<compile_context>
chip_gen: v5e
topology: v5e:2x2
jax: 0.10.0
libtpu: 0.0.40
codegen_flags: <defaults>
</compile_context>

<pallas_src>
import functools

import numpy as np
import jax
import jax.numpy as jnp
from jax.experimental import pallas as pl
from jax.experimental.pallas import tpu as pltpu


LANE = 128                      # lane width: pad all channel dims to this
_COMPUTE_DTYPE = jnp.bfloat16   # MXU-friendly operand dtype; accumulate in f32
_TARGET_PIXELS = 2048           # matmul M-rows per block (>=256 fills the MXU)


def _round_up(v, m):
    return (v + m - 1) // m * m


def _pad_axis(x, axis, target):
    cur = x.shape[axis]
    if cur == target:
        return x
    pads = [(0, 0)] * x.ndim
    pads[axis] = (0, target - cur)
    return jnp.pad(x, pads)


def _pick_vmem_limit():
    # Half the physical VMEM, capped at 64 MiB (v5e/v6e: 128 MiB, v7x: 64 MiB).
    try:
        cap = pltpu.get_tpu_info().vmem_capacity_bytes
    except Exception:
        cap = 64 * 1024 * 1024
    return int(min(cap // 2, 64 * 1024 * 1024))


_VMEM_LIMIT_BYTES = _pick_vmem_limit()


def _compiler_params(semantics):
    return pltpu.CompilerParams(dimension_semantics=semantics,
                                vmem_limit_bytes=_VMEM_LIMIT_BYTES)


def _pick_pixels(M, target=_TARGET_PIXELS):
    """Pixels (matmul rows) per block for the plain 1x1 conv."""
    if M <= target:
        return M
    best = M
    for tm in range(8, M, 8):              # sublane-aligned divisors of M
        if M % tm == 0 and tm <= target:
            best = tm
    return best


def _pick_rows(H, W, target=_TARGET_PIXELS):
    """Fine rows per block for the fused-upsample side conv: even, divides H,
    and keeps both the fine and the coarse block sublane-aligned."""
    if H * W <= target:
        return H
    best = H                                # whole image fallback
    for th in range(2, H, 2):
        if H % th == 0 and (th * W) % 32 == 0 and th * W <= target:
            best = th
    return best


# ----------------------------------------------------------------------------
# Kernel 1: 1x1 side conv (+bias).  Pure matmul over flattened pixels.
# ----------------------------------------------------------------------------
def pallas_side_conv(x_flat, w, b, tm):
    """x_flat: (N, M, Kp) bf16 with M = H*W; w: (Kp, Cp) bf16; b: (1, Cp) f32."""
    N, M, Kp = x_flat.shape
    Cp = w.shape[1]
    assert M % tm == 0

    def kernel(x_ref, w_ref, b_ref, o_ref):
        acc = jnp.dot(x_ref[...], w_ref[...],
                      preferred_element_type=jnp.float32) + b_ref[...]
        o_ref[...] = acc.astype(o_ref.dtype)

    return pl.pallas_call(
        kernel,
        out_shape=jax.ShapeDtypeStruct((N, M, Cp), x_flat.dtype),
        grid=(N, M // tm),
        in_specs=[
            pl.BlockSpec((None, tm, Kp), lambda n, m: (n, m, 0)),
            pl.BlockSpec((Kp, Cp), lambda n, m: (0, 0)),
            pl.BlockSpec((1, Cp), lambda n, m: (0, 0)),
        ],
        out_specs=pl.BlockSpec((None, tm, Cp), lambda n, m: (n, m, 0)),
        compiler_params=_compiler_params(("parallel", "parallel")),
    )(x_flat, w, b)


# ----------------------------------------------------------------------------
# Kernel 2: 1x1 side conv + bias + fused nearest-2x upsample of the coarse
# residual (FPN top-down merge).  The coarse block is selected by the index
# map; its W-expansion is one tiny 0/1 matmul per *coarse* row (amortised over
# the 2 fine rows that reuse it) and the H-expansion is a free concat -- the
# upsampled map never touches HBM.
# ----------------------------------------------------------------------------
def pallas_side_conv_upsample(x_flat, w, b, r_flat, H, W, Hc, Wc, th):
    """x_flat: (N, H*W, Kp); r_flat: (N, Hc*Wc, Cp) coarse map; th = fine rows
    per block (even, divides H)."""
    N, M, Kp = x_flat.shape
    Cp = w.shape[1]
    assert H == 2 * Hc and W == 2 * Wc and M == H * W
    assert th % 2 == 0 and H % th == 0
    TM = th * W
    thc = th // 2
    TMc = thc * Wc

    # 0/1 column-expansion matrix: (u @ r_row)[w, :] = r_row[w // 2, :].
    # Built from numpy -> baked into the program as a constant (no runtime op).
    u = jnp.asarray((np.arange(W)[:, None] // 2 == np.arange(Wc)[None, :])
                    .astype(np.float32), dtype=x_flat.dtype)

    def kernel(x_ref, r_ref, u_ref, w_ref, b_ref, o_ref):
        acc = jnp.dot(x_ref[...], w_ref[...],
                      preferred_element_type=jnp.float32) + b_ref[...]
        ups = []
        for c in range(thc):                               # once per coarse row
            r_rows = r_ref[c * Wc:(c + 1) * Wc, :]         # (Wc, Cp)
            ups.append(jnp.dot(u_ref[...], r_rows,
                               preferred_element_type=jnp.float32))  # (W, Cp)
        # H-expansion: each coarse row feeds two consecutive fine rows.
        up_block = jnp.concatenate([ups[g // 2] for g in range(th)], axis=0)
        o_ref[...] = (acc + up_block).astype(o_ref.dtype)

    return pl.pallas_call(
        kernel,
        out_shape=jax.ShapeDtypeStruct((N, M, Cp), x_flat.dtype),
        grid=(N, H // th),
        in_specs=[
            pl.BlockSpec((None, TM, Kp), lambda n, m: (n, m, 0)),
            pl.BlockSpec((None, TMc, Cp), lambda n, m: (n, m, 0)),
            pl.BlockSpec((W, Wc), lambda n, m: (0, 0)),
            pl.BlockSpec((Kp, Cp), lambda n, m: (0, 0)),
            pl.BlockSpec((1, Cp), lambda n, m: (0, 0)),
        ],
        out_specs=pl.BlockSpec((None, TM, Cp), lambda n, m: (n, m, 0)),
        compiler_params=_compiler_params(("parallel", "parallel")),
    )(x_flat, r_flat, u, w, b)


# ----------------------------------------------------------------------------
# Kernel 3: 3x3 conv, stride 1, padding 1 (merge convs).  Whole image per grid
# step; the padded image is flattened so each of the 9 taps is a contiguous
# window at a static offset and one big 2-D MXU matmul (M = H*Wp).
# ----------------------------------------------------------------------------
def pallas_conv3x3(x_nhwc, w9, b):
    """x_nhwc: (N,H,W,Ci) bf16; w9: (9,Ci,Cp) bf16; b: (1,Cp) f32.
    Returns (N, H, Wp, Cp) bf16; true pixels live at [:, :, :W, :]."""
    N, H, W, Ci = x_nhwc.shape
    Cp = w9.shape[-1]
    Wp = _round_up(W + 2, 8)            # lane/sublane-friendly padded width
    # halo: 1 row top / 2 rows bottom (extra zero row keeps every tap slice in
    # bounds), 1 col left / (Wp - W - 1) cols right.
    xp = jnp.pad(x_nhwc, ((0, 0), (1, 2), (1, Wp - W - 1), (0, 0)))
    R = (H + 3) * Wp
    x_flat = xp.reshape(N, R, Ci)
    Mo = H * Wp

    def kernel(x_ref, w_ref, b_ref, o_ref):
        acc = None
        for dy in range(3):
            for dx in range(3):
                off = dy * Wp + dx
                tap = x_ref[off:off + Mo, :]                  # (Mo, Ci) window
                part = jnp.dot(tap, w_ref[dy * 3 + dx],
                               preferred_element_type=jnp.float32)
                acc = part if acc is None else acc + part
        o_ref[...] = (acc + b_ref[...]).astype(o_ref.dtype)

    out_flat = pl.pallas_call(
        kernel,
        out_shape=jax.ShapeDtypeStruct((N, Mo, Cp), x_nhwc.dtype),
        grid=(N,),
        in_specs=[
            pl.BlockSpec((None, R, Ci), lambda n: (n, 0, 0)),
            pl.BlockSpec((9, Ci, Cp), lambda n: (0, 0, 0)),
            pl.BlockSpec((1, Cp), lambda n: (0, 0)),
        ],
        out_specs=pl.BlockSpec((None, Mo, Cp), lambda n: (n, 0, 0)),
        compiler_params=_compiler_params(("parallel",)),
    )(x_flat, w9, b)
    return out_flat.reshape(N, H, Wp, Cp)


# ----------------------------------------------------------------------------
# Kernel 4: 3x3 conv, stride 2, padding 1 (conv6).  The padded C5 is split in
# the wrapper into its four (row, col) parity phases (C5 is the smallest map),
# so every stride-2 tap is again a contiguous window -> 9 big 2-D matmuls.
# ----------------------------------------------------------------------------
def pallas_conv3x3_s2(x_nhwc, w9, b):
    """Returns (N, Ho, Wph, Cp) bf16; true pixels live at [:, :, :Wo, :]."""
    N, H, W, Ci = x_nhwc.shape
    Cp = w9.shape[-1]
    Ho = (H - 1) // 2 + 1
    Wo = (W - 1) // 2 + 1
    Hph = Ho + 2
    Wph = _round_up(Wo + 2, 8)
    xp = jnp.pad(x_nhwc, ((0, 0), (1, 2 * Hph - H), (1, 2 * Wph - W), (0, 0)))
    # phase (a, b) holds xp[2i + a, 2j + b]
    phases = [xp[:, a:a + 2 * Hph:2, b:b + 2 * Wph:2, :].reshape(N, Hph * Wph, Ci)
              for a in range(2) for b in range(2)]
    Rp = Hph * Wph
    Mo = Ho * Wph

    def kernel(p00, p01, p10, p11, w_ref, b_ref, o_ref):
        refs = (p00, p01, p10, p11)
        acc = None
        for dy in range(3):
            for dx in range(3):
                ref = refs[(dy % 2) * 2 + (dx % 2)]
                off = (dy // 2) * Wph + (dx // 2)
                part = jnp.dot(ref[off:off + Mo, :], w_ref[dy * 3 + dx],
                               preferred_element_type=jnp.float32)
                acc = part if acc is None else acc + part
        o_ref[...] = (acc + b_ref[...]).astype(o_ref.dtype)

    out_flat = pl.pallas_call(
        kernel,
        out_shape=jax.ShapeDtypeStruct((N, Mo, Cp), x_nhwc.dtype),
        grid=(N,),
        in_specs=[pl.BlockSpec((None, Rp, Ci), lambda n: (n, 0, 0))
                  for _ in range(4)] + [
            pl.BlockSpec((9, Ci, Cp), lambda n: (0, 0, 0)),
            pl.BlockSpec((1, Cp), lambda n: (0, 0)),
        ],
        out_specs=pl.BlockSpec((None, Mo, Cp), lambda n: (n, 0, 0)),
        compiler_params=_compiler_params(("parallel",)),
    )(*phases, w9, b)
    return out_flat.reshape(N, Ho, Wph, Cp)


# ----------------------------------------------------------------------------
# One-time parameter prep (hoisted out of the per-call path per the review).
# ----------------------------------------------------------------------------
def prepare_fpn_params(params, out_ch):
    cdt = _COMPUTE_DTYPE
    Cp = _round_up(out_ch, LANE)

    def prep_w1(w):                      # (Cin, Cout) -> (Kp, Cp) bf16
        w = _pad_axis(w, 0, _round_up(w.shape[0], LANE))
        return _pad_axis(w, 1, Cp).astype(cdt)

    def prep_w3(w):                      # (3,3,Cin,Cout) -> (9, Kp, Cp) bf16
        w = _pad_axis(w, 2, _round_up(w.shape[2], LANE))
        w = _pad_axis(w, 3, Cp)
        return w.reshape(9, w.shape[2], Cp).astype(cdt)

    def prep_b(b):                       # (Cout,) -> (1, Cp) f32 (zero-padded)
        return _pad_axis(b, 0, Cp).astype(jnp.float32).reshape(1, Cp)

    out = {}
    for lvl in ("3", "4", "5"):
        out[f"side{lvl}_w"] = prep_w1(params[f"side{lvl}_w"])
        out[f"side{lvl}_b"] = prep_b(params[f"side{lvl}_b"])
        out[f"merge{lvl}_w"] = prep_w3(params[f"merge{lvl}_w"])
        out[f"merge{lvl}_b"] = prep_b(params[f"merge{lvl}_b"])
    out["conv6_w"] = prep_w3(params["conv6_w"])
    out["conv6_b"] = prep_b(params["conv6_b"])
    return out


# ----------------------------------------------------------------------------
# FPN forward (matches the PyTorch module's dataflow).
# ----------------------------------------------------------------------------
def fpn_forward(prepped, C3, C4, C5, *, out_ch):
    cdt = _COMPUTE_DTYPE
    Cp = prepped["side5_w"].shape[1]

    def prep_x(x):                       # NCHW -> NHWC, lane-pad channels, bf16
        x = jnp.transpose(x, (0, 2, 3, 1))
        return _pad_axis(x, -1, _round_up(x.shape[-1], LANE)).astype(cdt)

    c3, c4, c5 = prep_x(C3), prep_x(C4), prep_x(C5)
    N = c3.shape[0]
    H3, W3 = c3.shape[1:3]
    H4, W4 = c4.shape[1:3]
    H5, W5 = c5.shape[1:3]
    assert H3 == 2 * H4 and W3 == 2 * W4 and H4 == 2 * H5 and W4 == 2 * W5, \
        "FPN levels must halve spatially (nn.Upsample(scale_factor=2) contract)"

    flat = lambda t: t.reshape(N, t.shape[1] * t.shape[2], t.shape[3])

    # ---- P5 ----
    p5_side = pallas_side_conv(flat(c5), prepped["side5_w"], prepped["side5_b"],
                               tm=_pick_pixels(H5 * W5))
    p5 = pallas_conv3x3(p5_side.reshape(N, H5, W5, Cp),
                        prepped["merge5_w"], prepped["merge5_b"])

    # ---- P4 ---- (2x upsample of p5_side fused into the side conv)
    p4_side = pallas_side_conv_upsample(flat(c4), prepped["side4_w"],
                                        prepped["side4_b"], p5_side,
                                        H4, W4, H5, W5, _pick_rows(H4, W4))
    p4 = pallas_conv3x3(p4_side.reshape(N, H4, W4, Cp),
                        prepped["merge4_w"], prepped["merge4_b"])

    # ---- P3 ---- (2x upsample of p4_side fused into the side conv)
    p3_side = pallas_side_conv_upsample(flat(c3), prepped["side3_w"],
                                        prepped["side3_b"], p4_side,
                                        H3, W3, H4, W4, _pick_rows(H3, W3))
    p3 = pallas_conv3x3(p3_side.reshape(N, H3, W3, Cp),
                        prepped["merge3_w"], prepped["merge3_b"])

    # ---- P6 ---- (3x3 stride 2 on C5)
    p6 = pallas_conv3x3_s2(c5, prepped["conv6_w"], prepped["conv6_b"])
    Wo6 = (W5 - 1) // 2 + 1

    def finalize(t, w_true):             # drop pad cols / channels, NCHW f32
        return jnp.transpose(t[:, :, :w_true, :out_ch], (0, 3, 1, 2)
                             ).astype(jnp.float32)

    return (finalize(p3, W3), finalize(p4, W4), finalize(p5, W5),
            finalize(p6, Wo6))


# ----------------------------------------------------------------------------
# Deterministic parameter init (xavier_normal_ weights, zero biases).
# ----------------------------------------------------------------------------
def _xavier_normal(key, shape):
    if len(shape) == 2:                       # 1x1 conv stored as (Cin, Cout)
        fan_in, fan_out = shape
    else:                                     # (kh, kw, Cin, Cout)
        kh, kw, cin, cout = shape
        fan_in, fan_out = kh * kw * cin, kh * kw * cout
    std = (2.0 / (fan_in + fan_out)) ** 0.5
    return jax.random.normal(key, shape, jnp.float32) * std


def make_fpn_params(key, sizes, out_ch):
    s3, s4, s5 = sizes
    ks = jax.random.split(key, 7)
    z = lambda: jnp.zeros((out_ch,), jnp.float32)
    return {
        "side5_w": _xavier_normal(ks[0], (s5, out_ch)),        "side5_b": z(),
        "merge5_w": _xavier_normal(ks[1], (3, 3, out_ch, out_ch)), "merge5_b": z(),
        "side4_w": _xavier_normal(ks[2], (s4, out_ch)),        "side4_b": z(),
        "merge4_w": _xavier_normal(ks[3], (3, 3, out_ch, out_ch)), "merge4_b": z(),
        "side3_w": _xavier_normal(ks[4], (s3, out_ch)),        "side3_b": z(),
        "merge3_w": _xavier_normal(ks[5], (3, 3, out_ch, out_ch)), "merge3_b": z(),
        "conv6_w": _xavier_normal(ks[6], (3, 3, s5, out_ch)),  "conv6_b": z(),
    }


# ----------------------------------------------------------------------------
# Pure-JAX reference (lax.conv) mirroring the bf16-operand / f32-accum
# numerics, for correctness checking.
# ----------------------------------------------------------------------------
def fpn_reference(params, C3, C4, C5):
    cdt = _COMPUTE_DTYPE
    nhwc = lambda x: jnp.transpose(x, (0, 2, 3, 1)).astype(cdt)
    c3, c4, c5 = nhwc(C3), nhwc(C4), nhwc(C5)

    def conv(x, w, b, stride=1, pad=0):
        y = jax.lax.conv_general_dilated(
            x, w.astype(cdt), (stride, stride), [(pad, pad), (pad, pad)],
            dimension_numbers=("NHWC", "HWIO", "NHWC"),
            preferred_element_type=jnp.float32)
        return y + b.astype(jnp.float32)

    as4d = lambda w: w.reshape(1, 1, *w.shape)
    up2 = lambda t: jnp.repeat(jnp.repeat(t, 2, axis=1), 2, axis=2)

    p5_side = conv(c5, as4d(params["side5_w"]), params["side5_b"]).astype(cdt)
    p5 = conv(p5_side, params["merge5_w"], params["merge5_b"], pad=1)
    p4_side = (conv(c4, as4d(params["side4_w"]), params["side4_b"])
               + up2(p5_side).astype(jnp.float32)).astype(cdt)
    p4 = conv(p4_side, params["merge4_w"], params["merge4_b"], pad=1)
    p3_side = (conv(c3, as4d(params["side3_w"]), params["side3_b"])
               + up2(p4_side).astype(jnp.float32)).astype(cdt)
    p3 = conv(p3_side, params["merge3_w"], params["merge3_b"], pad=1)
    p6 = conv(c5, params["conv6_w"], params["conv6_b"], stride=2, pad=1)

    nchw = lambda t: jnp.transpose(t, (0, 3, 1, 2))
    return nchw(p3), nchw(p4), nchw(p5), nchw(p6)


if __name__ == "__main__":
    key = jax.random.PRNGKey(0)
    k_c3, k_c4, k_c5, k_params = jax.random.split(key, 4)

    sizes = (4, 8, 16)      # channels of (C3, C4, C5)
    out_ch = 8
    N = 2
    C3 = jax.random.normal(k_c3, (N, sizes[0], 16, 16), jnp.float32)
    C4 = jax.random.normal(k_c4, (N, sizes[1], 8, 8), jnp.float32)
    C5 = jax.random.normal(k_c5, (N, sizes[2], 4, 4), jnp.float32)

    params = make_fpn_params(k_params, sizes, out_ch)
    prepped = prepare_fpn_params(params, out_ch)      # hoisted, once per model

    fwd = jax.jit(functools.partial(fpn_forward, out_ch=out_ch))
    P3, P4, P5, P6 = fwd(prepped, C3, C4, C5)
    jax.block_until_ready((P3, P4, P5, P6))

    assert P3.shape == (N, out_ch, 16, 16)
    assert P4.shape == (N, out_ch, 8, 8)
    assert P5.shape == (N, out_ch, 4, 4)
    assert P6.shape == (N, out_ch, 2, 2)

    R3, R4, R5, R6 = jax.jit(fpn_reference)(params, C3, C4, C5)
    for got, ref in ((P3, R3), (P4, R4), (P5, R5), (P6, R6)):
        err = float(jnp.max(jnp.abs(got - ref)))
        assert jnp.allclose(got, ref, atol=2e-2, rtol=2e-2), err

    print("KERNEL_OK")
</pallas_src>

<mosaic_0001>
module attributes {stable_mosaic.version = 11 : i64} {
  func.func @kernel(%arg0: i32, %arg1: memref<1x32x128xbf16, #tpu.memory_space<vmem>>, %arg2: memref<1x32x128xbf16, #tpu.memory_space<vmem>>, %arg3: memref<1x32x128xbf16, #tpu.memory_space<vmem>>, %arg4: memref<1x32x128xbf16, #tpu.memory_space<vmem>>, %arg5: memref<9x128x128xbf16, #tpu.memory_space<vmem>>, %arg6: memref<1x128xf32, #tpu.memory_space<vmem>>, %arg7: memref<1x16x128xbf16, #tpu.memory_space<vmem>>) attributes {dimension_semantics = [#tpu.dimension_semantics<parallel>], iteration_bounds = array<i64: 2>, scalar_prefetch = 0 : i64, scratch_operands = 0 : i64, tpu.core_type = #tpu.core_type<tc>, window_params = [{transform_indices = @transform_0, window_bounds = array<i64: 1, 32, 128>}, {transform_indices = @transform_1, window_bounds = array<i64: 1, 32, 128>}, {transform_indices = @transform_2, window_bounds = array<i64: 1, 32, 128>}, {transform_indices = @transform_3, window_bounds = array<i64: 1, 32, 128>}, {pipeline_mode = #tpu.pipeline_mode<synchronous>, transform_indices = @transform_4, window_bounds = array<i64: 9, 128, 128>}, {pipeline_mode = #tpu.pipeline_mode<synchronous>, transform_indices = @transform_5, window_bounds = array<i64: 1, 128>}, {transform_indices = @transform_6, window_bounds = array<i64: 1, 16, 128>}]} {
    %c0 = arith.constant 0 : index
    %c0_0 = arith.constant 0 : index
    %c0_1 = arith.constant 0 : index
    %0 = vector.load %arg1[%c0, %c0_0, %c0_1] : memref<1x32x128xbf16, #tpu.memory_space<vmem>>, vector<1x16x128xbf16>
    %1 = vector.shape_cast %0 : vector<1x16x128xbf16> to vector<16x128xbf16>
    %c0_2 = arith.constant 0 : index
    %c0_3 = arith.constant 0 : index
    %c0_4 = arith.constant 0 : index
    %2 = vector.load %arg5[%c0_2, %c0_3, %c0_4] : memref<9x128x128xbf16, #tpu.memory_space<vmem>>, vector<1x128x128xbf16>
    %3 = vector.shape_cast %2 : vector<1x128x128xbf16> to vector<128x128xbf16>
    %cst = arith.constant dense<0.000000e+00> : vector<16x128xf32>
    %4 = tpu.matmul %1, %3, %cst {dimension_numbers = #tpu.dot_dimension_numbers<[1], [0], [0], [1], [0, 0, 1, 1], [], []>} : vector<16x128xbf16>, vector<128x128xbf16>, vector<16x128xf32> -> vector<16x128xf32>
    %c0_5 = arith.constant 0 : index
    %c0_6 = arith.constant 0 : index
    %c0_7 = arith.constant 0 : index
    %5 = vector.load %arg2[%c0_5, %c0_6, %c0_7] : memref<1x32x128xbf16, #tpu.memory_space<vmem>>, vector<1x16x128xbf16>
    %6 = vector.shape_cast %5 : vector<1x16x128xbf16> to vector<16x128xbf16>
    %c1 = arith.constant 1 : index
    %c0_8 = arith.constant 0 : index
    %c0_9 = arith.constant 0 : index
    %7 = vector.load %arg5[%c1, %c0_8, %c0_9] : memref<9x128x128xbf16, #tpu.memory_space<vmem>>, vector<1x128x128xbf16>
    %8 = vector.shape_cast %7 : vector<1x128x128xbf16> to vector<128x128xbf16>
    %cst_10 = arith.constant dense<0.000000e+00> : vector<16x128xf32>
    %9 = tpu.matmul %6, %8, %cst_10 {dimension_numbers = #tpu.dot_dimension_numbers<[1], [0], [0], [1], [0, 0, 1, 1], [], []>} : vector<16x128xbf16>, vector<128x128xbf16>, vector<16x128xf32> -> vector<16x128xf32>
    %10 = arith.addf %4, %9 : vector<16x128xf32>
    %c0_11 = arith.constant 0 : index
    %c1_12 = arith.constant 1 : index
    %c0_13 = arith.constant 0 : index
    %11 = vector.load %arg1[%c0_11, %c1_12, %c0_13] : memref<1x32x128xbf16, #tpu.memory_space<vmem>>, vector<1x16x128xbf16>
    %12 = vector.shape_cast %11 : vector<1x16x128xbf16> to vector<16x128xbf16>
    %c2 = arith.constant 2 : index
    %c0_14 = arith.constant 0 : index
    %c0_15 = arith.constant 0 : index
    %13 = vector.load %arg5[%c2, %c0_14, %c0_15] : memref<9x128x128xbf16, #tpu.memory_space<vmem>>, vector<1x128x128xbf16>
    %14 = vector.shape_cast %13 : vector<1x128x128xbf16> to vector<128x128xbf16>
    %cst_16 = arith.constant dense<0.000000e+00> : vector<16x128xf32>
    %15 = tpu.matmul %12, %14, %cst_16 {dimension_numbers = #tpu.dot_dimension_numbers<[1], [0], [0], [1], [0, 0, 1, 1], [], []>} : vector<16x128xbf16>, vector<128x128xbf16>, vector<16x128xf32> -> vector<16x128xf32>
    %16 = arith.addf %10, %15 : vector<16x128xf32>
    %c0_17 = arith.constant 0 : index
    %c0_18 = arith.constant 0 : index
    %c0_19 = arith.constant 0 : index
    %17 = vector.load %arg3[%c0_17, %c0_18, %c0_19] : memref<1x32x128xbf16, #tpu.memory_space<vmem>>, vector<1x16x128xbf16>
    %18 = vector.shape_cast %17 : vector<1x16x128xbf16> to vector<16x128xbf16>
    %c3 = arith.constant 3 : index
    %c0_20 = arith.constant 0 : index
    %c0_21 = arith.constant 0 : index
    %19 = vector.load %arg5[%c3, %c0_20, %c0_21] : memref<9x128x128xbf16, #tpu.memory_space<vmem>>, vector<1x128x128xbf16>
    %20 = vector.shape_cast %19 : vector<1x128x128xbf16> to vector<128x128xbf16>
    %cst_22 = arith.constant dense<0.000000e+00> : vector<16x128xf32>
    %21 = tpu.matmul %18, %20, %cst_22 {dimension_numbers = #tpu.dot_dimension_numbers<[1], [0], [0], [1], [0, 0, 1, 1], [], []>} : vector<16x128xbf16>, vector<128x128xbf16>, vector<16x128xf32> -> vector<16x128xf32>
    %22 = arith.addf %16, %21 : vector<16x128xf32>
    %c0_23 = arith.constant 0 : index
    %c0_24 = arith.constant 0 : index
    %c0_25 = arith.constant 0 : index
    %23 = vector.load %arg4[%c0_23, %c0_24, %c0_25] : memref<1x32x128xbf16, #tpu.memory_space<vmem>>, vector<1x16x128xbf16>
    %24 = vector.shape_cast %23 : vector<1x16x128xbf16> to vector<16x128xbf16>
    %c4 = arith.constant 4 : index
    %c0_26 = arith.constant 0 : index
    %c0_27 = arith.constant 0 : index
    %25 = vector.load %arg5[%c4, %c0_26, %c0_27] : memref<9x128x128xbf16, #tpu.memory_space<vmem>>, vector<1x128x128xbf16>
    %26 = vector.shape_cast %25 : vector<1x128x128xbf16> to vector<128x128xbf16>
    %cst_28 = arith.constant dense<0.000000e+00> : vector<16x128xf32>
    %27 = tpu.matmul %24, %26, %cst_28 {dimension_numbers = #tpu.dot_dimension_numbers<[1], [0], [0], [1], [0, 0, 1, 1], [], []>} : vector<16x128xbf16>, vector<128x128xbf16>, vector<16x128xf32> -> vector<16x128xf32>
    %28 = arith.addf %22, %27 : vector<16x128xf32>
    %c0_29 = arith.constant 0 : index
    %c1_30 = arith.constant 1 : index
    %c0_31 = arith.constant 0 : index
    %29 = vector.load %arg3[%c0_29, %c1_30, %c0_31] : memref<1x32x128xbf16, #tpu.memory_space<vmem>>, vector<1x16x128xbf16>
    %30 = vector.shape_cast %29 : vector<1x16x128xbf16> to vector<16x128xbf16>
    %c5 = arith.constant 5 : index
    %c0_32 = arith.constant 0 : index
    %c0_33 = arith.constant 0 : index
    %31 = vector.load %arg5[%c5, %c0_32, %c0_33] : memref<9x128x128xbf16, #tpu.memory_space<vmem>>, vector<1x128x128xbf16>
    %32 = vector.shape_cast %31 : vector<1x128x128xbf16> to vector<128x128xbf16>
    %cst_34 = arith.constant dense<0.000000e+00> : vector<16x128xf32>
    %33 = tpu.matmul %30, %32, %cst_34 {dimension_numbers = #tpu.dot_dimension_numbers<[1], [0], [0], [1], [0, 0, 1, 1], [], []>} : vector<16x128xbf16>, vector<128x128xbf16>, vector<16x128xf32> -> vector<16x128xf32>
    %34 = arith.addf %28, %33 : vector<16x128xf32>
    %c0_35 = arith.constant 0 : index
    %c8 = arith.constant 8 : index
    %c0_36 = arith.constant 0 : index
    %35 = vector.load %arg1[%c0_35, %c8, %c0_36] : memref<1x32x128xbf16, #tpu.memory_space<vmem>>, vector<1x16x128xbf16>
    %36 = vector.shape_cast %35 : vector<1x16x128xbf16> to vector<16x128xbf16>
    %c6 = arith.constant 6 : index
    %c0_37 = arith.constant 0 : index
    %c0_38 = arith.constant 0 : index
    %37 = vector.load %arg5[%c6, %c0_37, %c0_38] : memref<9x128x128xbf16, #tpu.memory_space<vmem>>, vector<1x128x128xbf16>
    %38 = vector.shape_cast %37 : vector<1x128x128xbf16> to vector<128x128xbf16>
    %cst_39 = arith.constant dense<0.000000e+00> : vector<16x128xf32>
    %39 = tpu.matmul %36, %38, %cst_39 {dimension_numbers = #tpu.dot_dimension_numbers<[1], [0], [0], [1], [0, 0, 1, 1], [], []>} : vector<16x128xbf16>, vector<128x128xbf16>, vector<16x128xf32> -> vector<16x128xf32>
    %40 = arith.addf %34, %39 : vector<16x128xf32>
    %c0_40 = arith.constant 0 : index
    %c8_41 = arith.constant 8 : index
    %c0_42 = arith.constant 0 : index
    %41 = vector.load %arg2[%c0_40, %c8_41, %c0_42] : memref<1x32x128xbf16, #tpu.memory_space<vmem>>, vector<1x16x128xbf16>
    %42 = vector.shape_cast %41 : vector<1x16x128xbf16> to vector<16x128xbf16>
    %c7 = arith.constant 7 : index
    %c0_43 = arith.constant 0 : index
    %c0_44 = arith.constant 0 : index
    %43 = vector.load %arg5[%c7, %c0_43, %c0_44] : memref<9x128x128xbf16, #tpu.memory_space<vmem>>, vector<1x128x128xbf16>
    %44 = vector.shape_cast %43 : vector<1x128x128xbf16> to vector<128x128xbf16>
    %cst_45 = arith.constant dense<0.000000e+00> : vector<16x128xf32>
    %45 = tpu.matmul %42, %44, %cst_45 {dimension_numbers = #tpu.dot_dimension_numbers<[1], [0], [0], [1], [0, 0, 1, 1], [], []>} : vector<16x128xbf16>, vector<128x128xbf16>, vector<16x128xf32> -> vector<16x128xf32>
    %46 = arith.addf %40, %45 : vector<16x128xf32>
    %c0_46 = arith.constant 0 : index
    %c9 = arith.constant 9 : index
    %c0_47 = arith.constant 0 : index
    %47 = vector.load %arg1[%c0_46, %c9, %c0_47] : memref<1x32x128xbf16, #tpu.memory_space<vmem>>, vector<1x16x128xbf16>
    %48 = vector.shape_cast %47 : vector<1x16x128xbf16> to vector<16x128xbf16>
    %c8_48 = arith.constant 8 : index
    %c0_49 = arith.constant 0 : index
    %c0_50 = arith.constant 0 : index
    %49 = vector.load %arg5[%c8_48, %c0_49, %c0_50] : memref<9x128x128xbf16, #tpu.memory_space<vmem>>, vector<1x128x128xbf16>
    %50 = vector.shape_cast %49 : vector<1x128x128xbf16> to vector<128x128xbf16>
    %cst_51 = arith.constant dense<0.000000e+00> : vector<16x128xf32>
    %51 = tpu.matmul %48, %50, %cst_51 {dimension_numbers = #tpu.dot_dimension_numbers<[1], [0], [0], [1], [0, 0, 1, 1], [], []>} : vector<16x128xbf16>, vector<128x128xbf16>, vector<16x128xf32> -> vector<16x128xf32>
    %52 = arith.addf %46, %51 : vector<16x128xf32>
    %c0_52 = arith.constant 0 : index
    %c0_53 = arith.constant 0 : index
    %53 = vector.load %arg6[%c0_52, %c0_53] : memref<1x128xf32, #tpu.memory_space<vmem>>, vector<1x128xf32>
    %54 = vector.broadcast %53 : vector<1x128xf32> to vector<16x128xf32>
    %55 = arith.addf %52, %54 : vector<16x128xf32>
    %56 = arith.truncf %55 : vector<16x128xf32> to vector<16x128xbf16>
    %c0_54 = arith.constant 0 : index
    %c0_55 = arith.constant 0 : index
    %c0_56 = arith.constant 0 : index
    %57 = vector.load %arg7[%c0_54, %c0_55, %c0_56] : memref<1x16x128xbf16, #tpu.memory_space<vmem>>, vector<1x16x128xbf16>
    %58 = vector.shape_cast %57 : vector<1x16x128xbf16> to vector<16x128xbf16>
    %59 = vector.shape_cast %56 : vector<16x128xbf16> to vector<1x16x128xbf16>
    tpu.vector_store %arg7[%c0_54, %c0_55, %c0_56], %59 {strides = array<i32>} : memref<1x16x128xbf16, #tpu.memory_space<vmem>>, vector<1x16x128xbf16>,
    return
  }
  func.func @transform_0(%arg0: i32) -> (i32, i32, i32) {
    %c0_i32 = arith.constant 0 : i32
    %c0_i32_0 = arith.constant 0 : i32
    %c0_i32_1 = arith.constant 0 : i32
    return %arg0, %c0_i32, %c0_i32_0 : i32, i32, i32
  }
  func.func @transform_1(%arg0: i32) -> (i32, i32, i32) {
    %c0_i32 = arith.constant 0 : i32
    %c0_i32_0 = arith.constant 0 : i32
    %c0_i32_1 = arith.constant 0 : i32
    return %arg0, %c0_i32, %c0_i32_0 : i32, i32, i32
  }
  func.func @transform_2(%arg0: i32) -> (i32, i32, i32) {
    %c0_i32 = arith.constant 0 : i32
    %c0_i32_0 = arith.constant 0 : i32
    %c0_i32_1 = arith.constant 0 : i32
    return %arg0, %c0_i32, %c0_i32_0 : i32, i32, i32
  }
  func.func @transform_3(%arg0: i32) -> (i32, i32, i32) {
    %c0_i32 = arith.constant 0 : i32
    %c0_i32_0 = arith.constant 0 : i32
    %c0_i32_1 = arith.constant 0 : i32
    return %arg0, %c0_i32, %c0_i32_0 : i32, i32, i32
  }
  func.func @transform_4(%arg0: i32) -> (i32, i32, i32) {
    %c0_i32 = arith.constant 0 : i32
    %c0_i32_0 = arith.constant 0 : i32
    %c0_i32_1 = arith.constant 0 : i32
    %c0_i32_2 = arith.constant 0 : i32
    return %c0_i32, %c0_i32_0, %c0_i32_1 : i32, i32, i32
  }
  func.func @transform_5(%arg0: i32) -> (i32, i32) {
    %c0_i32 = arith.constant 0 : i32
    %c0_i32_0 = arith.constant 0 : i32
    %c0_i32_1 = arith.constant 0 : i32
    return %c0_i32, %c0_i32_0 : i32, i32
  }
  func.func @transform_6(%arg0: i32) -> (i32, i32, i32) {
    %c0_i32 = arith.constant 0 : i32
    %c0_i32_0 = arith.constant 0 : i32
    %c0_i32_1 = arith.constant 0 : i32
    return %arg0, %c0_i32, %c0_i32_0 : i32, i32, i32
  }
}

module attributes {stable_mosaic.version = 11 : i64} {
  func.func @kernel(%arg0: i32, %arg1: i32, %arg2: memref<1x16x128xbf16, #tpu.memory_space<vmem>>, %arg3: memref<128x128xbf16, #tpu.memory_space<vmem>>, %arg4: memref<1x128xf32, #tpu.memory_space<vmem>>, %arg5: memref<1x16x128xbf16, #tpu.memory_space<vmem>>) attributes {dimension_semantics = [#tpu.dimension_semantics<parallel>, #tpu.dimension_semantics<parallel>], iteration_bounds = array<i64: 2, 1>, scalar_prefetch = 0 : i64, scratch_operands = 0 : i64, tpu.core_type = #tpu.core_type<tc>, window_params = [{transform_indices = @transform_0, window_bounds = array<i64: 1, 16, 128>}, {pipeline_mode = #tpu.pipeline_mode<synchronous>, transform_indices = @transform_1, window_bounds = array<i64: 128, 128>}, {pipeline_mode = #tpu.pipeline_mode<synchronous>, transform_indices = @transform_2, window_bounds = array<i64: 1, 128>}, {transform_indices = @transform_3, window_bounds = array<i64: 1, 16, 128>}]} {
    %c0 = arith.constant 0 : index
    %c0_0 = arith.constant 0 : index
    %c0_1 = arith.constant 0 : index
    %0 = vector.load %arg2[%c0, %c0_0, %c0_1] : memref<1x16x128xbf16, #tpu.memory_space<vmem>>, vector<1x16x128xbf16>
    %1 = vector.shape_cast %0 : vector<1x16x128xbf16> to vector<16x128xbf16>
    %c0_2 = arith.constant 0 : index
    %c0_3 = arith.constant 0 : index
    %2 = vector.load %arg3[%c0_2, %c0_3] : memref<128x128xbf16, #tpu.memory_space<vmem>>, vector<128x128xbf16>
    %cst = arith.constant dense<0.000000e+00> : vector<16x128xf32>
    %3 = tpu.matmul %1, %2, %cst {dimension_numbers = #tpu.dot_dimension_numbers<[1], [0], [0], [1], [0, 0, 1, 1], [], []>} : vector<16x128xbf16>, vector<128x128xbf16>, vector<16x128xf32> -> vector<16x128xf32>
    %c0_4 = arith.constant 0 : index
    %c0_5 = arith.constant 0 : index
    %4 = vector.load %arg4[%c0_4, %c0_5] : memref<1x128xf32, #tpu.memory_space<vmem>>, vector<1x128xf32>
    %5 = vector.broadcast %4 : vector<1x128xf32> to vector<16x128xf32>
    %6 = arith.addf %3, %5 : vector<16x128xf32>
    %7 = arith.truncf %6 : vector<16x128xf32> to vector<16x128xbf16>
    %c0_6 = arith.constant 0 : index
    %c0_7 = arith.constant 0 : index
    %c0_8 = arith.constant 0 : index
    %8 = vector.load %arg5[%c0_6, %c0_7, %c0_8] : memref<1x16x128xbf16, #tpu.memory_space<vmem>>, vector<1x16x128xbf16>
    %9 = vector.shape_cast %8 : vector<1x16x128xbf16> to vector<16x128xbf16>
    %10 = vector.shape_cast %7 : vector<16x128xbf16> to vector<1x16x128xbf16>
    tpu.vector_store %arg5[%c0_6, %c0_7, %c0_8], %10 {strides = array<i32>} : memref<1x16x128xbf16, #tpu.memory_space<vmem>>, vector<1x16x128xbf16>,
    return
  }
  func.func @transform_0(%arg0: i32, %arg1: i32) -> (i32, i32, i32) {
    %c0_i32 = arith.constant 0 : i32
    %c0_i32_0 = arith.constant 0 : i32
    return %arg0, %arg1, %c0_i32 : i32, i32, i32
  }
  func.func @transform_1(%arg0: i32, %arg1: i32) -> (i32, i32) {
    %c0_i32 = arith.constant 0 : i32
    %c0_i32_0 = arith.constant 0 : i32
    %c0_i32_1 = arith.constant 0 : i32
    return %c0_i32, %c0_i32_0 : i32, i32
  }
  func.func @transform_2(%arg0: i32, %arg1: i32) -> (i32, i32) {
    %c0_i32 = arith.constant 0 : i32
    %c0_i32_0 = arith.constant 0 : i32
    %c0_i32_1 = arith.constant 0 : i32
    return %c0_i32, %c0_i32_0 : i32, i32
  }
  func.func @transform_3(%arg0: i32, %arg1: i32) -> (i32, i32, i32) {
    %c0_i32 = arith.constant 0 : i32
    %c0_i32_0 = arith.constant 0 : i32
    return %arg0, %arg1, %c0_i32 : i32, i32, i32
  }
}

module attributes {stable_mosaic.version = 11 : i64} {
  func.func @kernel(%arg0: i32, %arg1: i32, %arg2: memref<1x64x128xbf16, #tpu.memory_space<vmem>>, %arg3: memref<1x16x128xbf16, #tpu.memory_space<vmem>>, %arg4: memref<8x4xbf16, #tpu.memory_space<vmem>>, %arg5: memref<128x128xbf16, #tpu.memory_space<vmem>>, %arg6: memref<1x128xf32, #tpu.memory_space<vmem>>, %arg7: memref<1x64x128xbf16, #tpu.memory_space<vmem>>) attributes {dimension_semantics = [#tpu.dimension_semantics<parallel>, #tpu.dimension_semantics<parallel>], iteration_bounds = array<i64: 2, 1>, scalar_prefetch = 0 : i64, scratch_operands = 0 : i64, tpu.core_type = #tpu.core_type<tc>, window_params = [{transform_indices = @transform_0, window_bounds = array<i64: 1, 64, 128>}, {transform_indices = @transform_1, window_bounds = array<i64: 1, 16, 128>}, {pipeline_mode = #tpu.pipeline_mode<synchronous>, transform_indices = @transform_2, window_bounds = array<i64: 8, 4>}, {pipeline_mode = #tpu.pipeline_mode<synchronous>, transform_indices = @transform_3, window_bounds = array<i64: 128, 128>}, {pipeline_mode = #tpu.pipeline_mode<synchronous>, transform_indices = @transform_4, window_bounds = array<i64: 1, 128>}, {transform_indices = @transform_5, window_bounds = array<i64: 1, 64, 128>}]} {
    %c0 = arith.constant 0 : index
    %c0_0 = arith.constant 0 : index
    %c0_1 = arith.constant 0 : index
    %0 = vector.load %arg2[%c0, %c0_0, %c0_1] : memref<1x64x128xbf16, #tpu.memory_space<vmem>>, vector<1x64x128xbf16>
    %1 = vector.shape_cast %0 : vector<1x64x128xbf16> to vector<64x128xbf16>
    %c0_2 = arith.constant 0 : index
    %c0_3 = arith.constant 0 : index
    %2 = vector.load %arg5[%c0_2, %c0_3] : memref<128x128xbf16, #tpu.memory_space<vmem>>, vector<128x128xbf16>
    %cst = arith.constant dense<0.000000e+00> : vector<64x128xf32>
    %3 = tpu.matmul %1, %2, %cst {dimension_numbers = #tpu.dot_dimension_numbers<[1], [0], [0], [1], [0, 0, 1, 1], [], []>} : vector<64x128xbf16>, vector<128x128xbf16>, vector<64x128xf32> -> vector<64x128xf32>
    %c0_4 = arith.constant 0 : index
    %c0_5 = arith.constant 0 : index
    %4 = vector.load %arg6[%c0_4, %c0_5] : memref<1x128xf32, #tpu.memory_space<vmem>>, vector<1x128xf32>
    %5 = vector.broadcast %4 : vector<1x128xf32> to vector<64x128xf32>
    %6 = arith.addf %3, %5 : vector<64x128xf32>
    %c0_6 = arith.constant 0 : index
    %c0_7 = arith.constant 0 : index
    %c0_8 = arith.constant 0 : index
    %7 = vector.load %arg3[%c0_6, %c0_7, %c0_8] : memref<1x16x128xbf16, #tpu.memory_space<vmem>>, vector<1x4x128xbf16>
    %8 = vector.shape_cast %7 : vector<1x4x128xbf16> to vector<4x128xbf16>
    %c0_9 = arith.constant 0 : index
    %c0_10 = arith.constant 0 : index
    %9 = vector.load %arg4[%c0_9, %c0_10] : memref<8x4xbf16, #tpu.memory_space<vmem>>, vector<8x4xbf16>
    %cst_11 = arith.constant dense<0.000000e+00> : vector<8x128xf32>
    %10 = tpu.matmul %9, %8, %cst_11 {dimension_numbers = #tpu.dot_dimension_numbers<[1], [0], [0], [1], [0, 0, 1, 1], [], []>} : vector<8x4xbf16>, vector<4x128xbf16>, vector<8x128xf32> -> vector<8x128xf32>
    %c0_12 = arith.constant 0 : index
    %c4 = arith.constant 4 : index
    %c0_13 = arith.constant 0 : index
    %11 = vector.load %arg3[%c0_12, %c4, %c0_13] : memref<1x16x128xbf16, #tpu.memory_space<vmem>>, vector<1x4x128xbf16>
    %12 = vector.shape_cast %11 : vector<1x4x128xbf16> to vector<4x128xbf16>
    %c0_14 = arith.constant 0 : index
    %c0_15 = arith.constant 0 : index
    %13 = vector.load %arg4[%c0_14, %c0_15] : memref<8x4xbf16, #tpu.memory_space<vmem>>, vector<8x4xbf16>
    %cst_16 = arith.constant dense<0.000000e+00> : vector<8x128xf32>
    %14 = tpu.matmul %13, %12, %cst_16 {dimension_numbers = #tpu.dot_dimension_numbers<[1], [0], [0], [1], [0, 0, 1, 1], [], []>} : vector<8x4xbf16>, vector<4x128xbf16>, vector<8x128xf32> -> vector<8x128xf32>
    %c0_17 = arith.constant 0 : index
    %c8 = arith.constant 8 : index
    %c0_18 = arith.constant 0 : index
    %15 = vector.load %arg3[%c0_17, %c8, %c0_18] : memref<1x16x128xbf16, #tpu.memory_space<vmem>>, vector<1x4x128xbf16>
    %16 = vector.shape_cast %15 : vector<1x4x128xbf16> to vector<4x128xbf16>
    %c0_19 = arith.constant 0 : index
    %c0_20 = arith.constant 0 : index
    %17 = vector.load %arg4[%c0_19, %c0_20] : memref<8x4xbf16, #tpu.memory_space<vmem>>, vector<8x4xbf16>
    %cst_21 = arith.constant dense<0.000000e+00> : vector<8x128xf32>
    %18 = tpu.matmul %17, %16, %cst_21 {dimension_numbers = #tpu.dot_dimension_numbers<[1], [0], [0], [1], [0, 0, 1, 1], [], []>} : vector<8x4xbf16>, vector<4x128xbf16>, vector<8x128xf32> -> vector<8x128xf32>
    %c0_22 = arith.constant 0 : index
    %c12 = arith.constant 12 : index
    %c0_23 = arith.constant 0 : index
    %19 = vector.load %arg3[%c0_22, %c12, %c0_23] : memref<1x16x128xbf16, #tpu.memory_space<vmem>>, vector<1x4x128xbf16>
    %20 = vector.shape_cast %19 : vector<1x4x128xbf16> to vector<4x128xbf16>
    %c0_24 = arith.constant 0 : index
    %c0_25 = arith.constant 0 : index
    %21 = vector.load %arg4[%c0_24, %c0_25] : memref<8x4xbf16, #tpu.memory_space<vmem>>, vector<8x4xbf16>
    %cst_26 = arith.constant dense<0.000000e+00> : vector<8x128xf32>
    %22 = tpu.matmul %21, %20, %cst_26 {dimension_numbers = #tpu.dot_dimension_numbers<[1], [0], [0], [1], [0, 0, 1, 1], [], []>} : vector<8x4xbf16>, vector<4x128xbf16>, vector<8x128xf32> -> vector<8x128xf32>
    %23 = tpu.concatenate %10, %10, %14, %14, %18, %18, %22, %22 in 0 : vector<8x128xf32>, vector<8x128xf32>, vector<8x128xf32>, vector<8x128xf32>, vector<8x128xf32>, vector<8x128xf32>, vector<8x128xf32>, vector<8x128xf32> -> vector<64x128xf32>
    %24 = arith.addf %6, %23 : vector<64x128xf32>
    %25 = arith.truncf %24 : vector<64x128xf32> to vector<64x128xbf16>
    %c0_27 = arith.constant 0 : index
    %c0_28 = arith.constant 0 : index
    %c0_29 = arith.constant 0 : index
    %26 = vector.load %arg7[%c0_27, %c0_28, %c0_29] : memref<1x64x128xbf16, #tpu.memory_space<vmem>>, vector<1x64x128xbf16>
    %27 = vector.shape_cast %26 : vector<1x64x128xbf16> to vector<64x128xbf16>
    %28 = vector.shape_cast %25 : vector<64x128xbf16> to vector<1x64x128xbf16>
    tpu.vector_store %arg7[%c0_27, %c0_28, %c0_29], %28 {strides = array<i32>} : memref<1x64x128xbf16, #tpu.memory_space<vmem>>, vector<1x64x128xbf16>,
    return
  }
  func.func @transform_0(%arg0: i32, %arg1: i32) -> (i32, i32, i32) {
    %c0_i32 = arith.constant 0 : i32
    %c0_i32_0 = arith.constant 0 : i32
    return %arg0, %arg1, %c0_i32 : i32, i32, i32
  }
  func.func @transform_1(%arg0: i32, %arg1: i32) -> (i32, i32, i32) {
    %c0_i32 = arith.constant 0 : i32
    %c0_i32_0 = arith.constant 0 : i32
    return %arg0, %arg1, %c0_i32 : i32, i32, i32
  }
  func.func @transform_2(%arg0: i32, %arg1: i32) -> (i32, i32) {
    %c0_i32 = arith.constant 0 : i32
    %c0_i32_0 = arith.constant 0 : i32
    %c0_i32_1 = arith.constant 0 : i32
    return %c0_i32, %c0_i32_0 : i32, i32
  }
  func.func @transform_3(%arg0: i32, %arg1: i32) -> (i32, i32) {
    %c0_i32 = arith.constant 0 : i32
    %c0_i32_0 = arith.constant 0 : i32
    %c0_i32_1 = arith.constant 0 : i32
    return %c0_i32, %c0_i32_0 : i32, i32
  }
  func.func @transform_4(%arg0: i32, %arg1: i32) -> (i32, i32) {
    %c0_i32 = arith.constant 0 : i32
    %c0_i32_0 = arith.constant 0 : i32
    %c0_i32_1 = arith.constant 0 : i32
    return %c0_i32, %c0_i32_0 : i32, i32
  }
  func.func @transform_5(%arg0: i32, %arg1: i32) -> (i32, i32, i32) {
    %c0_i32 = arith.constant 0 : i32
    %c0_i32_0 = arith.constant 0 : i32
    return %arg0, %arg1, %c0_i32 : i32, i32, i32
  }
}

module attributes {stable_mosaic.version = 11 : i64} {
  func.func @kernel(%arg0: i32, %arg1: i32, %arg2: memref<1x256x128xbf16, #tpu.memory_space<vmem>>, %arg3: memref<1x64x128xbf16, #tpu.memory_space<vmem>>, %arg4: memref<16x8xbf16, #tpu.memory_space<vmem>>, %arg5: memref<128x128xbf16, #tpu.memory_space<vmem>>, %arg6: memref<1x128xf32, #tpu.memory_space<vmem>>, %arg7: memref<1x256x128xbf16, #tpu.memory_space<vmem>>) attributes {dimension_semantics = [#tpu.dimension_semantics<parallel>, #tpu.dimension_semantics<parallel>], iteration_bounds = array<i64: 2, 1>, scalar_prefetch = 0 : i64, scratch_operands = 0 : i64, tpu.core_type = #tpu.core_type<tc>, window_params = [{transform_indices = @transform_0, window_bounds = array<i64: 1, 256, 128>}, {transform_indices = @transform_1, window_bounds = array<i64: 1, 64, 128>}, {pipeline_mode = #tpu.pipeline_mode<synchronous>, transform_indices = @transform_2, window_bounds = array<i64: 16, 8>}, {pipeline_mode = #tpu.pipeline_mode<synchronous>, transform_indices = @transform_3, window_bounds = array<i64: 128, 128>}, {pipeline_mode = #tpu.pipeline_mode<synchronous>, transform_indices = @transform_4, window_bounds = array<i64: 1, 128>}, {transform_indices = @transform_5, window_bounds = array<i64: 1, 256, 128>}]} {
    %c0 = arith.constant 0 : index
    %c0_0 = arith.constant 0 : index
    %c0_1 = arith.constant 0 : index
    %0 = vector.load %arg2[%c0, %c0_0, %c0_1] : memref<1x256x128xbf16, #tpu.memory_space<vmem>>, vector<1x256x128xbf16>
    %1 = vector.shape_cast %0 : vector<1x256x128xbf16> to vector<256x128xbf16>
    %c0_2 = arith.constant 0 : index
    %c0_3 = arith.constant 0 : index
    %2 = vector.load %arg5[%c0_2, %c0_3] : memref<128x128xbf16, #tpu.memory_space<vmem>>, vector<128x128xbf16>
    %cst = arith.constant dense<0.000000e+00> : vector<256x128xf32>
    %3 = tpu.matmul %1, %2, %cst {dimension_numbers = #tpu.dot_dimension_numbers<[1], [0], [0], [1], [0, 0, 1, 1], [], []>} : vector<256x128xbf16>, vector<128x128xbf16>, vector<256x128xf32> -> vector<256x128xf32>
    %c0_4 = arith.constant 0 : index
    %c0_5 = arith.constant 0 : index
    %4 = vector.load %arg6[%c0_4, %c0_5] : memref<1x128xf32, #tpu.memory_space<vmem>>, vector<1x128xf32>
    %5 = vector.broadcast %4 : vector<1x128xf32> to vector<256x128xf32>
    %6 = arith.addf %3, %5 : vector<256x128xf32>
    %c0_6 = arith.constant 0 : index
    %c0_7 = arith.constant 0 : index
    %c0_8 = arith.constant 0 : index
    %7 = vector.load %arg3[%c0_6, %c0_7, %c0_8] : memref<1x64x128xbf16, #tpu.memory_space<vmem>>, vector<1x8x128xbf16>
    %8 = vector.shape_cast %7 : vector<1x8x128xbf16> to vector<8x128xbf16>
    %c0_9 = arith.constant 0 : index
    %c0_10 = arith.constant 0 : index
    %9 = vector.load %arg4[%c0_9, %c0_10] : memref<16x8xbf16, #tpu.memory_space<vmem>>, vector<16x8xbf16>
    %cst_11 = arith.constant dense<0.000000e+00> : vector<16x128xf32>
    %10 = tpu.matmul %9, %8, %cst_11 {dimension_numbers = #tpu.dot_dimension_numbers<[1], [0], [0], [1], [0, 0, 1, 1], [], []>} : vector<16x8xbf16>, vector<8x128xbf16>, vector<16x128xf32> -> vector<16x128xf32>
    %c0_12 = arith.constant 0 : index
    %c8 = arith.constant 8 : index
    %c0_13 = arith.constant 0 : index
    %11 = vector.load %arg3[%c0_12, %c8, %c0_13] : memref<1x64x128xbf16, #tpu.memory_space<vmem>>, vector<1x8x128xbf16>
    %12 = vector.shape_cast %11 : vector<1x8x128xbf16> to vector<8x128xbf16>
    %c0_14 = arith.constant 0 : index
    %c0_15 = arith.constant 0 : index
    %13 = vector.load %arg4[%c0_14, %c0_15] : memref<16x8xbf16, #tpu.memory_space<vmem>>, vector<16x8xbf16>
    %cst_16 = arith.constant dense<0.000000e+00> : vector<16x128xf32>
    %14 = tpu.matmul %13, %12, %cst_16 {dimension_numbers = #tpu.dot_dimension_numbers<[1], [0], [0], [1], [0, 0, 1, 1], [], []>} : vector<16x8xbf16>, vector<8x128xbf16>, vector<16x128xf32> -> vector<16x128xf32>
    %c0_17 = arith.constant 0 : index
    %c16 = arith.constant 16 : index
    %c0_18 = arith.constant 0 : index
    %15 = vector.load %arg3[%c0_17, %c16, %c0_18] : memref<1x64x128xbf16, #tpu.memory_space<vmem>>, vector<1x8x128xbf16>
    %16 = vector.shape_cast %15 : vector<1x8x128xbf16> to vector<8x128xbf16>
    %c0_19 = arith.constant 0 : index
    %c0_20 = arith.constant 0 : index
    %17 = vector.load %arg4[%c0_19, %c0_20] : memref<16x8xbf16, #tpu.memory_space<vmem>>, vector<16x8xbf16>
    %cst_21 = arith.constant dense<0.000000e+00> : vector<16x128xf32>
    %18 = tpu.matmul %17, %16, %cst_21 {dimension_numbers = #tpu.dot_dimension_numbers<[1], [0], [0], [1], [0, 0, 1, 1], [], []>} : vector<16x8xbf16>, vector<8x128xbf16>, vector<16x128xf32> -> vector<16x128xf32>
    %c0_22 = arith.constant 0 : index
    %c24 = arith.constant 24 : index
    %c0_23 = arith.constant 0 : index
    %19 = vector.load %arg3[%c0_22, %c24, %c0_23] : memref<1x64x128xbf16, #tpu.memory_space<vmem>>, vector<1x8x128xbf16>
    %20 = vector.shape_cast %19 : vector<1x8x128xbf16> to vector<8x128xbf16>
    %c0_24 = arith.constant 0 : index
    %c0_25 = arith.constant 0 : index
    %21 = vector.load %arg4[%c0_24, %c0_25] : memref<16x8xbf16, #tpu.memory_space<vmem>>, vector<16x8xbf16>
    %cst_26 = arith.constant dense<0.000000e+00> : vector<16x128xf32>
    %22 = tpu.matmul %21, %20, %cst_26 {dimension_numbers = #tpu.dot_dimension_numbers<[1], [0], [0], [1], [0, 0, 1, 1], [], []>} : vector<16x8xbf16>, vector<8x128xbf16>, vector<16x128xf32> -> vector<16x128xf32>
    %c0_27 = arith.constant 0 : index
    %c32 = arith.constant 32 : index
    %c0_28 = arith.constant 0 : index
    %23 = vector.load %arg3[%c0_27, %c32, %c0_28] : memref<1x64x128xbf16, #tpu.memory_space<vmem>>, vector<1x8x128xbf16>
    %24 = vector.shape_cast %23 : vector<1x8x128xbf16> to vector<8x128xbf16>
    %c0_29 = arith.constant 0 : index
    %c0_30 = arith.constant 0 : index
    %25 = vector.load %arg4[%c0_29, %c0_30] : memref<16x8xbf16, #tpu.memory_space<vmem>>, vector<16x8xbf16>
    %cst_31 = arith.constant dense<0.000000e+00> : vector<16x128xf32>
    %26 = tpu.matmul %25, %24, %cst_31 {dimension_numbers = #tpu.dot_dimension_numbers<[1], [0], [0], [1], [0, 0, 1, 1], [], []>} : vector<16x8xbf16>, vector<8x128xbf16>, vector<16x128xf32> -> vector<16x128xf32>
    %c0_32 = arith.constant 0 : index
    %c40 = arith.constant 40 : index
    %c0_33 = arith.constant 0 : index
    %27 = vector.load %arg3[%c0_32, %c40, %c0_33] : memref<1x64x128xbf16, #tpu.memory_space<vmem>>, vector<1x8x128xbf16>
    %28 = vector.shape_cast %27 : vector<1x8x128xbf16> to vector<8x128xbf16>
    %c0_34 = arith.constant 0 : index
    %c0_35 = arith.constant 0 : index
    %29 = vector.load %arg4[%c0_34, %c0_35] : memref<16x8xbf16, #tpu.memory_space<vmem>>, vector<16x8xbf16>
    %cst_36 = arith.constant dense<0.000000e+00> : vector<16x128xf32>
    %30 = tpu.matmul %29, %28, %cst_36 {dimension_numbers = #tpu.dot_dimension_numbers<[1], [0], [0], [1], [0, 0, 1, 1], [], []>} : vector<16x8xbf16>, vector<8x128xbf16>, vector<16x128xf32> -> vector<16x128xf32>
    %c0_37 = arith.constant 0 : index
    %c48 = arith.constant 48 : index
    %c0_38 = arith.constant 0 : index
    %31 = vector.load %arg3[%c0_37, %c48, %c0_38] : memref<1x64x128xbf16, #tpu.memory_space<vmem>>, vector<1x8x128xbf16>
    %32 = vector.shape_cast %31 : vector<1x8x128xbf16> to vector<8x128xbf16>
    %c0_39 = arith.constant 0 : index
    %c0_40 = arith.constant 0 : index
    %33 = vector.load %arg4[%c0_39, %c0_40] : memref<16x8xbf16, #tpu.memory_space<vmem>>, vector<16x8xbf16>
    %cst_41 = arith.constant dense<0.000000e+00> : vector<16x128xf32>
    %34 = tpu.matmul %33, %32, %cst_41 {dimension_numbers = #tpu.dot_dimension_numbers<[1], [0], [0], [1], [0, 0, 1, 1], [], []>} : vector<16x8xbf16>, vector<8x128xbf16>, vector<16x128xf32> -> vector<16x128xf32>
    %c0_42 = arith.constant 0 : index
    %c56 = arith.constant 56 : index
    %c0_43 = arith.constant 0 : index
    %35 = vector.load %arg3[%c0_42, %c56, %c0_43] : memref<1x64x128xbf16, #tpu.memory_space<vmem>>, vector<1x8x128xbf16>
    %36 = vector.shape_cast %35 : vector<1x8x128xbf16> to vector<8x128xbf16>
    %c0_44 = arith.constant 0 : index
    %c0_45 = arith.constant 0 : index
    %37 = vector.load %arg4[%c0_44, %c0_45] : memref<16x8xbf16, #tpu.memory_space<vmem>>, vector<16x8xbf16>
    %cst_46 = arith.constant dense<0.000000e+00> : vector<16x128xf32>
    %38 = tpu.matmul %37, %36, %cst_46 {dimension_numbers = #tpu.dot_dimension_numbers<[1], [0], [0], [1], [0, 0, 1, 1], [], []>} : vector<16x8xbf16>, vector<8x128xbf16>, vector<16x128xf32> -> vector<16x128xf32>
    %39 = tpu.concatenate %10, %10, %14, %14, %18, %18, %22, %22, %26, %26, %30, %30, %34, %34, %38, %38 in 0 : vector<16x128xf32>, vector<16x128xf32>, vector<16x128xf32>, vector<16x128xf32>, vector<16x128xf32>, vector<16x128xf32>, vector<16x128xf32>, vector<16x128xf32>, vector<16x128xf32>, vector<16x128xf32>, vector<16x128xf32>, vector<16x128xf32>, vector<16x128xf32>, vector<16x128xf32>, vector<16x128xf32>, vector<16x128xf32> -> vector<256x128xf32>
    %40 = arith.addf %6, %39 : vector<256x128xf32>
    %41 = arith.truncf %40 : vector<256x128xf32> to vector<256x128xbf16>
    %c0_47 = arith.constant 0 : index
    %c0_48 = arith.constant 0 : index
    %c0_49 = arith.constant 0 : index
    %42 = vector.load %arg7[%c0_47, %c0_48, %c0_49] : memref<1x256x128xbf16, #tpu.memory_space<vmem>>, vector<1x256x128xbf16>
    %43 = vector.shape_cast %42 : vector<1x256x128xbf16> to vector<256x128xbf16>
    %44 = vector.shape_cast %41 : vector<256x128xbf16> to vector<1x256x128xbf16>
    tpu.vector_store %arg7[%c0_47, %c0_48, %c0_49], %44 {strides = array<i32>} : memref<1x256x128xbf16, #tpu.memory_space<vmem>>, vector<1x256x128xbf16>,
    return
  }
  func.func @transform_0(%arg0: i32, %arg1: i32) -> (i32, i32, i32) {
    %c0_i32 = arith.constant 0 : i32
    %c0_i32_0 = arith.constant 0 : i32
    return %arg0, %arg1, %c0_i32 : i32, i32, i32
  }
  func.func @transform_1(%arg0: i32, %arg1: i32) -> (i32, i32, i32) {
    %c0_i32 = arith.constant 0 : i32
    %c0_i32_0 = arith.constant 0 : i32
    return %arg0, %arg1, %c0_i32 : i32, i32, i32
  }
  func.func @transform_2(%arg0: i32, %arg1: i32) -> (i32, i32) {
    %c0_i32 = arith.constant 0 : i32
    %c0_i32_0 = arith.constant 0 : i32
    %c0_i32_1 = arith.constant 0 : i32
    return %c0_i32, %c0_i32_0 : i32, i32
  }
  func.func @transform_3(%arg0: i32, %arg1: i32) -> (i32, i32) {
    %c0_i32 = arith.constant 0 : i32
    %c0_i32_0 = arith.constant 0 : i32
    %c0_i32_1 = arith.constant 0 : i32
    return %c0_i32, %c0_i32_0 : i32, i32
  }
  func.func @transform_4(%arg0: i32, %arg1: i32) -> (i32, i32) {
    %c0_i32 = arith.constant 0 : i32
    %c0_i32_0 = arith.constant 0 : i32
    %c0_i32_1 = arith.constant 0 : i32
    return %c0_i32, %c0_i32_0 : i32, i32
  }
  func.func @transform_5(%arg0: i32, %arg1: i32) -> (i32, i32, i32) {
    %c0_i32 = arith.constant 0 : i32
    %c0_i32_0 = arith.constant 0 : i32
    return %arg0, %arg1, %c0_i32 : i32, i32, i32
  }
}

module attributes {stable_mosaic.version = 11 : i64} {
  func.func @kernel(%arg0: i32, %arg1: memref<1x456x128xbf16, #tpu.memory_space<vmem>>, %arg2: memref<9x128x128xbf16, #tpu.memory_space<vmem>>, %arg3: memref<1x128xf32, #tpu.memory_space<vmem>>, %arg4: memref<1x384x128xbf16, #tpu.memory_space<vmem>>) attributes {dimension_semantics = [#tpu.dimension_semantics<parallel>], iteration_bounds = array<i64: 2>, scalar_prefetch = 0 : i64, scratch_operands = 0 : i64, tpu.core_type = #tpu.core_type<tc>, window_params = [{transform_indices = @transform_0, window_bounds = array<i64: 1, 456, 128>}, {pipeline_mode = #tpu.pipeline_mode<synchronous>, transform_indices = @transform_1, window_bounds = array<i64: 9, 128, 128>}, {pipeline_mode = #tpu.pipeline_mode<synchronous>, transform_indices = @transform_2, window_bounds = array<i64: 1, 128>}, {transform_indices = @transform_3, window_bounds = array<i64: 1, 384, 128>}]} {
    %c0 = arith.constant 0 : index
    %c0_0 = arith.constant 0 : index
    %c0_1 = arith.constant 0 : index
    %0 = vector.load %arg1[%c0, %c0_0, %c0_1] : memref<1x456x128xbf16, #tpu.memory_space<vmem>>, vector<1x384x128xbf16>
    %1 = vector.shape_cast %0 : vector<1x384x128xbf16> to vector<384x128xbf16>
    %c0_2 = arith.constant 0 : index
    %c0_3 = arith.constant 0 : index
    %c0_4 = arith.constant 0 : index
    %2 = vector.load %arg2[%c0_2, %c0_3, %c0_4] : memref<9x128x128xbf16, #tpu.memory_space<vmem>>, vector<1x128x128xbf16>
    %3 = vector.shape_cast %2 : vector<1x128x128xbf16> to vector<128x128xbf16>
    %cst = arith.constant dense<0.000000e+00> : vector<384x128xf32>
    %4 = tpu.matmul %1, %3, %cst {dimension_numbers = #tpu.dot_dimension_numbers<[1], [0], [0], [1], [0, 0, 1, 1], [], []>} : vector<384x128xbf16>, vector<128x128xbf16>, vector<384x128xf32> -> vector<384x128xf32>
    %c0_5 = arith.constant 0 : index
    %c1 = arith.constant 1 : index
    %c0_6 = arith.constant 0 : index
    %5 = vector.load %arg1[%c0_5, %c1, %c0_6] : memref<1x456x128xbf16, #tpu.memory_space<vmem>>, vector<1x384x128xbf16>
    %6 = vector.shape_cast %5 : vector<1x384x128xbf16> to vector<384x128xbf16>
    %c1_7 = arith.constant 1 : index
    %c0_8 = arith.constant 0 : index
    %c0_9 = arith.constant 0 : index
    %7 = vector.load %arg2[%c1_7, %c0_8, %c0_9] : memref<9x128x128xbf16, #tpu.memory_space<vmem>>, vector<1x128x128xbf16>
    %8 = vector.shape_cast %7 : vector<1x128x128xbf16> to vector<128x128xbf16>
    %cst_10 = arith.constant dense<0.000000e+00> : vector<384x128xf32>
    %9 = tpu.matmul %6, %8, %cst_10 {dimension_numbers = #tpu.dot_dimension_numbers<[1], [0], [0], [1], [0, 0, 1, 1], [], []>} : vector<384x128xbf16>, vector<128x128xbf16>, vector<384x128xf32> -> vector<384x128xf32>
    %10 = arith.addf %4, %9 : vector<384x128xf32>
    %c0_11 = arith.constant 0 : index
    %c2 = arith.constant 2 : index
    %c0_12 = arith.constant 0 : index
    %11 = vector.load %arg1[%c0_11, %c2, %c0_12] : memref<1x456x128xbf16, #tpu.memory_space<vmem>>, vector<1x384x128xbf16>
    %12 = vector.shape_cast %11 : vector<1x384x128xbf16> to vector<384x128xbf16>
    %c2_13 = arith.constant 2 : index
    %c0_14 = arith.constant 0 : index
    %c0_15 = arith.constant 0 : index
    %13 = vector.load %arg2[%c2_13, %c0_14, %c0_15] : memref<9x128x128xbf16, #tpu.memory_space<vmem>>, vector<1x128x128xbf16>
    %14 = vector.shape_cast %13 : vector<1x128x128xbf16> to vector<128x128xbf16>
    %cst_16 = arith.constant dense<0.000000e+00> : vector<384x128xf32>
    %15 = tpu.matmul %12, %14, %cst_16 {dimension_numbers = #tpu.dot_dimension_numbers<[1], [0], [0], [1], [0, 0, 1, 1], [], []>} : vector<384x128xbf16>, vector<128x128xbf16>, vector<384x128xf32> -> vector<384x128xf32>
    %16 = arith.addf %10, %15 : vector<384x128xf32>
    %c0_17 = arith.constant 0 : index
    %c24 = arith.constant 24 : index
    %c0_18 = arith.constant 0 : index
    %17 = vector.load %arg1[%c0_17, %c24, %c0_18] : memref<1x456x128xbf16, #tpu.memory_space<vmem>>, vector<1x384x128xbf16>
    %18 = vector.shape_cast %17 : vector<1x384x128xbf16> to vector<384x128xbf16>
    %c3 = arith.constant 3 : index
    %c0_19 = arith.constant 0 : index
    %c0_20 = arith.constant 0 : index
    %19 = vector.load %arg2[%c3, %c0_19, %c0_20] : memref<9x128x128xbf16, #tpu.memory_space<vmem>>, vector<1x128x128xbf16>
    %20 = vector.shape_cast %19 : vector<1x128x128xbf16> to vector<128x128xbf16>
    %cst_21 = arith.constant dense<0.000000e+00> : vector<384x128xf32>
    %21 = tpu.matmul %18, %20, %cst_21 {dimension_numbers = #tpu.dot_dimension_numbers<[1], [0], [0], [1], [0, 0, 1, 1], [], []>} : vector<384x128xbf16>, vector<128x128xbf16>, vector<384x128xf32> -> vector<384x128xf32>
    %22 = arith.addf %16, %21 : vector<384x128xf32>
    %c0_22 = arith.constant 0 : index
    %c25 = arith.constant 25 : index
    %c0_23 = arith.constant 0 : index
    %23 = vector.load %arg1[%c0_22, %c25, %c0_23] : memref<1x456x128xbf16, #tpu.memory_space<vmem>>, vector<1x384x128xbf16>
    %24 = vector.shape_cast %23 : vector<1x384x128xbf16> to vector<384x128xbf16>
    %c4 = arith.constant 4 : index
    %c0_24 = arith.constant 0 : index
    %c0_25 = arith.constant 0 : index
    %25 = vector.load %arg2[%c4, %c0_24, %c0_25] : memref<9x128x128xbf16, #tpu.memory_space<vmem>>, vector<1x128x128xbf16>
    %26 = vector.shape_cast %25 : vector<1x128x128xbf16> to vector<128x128xbf16>
    %cst_26 = arith.constant dense<0.000000e+00> : vector<384x128xf32>
    %27 = tpu.matmul %24, %26, %cst_26 {dimension_numbers = #tpu.dot_dimension_numbers<[1], [0], [0], [1], [0, 0, 1, 1], [], []>} : vector<384x128xbf16>, vector<128x128xbf16>, vector<384x128xf32> -> vector<384x128xf32>
    %28 = arith.addf %22, %27 : vector<384x128xf32>
    %c0_27 = arith.constant 0 : index
    %c26 = arith.constant 26 : index
    %c0_28 = arith.constant 0 : index
    %29 = vector.load %arg1[%c0_27, %c26, %c0_28] : memref<1x456x128xbf16, #tpu.memory_space<vmem>>, vector<1x384x128xbf16>
    %30 = vector.shape_cast %29 : vector<1x384x128xbf16> to vector<384x128xbf16>
    %c5 = arith.constant 5 : index
    %c0_29 = arith.constant 0 : index
    %c0_30 = arith.constant 0 : index
    %31 = vector.load %arg2[%c5, %c0_29, %c0_30] : memref<9x128x128xbf16, #tpu.memory_space<vmem>>, vector<1x128x128xbf16>
    %32 = vector.shape_cast %31 : vector<1x128x128xbf16> to vector<128x128xbf16>
    %cst_31 = arith.constant dense<0.000000e+00> : vector<384x128xf32>
    %33 = tpu.matmul %30, %32, %cst_31 {dimension_numbers = #tpu.dot_dimension_numbers<[1], [0], [0], [1], [0, 0, 1, 1], [], []>} : vector<384x128xbf16>, vector<128x128xbf16>, vector<384x128xf32> -> vector<384x128xf32>
    %34 = arith.addf %28, %33 : vector<384x128xf32>
    %c0_32 = arith.constant 0 : index
    %c48 = arith.constant 48 : index
    %c0_33 = arith.constant 0 : index
    %35 = vector.load %arg1[%c0_32, %c48, %c0_33] : memref<1x456x128xbf16, #tpu.memory_space<vmem>>, vector<1x384x128xbf16>
    %36 = vector.shape_cast %35 : vector<1x384x128xbf16> to vector<384x128xbf16>
    %c6 = arith.constant 6 : index
    %c0_34 = arith.constant 0 : index
    %c0_35 = arith.constant 0 : index
    %37 = vector.load %arg2[%c6, %c0_34, %c0_35] : memref<9x128x128xbf16, #tpu.memory_space<vmem>>, vector<1x128x128xbf16>
    %38 = vector.shape_cast %37 : vector<1x128x128xbf16> to vector<128x128xbf16>
    %cst_36 = arith.constant dense<0.000000e+00> : vector<384x128xf32>
    %39 = tpu.matmul %36, %38, %cst_36 {dimension_numbers = #tpu.dot_dimension_numbers<[1], [0], [0], [1], [0, 0, 1, 1], [], []>} : vector<384x128xbf16>, vector<128x128xbf16>, vector<384x128xf32> -> vector<384x128xf32>
    %40 = arith.addf %34, %39 : vector<384x128xf32>
    %c0_37 = arith.constant 0 : index
    %c49 = arith.constant 49 : index
    %c0_38 = arith.constant 0 : index
    %41 = vector.load %arg1[%c0_37, %c49, %c0_38] : memref<1x456x128xbf16, #tpu.memory_space<vmem>>, vector<1x384x128xbf16>
    %42 = vector.shape_cast %41 : vector<1x384x128xbf16> to vector<384x128xbf16>
    %c7 = arith.constant 7 : index
    %c0_39 = arith.constant 0 : index
    %c0_40 = arith.constant 0 : index
    %43 = vector.load %arg2[%c7, %c0_39, %c0_40] : memref<9x128x128xbf16, #tpu.memory_space<vmem>>, vector<1x128x128xbf16>
    %44 = vector.shape_cast %43 : vector<1x128x128xbf16> to vector<128x128xbf16>
    %cst_41 = arith.constant dense<0.000000e+00> : vector<384x128xf32>
    %45 = tpu.matmul %42, %44, %cst_41 {dimension_numbers = #tpu.dot_dimension_numbers<[1], [0], [0], [1], [0, 0, 1, 1], [], []>} : vector<384x128xbf16>, vector<128x128xbf16>, vector<384x128xf32> -> vector<384x128xf32>
    %46 = arith.addf %40, %45 : vector<384x128xf32>
    %c0_42 = arith.constant 0 : index
    %c50 = arith.constant 50 : index
    %c0_43 = arith.constant 0 : index
    %47 = vector.load %arg1[%c0_42, %c50, %c0_43] : memref<1x456x128xbf16, #tpu.memory_space<vmem>>, vector<1x384x128xbf16>
    %48 = vector.shape_cast %47 : vector<1x384x128xbf16> to vector<384x128xbf16>
    %c8 = arith.constant 8 : index
    %c0_44 = arith.constant 0 : index
    %c0_45 = arith.constant 0 : index
    %49 = vector.load %arg2[%c8, %c0_44, %c0_45] : memref<9x128x128xbf16, #tpu.memory_space<vmem>>, vector<1x128x128xbf16>
    %50 = vector.shape_cast %49 : vector<1x128x128xbf16> to vector<128x128xbf16>
    %cst_46 = arith.constant dense<0.000000e+00> : vector<384x128xf32>
    %51 = tpu.matmul %48, %50, %cst_46 {dimension_numbers = #tpu.dot_dimension_numbers<[1], [0], [0], [1], [0, 0, 1, 1], [], []>} : vector<384x128xbf16>, vector<128x128xbf16>, vector<384x128xf32> -> vector<384x128xf32>
    %52 = arith.addf %46, %51 : vector<384x128xf32>
    %c0_47 = arith.constant 0 : index
    %c0_48 = arith.constant 0 : index
    %53 = vector.load %arg3[%c0_47, %c0_48] : memref<1x128xf32, #tpu.memory_space<vmem>>, vector<1x128xf32>
    %54 = vector.broadcast %53 : vector<1x128xf32> to vector<384x128xf32>
    %55 = arith.addf %52, %54 : vector<384x128xf32>
    %56 = arith.truncf %55 : vector<384x128xf32> to vector<384x128xbf16>
    %c0_49 = arith.constant 0 : index
    %c0_50 = arith.constant 0 : index
    %c0_51 = arith.constant 0 : index
    %57 = vector.load %arg4[%c0_49, %c0_50, %c0_51] : memref<1x384x128xbf16, #tpu.memory_space<vmem>>, vector<1x384x128xbf16>
    %58 = vector.shape_cast %57 : vector<1x384x128xbf16> to vector<384x128xbf16>
    %59 = vector.shape_cast %56 : vector<384x128xbf16> to vector<1x384x128xbf16>
    tpu.vector_store %arg4[%c0_49, %c0_50, %c0_51], %59 {strides = array<i32>} : memref<1x384x128xbf16, #tpu.memory_space<vmem>>, vector<1x384x128xbf16>,
    return
  }
  func.func @transform_0(%arg0: i32) -> (i32, i32, i32) {
    %c0_i32 = arith.constant 0 : i32
    %c0_i32_0 = arith.constant 0 : i32
    %c0_i32_1 = arith.constant 0 : i32
    return %arg0, %c0_i32, %c0_i32_0 : i32, i32, i32
  }
  func.func @transform_1(%arg0: i32) -> (i32, i32, i32) {
    %c0_i32 = arith.constant 0 : i32
    %c0_i32_0 = arith.constant 0 : i32
    %c0_i32_1 = arith.constant 0 : i32
    %c0_i32_2 = arith.constant 0 : i32
    return %c0_i32, %c0_i32_0, %c0_i32_1 : i32, i32, i32
  }
  func.func @transform_2(%arg0: i32) -> (i32, i32) {
    %c0_i32 = arith.constant 0 : i32
    %c0_i32_0 = arith.constant 0 : i32
    %c0_i32_1 = arith.constant 0 : i32
    return %c0_i32, %c0_i32_0 : i32, i32
  }
  func.func @transform_3(%arg0: i32) -> (i32, i32, i32) {
    %c0_i32 = arith.constant 0 : i32
    %c0_i32_0 = arith.constant 0 : i32
    %c0_i32_1 = arith.constant 0 : i32
    return %arg0, %c0_i32, %c0_i32_0 : i32, i32, i32
  }
}

module attributes {stable_mosaic.version = 11 : i64} {
  func.func @kernel(%arg0: i32, %arg1: memref<1x176x128xbf16, #tpu.memory_space<vmem>>, %arg2: memref<9x128x128xbf16, #tpu.memory_space<vmem>>, %arg3: memref<1x128xf32, #tpu.memory_space<vmem>>, %arg4: memref<1x128x128xbf16, #tpu.memory_space<vmem>>) attributes {dimension_semantics = [#tpu.dimension_semantics<parallel>], iteration_bounds = array<i64: 2>, scalar_prefetch = 0 : i64, scratch_operands = 0 : i64, tpu.core_type = #tpu.core_type<tc>, window_params = [{transform_indices = @transform_0, window_bounds = array<i64: 1, 176, 128>}, {pipeline_mode = #tpu.pipeline_mode<synchronous>, transform_indices = @transform_1, window_bounds = array<i64: 9, 128, 128>}, {pipeline_mode = #tpu.pipeline_mode<synchronous>, transform_indices = @transform_2, window_bounds = array<i64: 1, 128>}, {transform_indices = @transform_3, window_bounds = array<i64: 1, 128, 128>}]} {
    %c0 = arith.constant 0 : index
    %c0_0 = arith.constant 0 : index
    %c0_1 = arith.constant 0 : index
    %0 = vector.load %arg1[%c0, %c0_0, %c0_1] : memref<1x176x128xbf16, #tpu.memory_space<vmem>>, vector<1x128x128xbf16>
    %1 = vector.shape_cast %0 : vector<1x128x128xbf16> to vector<128x128xbf16>
    %c0_2 = arith.constant 0 : index
    %c0_3 = arith.constant 0 : index
    %c0_4 = arith.constant 0 : index
    %2 = vector.load %arg2[%c0_2, %c0_3, %c0_4] : memref<9x128x128xbf16, #tpu.memory_space<vmem>>, vector<1x128x128xbf16>
    %3 = vector.shape_cast %2 : vector<1x128x128xbf16> to vector<128x128xbf16>
    %cst = arith.constant dense<0.000000e+00> : vector<128x128xf32>
    %4 = tpu.matmul %1, %3, %cst {dimension_numbers = #tpu.dot_dimension_numbers<[1], [0], [0], [1], [0, 0, 1, 1], [], []>} : vector<128x128xbf16>, vector<128x128xbf16>, vector<128x128xf32> -> vector<128x128xf32>
    %c0_5 = arith.constant 0 : index
    %c1 = arith.constant 1 : index
    %c0_6 = arith.constant 0 : index
    %5 = vector.load %arg1[%c0_5, %c1, %c0_6] : memref<1x176x128xbf16, #tpu.memory_space<vmem>>, vector<1x128x128xbf16>
    %6 = vector.shape_cast %5 : vector<1x128x128xbf16> to vector<128x128xbf16>
    %c1_7 = arith.constant 1 : index
    %c0_8 = arith.constant 0 : index
    %c0_9 = arith.constant 0 : index
    %7 = vector.load %arg2[%c1_7, %c0_8, %c0_9] : memref<9x128x128xbf16, #tpu.memory_space<vmem>>, vector<1x128x128xbf16>
    %8 = vector.shape_cast %7 : vector<1x128x128xbf16> to vector<128x128xbf16>
    %cst_10 = arith.constant dense<0.000000e+00> : vector<128x128xf32>
    %9 = tpu.matmul %6, %8, %cst_10 {dimension_numbers = #tpu.dot_dimension_numbers<[1], [0], [0], [1], [0, 0, 1, 1], [], []>} : vector<128x128xbf16>, vector<128x128xbf16>, vector<128x128xf32> -> vector<128x128xf32>
    %10 = arith.addf %4, %9 : vector<128x128xf32>
    %c0_11 = arith.constant 0 : index
    %c2 = arith.constant 2 : index
    %c0_12 = arith.constant 0 : index
    %11 = vector.load %arg1[%c0_11, %c2, %c0_12] : memref<1x176x128xbf16, #tpu.memory_space<vmem>>, vector<1x128x128xbf16>
    %12 = vector.shape_cast %11 : vector<1x128x128xbf16> to vector<128x128xbf16>
    %c2_13 = arith.constant 2 : index
    %c0_14 = arith.constant 0 : index
    %c0_15 = arith.constant 0 : index
    %13 = vector.load %arg2[%c2_13, %c0_14, %c0_15] : memref<9x128x128xbf16, #tpu.memory_space<vmem>>, vector<1x128x128xbf16>
    %14 = vector.shape_cast %13 : vector<1x128x128xbf16> to vector<128x128xbf16>
    %cst_16 = arith.constant dense<0.000000e+00> : vector<128x128xf32>
    %15 = tpu.matmul %12, %14, %cst_16 {dimension_numbers = #tpu.dot_dimension_numbers<[1], [0], [0], [1], [0, 0, 1, 1], [], []>} : vector<128x128xbf16>, vector<128x128xbf16>, vector<128x128xf32> -> vector<128x128xf32>
    %16 = arith.addf %10, %15 : vector<128x128xf32>
    %c0_17 = arith.constant 0 : index
    %c16 = arith.constant 16 : index
    %c0_18 = arith.constant 0 : index
    %17 = vector.load %arg1[%c0_17, %c16, %c0_18] : memref<1x176x128xbf16, #tpu.memory_space<vmem>>, vector<1x128x128xbf16>
    %18 = vector.shape_cast %17 : vector<1x128x128xbf16> to vector<128x128xbf16>
    %c3 = arith.constant 3 : index
    %c0_19 = arith.constant 0 : index
    %c0_20 = arith.constant 0 : index
    %19 = vector.load %arg2[%c3, %c0_19, %c0_20] : memref<9x128x128xbf16, #tpu.memory_space<vmem>>, vector<1x128x128xbf16>
    %20 = vector.shape_cast %19 : vector<1x128x128xbf16> to vector<128x128xbf16>
    %cst_21 = arith.constant dense<0.000000e+00> : vector<128x128xf32>
    %21 = tpu.matmul %18, %20, %cst_21 {dimension_numbers = #tpu.dot_dimension_numbers<[1], [0], [0], [1], [0, 0, 1, 1], [], []>} : vector<128x128xbf16>, vector<128x128xbf16>, vector<128x128xf32> -> vector<128x128xf32>
    %22 = arith.addf %16, %21 : vector<128x128xf32>
    %c0_22 = arith.constant 0 : index
    %c17 = arith.constant 17 : index
    %c0_23 = arith.constant 0 : index
    %23 = vector.load %arg1[%c0_22, %c17, %c0_23] : memref<1x176x128xbf16, #tpu.memory_space<vmem>>, vector<1x128x128xbf16>
    %24 = vector.shape_cast %23 : vector<1x128x128xbf16> to vector<128x128xbf16>
    %c4 = arith.constant 4 : index
    %c0_24 = arith.constant 0 : index
    %c0_25 = arith.constant 0 : index
    %25 = vector.load %arg2[%c4, %c0_24, %c0_25] : memref<9x128x128xbf16, #tpu.memory_space<vmem>>, vector<1x128x128xbf16>
    %26 = vector.shape_cast %25 : vector<1x128x128xbf16> to vector<128x128xbf16>
    %cst_26 = arith.constant dense<0.000000e+00> : vector<128x128xf32>
    %27 = tpu.matmul %24, %26, %cst_26 {dimension_numbers = #tpu.dot_dimension_numbers<[1], [0], [0], [1], [0, 0, 1, 1], [], []>} : vector<128x128xbf16>, vector<128x128xbf16>, vector<128x128xf32> -> vector<128x128xf32>
    %28 = arith.addf %22, %27 : vector<128x128xf32>
    %c0_27 = arith.constant 0 : index
    %c18 = arith.constant 18 : index
    %c0_28 = arith.constant 0 : index
    %29 = vector.load %arg1[%c0_27, %c18, %c0_28] : memref<1x176x128xbf16, #tpu.memory_space<vmem>>, vector<1x128x128xbf16>
    %30 = vector.shape_cast %29 : vector<1x128x128xbf16> to vector<128x128xbf16>
    %c5 = arith.constant 5 : index
    %c0_29 = arith.constant 0 : index
    %c0_30 = arith.constant 0 : index
    %31 = vector.load %arg2[%c5, %c0_29, %c0_30] : memref<9x128x128xbf16, #tpu.memory_space<vmem>>, vector<1x128x128xbf16>
    %32 = vector.shape_cast %31 : vector<1x128x128xbf16> to vector<128x128xbf16>
    %cst_31 = arith.constant dense<0.000000e+00> : vector<128x128xf32>
    %33 = tpu.matmul %30, %32, %cst_31 {dimension_numbers = #tpu.dot_dimension_numbers<[1], [0], [0], [1], [0, 0, 1, 1], [], []>} : vector<128x128xbf16>, vector<128x128xbf16>, vector<128x128xf32> -> vector<128x128xf32>
    %34 = arith.addf %28, %33 : vector<128x128xf32>
    %c0_32 = arith.constant 0 : index
    %c32 = arith.constant 32 : index
    %c0_33 = arith.constant 0 : index
    %35 = vector.load %arg1[%c0_32, %c32, %c0_33] : memref<1x176x128xbf16, #tpu.memory_space<vmem>>, vector<1x128x128xbf16>
    %36 = vector.shape_cast %35 : vector<1x128x128xbf16> to vector<128x128xbf16>
    %c6 = arith.constant 6 : index
    %c0_34 = arith.constant 0 : index
    %c0_35 = arith.constant 0 : index
    %37 = vector.load %arg2[%c6, %c0_34, %c0_35] : memref<9x128x128xbf16, #tpu.memory_space<vmem>>, vector<1x128x128xbf16>
    %38 = vector.shape_cast %37 : vector<1x128x128xbf16> to vector<128x128xbf16>
    %cst_36 = arith.constant dense<0.000000e+00> : vector<128x128xf32>
    %39 = tpu.matmul %36, %38, %cst_36 {dimension_numbers = #tpu.dot_dimension_numbers<[1], [0], [0], [1], [0, 0, 1, 1], [], []>} : vector<128x128xbf16>, vector<128x128xbf16>, vector<128x128xf32> -> vector<128x128xf32>
    %40 = arith.addf %34, %39 : vector<128x128xf32>
    %c0_37 = arith.constant 0 : index
    %c33 = arith.constant 33 : index
    %c0_38 = arith.constant 0 : index
    %41 = vector.load %arg1[%c0_37, %c33, %c0_38] : memref<1x176x128xbf16, #tpu.memory_space<vmem>>, vector<1x128x128xbf16>
    %42 = vector.shape_cast %41 : vector<1x128x128xbf16> to vector<128x128xbf16>
    %c7 = arith.constant 7 : index
    %c0_39 = arith.constant 0 : index
    %c0_40 = arith.constant 0 : index
    %43 = vector.load %arg2[%c7, %c0_39, %c0_40] : memref<9x128x128xbf16, #tpu.memory_space<vmem>>, vector<1x128x128xbf16>
    %44 = vector.shape_cast %43 : vector<1x128x128xbf16> to vector<128x128xbf16>
    %cst_41 = arith.constant dense<0.000000e+00> : vector<128x128xf32>
    %45 = tpu.matmul %42, %44, %cst_41 {dimension_numbers = #tpu.dot_dimension_numbers<[1], [0], [0], [1], [0, 0, 1, 1], [], []>} : vector<128x128xbf16>, vector<128x128xbf16>, vector<128x128xf32> -> vector<128x128xf32>
    %46 = arith.addf %40, %45 : vector<128x128xf32>
    %c0_42 = arith.constant 0 : index
    %c34 = arith.constant 34 : index
    %c0_43 = arith.constant 0 : index
    %47 = vector.load %arg1[%c0_42, %c34, %c0_43] : memref<1x176x128xbf16, #tpu.memory_space<vmem>>, vector<1x128x128xbf16>
    %48 = vector.shape_cast %47 : vector<1x128x128xbf16> to vector<128x128xbf16>
    %c8 = arith.constant 8 : index
    %c0_44 = arith.constant 0 : index
    %c0_45 = arith.constant 0 : index
    %49 = vector.load %arg2[%c8, %c0_44, %c0_45] : memref<9x128x128xbf16, #tpu.memory_space<vmem>>, vector<1x128x128xbf16>
    %50 = vector.shape_cast %49 : vector<1x128x128xbf16> to vector<128x128xbf16>
    %cst_46 = arith.constant dense<0.000000e+00> : vector<128x128xf32>
    %51 = tpu.matmul %48, %50, %cst_46 {dimension_numbers = #tpu.dot_dimension_numbers<[1], [0], [0], [1], [0, 0, 1, 1], [], []>} : vector<128x128xbf16>, vector<128x128xbf16>, vector<128x128xf32> -> vector<128x128xf32>
    %52 = arith.addf %46, %51 : vector<128x128xf32>
    %c0_47 = arith.constant 0 : index
    %c0_48 = arith.constant 0 : index
    %53 = vector.load %arg3[%c0_47, %c0_48] : memref<1x128xf32, #tpu.memory_space<vmem>>, vector<1x128xf32>
    %54 = vector.broadcast %53 : vector<1x128xf32> to vector<128x128xf32>
    %55 = arith.addf %52, %54 : vector<128x128xf32>
    %56 = arith.truncf %55 : vector<128x128xf32> to vector<128x128xbf16>
    %c0_49 = arith.constant 0 : index
    %c0_50 = arith.constant 0 : index
    %c0_51 = arith.constant 0 : index
    %57 = vector.load %arg4[%c0_49, %c0_50, %c0_51] : memref<1x128x128xbf16, #tpu.memory_space<vmem>>, vector<1x128x128xbf16>
    %58 = vector.shape_cast %57 : vector<1x128x128xbf16> to vector<128x128xbf16>
    %59 = vector.shape_cast %56 : vector<128x128xbf16> to vector<1x128x128xbf16>
    tpu.vector_store %arg4[%c0_49, %c0_50, %c0_51], %59 {strides = array<i32>} : memref<1x128x128xbf16, #tpu.memory_space<vmem>>, vector<1x128x128xbf16>,
    return
  }
  func.func @transform_0(%arg0: i32) -> (i32, i32, i32) {
    %c0_i32 = arith.constant 0 : i32
    %c0_i32_0 = arith.constant 0 : i32
    %c0_i32_1 = arith.constant 0 : i32
    return %arg0, %c0_i32, %c0_i32_0 : i32, i32, i32
  }
  func.func @transform_1(%arg0: i32) -> (i32, i32, i32) {
    %c0_i32 = arith.constant 0 : i32
    %c0_i32_0 = arith.constant 0 : i32
    %c0_i32_1 = arith.constant 0 : i32
    %c0_i32_2 = arith.constant 0 : i32
    return %c0_i32, %c0_i32_0, %c0_i32_1 : i32, i32, i32
  }
  func.func @transform_2(%arg0: i32) -> (i32, i32) {
    %c0_i32 = arith.constant 0 : i32
    %c0_i32_0 = arith.constant 0 : i32
    %c0_i32_1 = arith.constant 0 : i32
    return %c0_i32, %c0_i32_0 : i32, i32
  }
  func.func @transform_3(%arg0: i32) -> (i32, i32, i32) {
    %c0_i32 = arith.constant 0 : i32
    %c0_i32_0 = arith.constant 0 : i32
    %c0_i32_1 = arith.constant 0 : i32
    return %arg0, %c0_i32, %c0_i32_0 : i32, i32, i32
  }
}

module attributes {stable_mosaic.version = 11 : i64} {
  func.func @kernel(%arg0: i32, %arg1: memref<1x56x128xbf16, #tpu.memory_space<vmem>>, %arg2: memref<9x128x128xbf16, #tpu.memory_space<vmem>>, %arg3: memref<1x128xf32, #tpu.memory_space<vmem>>, %arg4: memref<1x32x128xbf16, #tpu.memory_space<vmem>>) attributes {dimension_semantics = [#tpu.dimension_semantics<parallel>], iteration_bounds = array<i64: 2>, scalar_prefetch = 0 : i64, scratch_operands = 0 : i64, tpu.core_type = #tpu.core_type<tc>, window_params = [{transform_indices = @transform_0, window_bounds = array<i64: 1, 56, 128>}, {pipeline_mode = #tpu.pipeline_mode<synchronous>, transform_indices = @transform_1, window_bounds = array<i64: 9, 128, 128>}, {pipeline_mode = #tpu.pipeline_mode<synchronous>, transform_indices = @transform_2, window_bounds = array<i64: 1, 128>}, {transform_indices = @transform_3, window_bounds = array<i64: 1, 32, 128>}]} {
    %c0 = arith.constant 0 : index
    %c0_0 = arith.constant 0 : index
    %c0_1 = arith.constant 0 : index
    %0 = vector.load %arg1[%c0, %c0_0, %c0_1] : memref<1x56x128xbf16, #tpu.memory_space<vmem>>, vector<1x32x128xbf16>
    %1 = vector.shape_cast %0 : vector<1x32x128xbf16> to vector<32x128xbf16>
    %c0_2 = arith.constant 0 : index
    %c0_3 = arith.constant 0 : index
    %c0_4 = arith.constant 0 : index
    %2 = vector.load %arg2[%c0_2, %c0_3, %c0_4] : memref<9x128x128xbf16, #tpu.memory_space<vmem>>, vector<1x128x128xbf16>
    %3 = vector.shape_cast %2 : vector<1x128x128xbf16> to vector<128x128xbf16>
    %cst = arith.constant dense<0.000000e+00> : vector<32x128xf32>
    %4 = tpu.matmul %1, %3, %cst {dimension_numbers = #tpu.dot_dimension_numbers<[1], [0], [0], [1], [0, 0, 1, 1], [], []>} : vector<32x128xbf16>, vector<128x128xbf16>, vector<32x128xf32> -> vector<32x128xf32>
    %c0_5 = arith.constant 0 : index
    %c1 = arith.constant 1 : index
    %c0_6 = arith.constant 0 : index
    %5 = vector.load %arg1[%c0_5, %c1, %c0_6] : memref<1x56x128xbf16, #tpu.memory_space<vmem>>, vector<1x32x128xbf16>
    %6 = vector.shape_cast %5 : vector<1x32x128xbf16> to vector<32x128xbf16>
    %c1_7 = arith.constant 1 : index
    %c0_8 = arith.constant 0 : index
    %c0_9 = arith.constant 0 : index
    %7 = vector.load %arg2[%c1_7, %c0_8, %c0_9] : memref<9x128x128xbf16, #tpu.memory_space<vmem>>, vector<1x128x128xbf16>
    %8 = vector.shape_cast %7 : vector<1x128x128xbf16> to vector<128x128xbf16>
    %cst_10 = arith.constant dense<0.000000e+00> : vector<32x128xf32>
    %9 = tpu.matmul %6, %8, %cst_10 {dimension_numbers = #tpu.dot_dimension_numbers<[1], [0], [0], [1], [0, 0, 1, 1], [], []>} : vector<32x128xbf16>, vector<128x128xbf16>, vector<32x128xf32> -> vector<32x128xf32>
    %10 = arith.addf %4, %9 : vector<32x128xf32>
    %c0_11 = arith.constant 0 : index
    %c2 = arith.constant 2 : index
    %c0_12 = arith.constant 0 : index
    %11 = vector.load %arg1[%c0_11, %c2, %c0_12] : memref<1x56x128xbf16, #tpu.memory_space<vmem>>, vector<1x32x128xbf16>
    %12 = vector.shape_cast %11 : vector<1x32x128xbf16> to vector<32x128xbf16>
    %c2_13 = arith.constant 2 : index
    %c0_14 = arith.constant 0 : index
    %c0_15 = arith.constant 0 : index
    %13 = vector.load %arg2[%c2_13, %c0_14, %c0_15] : memref<9x128x128xbf16, #tpu.memory_space<vmem>>, vector<1x128x128xbf16>
    %14 = vector.shape_cast %13 : vector<1x128x128xbf16> to vector<128x128xbf16>
    %cst_16 = arith.constant dense<0.000000e+00> : vector<32x128xf32>
    %15 = tpu.matmul %12, %14, %cst_16 {dimension_numbers = #tpu.dot_dimension_numbers<[1], [0], [0], [1], [0, 0, 1, 1], [], []>} : vector<32x128xbf16>, vector<128x128xbf16>, vector<32x128xf32> -> vector<32x128xf32>
    %16 = arith.addf %10, %15 : vector<32x128xf32>
    %c0_17 = arith.constant 0 : index
    %c8 = arith.constant 8 : index
    %c0_18 = arith.constant 0 : index
    %17 = vector.load %arg1[%c0_17, %c8, %c0_18] : memref<1x56x128xbf16, #tpu.memory_space<vmem>>, vector<1x32x128xbf16>
    %18 = vector.shape_cast %17 : vector<1x32x128xbf16> to vector<32x128xbf16>
    %c3 = arith.constant 3 : index
    %c0_19 = arith.constant 0 : index
    %c0_20 = arith.constant 0 : index
    %19 = vector.load %arg2[%c3, %c0_19, %c0_20] : memref<9x128x128xbf16, #tpu.memory_space<vmem>>, vector<1x128x128xbf16>
    %20 = vector.shape_cast %19 : vector<1x128x128xbf16> to vector<128x128xbf16>
    %cst_21 = arith.constant dense<0.000000e+00> : vector<32x128xf32>
    %21 = tpu.matmul %18, %20, %cst_21 {dimension_numbers = #tpu.dot_dimension_numbers<[1], [0], [0], [1], [0, 0, 1, 1], [], []>} : vector<32x128xbf16>, vector<128x128xbf16>, vector<32x128xf32> -> vector<32x128xf32>
    %22 = arith.addf %16, %21 : vector<32x128xf32>
    %c0_22 = arith.constant 0 : index
    %c9 = arith.constant 9 : index
    %c0_23 = arith.constant 0 : index
    %23 = vector.load %arg1[%c0_22, %c9, %c0_23] : memref<1x56x128xbf16, #tpu.memory_space<vmem>>, vector<1x32x128xbf16>
    %24 = vector.shape_cast %23 : vector<1x32x128xbf16> to vector<32x128xbf16>
    %c4 = arith.constant 4 : index
    %c0_24 = arith.constant 0 : index
    %c0_25 = arith.constant 0 : index
    %25 = vector.load %arg2[%c4, %c0_24, %c0_25] : memref<9x128x128xbf16, #tpu.memory_space<vmem>>, vector<1x128x128xbf16>
    %26 = vector.shape_cast %25 : vector<1x128x128xbf16> to vector<128x128xbf16>
    %cst_26 = arith.constant dense<0.000000e+00> : vector<32x128xf32>
    %27 = tpu.matmul %24, %26, %cst_26 {dimension_numbers = #tpu.dot_dimension_numbers<[1], [0], [0], [1], [0, 0, 1, 1], [], []>} : vector<32x128xbf16>, vector<128x128xbf16>, vector<32x128xf32> -> vector<32x128xf32>
    %28 = arith.addf %22, %27 : vector<32x128xf32>
    %c0_27 = arith.constant 0 : index
    %c10 = arith.constant 10 : index
    %c0_28 = arith.constant 0 : index
    %29 = vector.load %arg1[%c0_27, %c10, %c0_28] : memref<1x56x128xbf16, #tpu.memory_space<vmem>>, vector<1x32x128xbf16>
    %30 = vector.shape_cast %29 : vector<1x32x128xbf16> to vector<32x128xbf16>
    %c5 = arith.constant 5 : index
    %c0_29 = arith.constant 0 : index
    %c0_30 = arith.constant 0 : index
    %31 = vector.load %arg2[%c5, %c0_29, %c0_30] : memref<9x128x128xbf16, #tpu.memory_space<vmem>>, vector<1x128x128xbf16>
    %32 = vector.shape_cast %31 : vector<1x128x128xbf16> to vector<128x128xbf16>
    %cst_31 = arith.constant dense<0.000000e+00> : vector<32x128xf32>
    %33 = tpu.matmul %30, %32, %cst_31 {dimension_numbers = #tpu.dot_dimension_numbers<[1], [0], [0], [1], [0, 0, 1, 1], [], []>} : vector<32x128xbf16>, vector<128x128xbf16>, vector<32x128xf32> -> vector<32x128xf32>
    %34 = arith.addf %28, %33 : vector<32x128xf32>
    %c0_32 = arith.constant 0 : index
    %c16 = arith.constant 16 : index
    %c0_33 = arith.constant 0 : index
    %35 = vector.load %arg1[%c0_32, %c16, %c0_33] : memref<1x56x128xbf16, #tpu.memory_space<vmem>>, vector<1x32x128xbf16>
    %36 = vector.shape_cast %35 : vector<1x32x128xbf16> to vector<32x128xbf16>
    %c6 = arith.constant 6 : index
    %c0_34 = arith.constant 0 : index
    %c0_35 = arith.constant 0 : index
    %37 = vector.load %arg2[%c6, %c0_34, %c0_35] : memref<9x128x128xbf16, #tpu.memory_space<vmem>>, vector<1x128x128xbf16>
    %38 = vector.shape_cast %37 : vector<1x128x128xbf16> to vector<128x128xbf16>
    %cst_36 = arith.constant dense<0.000000e+00> : vector<32x128xf32>
    %39 = tpu.matmul %36, %38, %cst_36 {dimension_numbers = #tpu.dot_dimension_numbers<[1], [0], [0], [1], [0, 0, 1, 1], [], []>} : vector<32x128xbf16>, vector<128x128xbf16>, vector<32x128xf32> -> vector<32x128xf32>
    %40 = arith.addf %34, %39 : vector<32x128xf32>
    %c0_37 = arith.constant 0 : index
    %c17 = arith.constant 17 : index
    %c0_38 = arith.constant 0 : index
    %41 = vector.load %arg1[%c0_37, %c17, %c0_38] : memref<1x56x128xbf16, #tpu.memory_space<vmem>>, vector<1x32x128xbf16>
    %42 = vector.shape_cast %41 : vector<1x32x128xbf16> to vector<32x128xbf16>
    %c7 = arith.constant 7 : index
    %c0_39 = arith.constant 0 : index
    %c0_40 = arith.constant 0 : index
    %43 = vector.load %arg2[%c7, %c0_39, %c0_40] : memref<9x128x128xbf16, #tpu.memory_space<vmem>>, vector<1x128x128xbf16>
    %44 = vector.shape_cast %43 : vector<1x128x128xbf16> to vector<128x128xbf16>
    %cst_41 = arith.constant dense<0.000000e+00> : vector<32x128xf32>
    %45 = tpu.matmul %42, %44, %cst_41 {dimension_numbers = #tpu.dot_dimension_numbers<[1], [0], [0], [1], [0, 0, 1, 1], [], []>} : vector<32x128xbf16>, vector<128x128xbf16>, vector<32x128xf32> -> vector<32x128xf32>
    %46 = arith.addf %40, %45 : vector<32x128xf32>
    %c0_42 = arith.constant 0 : index
    %c18 = arith.constant 18 : index
    %c0_43 = arith.constant 0 : index
    %47 = vector.load %arg1[%c0_42, %c18, %c0_43] : memref<1x56x128xbf16, #tpu.memory_space<vmem>>, vector<1x32x128xbf16>
    %48 = vector.shape_cast %47 : vector<1x32x128xbf16> to vector<32x128xbf16>
    %c8_44 = arith.constant 8 : index
    %c0_45 = arith.constant 0 : index
    %c0_46 = arith.constant 0 : index
    %49 = vector.load %arg2[%c8_44, %c0_45, %c0_46] : memref<9x128x128xbf16, #tpu.memory_space<vmem>>, vector<1x128x128xbf16>
    %50 = vector.shape_cast %49 : vector<1x128x128xbf16> to vector<128x128xbf16>
    %cst_47 = arith.constant dense<0.000000e+00> : vector<32x128xf32>
    %51 = tpu.matmul %48, %50, %cst_47 {dimension_numbers = #tpu.dot_dimension_numbers<[1], [0], [0], [1], [0, 0, 1, 1], [], []>} : vector<32x128xbf16>, vector<128x128xbf16>, vector<32x128xf32> -> vector<32x128xf32>
    %52 = arith.addf %46, %51 : vector<32x128xf32>
    %c0_48 = arith.constant 0 : index
    %c0_49 = arith.constant 0 : index
    %53 = vector.load %arg3[%c0_48, %c0_49] : memref<1x128xf32, #tpu.memory_space<vmem>>, vector<1x128xf32>
    %54 = vector.broadcast %53 : vector<1x128xf32> to vector<32x128xf32>
    %55 = arith.addf %52, %54 : vector<32x128xf32>
    %56 = arith.truncf %55 : vector<32x128xf32> to vector<32x128xbf16>
    %c0_50 = arith.constant 0 : index
    %c0_51 = arith.constant 0 : index
    %c0_52 = arith.constant 0 : index
    %57 = vector.load %arg4[%c0_50, %c0_51, %c0_52] : memref<1x32x128xbf16, #tpu.memory_space<vmem>>, vector<1x32x128xbf16>
    %58 = vector.shape_cast %57 : vector<1x32x128xbf16> to vector<32x128xbf16>
    %59 = vector.shape_cast %56 : vector<32x128xbf16> to vector<1x32x128xbf16>
    tpu.vector_store %arg4[%c0_50, %c0_51, %c0_52], %59 {strides = array<i32>} : memref<1x32x128xbf16, #tpu.memory_space<vmem>>, vector<1x32x128xbf16>,
    return
  }
  func.func @transform_0(%arg0: i32) -> (i32, i32, i32) {
    %c0_i32 = arith.constant 0 : i32
    %c0_i32_0 = arith.constant 0 : i32
    %c0_i32_1 = arith.constant 0 : i32
    return %arg0, %c0_i32, %c0_i32_0 : i32, i32, i32
  }
  func.func @transform_1(%arg0: i32) -> (i32, i32, i32) {
    %c0_i32 = arith.constant 0 : i32
    %c0_i32_0 = arith.constant 0 : i32
    %c0_i32_1 = arith.constant 0 : i32
    %c0_i32_2 = arith.constant 0 : i32
    return %c0_i32, %c0_i32_0, %c0_i32_1 : i32, i32, i32
  }
  func.func @transform_2(%arg0: i32) -> (i32, i32) {
    %c0_i32 = arith.constant 0 : i32
    %c0_i32_0 = arith.constant 0 : i32
    %c0_i32_1 = arith.constant 0 : i32
    return %c0_i32, %c0_i32_0 : i32, i32
  }
  func.func @transform_3(%arg0: i32) -> (i32, i32, i32) {
    %c0_i32 = arith.constant 0 : i32
    %c0_i32_0 = arith.constant 0 : i32
    %c0_i32_1 = arith.constant 0 : i32
    return %arg0, %c0_i32, %c0_i32_0 : i32, i32, i32
  }
}

</mosaic_0001>

<llo_original>
// kernel: fpn_forward.7
$region0: #{fpn_forward.7}
  #allocation0 [shape = 'u32[]', space=smem, size = 0x4, offset = 0x4, fixed_abs, tag = 'smem constant byte address 0x4 - core index']
  #allocation1 [shape = 'u32[72,128]{1,0:T(1,128)}', space=vmem, size = 0x9000, scoped, tag = 'internal scratch']
  %s0 = inlined_call_operand.vmem [shape: bf16[2,16,128], index: 0, kind: input, shape index: {}]
  %s1 = inlined_call_operand.vmem [shape: bf16[128,128], index: 1, kind: input, shape index: {}]
  %s2 = inlined_call_operand.vmem [shape: f32[1,128], index: 2, kind: input, shape index: {}]
  %s3 = inlined_call_operand.vmem [shape: bf16[2,16,128], index: 3, kind: output, shape index: {}]
  %s4 = sld [smem:[#allocation0]]
  $region45: #{fpn_forward.7} parent=0
    _
  %s6 = ssub.s32 1, %s4
  %s7 = scalar_select 0, %s6, %s4
  loop: start=0, step=1, limit=4
  $region2: #{fpn_forward.7} parent=0 // loop_pre_header
    _
  $region3: #{fpn_forward.7} parent=0 // loop_header
    %s9 = sphi 0, %s13
    %p10 = scmp.ge.s32.totalorder %s9, 4
    %s16 = sphi 0, %s28
    %s17 = sphi 0, %s24
    %s18 = sphi 0, %s16
    %s19 = sphi 0, %s17
    %s20 = sphi 0, %s18
    %s21 = sphi 0, %s19
    %s33 = sphi 0, %s35
    %s36 = sphi 0, %s33
    %s37 = sphi 0, %s36
    %s53 = sphi 0, %s37
    %s57 = sphi 0, %s57
    %s59 = sphi 0, %s57
    %s60 = sphi 0, %s59
    %s74 = sphi 0, %s60
    %s78 = sphi 0, %s78
    %s80 = sphi 0, %s78
    %s81 = sphi 0, %s80
    %s95 = sphi 0, %s81
    %s103 = sphi 0, %s105
    %s106 = sphi 0, %s103
    %s107 = sphi 0, %s106
    %s123 = sphi 0, %s107
  $region4: #{fpn_forward.7} parent=0 // loop_header_branch
    %12 = sbr.rel (%p10) target = $region8
  $region5: #{fpn_forward.7} parent=0 // loop_body
    %s14 = ssub.s32 %s9, 1
    %s15 = ssub.s32 %s9, 2
    %s22 = sadd.s32 1, %s17
    %p23 = scmp.ge.s32.totalorder %s22, 1
    %s24 = scalar_select %p23, 0, %s22
    %s25 = sadd.s32 1, %s16
    %s26 = scalar_select %p23, %s25, %s16
    %p27 = scmp.ge.s32.totalorder %s26, 2
    %s28 = scalar_select %p27, 0, %s26
    %s29 = ssub.s32 %s16, %s28
    %s30 = ssub.s32 %s17, %s24
    %s31 = sor.u32 %s29, %s30
    %p32 = scmp.eq.s32.totalorder %s31, 0
    %s34 = sadd.s32 %s33, 1
    %s35 = scalar_select %p32, %s33, %s34
    %p38 = pneg %p32
    %p39 = scmp.eq.s32.totalorder %s9, 1
    %p40 = por %p38, %p39
    %p41 = scmp.ne.s32.totalorder %s33, %s36
    %p42 = scmp.eq.s32.totalorder %s9, 0
    %p43 = por %p41, %p42
    %p44 = scmp.ne.s32.totalorder %s33, %s36
    %p45 = scmp.eq.s32.totalorder %s14, 1
    %p46 = por %p44, %p45
    %p47 = scmp.ne.s32.totalorder %s36, %s37
    %p48 = scmp.eq.s32.totalorder %s14, 0
    %p49 = por %p47, %p48
    %p50 = scmp.ne.s32.totalorder %s36, %s37
    %p51 = scmp.eq.s32.totalorder %s15, 1
    %p52 = por %p50, %p51
    %p54 = scmp.ne.s32.totalorder %s37, %s53
    %p55 = scmp.eq.s32.totalorder %s15, 0
    %p56 = por %p54, %p55
    %s58 = sadd.s32 %s57, 1
    %p61 = scmp.eq.s32.totalorder %s9, 1
    %p62 = scmp.ne.s32.totalorder %s57, %s59
    %p63 = scmp.eq.s32.totalorder %s9, 0
    %p64 = por %p62, %p63
    %p65 = scmp.ne.s32.totalorder %s57, %s59
    %p66 = scmp.eq.s32.totalorder %s14, 1
    %p67 = por %p65, %p66
    %p68 = scmp.ne.s32.totalorder %s59, %s60
    %p69 = scmp.eq.s32.totalorder %s14, 0
    %p70 = por %p68, %p69
    %p71 = scmp.ne.s32.totalorder %s59, %s60
    %p72 = scmp.eq.s32.totalorder %s15, 1
    %p73 = por %p71, %p72
    %p75 = scmp.ne.s32.totalorder %s60, %s74
    %p76 = scmp.eq.s32.totalorder %s15, 0
    %p77 = por %p75, %p76
    %s79 = sadd.s32 %s78, 1
    %p82 = scmp.eq.s32.totalorder %s9, 1
    %p83 = scmp.ne.s32.totalorder %s78, %s80
    %p84 = scmp.eq.s32.totalorder %s9, 0
    %p85 = por %p83, %p84
    %p86 = scmp.ne.s32.totalorder %s78, %s80
    %p87 = scmp.eq.s32.totalorder %s14, 1
    %p88 = por %p86, %p87
    %p89 = scmp.ne.s32.totalorder %s80, %s81
    %p90 = scmp.eq.s32.totalorder %s14, 0
    %p91 = por %p89, %p90
    %p92 = scmp.ne.s32.totalorder %s80, %s81
    %p93 = scmp.eq.s32.totalorder %s15, 1
    %p94 = por %p92, %p93
    %p96 = scmp.ne.s32.totalorder %s81, %s95
    %p97 = scmp.eq.s32.totalorder %s15, 0
    %p98 = por %p96, %p97
    %s99 = ssub.s32 %s16, %s28
    %s100 = ssub.s32 %s17, %s24
    %s101 = sor.u32 %s99, %s100
    %p102 = scmp.eq.s32.totalorder %s101, 0
    %s104 = sadd.s32 %s103, 1
    %s105 = scalar_select %p102, %s103, %s104
    %p108 = pneg %p102
    %p109 = scmp.eq.s32.totalorder %s9, 1
    %p110 = por %p108, %p109
    %p111 = scmp.ne.s32.totalorder %s103, %s106
    %p112 = scmp.eq.s32.totalorder %s9, 0
    %p113 = por %p111, %p112
    %p114 = scmp.ne.s32.totalorder %s103, %s106
    %p115 = scmp.eq.s32.totalorder %s14, 1
    %p116 = por %p114, %p115
    %p117 = scmp.ne.s32.totalorder %s106, %s107
    %p118 = scmp.eq.s32.totalorder %s14, 0
    %p119 = por %p117, %p118
    %p120 = scmp.ne.s32.totalorder %s106, %s107
    %p121 = scmp.eq.s32.totalorder %s15, 1
    %p122 = por %p120, %p121
    %p124 = scmp.ne.s32.totalorder %s107, %s123
    %p125 = scmp.eq.s32.totalorder %s15, 0
    %p126 = por %p124, %p125
    %p127 = scmp.le.s32.totalorder 1, %s9
    %p128 = scmp.lt.s32.totalorder %s9, 3
    %p129 = pnand %p127, %p128
    %p130 = pneg %p129
    // Predicated region
    $region9: #{fpn_forward.7} parent=5 // pred_check
      _
    $region10: #{fpn_forward.7} parent=5 // pred_check_branch
      %132 = sbr.rel (%p129) target = $region12
    $region11: #{fpn_forward.7} parent=5 // pred_region
      %s133 = ssub.s32 %s9, 1
      // Predicated region
      $region13: #{fpn_forward.7} parent=11 // pred_check
        %p134 = pneg %p70
      $region14: #{fpn_forward.7} parent=11 // pred_check_branch
        %136 = sbr.rel (%p134) target = $region16
      $region15: #{fpn_forward.7} parent=11 // pred_region
        _
      $region16: #{fpn_forward.7} parent=11 // pred_fallthru
        _
      // Predicated region
      $region17: #{fpn_forward.7} parent=11 // pred_check
        %p137 = pneg %p91
      $region18: #{fpn_forward.7} parent=11 // pred_check_branch
        %139 = sbr.rel (%p137) target = $region20
      $region19: #{fpn_forward.7} parent=11 // pred_region
        _
      $region20: #{fpn_forward.7} parent=11 // pred_fallthru
        _
    $region12: #{fpn_forward.7} parent=5 // pred_fallthru
      _
    %p140 = scmp.lt.s32.totalorder %s9, 2
    // Predicated region
    $region21: #{fpn_forward.7} parent=5 // pred_check
      %p141 = pneg %p140
    $region22: #{fpn_forward.7} parent=5 // pred_check_branch
      %143 = sbr.rel (%p141) target = $region24
    $region23: #{fpn_forward.7} parent=5 // pred_region
      // Predicated region
      $region25: #{fpn_forward.7} parent=23 // pred_check
        %p144 = pneg %p43
      $region26: #{fpn_forward.7} parent=23 // pred_check_branch
        %146 = sbr.rel (%p144) target = $region28
      $region27: #{fpn_forward.7} parent=23 // pred_region
        %s147 = smul.u32 2, %s17
        %p148 = scmp.lt.s32.totalorder %s16, 1
        %s149 = scalar_select %p148, %s16, 1
        %p150 = scmp.lt.s32.totalorder %s147, 1
        %s151 = scalar_select %p150, %s147, 1
        %s152 = smul.addr %s149, 2
        %s153 = sadd.s32 %s151, %s152
        %s154 = smul.addr %s153, 4
        %s155 = scalar_lea.vmem %s0, %s154
        %s156 = smul.u32 2, %s17
      $region28: #{fpn_forward.7} parent=23 // pred_fallthru
        _
    $region24: #{fpn_forward.7} parent=5 // pred_fallthru
      _
    %p157 = scmp.le.s32.totalorder 1, %s9
    %p158 = scmp.lt.s32.totalorder %s9, 3
    %p159 = pnand %p157, %p158
    %p160 = pneg %p159
    // Predicated region
    $region29: #{fpn_forward.7} parent=5 // pred_check
      _
    $region30: #{fpn_forward.7} parent=5 // pred_check_branch
      %162 = sbr.rel (%p159) target = $region32
    $region31: #{fpn_forward.7} parent=5 // pred_region
      %s163 = ssub.s32 %s9, 1
      %s164 = smul.u32 2, %s19
      %p165 = scmp.lt.s32.totalorder %s18, 1
      %s166 = scalar_select %p165, %s18, 1
      %p167 = scmp.lt.s32.totalorder %s164, 1
      %s168 = scalar_select %p167, %s164, 1
      %s169 = smul.addr %s166, 2
      %s170 = sadd.s32 %s168, %s169
      %s171 = smul.addr %s170, 4
      %s172 = scalar_lea.vmem %s0, %s171
      %p173 = pneg %p49
      %p174 = pneg %p46
      %p175 = pneg %p70
      %p176 = pneg %p67
      %p177 = pneg %p91
      %p178 = pneg %p88
      %p179 = pneg %p119
      %p180 = pneg %p116
      %s181 = smul.u32 2, %s19
      %p182 = scmp.lt.s32.totalorder %s18, 1
      %s183 = scalar_select %p182, %s18, 1
      %p184 = scmp.lt.s32.totalorder %s181, 1
      %s185 = scalar_select %p184, %s181, 1
      %s186 = smul.addr %s183, 2
      %s187 = sadd.s32 %s185, %s186
      %s188 = smul.addr %s187, 4
      %s189 = scalar_lea.vmem %s3, %s188
      %s190 = smul.u32 2, %s19
      %p191 = scmp.lt.s32.totalorder %s18, 1
      %s192 = scalar_select %p191, %s18, 1
      %p193 = scmp.lt.s32.totalorder %s190, 1
      %s194 = scalar_select %p193, %s190, 1
      %s195 = smul.addr %s192, 2
      %s196 = sadd.s32 %s194, %s195
      %s197 = smul.addr %s196, 4
      %s198 = scalar_lea.vmem %s0, %s197
      %s199 = smul.u32 2, %s19
      %s200 = smul.u32 2, %s19
      %p201 = scmp.lt.s32.totalorder %s18, 1
      %s202 = scalar_select %p201, %s18, 1
      %p203 = scmp.lt.s32.totalorder %s200, 1
      %s204 = scalar_select %p203, %s200, 1
      %s205 = smul.addr %s202, 2
      %s206 = sadd.s32 %s204, %s205
      %s207 = smul.addr %s206, 4
      %s208 = scalar_lea.vmem %s3, %s207
      %s209 = smul.u32 2, %s19
      %v210 = vld [vmem:[%s198] sm:$0xf]
      %v211 = vld [vmem:[%s198 + $0x4] sm:$0xf]
      %v212 = vld [vmem:[%s1] sm:$0xf]
      %v213 = vld [vmem:[%s1 + $0x4] sm:$0xf]
      %v214 = vld [vmem:[%s1 + $0x8] sm:$0xf]
      %v215 = vld [vmem:[%s1 + $0xc] sm:$0xf]
      %v216 = vld [vmem:[%s1 + $0x10] sm:$0xf]
      %v217 = vld [vmem:[%s1 + $0x14] sm:$0xf]
      %v218 = vld [vmem:[%s1 + $0x18] sm:$0xf]
      %v219 = vld [vmem:[%s1 + $0x1c] sm:$0xf]
      %v220 = vld [vmem:[%s1 + $0x20] sm:$0xf]
      %v221 = vld [vmem:[%s1 + $0x24] sm:$0xf]
      %v222 = vld [vmem:[%s1 + $0x28] sm:$0xf]
      %v223 = vld [vmem:[%s1 + $0x2c] sm:$0xf]
      %v224 = vld [vmem:[%s1 + $0x30] sm:$0xf]
      %v225 = vld [vmem:[%s1 + $0x34] sm:$0xf]
      %v226 = vld [vmem:[%s1 + $0x38] sm:$0xf]
      %v227 = vld [vmem:[%s1 + $0x3c] sm:$0xf]
      %v228 = vld [vmem:[%s2] sm:$0x1]
      %v230 = vperm.slane %v228, 0
      %v234 = vunpack.c.l.b16 %v210
      %v235 = vunpack.c.l.b16 %v211
      %v236 = vpack.c.b16 %v235, %v234
      %v254 = vunpack.c.l.b16 %v212
      %v255 = vunpack.c.l.b16 %v213
      %v256 = vunpack.c.l.b16 %v214
      %v257 = vunpack.c.l.b16 %v215
      %v258 = vunpack.c.l.b16 %v216
      %v259 = vunpack.c.l.b16 %v217
      %v260 = vunpack.c.l.b16 %v218
      %v261 = vunpack.c.l.b16 %v219
      %v262 = vunpack.c.l.b16 %v220
      %v263 = vunpack.c.l.b16 %v221
      %v264 = vunpack.c.l.b16 %v222
      %v265 = vunpack.c.l.b16 %v223
      %v266 = vunpack.c.l.b16 %v224
      %v267 = vunpack.c.l.b16 %v225
      %v268 = vunpack.c.l.b16 %v226
      %v269 = vunpack.c.l.b16 %v227
      %v270 = vpack.c.b16 %v255, %v254
      %v271 = vpack.c.b16 %v257, %v256
      %v272 = vpack.c.b16 %v259, %v258
      %v273 = vpack.c.b16 %v261, %v260
      %v274 = vpack.c.b16 %v263, %v262
      %v275 = vpack.c.b16 %v265, %v264
      %v276 = vpack.c.b16 %v267, %v266
      %v277 = vpack.c.b16 %v269, %v268
      %286 = vmatpush.bf16.msra.mxu0 %v277
      %287 = vmatpush.bf16.msra.mxu0 %v276
      %288 = vmatpush.bf16.msra.mxu0 %v275
      %289 = vmatpush.bf16.msra.mxu0 %v274
      %290 = vmatpush.bf16.msra.mxu0 %v273
      %291 = vmatpush.bf16.msra.mxu0 %v272
      %292 = vmatpush.bf16.msra.mxu0 %v271
      %293 = vmatpush.bf16.msra.mxu0 %v270
      %294 = vmatmul.bf16.gmra.mxu0 %v236
      %v295 = vpop.f32.mrf.mxu0
      %v296 = vadd.f32 %v230, %v295
      %v297 = vpop.f32.mrf.mxu0
      %v298 = vadd.f32 %v230, %v297
      %299 = vdwg.mxu0
      %v300 = vpack.c.bf16 %v296, %v296
      %v301 = vpack.c.bf16 %v298, %v298
      %302 = vst [vmem:[%s208] sm:$0xf] %v300
      %303 = vst [vmem:[%s208 + $0x4] sm:$0xf] %v301
      %s304 = smul.u32 2, %s19
      %p305 = scmp.lt.s32.totalorder %s18, 1
      %s306 = scalar_select %p305, %s18, 1
      %p307 = scmp.lt.s32.totalorder %s304, 1
      %s308 = scalar_select %p307, %s304, 1
      %s309 = smul.addr %s306, 2
      %s310 = sadd.s32 %s308, %s309
      %s311 = smul.addr %s310, 4
      %s312 = scalar_lea.vmem %s3, %s311
      // Predicated region
      $region33: #{fpn_forward.7} parent=31 // pred_check
        %p313 = pneg %p116
      $region34: #{fpn_forward.7} parent=31 // pred_check_branch
        %315 = sbr.rel (%p313) target = $region36
      $region35: #{fpn_forward.7} parent=31 // pred_region
        %s316 = smul.u32 2, %s19
      $region36: #{fpn_forward.7} parent=31 // pred_fallthru
        _
    $region32: #{fpn_forward.7} parent=5 // pred_fallthru
      _
    %p317 = scmp.le.s32.totalorder 2, %s9
    // Predicated region
    $region37: #{fpn_forward.7} parent=5 // pred_check
      %p318 = pneg %p317
    $region38: #{fpn_forward.7} parent=5 // pred_check_branch
      %320 = sbr.rel (%p318) target = $region40
    $region39: #{fpn_forward.7} parent=5 // pred_region
      %s321 = ssub.s32 %s9, 2
      // Predicated region
      $region41: #{fpn_forward.7} parent=39 // pred_check
        %p322 = pneg %p122
      $region42: #{fpn_forward.7} parent=39 // pred_check_branch
        %324 = sbr.rel (%p322) target = $region44
      $region43: #{fpn_forward.7} parent=39 // pred_region
        %s325 = smul.u32 2, %s21
        %p326 = scmp.lt.s32.totalorder %s20, 1
        %s327 = scalar_select %p326, %s20, 1
        %p328 = scmp.lt.s32.totalorder %s325, 1
        %s329 = scalar_select %p328, %s325, 1
        %s330 = smul.addr %s327, 2
        %s331 = sadd.s32 %s329, %s330
        %s332 = smul.addr %s331, 4
        %s333 = scalar_lea.vmem %s3, %s332
      $region44: #{fpn_forward.7} parent=39 // pred_fallthru
        _
    $region40: #{fpn_forward.7} parent=5 // pred_fallthru
      _
  $region6: #{fpn_forward.7} parent=0 // loop_footer
    %s13 = sadd.s32 1, %s9
  $region7: #{fpn_forward.7} parent=0 // loop_footer_branch
    %8 = sbr.rel target = $region3
  $region8: #{fpn_forward.7} parent=0 // loop_exit
    _

// kernel: fpn_forward.9
$region0: #{fpn_forward.9}
  #allocation0 [shape = 'u32[]', space=smem, size = 0x4, offset = 0x4, fixed_abs, tag = 'smem constant byte address 0x4 - core index']
  #allocation1 [shape = 'u32[72,128]{1,0:T(1,128)}', space=vmem, size = 0x9000, scoped, tag = 'internal scratch']
  %s0 = inlined_call_operand.vmem [shape: bf16[2,64,128], index: 0, kind: input, shape index: {}]
  %s1 = inlined_call_operand.vmem [shape: bf16[2,16,128], index: 1, kind: input, shape index: {}]
  %s2 = inlined_call_operand.vmem [shape: bf16[8,4], index: 2, kind: input, shape index: {}]
  %s3 = inlined_call_operand.vmem [shape: bf16[128,128], index: 3, kind: input, shape index: {}]
  %s4 = inlined_call_operand.vmem [shape: f32[1,128], index: 4, kind: input, shape index: {}]
  %s5 = inlined_call_operand.vmem [shape: bf16[2,64,128], index: 5, kind: output, shape index: {}]
  %s6 = sld [smem:[#allocation0]]
  $region53: #{fpn_forward.9} parent=0
    _
  %s8 = ssub.s32 1, %s6
  %s9 = scalar_select 0, %s8, %s6
  loop: start=0, step=1, limit=4
  $region2: #{fpn_forward.9} parent=0 // loop_pre_header
    _
  $region3: #{fpn_forward.9} parent=0 // loop_header
    %s11 = sphi 0, %s15
    %p12 = scmp.ge.s32.totalorder %s11, 4
    %s18 = sphi 0, %s30
    %s19 = sphi 0, %s26
    %s20 = sphi 0, %s18
    %s21 = sphi 0, %s19
    %s22 = sphi 0, %s20
    %s23 = sphi 0, %s21
    %s35 = sphi 0, %s37
    %s38 = sphi 0, %s35
    %s39 = sphi 0, %s38
    %s55 = sphi 0, %s39
    %s63 = sphi 0, %s65
    %s66 = sphi 0, %s63
    %s67 = sphi 0, %s66
    %s83 = sphi 0, %s67
    %s87 = sphi 0, %s87
    %s89 = sphi 0, %s87
    %s90 = sphi 0, %s89
    %s104 = sphi 0, %s90
    %s108 = sphi 0, %s108
    %s110 = sphi 0, %s108
    %s111 = sphi 0, %s110
    %s125 = sphi 0, %s111
    %s129 = sphi 0, %s129
    %s131 = sphi 0, %s129
    %s132 = sphi 0, %s131
    %s146 = sphi 0, %s132
    %s154 = sphi 0, %s156
    %s157 = sphi 0, %s154
    %s158 = sphi 0, %s157
    %s174 = sphi 0, %s158
  $region4: #{fpn_forward.9} parent=0 // loop_header_branch
    %14 = sbr.rel (%p12) target = $region8
  $region5: #{fpn_forward.9} parent=0 // loop_body
    %s16 = ssub.s32 %s11, 1
    %s17 = ssub.s32 %s11, 2
    %s24 = sadd.s32 1, %s19
    %p25 = scmp.ge.s32.totalorder %s24, 1
    %s26 = scalar_select %p25, 0, %s24
    %s27 = sadd.s32 1, %s18
    %s28 = scalar_select %p25, %s27, %s18
    %p29 = scmp.ge.s32.totalorder %s28, 2
    %s30 = scalar_select %p29, 0, %s28
    %s31 = ssub.s32 %s18, %s30
    %s32 = ssub.s32 %s19, %s26
    %s33 = sor.u32 %s31, %s32
    %p34 = scmp.eq.s32.totalorder %s33, 0
    %s36 = sadd.s32 %s35, 1
    %s37 = scalar_select %p34, %s35, %s36
    %p40 = pneg %p34
    %p41 = scmp.eq.s32.totalorder %s11, 1
    %p42 = por %p40, %p41
    %p43 = scmp.ne.s32.totalorder %s35, %s38
    %p44 = scmp.eq.s32.totalorder %s11, 0
    %p45 = por %p43, %p44
    %p46 = scmp.ne.s32.totalorder %s35, %s38
    %p47 = scmp.eq.s32.totalorder %s16, 1
    %p48 = por %p46, %p47
    %p49 = scmp.ne.s32.totalorder %s38, %s39
    %p50 = scmp.eq.s32.totalorder %s16, 0
    %p51 = por %p49, %p50
    %p52 = scmp.ne.s32.totalorder %s38, %s39
    %p53 = scmp.eq.s32.totalorder %s17, 1
    %p54 = por %p52, %p53
    %p56 = scmp.ne.s32.totalorder %s39, %s55
    %p57 = scmp.eq.s32.totalorder %s17, 0
    %p58 = por %p56, %p57
    %s59 = ssub.s32 %s18, %s30
    %s60 = ssub.s32 %s19, %s26
    %s61 = sor.u32 %s59, %s60
    %p62 = scmp.eq.s32.totalorder %s61, 0
    %s64 = sadd.s32 %s63, 1
    %s65 = scalar_select %p62, %s63, %s64
    %p68 = pneg %p62
    %p69 = scmp.eq.s32.totalorder %s11, 1
    %p70 = por %p68, %p69
    %p71 = scmp.ne.s32.totalorder %s63, %s66
    %p72 = scmp.eq.s32.totalorder %s11, 0
    %p73 = por %p71, %p72
    %p74 = scmp.ne.s32.totalorder %s63, %s66
    %p75 = scmp.eq.s32.totalorder %s16, 1
    %p76 = por %p74, %p75
    %p77 = scmp.ne.s32.totalorder %s66, %s67
    %p78 = scmp.eq.s32.totalorder %s16, 0
    %p79 = por %p77, %p78
    %p80 = scmp.ne.s32.totalorder %s66, %s67
    %p81 = scmp.eq.s32.totalorder %s17, 1
    %p82 = por %p80, %p81
    %p84 = scmp.ne.s32.totalorder %s67, %s83
    %p85 = scmp.eq.s32.totalorder %s17, 0
    %p86 = por %p84, %p85
    %s88 = sadd.s32 %s87, 1
    %p91 = scmp.eq.s32.totalorder %s11, 1
    %p92 = scmp.ne.s32.totalorder %s87, %s89
    %p93 = scmp.eq.s32.totalorder %s11, 0
    %p94 = por %p92, %p93
    %p95 = scmp.ne.s32.totalorder %s87, %s89
    %p96 = scmp.eq.s32.totalorder %s16, 1
    %p97 = por %p95, %p96
    %p98 = scmp.ne.s32.totalorder %s89, %s90
    %p99 = scmp.eq.s32.totalorder %s16, 0
    %p100 = por %p98, %p99
    %p101 = scmp.ne.s32.totalorder %s89, %s90
    %p102 = scmp.eq.s32.totalorder %s17, 1
    %p103 = por %p101, %p102
    %p105 = scmp.ne.s32.totalorder %s90, %s104
    %p106 = scmp.eq.s32.totalorder %s17, 0
    %p107 = por %p105, %p106
    %s109 = sadd.s32 %s108, 1
    %p112 = scmp.eq.s32.totalorder %s11, 1
    %p113 = scmp.ne.s32.totalorder %s108, %s110
    %p114 = scmp.eq.s32.totalorder %s11, 0
    %p115 = por %p113, %p114
    %p116 = scmp.ne.s32.totalorder %s108, %s110
    %p117 = scmp.eq.s32.totalorder %s16, 1
    %p118 = por %p116, %p117
    %p119 = scmp.ne.s32.totalorder %s110, %s111
    %p120 = scmp.eq.s32.totalorder %s16, 0
    %p121 = por %p119, %p120
    %p122 = scmp.ne.s32.totalorder %s110, %s111
    %p123 = scmp.eq.s32.totalorder %s17, 1
    %p124 = por %p122, %p123
    %p126 = scmp.ne.s32.totalorder %s111, %s125
    %p127 = scmp.eq.s32.totalorder %s17, 0
    %p128 = por %p126, %p127
    %s130 = sadd.s32 %s129, 1
    %p133 = scmp.eq.s32.totalorder %s11, 1
    %p134 = scmp.ne.s32.totalorder %s129, %s131
    %p135 = scmp.eq.s32.totalorder %s11, 0
    %p136 = por %p134, %p135
    %p137 = scmp.ne.s32.totalorder %s129, %s131
    %p138 = scmp.eq.s32.totalorder %s16, 1
    %p139 = por %p137, %p138
    %p140 = scmp.ne.s32.totalorder %s131, %s132
    %p141 = scmp.eq.s32.totalorder %s16, 0
    %p142 = por %p140, %p141
    %p143 = scmp.ne.s32.totalorder %s131, %s132
    %p144 = scmp.eq.s32.totalorder %s17, 1
    %p145 = por %p143, %p144
    %p147 = scmp.ne.s32.totalorder %s132, %s146
    %p148 = scmp.eq.s32.totalorder %s17, 0
    %p149 = por %p147, %p148
    %s150 = ssub.s32 %s18, %s30
    %s151 = ssub.s32 %s19, %s26
    %s152 = sor.u32 %s150, %s151
    %p153 = scmp.eq.s32.totalorder %s152, 0
    %s155 = sadd.s32 %s154, 1
    %s156 = scalar_select %p153, %s154, %s155
    %p159 = pneg %p153
    %p160 = scmp.eq.s32.totalorder %s11, 1
    %p161 = por %p159, %p160
    %p162 = scmp.ne.s32.totalorder %s154, %s157
    %p163 = scmp.eq.s32.totalorder %s11, 0
    %p164 = por %p162, %p163
    %p165 = scmp.ne.s32.totalorder %s154, %s157
    %p166 = scmp.eq.s32.totalorder %s16, 1
    %p167 = por %p165, %p166
    %p168 = scmp.ne.s32.totalorder %s157, %s158
    %p169 = scmp.eq.s32.totalorder %s16, 0
    %p170 = por %p168, %p169
    %p171 = scmp.ne.s32.totalorder %s157, %s158
    %p172 = scmp.eq.s32.totalorder %s17, 1
    %p173 = por %p171, %p172
    %p175 = scmp.ne.s32.totalorder %s158, %s174
    %p176 = scmp.eq.s32.totalorder %s17, 0
    %p177 = por %p175, %p176
    %p178 = scmp.le.s32.totalorder 1, %s11
    %p179 = scmp.lt.s32.totalorder %s11, 3
    %p180 = pnand %p178, %p179
    %p181 = pneg %p180
    // Predicated region
    $region9: #{fpn_forward.9} parent=5 // pred_check
      _
    $region10: #{fpn_forward.9} parent=5 // pred_check_branch
      %183 = sbr.rel (%p180) target = $region12
    $region11: #{fpn_forward.9} parent=5 // pred_region
      %s184 = ssub.s32 %s11, 1
      // Predicated region
      $region13: #{fpn_forward.9} parent=11 // pred_check
        %p185 = pneg %p100
      $region14: #{fpn_forward.9} parent=11 // pred_check_branch
        %187 = sbr.rel (%p185) target = $region16
      $region15: #{fpn_forward.9} parent=11 // pred_region
        _
      $region16: #{fpn_forward.9} parent=11 // pred_fallthru
        _
      // Predicated region
      $region17: #{fpn_forward.9} parent=11 // pred_check
        %p188 = pneg %p121
      $region18: #{fpn_forward.9} parent=11 // pred_check_branch
        %190 = sbr.rel (%p188) target = $region20
      $region19: #{fpn_forward.9} parent=11 // pred_region
        _
      $region20: #{fpn_forward.9} parent=11 // pred_fallthru
        _
      // Predicated region
      $region21: #{fpn_forward.9} parent=11 // pred_check
        %p191 = pneg %p142
      $region22: #{fpn_forward.9} parent=11 // pred_check_branch
        %193 = sbr.rel (%p191) target = $region24
      $region23: #{fpn_forward.9} parent=11 // pred_region
        _
      $region24: #{fpn_forward.9} parent=11 // pred_fallthru
        _
    $region12: #{fpn_forward.9} parent=5 // pred_fallthru
      _
    %p194 = scmp.lt.s32.totalorder %s11, 2
    // Predicated region
    $region25: #{fpn_forward.9} parent=5 // pred_check
      %p195 = pneg %p194
    $region26: #{fpn_forward.9} parent=5 // pred_check_branch
      %197 = sbr.rel (%p195) target = $region28
    $region27: #{fpn_forward.9} parent=5 // pred_region
      // Predicated region
      $region29: #{fpn_forward.9} parent=27 // pred_check
        %p198 = pneg %p45
      $region30: #{fpn_forward.9} parent=27 // pred_check_branch
        %200 = sbr.rel (%p198) target = $region32
      $region31: #{fpn_forward.9} parent=27 // pred_region
        %s201 = smul.u32 8, %s19
        %p202 = scmp.lt.s32.totalorder %s18, 1
        %s203 = scalar_select %p202, %s18, 1
        %p204 = scmp.lt.s32.totalorder %s201, 7
        %s205 = scalar_select %p204, %s201, 7
        %s206 = smul.addr %s203, 8
        %s207 = sadd.s32 %s205, %s206
        %s208 = smul.addr %s207, 4
        %s209 = scalar_lea.vmem %s0, %s208
        %s210 = smul.u32 8, %s19
      $region32: #{fpn_forward.9} parent=27 // pred_fallthru
        _
      // Predicated region
      $region33: #{fpn_forward.9} parent=27 // pred_check
        %p211 = pneg %p73
      $region34: #{fpn_forward.9} parent=27 // pred_check_branch
        %213 = sbr.rel (%p211) target = $region36
      $region35: #{fpn_forward.9} parent=27 // pred_region
        %s214 = smul.u32 2, %s19
        %p215 = scmp.lt.s32.totalorder %s18, 1
        %s216 = scalar_select %p215, %s18, 1
        %p217 = scmp.lt.s32.totalorder %s214, 1
        %s218 = scalar_select %p217, %s214, 1
        %s219 = smul.addr %s216, 2
        %s220 = sadd.s32 %s218, %s219
        %s221 = smul.addr %s220, 4
        %s222 = scalar_lea.vmem %s1, %s221
        %s223 = smul.u32 2, %s19
      $region36: #{fpn_forward.9} parent=27 // pred_fallthru
        _
    $region28: #{fpn_forward.9} parent=5 // pred_fallthru
      _
    %p224 = scmp.le.s32.totalorder 1, %s11
    %p225 = scmp.lt.s32.totalorder %s11, 3
    %p226 = pnand %p224, %p225
    %p227 = pneg %p226
    // Predicated region
    $region37: #{fpn_forward.9} parent=5 // pred_check
      _
    $region38: #{fpn_forward.9} parent=5 // pred_check_branch
      %229 = sbr.rel (%p226) target = $region40
    $region39: #{fpn_forward.9} parent=5 // pred_region
      %s230 = ssub.s32 %s11, 1
      %s231 = smul.u32 8, %s21
      %p232 = scmp.lt.s32.totalorder %s20, 1
      %s233 = scalar_select %p232, %s20, 1
      %p234 = scmp.lt.s32.totalorder %s231, 7
      %s235 = scalar_select %p234, %s231, 7
      %s236 = smul.addr %s233, 8
      %s237 = sadd.s32 %s235, %s236
      %s238 = smul.addr %s237, 4
      %s239 = scalar_lea.vmem %s0, %s238
      %p240 = pneg %p51
      %p241 = pneg %p48
      %s242 = smul.u32 2, %s21
      %p243 = scmp.lt.s32.totalorder %s20, 1
      %s244 = scalar_select %p243, %s20, 1
      %p245 = scmp.lt.s32.totalorder %s242, 1
      %s246 = scalar_select %p245, %s242, 1
      %s247 = smul.addr %s244, 2
      %s248 = sadd.s32 %s246, %s247
      %s249 = smul.addr %s248, 4
      %s250 = scalar_lea.vmem %s1, %s249
      %p251 = pneg %p79
      %p252 = pneg %p76
      %p253 = pneg %p100
      %p254 = pneg %p97
      %p255 = pneg %p121
      %p256 = pneg %p118
      %p257 = pneg %p142
      %p258 = pneg %p139
      %p259 = pneg %p170
      %p260 = pneg %p167
      %s261 = smul.u32 8, %s21
      %p262 = scmp.lt.s32.totalorder %s20, 1
      %s263 = scalar_select %p262, %s20, 1
      %p264 = scmp.lt.s32.totalorder %s261, 7
      %s265 = scalar_select %p264, %s261, 7
      %s266 = smul.addr %s263, 8
      %s267 = sadd.s32 %s265, %s266
      %s268 = smul.addr %s267, 4
      %s269 = scalar_lea.vmem %s5, %s268
      %s270 = smul.u32 8, %s21
      %p271 = scmp.lt.s32.totalorder %s20, 1
      %s272 = scalar_select %p271, %s20, 1
      %p273 = scmp.lt.s32.totalorder %s270, 7
      %s274 = scalar_select %p273, %s270, 7
      %s275 = smul.addr %s272, 8
      %s276 = sadd.s32 %s274, %s275
      %s277 = smul.addr %s276, 4
      %s278 = scalar_lea.vmem %s0, %s277
      %s279 = smul.u32 8, %s21
      %s280 = smul.u32 2, %s21
      %p281 = scmp.lt.s32.totalorder %s20, 1
      %s282 = scalar_select %p281, %s20, 1
      %p283 = scmp.lt.s32.totalorder %s280, 1
      %s284 = scalar_select %p283, %s280, 1
      %s285 = smul.addr %s282, 2
      %s286 = sadd.s32 %s284, %s285
      %s287 = smul.addr %s286, 4
      %s288 = scalar_lea.vmem %s1, %s287
      %s289 = smul.u32 2, %s21
      %s290 = smul.u32 8, %s21
      %p291 = scmp.lt.s32.totalorder %s20, 1
      %s292 = scalar_select %p291, %s20, 1
      %p293 = scmp.lt.s32.totalorder %s290, 7
      %s294 = scalar_select %p293, %s290, 7
      %s295 = smul.addr %s292, 8
      %s296 = sadd.s32 %s294, %s295
      %s297 = smul.addr %s296, 4
      %s298 = scalar_lea.vmem %s5, %s297
      %s299 = smul.u32 8, %s21
      %v301 = vld [vmem:[%s278] sm:$0xf]
      %v302 = vld [vmem:[%s278 + $0x4] sm:$0xf]
      %v303 = vld [vmem:[%s278 + $0x8] sm:$0xf]
      %v304 = vld [vmem:[%s278 + $0xc] sm:$0xf]
      %v305 = vld [vmem:[%s278 + $0x10] sm:$0xf]
      %v306 = vld [vmem:[%s278 + $0x14] sm:$0xf]
      %v307 = vld [vmem:[%s278 + $0x18] sm:$0xf]
      %v308 = vld [vmem:[%s278 + $0x1c] sm:$0xf]
      %v309 = vld [vmem:[%s3] sm:$0xf]
      %v310 = vld [vmem:[%s3 + $0x4] sm:$0xf]
      %v311 = vld [vmem:[%s3 + $0x8] sm:$0xf]
      %v312 = vld [vmem:[%s3 + $0xc] sm:$0xf]
      %v313 = vld [vmem:[%s3 + $0x10] sm:$0xf]
      %v314 = vld [vmem:[%s3 + $0x14] sm:$0xf]
      %v315 = vld [vmem:[%s3 + $0x18] sm:$0xf]
      %v316 = vld [vmem:[%s3 + $0x1c] sm:$0xf]
      %v317 = vld [vmem:[%s3 + $0x20] sm:$0xf]
      %v318 = vld [vmem:[%s3 + $0x24] sm:$0xf]
      %v319 = vld [vmem:[%s3 + $0x28] sm:$0xf]
      %v320 = vld [vmem:[%s3 + $0x2c] sm:$0xf]
      %v321 = vld [vmem:[%s3 + $0x30] sm:$0xf]
      %v322 = vld [vmem:[%s3 + $0x34] sm:$0xf]
      %v323 = vld [vmem:[%s3 + $0x38] sm:$0xf]
      %v324 = vld [vmem:[%s3 + $0x3c] sm:$0xf]
      %v325 = vld [vmem:[%s4] sm:$0x1]
      %v327 = vperm.slane %v325, 0
      %v337 = vunpack.c.l.b16 %v301
      %v338 = vunpack.c.l.b16 %v302
      %v339 = vunpack.c.l.b16 %v303
      %v340 = vunpack.c.l.b16 %v304
      %v341 = vunpack.c.l.b16 %v305
      %v342 = vunpack.c.l.b16 %v306
      %v343 = vunpack.c.l.b16 %v307
      %v344 = vunpack.c.l.b16 %v308
      %v345 = vpack.c.b16 %v338, %v337
      %v346 = vpack.c.b16 %v340, %v339
      %v347 = vpack.c.b16 %v342, %v341
      %v348 = vpack.c.b16 %v344, %v343
      %v369 = vunpack.c.l.b16 %v309
      %v370 = vunpack.c.l.b16 %v310
      %v371 = vunpack.c.l.b16 %v311
      %v372 = vunpack.c.l.b16 %v312
      %v373 = vunpack.c.l.b16 %v313
      %v374 = vunpack.c.l.b16 %v314
      %v375 = vunpack.c.l.b16 %v315
      %v376 = vunpack.c.l.b16 %v316
      %v377 = vunpack.c.l.b16 %v317
      %v378 = vunpack.c.l.b16 %v318
      %v379 = vunpack.c.l.b16 %v319
      %v380 = vunpack.c.l.b16 %v320
      %v381 = vunpack.c.l.b16 %v321
      %v382 = vunpack.c.l.b16 %v322
      %v383 = vunpack.c.l.b16 %v323
      %v384 = vunpack.c.l.b16 %v324
      %v385 = vpack.c.b16 %v370, %v369
      %v386 = vpack.c.b16 %v372, %v371
      %v387 = vpack.c.b16 %v374, %v373
      %v388 = vpack.c.b16 %v376, %v375
      %v389 = vpack.c.b16 %v378, %v377
      %v390 = vpack.c.b16 %v380, %v379
      %v391 = vpack.c.b16 %v382, %v381
      %v392 = vpack.c.b16 %v384, %v383
      %401 = vmatpush.bf16.msra.mxu0 %v392
      %402 = vmatpush.bf16.msra.mxu0 %v391
      %403 = vmatpush.bf16.msra.mxu0 %v390
      %404 = vmatpush.bf16.msra.mxu0 %v389
      %405 = vmatpush.bf16.msra.mxu0 %v388
      %406 = vmatpush.bf16.msra.mxu0 %v387
      %407 = vmatpush.bf16.msra.mxu0 %v386
      %408 = vmatpush.bf16.msra.mxu0 %v385
      %409 = vmatmul.bf16.gmra.mxu0 %v345
      %v410 = vpop.f32.mrf.mxu0
      %v411 = vadd.f32 %v327, %v410
      %v412 = vpop.f32.mrf.mxu0
      %v413 = vadd.f32 %v327, %v412
      %414 = vmatmul.bf16.gmra.mxu0 %v346
      %v415 = vpop.f32.mrf.mxu0
      %v416 = vadd.f32 %v327, %v415
      %v417 = vpop.f32.mrf.mxu0
      %v418 = vadd.f32 %v327, %v417
      %419 = vmatmul.bf16.gmra.mxu0 %v347
      %v420 = vpop.f32.mrf.mxu0
      %v421 = vadd.f32 %v327, %v420
      %v422 = vpop.f32.mrf.mxu0
      %v423 = vadd.f32 %v327, %v422
      %424 = vmatmul.bf16.gmra.mxu0 %v348
      %v425 = vpop.f32.mrf.mxu0
      %v426 = vadd.f32 %v327, %v425
      %v427 = vpop.f32.mrf.mxu0
      %v428 = vadd.f32 %v327, %v427
      %429 = vdwg.mxu0
      %v430 = vld [vmem:[%s288] sm:$0x3]
      %v431 = vld [vmem:[%s2] sm:$0xf]
      %vm432 = vcmask 31744
      %v434 = vsel %vm432, %v431, 0
      %vm436 = vcmask 1041408
      %v438 = vsel %vm436, %v430, 0
      %440 = vmatpush.bf16.msra.mxu0 0
      %441 = vmatpush.bf16.msra.mxu0 0
      %442 = vmatpush.bf16.msra.mxu0 0
      %443 = vmatpush.bf16.msra.mxu0 0
      %444 = vmatpush.bf16.msra.mxu0 0
      %445 = vmatpush.bf16.msra.mxu0 0
      %446 = vmatpush.bf16.msra.mxu0 0
      %447 = vmatpush.bf16.msra.mxu0 %v438
      %448 = vmatmul.bf16.gmra.mxu0 %v434
      %v449 = vpop.f32.mrf.mxu0
      %v450 = vadd.f32 0.0, %v449
      %v451 = vpop.f32.mrf.mxu0
      %452 = vdwg.mxu0
      %v453 = vld [vmem:[%s288] sm:$0xc]
      %v455 = vunpack.c.l.b16 %v453
      %v456 = vpack.c.b16 %v455, %v455
      %v457 = vrot.slane %v456, 2
      %v459 = vsel %vm436, %v457, 0
      %461 = vmatpush.bf16.msra.mxu0 0
      %462 = vmatpush.bf16.msra.mxu0 0
      %463 = vmatpush.bf16.msra.mxu0 0
      %464 = vmatpush.bf16.msra.mxu0 0
      %465 = vmatpush.bf16.msra.mxu0 0
      %466 = vmatpush.bf16.msra.mxu0 0
      %467 = vmatpush.bf16.msra.mxu0 0
      %468 = vmatpush.bf16.msra.mxu0 %v459
      %469 = vmatmul.bf16.gmra.mxu0 %v434
      %v470 = vpop.f32.mrf.mxu0
      %v471 = vadd.f32 0.0, %v470
      %v472 = vpop.f32.mrf.mxu0
      %473 = vdwg.mxu0
      %v474 = vld [vmem:[%s288 + $0x4] sm:$0x3]
      %v476 = vsel %vm436, %v474, 0
      %478 = vmatpush.bf16.msra.mxu0 0
      %479 = vmatpush.bf16.msra.mxu0 0
      %480 = vmatpush.bf16.msra.mxu0 0
      %481 = vmatpush.bf16.msra.mxu0 0
      %482 = vmatpush.bf16.msra.mxu0 0
      %483 = vmatpush.bf16.msra.mxu0 0
      %484 = vmatpush.bf16.msra.mxu0 0
      %485 = vmatpush.bf16.msra.mxu0 %v476
      %486 = vmatmul.bf16.gmra.mxu0 %v434
      %v487 = vpop.f32.mrf.mxu0
      %v488 = vadd.f32 0.0, %v487
      %v489 = vpop.f32.mrf.mxu0
      %490 = vdwg.mxu0
      %v491 = vld [vmem:[%s288 + $0x4] sm:$0xc]
      %v493 = vunpack.c.l.b16 %v491
      %v494 = vpack.c.b16 %v493, %v493
      %v495 = vrot.slane %v494, 2
      %v497 = vsel %vm436, %v495, 0
      %499 = vmatpush.bf16.msra.mxu0 0
      %500 = vmatpush.bf16.msra.mxu0 0
      %501 = vmatpush.bf16.msra.mxu0 0
      %502 = vmatpush.bf16.msra.mxu0 0
      %503 = vmatpush.bf16.msra.mxu0 0
      %504 = vmatpush.bf16.msra.mxu0 0
      %505 = vmatpush.bf16.msra.mxu0 0
      %506 = vmatpush.bf16.msra.mxu0 %v497
      %507 = vmatmul.bf16.gmra.mxu0 %v434
      %v508 = vpop.f32.mrf.mxu0
      %v509 = vadd.f32 0.0, %v508
      %v510 = vpop.f32.mrf.mxu0
      %511 = vdwg.mxu0
      %v512 = vadd.f32 %v411, %v450
      %v513 = vadd.f32 %v413, %v450
      %v514 = vadd.f32 %v416, %v471
      %v515 = vadd.f32 %v418, %v471
      %v516 = vadd.f32 %v421, %v488
      %v517 = vadd.f32 %v423, %v488
      %v518 = vadd.f32 %v426, %v509
      %v519 = vadd.f32 %v428, %v509
      %v520 = vpack.c.bf16 %v512, %v512
      %v521 = vpack.c.bf16 %v513, %v513
      %v522 = vpack.c.bf16 %v514, %v514
      %v523 = vpack.c.bf16 %v515, %v515
      %v524 = vpack.c.bf16 %v516, %v516
      %v525 = vpack.c.bf16 %v517, %v517
      %v526 = vpack.c.bf16 %v518, %v518
      %v527 = vpack.c.bf16 %v519, %v519
      %528 = vst [vmem:[%s298] sm:$0xf] %v520
      %529 = vst [vmem:[%s298 + $0x4] sm:$0xf] %v521
      %530 = vst [vmem:[%s298 + $0x8] sm:$0xf] %v522
      %531 = vst [vmem:[%s298 + $0xc] sm:$0xf] %v523
      %532 = vst [vmem:[%s298 + $0x10] sm:$0xf] %v524
      %533 = vst [vmem:[%s298 + $0x14] sm:$0xf] %v525
      %534 = vst [vmem:[%s298 + $0x18] sm:$0xf] %v526
      %535 = vst [vmem:[%s298 + $0x1c] sm:$0xf] %v527
      %s536 = smul.u32 8, %s21
      %p537 = scmp.lt.s32.totalorder %s20, 1
      %s538 = scalar_select %p537, %s20, 1
      %p539 = scmp.lt.s32.totalorder %s536, 7
      %s540 = scalar_select %p539, %s536, 7
      %s541 = smul.addr %s538, 8
      %s542 = sadd.s32 %s540, %s541
      %s543 = smul.addr %s542, 4
      %s544 = scalar_lea.vmem %s5, %s543
      // Predicated region
      $region41: #{fpn_forward.9} parent=39 // pred_check
        %p545 = pneg %p167
      $region42: #{fpn_forward.9} parent=39 // pred_check_branch
        %547 = sbr.rel (%p545) target = $region44
      $region43: #{fpn_forward.9} parent=39 // pred_region
        %s548 = smul.u32 8, %s21
      $region44: #{fpn_forward.9} parent=39 // pred_fallthru
        _
    $region40: #{fpn_forward.9} parent=5 // pred_fallthru
      _
    %p549 = scmp.le.s32.totalorder 2, %s11
    // Predicated region
    $region45: #{fpn_forward.9} parent=5 // pred_check
      %p550 = pneg %p549
    $region46: #{fpn_forward.9} parent=5 // pred_check_branch
      %552 = sbr.rel (%p550) target = $region48
    $region47: #{fpn_forward.9} parent=5 // pred_region
      %s553 = ssub.s32 %s11, 2
      // Predicated region
      $region49: #{fpn_forward.9} parent=47 // pred_check
        %p554 = pneg %p173
      $region50: #{fpn_forward.9} parent=47 // pred_check_branch
        %556 = sbr.rel (%p554) target = $region52
      $region51: #{fpn_forward.9} parent=47 // pred_region
        %s557 = smul.u32 8, %s23
        %p558 = scmp.lt.s32.totalorder %s22, 1
        %s559 = scalar_select %p558, %s22, 1
        %p560 = scmp.lt.s32.totalorder %s557, 7
        %s561 = scalar_select %p560, %s557, 7
        %s562 = smul.addr %s559, 8
        %s563 = sadd.s32 %s561, %s562
        %s564 = smul.addr %s563, 4
        %s565 = scalar_lea.vmem %s5, %s564
      $region52: #{fpn_forward.9} parent=47 // pred_fallthru
        _
    $region48: #{fpn_forward.9} parent=5 // pred_fallthru
      _
  $region6: #{fpn_forward.9} parent=0 // loop_footer
    %s15 = sadd.s32 1, %s11
  $region7: #{fpn_forward.9} parent=0 // loop_footer_branch
    %10 = sbr.rel target = $region3
  $region8: #{fpn_forward.9} parent=0 // loop_exit
    _

// kernel: fpn_forward.13
$region0: #{fpn_forward.13}
  #allocation0 [shape = 'u32[]', space=smem, size = 0x4, offset = 0x4, fixed_abs, tag = 'smem constant byte address 0x4 - core index']
  #allocation1 [shape = 'u32[72,128]{1,0:T(1,128)}', space=vmem, size = 0x9000, scoped, tag = 'internal scratch']
  %s0 = inlined_call_operand.vmem [shape: bf16[2,32,128], index: 0, kind: input, shape index: {}]
  %s1 = inlined_call_operand.vmem [shape: bf16[2,32,128], index: 1, kind: input, shape index: {}]
  %s2 = inlined_call_operand.vmem [shape: bf16[2,32,128], index: 2, kind: input, shape index: {}]
  %s3 = inlined_call_operand.vmem [shape: bf16[2,32,128], index: 3, kind: input, shape index: {}]
  %s4 = inlined_call_operand.hbm [shape: bf16[9,128,128], index: 4, kind: input, shape index: {}]
  %s5 = inlined_call_operand.vmem [shape: f32[1,128], index: 5, kind: input, shape index: {}]
  %s6 = inlined_call_operand.vmem [shape: bf16[2,16,128], index: 6, kind: output, shape index: {}]
  %s7 = sld [smem:[#allocation0]]
  $region61: #{fpn_forward.13} parent=0
    _
  %s9 = ssub.s32 1, %s7
  %s10 = scalar_select 0, %s9, %s7
  $region1: #{fpn_forward.13} parent=0
    #allocation2 [shape = 'u8[294912]{0}', space=vmem, size = 0x48000, scoped, tag = 'input window, operand 4, single buffered']
    #allocation3 [shape = 's32[2]{0}', space=sflag, size = 0x8, scoped, tag = 'scoped memory for fpn_forward.13']
    %11 = vsyncpa [#allocation3], 0
    loop: start=0, step=1, limit=4
    $region2: #{fpn_forward.13} parent=1 // loop_pre_header
      _
    $region3: #{fpn_forward.13} parent=1 // loop_header
      %s13 = sphi 0, %s17
      %p14 = scmp.ge.s32.totalorder %s13, 4
      %s23 = sphi 0, %s25
      %s26 = sphi 0, %s23
      %s27 = sphi 0, %s26
      %s43 = sphi 0, %s27
      %s49 = sphi 0, %s51
      %s52 = sphi 0, %s49
      %s53 = sphi 0, %s52
      %s69 = sphi 0, %s53
      %s75 = sphi 0, %s77
      %s78 = sphi 0, %s75
      %s79 = sphi 0, %s78
      %s95 = sphi 0, %s79
      %s101 = sphi 0, %s103
      %s104 = sphi 0, %s101
      %s105 = sphi 0, %s104
      %s121 = sphi 0, %s105
      %s125 = sphi 0, %s125
      %s127 = sphi 0, %s125
      %s128 = sphi 0, %s127
      %s142 = sphi 0, %s128
      %s146 = sphi 0, %s146
      %s148 = sphi 0, %s146
      %s149 = sphi 0, %s148
      %s163 = sphi 0, %s149
      %s169 = sphi 0, %s171
      %s172 = sphi 0, %s169
      %s173 = sphi 0, %s172
      %s189 = sphi 0, %s173
    $region4: #{fpn_forward.13} parent=1 // loop_header_branch
      %16 = sbr.rel (%p14) target = $region8
    $region5: #{fpn_forward.13} parent=1 // loop_body
      %s18 = ssub.s32 %s13, 1
      %s19 = ssub.s32 %s13, 2
      %s20 = sadd.s32 %s13, 1
      %s21 = ssub.s32 %s13, %s20
      %p22 = scmp.eq.s32.totalorder %s21, 0
      %s24 = sadd.s32 %s23, 1
      %s25 = scalar_select %p22, %s23, %s24
      %p28 = pneg %p22
      %p29 = scmp.eq.s32.totalorder %s13, 1
      %p30 = por %p28, %p29
      %p31 = scmp.ne.s32.totalorder %s23, %s26
      %p32 = scmp.eq.s32.totalorder %s13, 0
      %p33 = por %p31, %p32
      %p34 = scmp.ne.s32.totalorder %s23, %s26
      %p35 = scmp.eq.s32.totalorder %s18, 1
      %p36 = por %p34, %p35
      %p37 = scmp.ne.s32.totalorder %s26, %s27
      %p38 = scmp.eq.s32.totalorder %s18, 0
      %p39 = por %p37, %p38
      %p40 = scmp.ne.s32.totalorder %s26, %s27
      %p41 = scmp.eq.s32.totalorder %s19, 1
      %p42 = por %p40, %p41
      %p44 = scmp.ne.s32.totalorder %s27, %s43
      %p45 = scmp.eq.s32.totalorder %s19, 0
      %p46 = por %p44, %p45
      %s47 = ssub.s32 %s13, %s20
      %p48 = scmp.eq.s32.totalorder %s47, 0
      %s50 = sadd.s32 %s49, 1
      %s51 = scalar_select %p48, %s49, %s50
      %p54 = pneg %p48
      %p55 = scmp.eq.s32.totalorder %s13, 1
      %p56 = por %p54, %p55
      %p57 = scmp.ne.s32.totalorder %s49, %s52
      %p58 = scmp.eq.s32.totalorder %s13, 0
      %p59 = por %p57, %p58
      %p60 = scmp.ne.s32.totalorder %s49, %s52
      %p61 = scmp.eq.s32.totalorder %s18, 1
      %p62 = por %p60, %p61
      %p63 = scmp.ne.s32.totalorder %s52, %s53
      %p64 = scmp.eq.s32.totalorder %s18, 0
      %p65 = por %p63, %p64
      %p66 = scmp.ne.s32.totalorder %s52, %s53
      %p67 = scmp.eq.s32.totalorder %s19, 1
      %p68 = por %p66, %p67
      %p70 = scmp.ne.s32.totalorder %s53, %s69
      %p71 = scmp.eq.s32.totalorder %s19, 0
      %p72 = por %p70, %p71
      %s73 = ssub.s32 %s13, %s20
      %p74 = scmp.eq.s32.totalorder %s73, 0
      %s76 = sadd.s32 %s75, 1
      %s77 = scalar_select %p74, %s75, %s76
      %p80 = pneg %p74
      %p81 = scmp.eq.s32.totalorder %s13, 1
      %p82 = por %p80, %p81
      %p83 = scmp.ne.s32.totalorder %s75, %s78
      %p84 = scmp.eq.s32.totalorder %s13, 0
      %p85 = por %p83, %p84
      %p86 = scmp.ne.s32.totalorder %s75, %s78
      %p87 = scmp.eq.s32.totalorder %s18, 1
      %p88 = por %p86, %p87
      %p89 = scmp.ne.s32.totalorder %s78, %s79
      %p90 = scmp.eq.s32.totalorder %s18, 0
      %p91 = por %p89, %p90
      %p92 = scmp.ne.s32.totalorder %s78, %s79
      %p93 = scmp.eq.s32.totalorder %s19, 1
      %p94 = por %p92, %p93
      %p96 = scmp.ne.s32.totalorder %s79, %s95
      %p97 = scmp.eq.s32.totalorder %s19, 0
      %p98 = por %p96, %p97
      %s99 = ssub.s32 %s13, %s20
      %p100 = scmp.eq.s32.totalorder %s99, 0
      %s102 = sadd.s32 %s101, 1
      %s103 = scalar_select %p100, %s101, %s102
      %p106 = pneg %p100
      %p107 = scmp.eq.s32.totalorder %s13, 1
      %p108 = por %p106, %p107
      %p109 = scmp.ne.s32.totalorder %s101, %s104
      %p110 = scmp.eq.s32.totalorder %s13, 0
      %p111 = por %p109, %p110
      %p112 = scmp.ne.s32.totalorder %s101, %s104
      %p113 = scmp.eq.s32.totalorder %s18, 1
      %p114 = por %p112, %p113
      %p115 = scmp.ne.s32.totalorder %s104, %s105
      %p116 = scmp.eq.s32.totalorder %s18, 0
      %p117 = por %p115, %p116
      %p118 = scmp.ne.s32.totalorder %s104, %s105
      %p119 = scmp.eq.s32.totalorder %s19, 1
      %p120 = por %p118, %p119
      %p122 = scmp.ne.s32.totalorder %s105, %s121
      %p123 = scmp.eq.s32.totalorder %s19, 0
      %p124 = por %p122, %p123
      %s126 = sadd.s32 %s125, 1
      %p129 = scmp.eq.s32.totalorder %s13, 1
      %p130 = scmp.ne.s32.totalorder %s125, %s127
      %p131 = scmp.eq.s32.totalorder %s13, 0
      %p132 = por %p130, %p131
      %p133 = scmp.ne.s32.totalorder %s125, %s127
      %p134 = scmp.eq.s32.totalorder %s18, 1
      %p135 = por %p133, %p134
      %p136 = scmp.ne.s32.totalorder %s127, %s128
      %p137 = scmp.eq.s32.totalorder %s18, 0
      %p138 = por %p136, %p137
      %p139 = scmp.ne.s32.totalorder %s127, %s128
      %p140 = scmp.eq.s32.totalorder %s19, 1
      %p141 = por %p139, %p140
      %p143 = scmp.ne.s32.totalorder %s128, %s142
      %p144 = scmp.eq.s32.totalorder %s19, 0
      %p145 = por %p143, %p144
      %s147 = sadd.s32 %s146, 1
      %p150 = scmp.eq.s32.totalorder %s13, 1
      %p151 = scmp.ne.s32.totalorder %s146, %s148
      %p152 = scmp.eq.s32.totalorder %s13, 0
      %p153 = por %p151, %p152
      %p154 = scmp.ne.s32.totalorder %s146, %s148
      %p155 = scmp.eq.s32.totalorder %s18, 1
      %p156 = por %p154, %p155
      %p157 = scmp.ne.s32.totalorder %s148, %s149
      %p158 = scmp.eq.s32.totalorder %s18, 0
      %p159 = por %p157, %p158
      %p160 = scmp.ne.s32.totalorder %s148, %s149
      %p161 = scmp.eq.s32.totalorder %s19, 1
      %p162 = por %p160, %p161
      %p164 = scmp.ne.s32.totalorder %s149, %s163
      %p165 = scmp.eq.s32.totalorder %s19, 0
      %p166 = por %p164, %p165
      %s167 = ssub.s32 %s13, %s20
      %p168 = scmp.eq.s32.totalorder %s167, 0
      %s170 = sadd.s32 %s169, 1
      %s171 = scalar_select %p168, %s169, %s170
      %p174 = pneg %p168
      %p175 = scmp.eq.s32.totalorder %s13, 1
      %p176 = por %p174, %p175
      %p177 = scmp.ne.s32.totalorder %s169, %s172
      %p178 = scmp.eq.s32.totalorder %s13, 0
      %p179 = por %p177, %p178
      %p180 = scmp.ne.s32.totalorder %s169, %s172
      %p181 = scmp.eq.s32.totalorder %s18, 1
      %p182 = por %p180, %p181
      %p183 = scmp.ne.s32.totalorder %s172, %s173
      %p184 = scmp.eq.s32.totalorder %s18, 0
      %p185 = por %p183, %p184
      %p186 = scmp.ne.s32.totalorder %s172, %s173
      %p187 = scmp.eq.s32.totalorder %s19, 1
      %p188 = por %p186, %p187
      %p190 = scmp.ne.s32.totalorder %s173, %s189
      %p191 = scmp.eq.s32.totalorder %s19, 0
      %p192 = por %p190, %p191
      %p193 = scmp.le.s32.totalorder 1, %s13
      %p194 = scmp.lt.s32.totalorder %s13, 3
      %p195 = pnand %p193, %p194
      %p196 = pneg %p195
      // Predicated region
      $region9: #{fpn_forward.13} parent=5 // pred_check
        _
      $region10: #{fpn_forward.13} parent=5 // pred_check_branch
        %198 = sbr.rel (%p195) target = $region12
      $region11: #{fpn_forward.13} parent=5 // pred_region
        %s199 = ssub.s32 %s13, 1
        // Predicated region
        $region13: #{fpn_forward.13} parent=11 // pred_check
          %p200 = pneg %p138
        $region14: #{fpn_forward.13} parent=11 // pred_check_branch
          %202 = sbr.rel (%p200) target = $region16
        $region15: #{fpn_forward.13} parent=11 // pred_region
          %204 = vsyncadd [#allocation3], 0
          %s205 = sshll.u32 %s4, 4
          %s206 = int_to_ptr.hbm [resolvable:$true] %s205
          %s207 = sshll.u32 [#allocation2], 4
          %s208 = int_to_ptr.vmem [resolvable:$true] %s207
          %213 = dma.hbm_to_vmem [thread:$0]  %s206, 9216, %s208, [#allocation3], 64, 64, 4
        $region16: #{fpn_forward.13} parent=11 // pred_fallthru
          _
        // Predicated region
        $region17: #{fpn_forward.13} parent=11 // pred_check
          %p214 = pneg %p159
        $region18: #{fpn_forward.13} parent=11 // pred_check_branch
          %216 = sbr.rel (%p214) target = $region20
        $region19: #{fpn_forward.13} parent=11 // pred_region
          _
        $region20: #{fpn_forward.13} parent=11 // pred_fallthru
          _
      $region12: #{fpn_forward.13} parent=5 // pred_fallthru
        _
      %p217 = scmp.lt.s32.totalorder %s13, 2
      // Predicated region
      $region21: #{fpn_forward.13} parent=5 // pred_check
        %p218 = pneg %p217
      $region22: #{fpn_forward.13} parent=5 // pred_check_branch
        %220 = sbr.rel (%p218) target = $region24
      $region23: #{fpn_forward.13} parent=5 // pred_region
        // Predicated region
        $region25: #{fpn_forward.13} parent=23 // pred_check
          %p221 = pneg %p33
        $region26: #{fpn_forward.13} parent=23 // pred_check_branch
          %223 = sbr.rel (%p221) target = $region28
        $region27: #{fpn_forward.13} parent=23 // pred_region
          %p224 = scmp.lt.s32.totalorder %s13, 1
          %s225 = scalar_select %p224, %s13, 1
          %s226 = smul.addr %s225, 4
          %s227 = smul.addr %s226, 4
          %s228 = scalar_lea.vmem %s0, %s227
        $region28: #{fpn_forward.13} parent=23 // pred_fallthru
          _
        // Predicated region
        $region29: #{fpn_forward.13} parent=23 // pred_check
          %p229 = pneg %p59
        $region30: #{fpn_forward.13} parent=23 // pred_check_branch
          %231 = sbr.rel (%p229) target = $region32
        $region31: #{fpn_forward.13} parent=23 // pred_region
          %p232 = scmp.lt.s32.totalorder %s13, 1
          %s233 = scalar_select %p232, %s13, 1
          %s234 = smul.addr %s233, 4
          %s235 = smul.addr %s234, 4
          %s236 = scalar_lea.vmem %s1, %s235
        $region32: #{fpn_forward.13} parent=23 // pred_fallthru
          _
        // Predicated region
        $region33: #{fpn_forward.13} parent=23 // pred_check
          %p237 = pneg %p85
        $region34: #{fpn_forward.13} parent=23 // pred_check_branch
          %239 = sbr.rel (%p237) target = $region36
        $region35: #{fpn_forward.13} parent=23 // pred_region
          %p240 = scmp.lt.s32.totalorder %s13, 1
          %s241 = scalar_select %p240, %s13, 1
          %s242 = smul.addr %s241, 4
          %s243 = smul.addr %s242, 4
          %s244 = scalar_lea.vmem %s2, %s243
        $region36: #{fpn_forward.13} parent=23 // pred_fallthru
          _
        // Predicated region
        $region37: #{fpn_forward.13} parent=23 // pred_check
          %p245 = pneg %p111
        $region38: #{fpn_forward.13} parent=23 // pred_check_branch
          %247 = sbr.rel (%p245) target = $region40
        $region39: #{fpn_forward.13} parent=23 // pred_region
          %p248 = scmp.lt.s32.totalorder %s13, 1
          %s249 = scalar_select %p248, %s13, 1
          %s250 = smul.addr %s249, 4
          %s251 = smul.addr %s250, 4
          %s252 = scalar_lea.vmem %s3, %s251
        $region40: #{fpn_forward.13} parent=23 // pred_fallthru
          _
      $region24: #{fpn_forward.13} parent=5 // pred_fallthru
        _
      %p253 = scmp.le.s32.totalorder 1, %s13
      %p254 = scmp.lt.s32.totalorder %s13, 3
      %p255 = pnand %p253, %p254
      %p256 = pneg %p255
      // Predicated region
      $region41: #{fpn_forward.13} parent=5 // pred_check
        _
      $region42: #{fpn_forward.13} parent=5 // pred_check_branch
        %258 = sbr.rel (%p255) target = $region44
      $region43: #{fpn_forward.13} parent=5 // pred_region
        %s259 = ssub.s32 %s13, 1
        // Predicated region
        $region45: #{fpn_forward.13} parent=43 // pred_check
          %p260 = pneg %p138
        $region46: #{fpn_forward.13} parent=43 // pred_check_branch
          %262 = sbr.rel (%p260) target = $region48
        $region47: #{fpn_forward.13} parent=43 // pred_region
          %264 = dma.done [#allocation3], 9216
        $region48: #{fpn_forward.13} parent=43 // pred_fallthru
          _
        %p265 = scmp.lt.s32.totalorder %s18, 1
        %s266 = scalar_select %p265, %s18, 1
        %s267 = smul.addr %s266, 4
        %s268 = smul.addr %s267, 4
        %s269 = scalar_lea.vmem %s0, %s268
        %p270 = pneg %p39
        %p271 = pneg %p36
        %p272 = scmp.lt.s32.totalorder %s18, 1
        %s273 = scalar_select %p272, %s18, 1
        %s274 = smul.addr %s273, 4
        %s275 = smul.addr %s274, 4
        %s276 = scalar_lea.vmem %s1, %s275
        %p277 = pneg %p65
        %p278 = pneg %p62
        %p279 = scmp.lt.s32.totalorder %s18, 1
        %s280 = scalar_select %p279, %s18, 1
        %s281 = smul.addr %s280, 4
        %s282 = smul.addr %s281, 4
        %s283 = scalar_lea.vmem %s2, %s282
        %p284 = pneg %p91
        %p285 = pneg %p88
        %p286 = scmp.lt.s32.totalorder %s18, 1
        %s287 = scalar_select %p286, %s18, 1
        %s288 = smul.addr %s287, 4
        %s289 = smul.addr %s288, 4
        %s290 = scalar_lea.vmem %s3, %s289
        %p291 = pneg %p117
        %p292 = pneg %p114
        %p293 = pneg %p138
        %p294 = pneg %p135
        %p295 = pneg %p159
        %p296 = pneg %p156
        %p297 = pneg %p185
        %p298 = pneg %p182
        %p299 = scmp.lt.s32.totalorder %s18, 1
        %s300 = scalar_select %p299, %s18, 1
        %s301 = smul.addr %s300, 2
        %s302 = smul.addr %s301, 4
        %s303 = scalar_lea.vmem %s6, %s302
        %p304 = scmp.lt.s32.totalorder %s18, 1
        %s305 = scalar_select %p304, %s18, 1
        %s306 = smul.addr %s305, 4
        %s307 = smul.addr %s306, 4
        %s308 = scalar_lea.vmem %s0, %s307
        %p309 = scmp.lt.s32.totalorder %s18, 1
        %s310 = scalar_select %p309, %s18, 1
        %s311 = smul.addr %s310, 4
        %s312 = smul.addr %s311, 4
        %s313 = scalar_lea.vmem %s1, %s312
        %p314 = scmp.lt.s32.totalorder %s18, 1
        %s315 = scalar_select %p314, %s18, 1
        %s316 = smul.addr %s315, 4
        %s317 = smul.addr %s316, 4
        %s318 = scalar_lea.vmem %s2, %s317
        %p319 = scmp.lt.s32.totalorder %s18, 1
        %s320 = scalar_select %p319, %s18, 1
        %s321 = smul.addr %s320, 4
        %s322 = smul.addr %s321, 4
        %s323 = scalar_lea.vmem %s3, %s322
        %p324 = scmp.lt.s32.totalorder %s18, 1
        %s325 = scalar_select %p324, %s18, 1
        %s326 = smul.addr %s325, 2
        %s327 = smul.addr %s326, 4
        %s328 = scalar_lea.vmem %s6, %s327
        %v329 = vld [vmem:[%s308] sm:$0xf]
        %v330 = vld [vmem:[%s308 + $0x4] sm:$0xf]
        %v331 = vld [vmem:[#allocation2] sm:$0xf]
        %v332 = vld [vmem:[#allocation2 + $0x4] sm:$0xf]
        %v333 = vld [vmem:[#allocation2 + $0x8] sm:$0xf]
        %v334 = vld [vmem:[#allocation2 + $0xc] sm:$0xf]
        %v335 = vld [vmem:[#allocation2 + $0x10] sm:$0xf]
        %v336 = vld [vmem:[#allocation2 + $0x14] sm:$0xf]
        %v337 = vld [vmem:[#allocation2 + $0x18] sm:$0xf]
        %v338 = vld [vmem:[#allocation2 + $0x1c] sm:$0xf]
        %v339 = vld [vmem:[#allocation2 + $0x20] sm:$0xf]
        %v340 = vld [vmem:[#allocation2 + $0x24] sm:$0xf]
        %v341 = vld [vmem:[#allocation2 + $0x28] sm:$0xf]
        %v342 = vld [vmem:[#allocation2 + $0x2c] sm:$0xf]
        %v343 = vld [vmem:[#allocation2 + $0x30] sm:$0xf]
        %v344 = vld [vmem:[#allocation2 + $0x34] sm:$0xf]
        %v345 = vld [vmem:[#allocation2 + $0x38] sm:$0xf]
        %v346 = vld [vmem:[#allocation2 + $0x3c] sm:$0xf]
        %v347 = vld [vmem:[%s313] sm:$0xf]
        %v348 = vld [vmem:[%s313 + $0x4] sm:$0xf]
        %s349 = scalar_lea.vmem [#allocation2], 64
        %v350 = vld [vmem:[%s349] sm:$0xf]
        %v351 = vld [vmem:[%s349 + $0x4] sm:$0xf]
        %v352 = vld [vmem:[%s349 + $0x8] sm:$0xf]
        %v353 = vld [vmem:[%s349 + $0xc] sm:$0xf]
        %v354 = vld [vmem:[%s349 + $0x10] sm:$0xf]
        %v355 = vld [vmem:[%s349 + $0x14] sm:$0xf]
        %v356 = vld [vmem:[%s349 + $0x18] sm:$0xf]
        %v357 = vld [vmem:[%s349 + $0x1c] sm:$0xf]
        %v358 = vld [vmem:[%s349 + $0x20] sm:$0xf]
        %v359 = vld [vmem:[%s349 + $0x24] sm:$0xf]
        %v360 = vld [vmem:[%s349 + $0x28] sm:$0xf]
        %v361 = vld [vmem:[%s349 + $0x2c] sm:$0xf]
        %v362 = vld [vmem:[%s349 + $0x30] sm:$0xf]
        %v363 = vld [vmem:[%s349 + $0x34] sm:$0xf]
        %v364 = vld [vmem:[%s349 + $0x38] sm:$0xf]
        %v365 = vld [vmem:[%s349 + $0x3c] sm:$0xf]
        %v368 = vunpack.c.l.b16 %v347
        %v369 = vunpack.c.l.b16 %v348
        %v370 = vpack.c.b16 %v369, %v368
        %v388 = vunpack.c.l.b16 %v350
        %v389 = vunpack.c.l.b16 %v351
        %v390 = vunpack.c.l.b16 %v352
        %v391 = vunpack.c.l.b16 %v353
        %v392 = vunpack.c.l.b16 %v354
        %v393 = vunpack.c.l.b16 %v355
        %v394 = vunpack.c.l.b16 %v356
        %v395 = vunpack.c.l.b16 %v357
        %v396 = vunpack.c.l.b16 %v358
        %v397 = vunpack.c.l.b16 %v359
        %v398 = vunpack.c.l.b16 %v360
        %v399 = vunpack.c.l.b16 %v361
        %v400 = vunpack.c.l.b16 %v362
        %v401 = vunpack.c.l.b16 %v363
        %v402 = vunpack.c.l.b16 %v364
        %v403 = vunpack.c.l.b16 %v365
        %v404 = vpack.c.b16 %v389, %v388
        %v405 = vpack.c.b16 %v391, %v390
        %v406 = vpack.c.b16 %v393, %v392
        %v407 = vpack.c.b16 %v395, %v394
        %v408 = vpack.c.b16 %v397, %v396
        %v409 = vpack.c.b16 %v399, %v398
        %v410 = vpack.c.b16 %v401, %v400
        %v411 = vpack.c.b16 %v403, %v402
        %420 = vmatpush.bf16.msra.mxu0 %v411
        %421 = vmatpush.bf16.msra.mxu0 %v410
        %422 = vmatpush.bf16.msra.mxu0 %v409
        %423 = vmatpush.bf16.msra.mxu0 %v408
        %424 = vmatpush.bf16.msra.mxu0 %v407
        %425 = vmatpush.bf16.msra.mxu0 %v406
        %426 = vmatpush.bf16.msra.mxu0 %v405
        %427 = vmatpush.bf16.msra.mxu0 %v404
        %428 = vmatmul.bf16.gmra.mxu0 %v370
        %v429 = vpop.f32.mrf.mxu0
        %v430 = vadd.f32 0.0, %v429
        %v431 = vpop.f32.mrf.mxu0
        %v432 = vadd.f32 0.0, %v431
        %433 = vdwg.mxu0
        %v436 = vunpack.c.l.b16 %v329
        %v437 = vunpack.c.l.b16 %v330
        %v438 = vpack.c.b16 %v437, %v436
        %v456 = vunpack.c.l.b16 %v331
        %v457 = vunpack.c.l.b16 %v332
        %v458 = vunpack.c.l.b16 %v333
        %v459 = vunpack.c.l.b16 %v334
        %v460 = vunpack.c.l.b16 %v335
        %v461 = vunpack.c.l.b16 %v336
        %v462 = vunpack.c.l.b16 %v337
        %v463 = vunpack.c.l.b16 %v338
        %v464 = vunpack.c.l.b16 %v339
        %v465 = vunpack.c.l.b16 %v340
        %v466 = vunpack.c.l.b16 %v341
        %v467 = vunpack.c.l.b16 %v342
        %v468 = vunpack.c.l.b16 %v343
        %v469 = vunpack.c.l.b16 %v344
        %v470 = vunpack.c.l.b16 %v345
        %v471 = vunpack.c.l.b16 %v346
        %v472 = vpack.c.b16 %v457, %v456
        %v473 = vpack.c.b16 %v459, %v458
        %v474 = vpack.c.b16 %v461, %v460
        %v475 = vpack.c.b16 %v463, %v462
        %v476 = vpack.c.b16 %v465, %v464
        %v477 = vpack.c.b16 %v467, %v466
        %v478 = vpack.c.b16 %v469, %v468
        %v479 = vpack.c.b16 %v471, %v470
        %488 = vmatpush.bf16.msra.mxu0 %v479
        %489 = vmatpush.bf16.msra.mxu0 %v478
        %490 = vmatpush.bf16.msra.mxu0 %v477
        %491 = vmatpush.bf16.msra.mxu0 %v476
        %492 = vmatpush.bf16.msra.mxu0 %v475
        %493 = vmatpush.bf16.msra.mxu0 %v474
        %494 = vmatpush.bf16.msra.mxu0 %v473
        %495 = vmatpush.bf16.msra.mxu0 %v472
        %496 = vmatmul.bf16.gmra.mxu0 %v438
        %v497 = vpop.f32.mrf.mxu0
        %v498 = vadd.f32 %v430, %v497
        %v499 = vpop.f32.mrf.mxu0
        %v500 = vadd.f32 %v432, %v499
        %501 = vdwg.mxu0
        %v502 = vld [vmem:[%s308] sm:$0xf]
        %v503 = vld [vmem:[%s308 + $0x4] sm:$0xf]
        %v504 = vld [vmem:[%s308 + $0x8] sm:$0x1]
        %s505 = scalar_lea.vmem [#allocation2], 128
        %v506 = vld [vmem:[%s505] sm:$0xf]
        %v507 = vld [vmem:[%s505 + $0x4] sm:$0xf]
        %v508 = vld [vmem:[%s505 + $0x8] sm:$0xf]
        %v509 = vld [vmem:[%s505 + $0xc] sm:$0xf]
        %v510 = vld [vmem:[%s505 + $0x10] sm:$0xf]
        %v511 = vld [vmem:[%s505 + $0x14] sm:$0xf]
        %v512 = vld [vmem:[%s505 + $0x18] sm:$0xf]
        %v513 = vld [vmem:[%s505 + $0x1c] sm:$0xf]
        %v514 = vld [vmem:[%s505 + $0x20] sm:$0xf]
        %v515 = vld [vmem:[%s505 + $0x24] sm:$0xf]
        %v516 = vld [vmem:[%s505 + $0x28] sm:$0xf]
        %v517 = vld [vmem:[%s505 + $0x2c] sm:$0xf]
        %v518 = vld [vmem:[%s505 + $0x30] sm:$0xf]
        %v519 = vld [vmem:[%s505 + $0x34] sm:$0xf]
        %v520 = vld [vmem:[%s505 + $0x38] sm:$0xf]
        %v521 = vld [vmem:[%s505 + $0x3c] sm:$0xf]
        %v525 = vunpack.c.l.b16 %v502
        %v526 = vunpack.c.l.b16 %v503
        %v527 = vunpack.c.l.b16 %v504
        %v528 = vpack.c.b16 %v526, %v525
        %v529 = vpack.c.b16 %v527, %v527
        %vm530 = vsmask.f32 7424
        %v532 = vshrl.u32 %v528, 16
        %v534 = vshll.u32 %v528, 16
        %v536 = vrot.slane %v534, 1
        %v537 = vor.u32 %v532, %v536
        %v539 = vshll.u32 %v529, 16
        %v541 = vrot.slane %v539, 1
        %v542 = vsel %vm530, %v537, %v541
        %v560 = vunpack.c.l.b16 %v506
        %v561 = vunpack.c.l.b16 %v507
        %v562 = vunpack.c.l.b16 %v508
        %v563 = vunpack.c.l.b16 %v509
        %v564 = vunpack.c.l.b16 %v510
        %v565 = vunpack.c.l.b16 %v511
        %v566 = vunpack.c.l.b16 %v512
        %v567 = vunpack.c.l.b16 %v513
        %v568 = vunpack.c.l.b16 %v514
        %v569 = vunpack.c.l.b16 %v515
        %v570 = vunpack.c.l.b16 %v516
        %v571 = vunpack.c.l.b16 %v517
        %v572 = vunpack.c.l.b16 %v518
        %v573 = vunpack.c.l.b16 %v519
        %v574 = vunpack.c.l.b16 %v520
        %v575 = vunpack.c.l.b16 %v521
        %v576 = vpack.c.b16 %v561, %v560
        %v577 = vpack.c.b16 %v563, %v562
        %v578 = vpack.c.b16 %v565, %v564
        %v579 = vpack.c.b16 %v567, %v566
        %v580 = vpack.c.b16 %v569, %v568
        %v581 = vpack.c.b16 %v571, %v570
        %v582 = vpack.c.b16 %v573, %v572
        %v583 = vpack.c.b16 %v575, %v574
        %592 = vmatpush.bf16.msra.mxu0 %v583
        %593 = vmatpush.bf16.msra.mxu0 %v582
        %594 = vmatpush.bf16.msra.mxu0 %v581
        %595 = vmatpush.bf16.msra.mxu0 %v580
        %596 = vmatpush.bf16.msra.mxu0 %v579
        %597 = vmatpush.bf16.msra.mxu0 %v578
        %598 = vmatpush.bf16.msra.mxu0 %v577
        %599 = vmatpush.bf16.msra.mxu0 %v576
        %600 = vmatmul.bf16.gmra.mxu0 %v542
        %v601 = vpop.f32.mrf.mxu0
        %v602 = vadd.f32 0.0, %v601
        %v603 = vpop.f32.mrf.mxu0
        %v604 = vadd.f32 0.0, %v603
        %605 = vdwg.mxu0
        %v606 = vadd.f32 %v498, %v602
        %v607 = vadd.f32 %v500, %v604
        %v608 = vld [vmem:[%s318] sm:$0xf]
        %v609 = vld [vmem:[%s318 + $0x4] sm:$0xf]
        %s610 = scalar_lea.vmem [#allocation2], 192
        %v611 = vld [vmem:[%s610] sm:$0xf]
        %v612 = vld [vmem:[%s610 + $0x4] sm:$0xf]
        %v613 = vld [vmem:[%s610 + $0x8] sm:$0xf]
        %v614 = vld [vmem:[%s610 + $0xc] sm:$0xf]
        %v615 = vld [vmem:[%s610 + $0x10] sm:$0xf]
        %v616 = vld [vmem:[%s610 + $0x14] sm:$0xf]
        %v617 = vld [vmem:[%s610 + $0x18] sm:$0xf]
        %v618 = vld [vmem:[%s610 + $0x1c] sm:$0xf]
        %v619 = vld [vmem:[%s610 + $0x20] sm:$0xf]
        %v620 = vld [vmem:[%s610 + $0x24] sm:$0xf]
        %v621 = vld [vmem:[%s610 + $0x28] sm:$0xf]
        %v622 = vld [vmem:[%s610 + $0x2c] sm:$0xf]
        %v623 = vld [vmem:[%s610 + $0x30] sm:$0xf]
        %v624 = vld [vmem:[%s610 + $0x34] sm:$0xf]
        %v625 = vld [vmem:[%s610 + $0x38] sm:$0xf]
        %v626 = vld [vmem:[%s610 + $0x3c] sm:$0xf]
        %v629 = vunpack.c.l.b16 %v608
        %v630 = vunpack.c.l.b16 %v609
        %v631 = vpack.c.b16 %v630, %v629
        %v649 = vunpack.c.l.b16 %v611
        %v650 = vunpack.c.l.b16 %v612
        %v651 = vunpack.c.l.b16 %v613
        %v652 = vunpack.c.l.b16 %v614
        %v653 = vunpack.c.l.b16 %v615
        %v654 = vunpack.c.l.b16 %v616
        %v655 = vunpack.c.l.b16 %v617
        %v656 = vunpack.c.l.b16 %v618
        %v657 = vunpack.c.l.b16 %v619
        %v658 = vunpack.c.l.b16 %v620
        %v659 = vunpack.c.l.b16 %v621
        %v660 = vunpack.c.l.b16 %v622
        %v661 = vunpack.c.l.b16 %v623
        %v662 = vunpack.c.l.b16 %v624
        %v663 = vunpack.c.l.b16 %v625
        %v664 = vunpack.c.l.b16 %v626
        %v665 = vpack.c.b16 %v650, %v649
        %v666 = vpack.c.b16 %v652, %v651
        %v667 = vpack.c.b16 %v654, %v653
        %v668 = vpack.c.b16 %v656, %v655
        %v669 = vpack.c.b16 %v658, %v657
        %v670 = vpack.c.b16 %v660, %v659
        %v671 = vpack.c.b16 %v662, %v661
        %v672 = vpack.c.b16 %v664, %v663
        %681 = vmatpush.bf16.msra.mxu0 %v672
        %682 = vmatpush.bf16.msra.mxu0 %v671
        %683 = vmatpush.bf16.msra.mxu0 %v670
        %684 = vmatpush.bf16.msra.mxu0 %v669
        %685 = vmatpush.bf16.msra.mxu0 %v668
        %686 = vmatpush.bf16.msra.mxu0 %v667
        %687 = vmatpush.bf16.msra.mxu0 %v666
        %688 = vmatpush.bf16.msra.mxu0 %v665
        %689 = vmatmul.bf16.gmra.mxu0 %v631
        %v690 = vpop.f32.mrf.mxu0
        %v691 = vadd.f32 0.0, %v690
        %v692 = vpop.f32.mrf.mxu0
        %v693 = vadd.f32 0.0, %v692
        %694 = vdwg.mxu0
        %v695 = vadd.f32 %v606, %v691
        %v696 = vadd.f32 %v607, %v693
        %v697 = vld [vmem:[%s323] sm:$0xf]
        %v698 = vld [vmem:[%s323 + $0x4] sm:$0xf]
        %s699 = scalar_lea.vmem [#allocation2], 256
        %v700 = vld [vmem:[%s699] sm:$0xf]
        %v701 = vld [vmem:[%s699 + $0x4] sm:$0xf]
        %v702 = vld [vmem:[%s699 + $0x8] sm:$0xf]
        %v703 = vld [vmem:[%s699 + $0xc] sm:$0xf]
        %v704 = vld [vmem:[%s699 + $0x10] sm:$0xf]
        %v705 = vld [vmem:[%s699 + $0x14] sm:$0xf]
        %v706 = vld [vmem:[%s699 + $0x18] sm:$0xf]
        %v707 = vld [vmem:[%s699 + $0x1c] sm:$0xf]
        %v708 = vld [vmem:[%s699 + $0x20] sm:$0xf]
        %v709 = vld [vmem:[%s699 + $0x24] sm:$0xf]
        %v710 = vld [vmem:[%s699 + $0x28] sm:$0xf]
        %v711 = vld [vmem:[%s699 + $0x2c] sm:$0xf]
        %v712 = vld [vmem:[%s699 + $0x30] sm:$0xf]
        %v713 = vld [vmem:[%s699 + $0x34] sm:$0xf]
        %v714 = vld [vmem:[%s699 + $0x38] sm:$0xf]
        %v715 = vld [vmem:[%s699 + $0x3c] sm:$0xf]
        %v718 = vunpack.c.l.b16 %v697
        %v719 = vunpack.c.l.b16 %v698
        %v720 = vpack.c.b16 %v719, %v718
        %v738 = vunpack.c.l.b16 %v700
        %v739 = vunpack.c.l.b16 %v701
        %v740 = vunpack.c.l.b16 %v702
        %v741 = vunpack.c.l.b16 %v703
        %v742 = vunpack.c.l.b16 %v704
        %v743 = vunpack.c.l.b16 %v705
        %v744 = vunpack.c.l.b16 %v706
        %v745 = vunpack.c.l.b16 %v707
        %v746 = vunpack.c.l.b16 %v708
        %v747 = vunpack.c.l.b16 %v709
        %v748 = vunpack.c.l.b16 %v710
        %v749 = vunpack.c.l.b16 %v711
        %v750 = vunpack.c.l.b16 %v712
        %v751 = vunpack.c.l.b16 %v713
        %v752 = vunpack.c.l.b16 %v714
        %v753 = vunpack.c.l.b16 %v715
        %v754 = vpack.c.b16 %v739, %v738
        %v755 = vpack.c.b16 %v741, %v740
        %v756 = vpack.c.b16 %v743, %v742
        %v757 = vpack.c.b16 %v745, %v744
        %v758 = vpack.c.b16 %v747, %v746
        %v759 = vpack.c.b16 %v749, %v748
        %v760 = vpack.c.b16 %v751, %v750
        %v761 = vpack.c.b16 %v753, %v752
        %770 = vmatpush.bf16.msra.mxu0 %v761
        %771 = vmatpush.bf16.msra.mxu0 %v760
        %772 = vmatpush.bf16.msra.mxu0 %v759
        %773 = vmatpush.bf16.msra.mxu0 %v758
        %774 = vmatpush.bf16.msra.mxu0 %v757
        %775 = vmatpush.bf16.msra.mxu0 %v756
        %776 = vmatpush.bf16.msra.mxu0 %v755
        %777 = vmatpush.bf16.msra.mxu0 %v754
        %778 = vmatmul.bf16.gmra.mxu0 %v720
        %v779 = vpop.f32.mrf.mxu0
        %v780 = vadd.f32 0.0, %v779
        %v781 = vpop.f32.mrf.mxu0
        %v782 = vadd.f32 0.0, %v781
        %783 = vdwg.mxu0
        %v784 = vadd.f32 %v695, %v780
        %v785 = vadd.f32 %v696, %v782
        %v786 = vld [vmem:[%s318] sm:$0xf]
        %v787 = vld [vmem:[%s318 + $0x4] sm:$0xf]
        %v788 = vld [vmem:[%s318 + $0x8] sm:$0x1]
        %s789 = scalar_lea.vmem [#allocation2], 320
        %v790 = vld [vmem:[%s789] sm:$0xf]
        %v791 = vld [vmem:[%s789 + $0x4] sm:$0xf]
        %v792 = vld [vmem:[%s789 + $0x8] sm:$0xf]
        %v793 = vld [vmem:[%s789 + $0xc] sm:$0xf]
        %v794 = vld [vmem:[%s789 + $0x10] sm:$0xf]
        %v795 = vld [vmem:[%s789 + $0x14] sm:$0xf]
        %v796 = vld [vmem:[%s789 + $0x18] sm:$0xf]
        %v797 = vld [vmem:[%s789 + $0x1c] sm:$0xf]
        %v798 = vld [vmem:[%s789 + $0x20] sm:$0xf]
        %v799 = vld [vmem:[%s789 + $0x24] sm:$0xf]
        %v800 = vld [vmem:[%s789 + $0x28] sm:$0xf]
        %v801 = vld [vmem:[%s789 + $0x2c] sm:$0xf]
        %v802 = vld [vmem:[%s789 + $0x30] sm:$0xf]
        %v803 = vld [vmem:[%s789 + $0x34] sm:$0xf]
        %v804 = vld [vmem:[%s789 + $0x38] sm:$0xf]
        %v805 = vld [vmem:[%s789 + $0x3c] sm:$0xf]
        %v809 = vunpack.c.l.b16 %v786
        %v810 = vunpack.c.l.b16 %v787
        %v811 = vunpack.c.l.b16 %v788
        %v812 = vpack.c.b16 %v810, %v809
        %v813 = vpack.c.b16 %v811, %v811
        %v815 = vshrl.u32 %v812, 16
        %v817 = vshll.u32 %v812, 16
        %v819 = vrot.slane %v817, 1
        %v820 = vor.u32 %v815, %v819
        %v822 = vshll.u32 %v813, 16
        %v824 = vrot.slane %v822, 1
        %v825 = vsel %vm530, %v820, %v824
        %v843 = vunpack.c.l.b16 %v790
        %v844 = vunpack.c.l.b16 %v791
        %v845 = vunpack.c.l.b16 %v792
        %v846 = vunpack.c.l.b16 %v793
        %v847 = vunpack.c.l.b16 %v794
        %v848 = vunpack.c.l.b16 %v795
        %v849 = vunpack.c.l.b16 %v796
        %v850 = vunpack.c.l.b16 %v797
        %v851 = vunpack.c.l.b16 %v798
        %v852 = vunpack.c.l.b16 %v799
        %v853 = vunpack.c.l.b16 %v800
        %v854 = vunpack.c.l.b16 %v801
        %v855 = vunpack.c.l.b16 %v802
        %v856 = vunpack.c.l.b16 %v803
        %v857 = vunpack.c.l.b16 %v804
        %v858 = vunpack.c.l.b16 %v805
        %v859 = vpack.c.b16 %v844, %v843
        %v860 = vpack.c.b16 %v846, %v845
        %v861 = vpack.c.b16 %v848, %v847
        %v862 = vpack.c.b16 %v850, %v849
        %v863 = vpack.c.b16 %v852, %v851
        %v864 = vpack.c.b16 %v854, %v853
        %v865 = vpack.c.b16 %v856, %v855
        %v866 = vpack.c.b16 %v858, %v857
        %875 = vmatpush.bf16.msra.mxu0 %v866
        %876 = vmatpush.bf16.msra.mxu0 %v865
        %877 = vmatpush.bf16.msra.mxu0 %v864
        %878 = vmatpush.bf16.msra.mxu0 %v863
        %879 = vmatpush.bf16.msra.mxu0 %v862
        %880 = vmatpush.bf16.msra.mxu0 %v861
        %881 = vmatpush.bf16.msra.mxu0 %v860
        %882 = vmatpush.bf16.msra.mxu0 %v859
        %883 = vmatmul.bf16.gmra.mxu0 %v825
        %v884 = vpop.f32.mrf.mxu0
        %v885 = vadd.f32 0.0, %v884
        %v886 = vpop.f32.mrf.mxu0
        %v887 = vadd.f32 0.0, %v886
        %888 = vdwg.mxu0
        %v889 = vadd.f32 %v784, %v885
        %v890 = vadd.f32 %v785, %v887
        %v891 = vld [vmem:[%s308 + $0x8] sm:$0xf]
        %s892 = scalar_lea.vmem [#allocation2], 384
        %v893 = vld [vmem:[%s892] sm:$0xf]
        %v894 = vld [vmem:[%s892 + $0x4] sm:$0xf]
        %v895 = vld [vmem:[%s892 + $0x8] sm:$0xf]
        %v896 = vld [vmem:[%s892 + $0xc] sm:$0xf]
        %v897 = vld [vmem:[%s892 + $0x10] sm:$0xf]
        %v898 = vld [vmem:[%s892 + $0x14] sm:$0xf]
        %v899 = vld [vmem:[%s892 + $0x18] sm:$0xf]
        %v900 = vld [vmem:[%s892 + $0x1c] sm:$0xf]
        %v901 = vld [vmem:[%s892 + $0x20] sm:$0xf]
        %v902 = vld [vmem:[%s892 + $0x24] sm:$0xf]
        %v903 = vld [vmem:[%s892 + $0x28] sm:$0xf]
        %v904 = vld [vmem:[%s892 + $0x2c] sm:$0xf]
        %v905 = vld [vmem:[%s892 + $0x30] sm:$0xf]
        %v906 = vld [vmem:[%s892 + $0x34] sm:$0xf]
        %v907 = vld [vmem:[%s892 + $0x38] sm:$0xf]
        %v908 = vld [vmem:[%s892 + $0x3c] sm:$0xf]
        %v910 = vunpack.c.l.b16 %v891
        %v911 = vpack.c.b16 %v910, %v526
        %v929 = vunpack.c.l.b16 %v893
        %v930 = vunpack.c.l.b16 %v894
        %v931 = vunpack.c.l.b16 %v895
        %v932 = vunpack.c.l.b16 %v896
        %v933 = vunpack.c.l.b16 %v897
        %v934 = vunpack.c.l.b16 %v898
        %v935 = vunpack.c.l.b16 %v899
        %v936 = vunpack.c.l.b16 %v900
        %v937 = vunpack.c.l.b16 %v901
        %v938 = vunpack.c.l.b16 %v902
        %v939 = vunpack.c.l.b16 %v903
        %v940 = vunpack.c.l.b16 %v904
        %v941 = vunpack.c.l.b16 %v905
        %v942 = vunpack.c.l.b16 %v906
        %v943 = vunpack.c.l.b16 %v907
        %v944 = vunpack.c.l.b16 %v908
        %v945 = vpack.c.b16 %v930, %v929
        %v946 = vpack.c.b16 %v932, %v931
        %v947 = vpack.c.b16 %v934, %v933
        %v948 = vpack.c.b16 %v936, %v935
        %v949 = vpack.c.b16 %v938, %v937
        %v950 = vpack.c.b16 %v940, %v939
        %v951 = vpack.c.b16 %v942, %v941
        %v952 = vpack.c.b16 %v944, %v943
        %961 = vmatpush.bf16.msra.mxu0 %v952
        %962 = vmatpush.bf16.msra.mxu0 %v951
        %963 = vmatpush.bf16.msra.mxu0 %v950
        %964 = vmatpush.bf16.msra.mxu0 %v949
        %965 = vmatpush.bf16.msra.mxu0 %v948
        %966 = vmatpush.bf16.msra.mxu0 %v947
        %967 = vmatpush.bf16.msra.mxu0 %v946
        %968 = vmatpush.bf16.msra.mxu0 %v945
        %969 = vmatmul.bf16.gmra.mxu0 %v911
        %v970 = vpop.f32.mrf.mxu0
        %v971 = vadd.f32 0.0, %v970
        %v972 = vpop.f32.mrf.mxu0
        %v973 = vadd.f32 0.0, %v972
        %974 = vdwg.mxu0
        %v975 = vadd.f32 %v889, %v971
        %v976 = vadd.f32 %v890, %v973
        %v977 = vld [vmem:[%s313 + $0x4] sm:$0xf]
        %v978 = vld [vmem:[%s313 + $0x8] sm:$0xf]
        %s979 = scalar_lea.vmem [#allocation2], 448
        %v980 = vld [vmem:[%s979] sm:$0xf]
        %v981 = vld [vmem:[%s979 + $0x4] sm:$0xf]
        %v982 = vld [vmem:[%s979 + $0x8] sm:$0xf]
        %v983 = vld [vmem:[%s979 + $0xc] sm:$0xf]
        %v984 = vld [vmem:[%s979 + $0x10] sm:$0xf]
        %v985 = vld [vmem:[%s979 + $0x14] sm:$0xf]
        %v986 = vld [vmem:[%s979 + $0x18] sm:$0xf]
        %v987 = vld [vmem:[%s979 + $0x1c] sm:$0xf]
        %v988 = vld [vmem:[%s979 + $0x20] sm:$0xf]
        %v989 = vld [vmem:[%s979 + $0x24] sm:$0xf]
        %v990 = vld [vmem:[%s979 + $0x28] sm:$0xf]
        %v991 = vld [vmem:[%s979 + $0x2c] sm:$0xf]
        %v992 = vld [vmem:[%s979 + $0x30] sm:$0xf]
        %v993 = vld [vmem:[%s979 + $0x34] sm:$0xf]
        %v994 = vld [vmem:[%s979 + $0x38] sm:$0xf]
        %v995 = vld [vmem:[%s979 + $0x3c] sm:$0xf]
        %v998 = vunpack.c.l.b16 %v977
        %v999 = vunpack.c.l.b16 %v978
        %v1000 = vpack.c.b16 %v999, %v998
        %v1018 = vunpack.c.l.b16 %v980
        %v1019 = vunpack.c.l.b16 %v981
        %v1020 = vunpack.c.l.b16 %v982
        %v1021 = vunpack.c.l.b16 %v983
        %v1022 = vunpack.c.l.b16 %v984
        %v1023 = vunpack.c.l.b16 %v985
        %v1024 = vunpack.c.l.b16 %v986
        %v1025 = vunpack.c.l.b16 %v987
        %v1026 = vunpack.c.l.b16 %v988
        %v1027 = vunpack.c.l.b16 %v989
        %v1028 = vunpack.c.l.b16 %v990
        %v1029 = vunpack.c.l.b16 %v991
        %v1030 = vunpack.c.l.b16 %v992
        %v1031 = vunpack.c.l.b16 %v993
        %v1032 = vunpack.c.l.b16 %v994
        %v1033 = vunpack.c.l.b16 %v995
        %v1034 = vpack.c.b16 %v1019, %v1018
        %v1035 = vpack.c.b16 %v1021, %v1020
        %v1036 = vpack.c.b16 %v1023, %v1022
        %v1037 = vpack.c.b16 %v1025, %v1024
        %v1038 = vpack.c.b16 %v1027, %v1026
        %v1039 = vpack.c.b16 %v1029, %v1028
        %v1040 = vpack.c.b16 %v1031, %v1030
        %v1041 = vpack.c.b16 %v1033, %v1032
        %1050 = vmatpush.bf16.msra.mxu0 %v1041
        %1051 = vmatpush.bf16.msra.mxu0 %v1040
        %1052 = vmatpush.bf16.msra.mxu0 %v1039
        %1053 = vmatpush.bf16.msra.mxu0 %v1038
        %1054 = vmatpush.bf16.msra.mxu0 %v1037
        %1055 = vmatpush.bf16.msra.mxu0 %v1036
        %1056 = vmatpush.bf16.msra.mxu0 %v1035
        %1057 = vmatpush.bf16.msra.mxu0 %v1034
        %1058 = vmatmul.bf16.gmra.mxu0 %v1000
        %v1059 = vpop.f32.mrf.mxu0
        %v1060 = vadd.f32 0.0, %v1059
        %v1061 = vpop.f32.mrf.mxu0
        %v1062 = vadd.f32 0.0, %v1061
        %1063 = vdwg.mxu0
        %v1064 = vadd.f32 %v975, %v1060
        %v1065 = vadd.f32 %v976, %v1062
        %v1066 = vld [vmem:[%s308 + $0x4] sm:$0xf]
        %v1067 = vld [vmem:[%s308 + $0x8] sm:$0xf]
        %v1068 = vld [vmem:[%s308 + $0xc] sm:$0x1]
        %s1069 = scalar_lea.vmem [#allocation2], 512
        %v1070 = vld [vmem:[%s1069] sm:$0xf]
        %v1071 = vld [vmem:[%s1069 + $0x4] sm:$0xf]
        %v1072 = vld [vmem:[%s1069 + $0x8] sm:$0xf]
        %v1073 = vld [vmem:[%s1069 + $0xc] sm:$0xf]
        %v1074 = vld [vmem:[%s1069 + $0x10] sm:$0xf]
        %v1075 = vld [vmem:[%s1069 + $0x14] sm:$0xf]
        %v1076 = vld [vmem:[%s1069 + $0x18] sm:$0xf]
        %v1077 = vld [vmem:[%s1069 + $0x1c] sm:$0xf]
        %v1078 = vld [vmem:[%s1069 + $0x20] sm:$0xf]
        %v1079 = vld [vmem:[%s1069 + $0x24] sm:$0xf]
        %v1080 = vld [vmem:[%s1069 + $0x28] sm:$0xf]
        %v1081 = vld [vmem:[%s1069 + $0x2c] sm:$0xf]
        %v1082 = vld [vmem:[%s1069 + $0x30] sm:$0xf]
        %v1083 = vld [vmem:[%s1069 + $0x34] sm:$0xf]
        %v1084 = vld [vmem:[%s1069 + $0x38] sm:$0xf]
        %v1085 = vld [vmem:[%s1069 + $0x3c] sm:$0xf]
        %v1089 = vunpack.c.l.b16 %v1066
        %v1090 = vunpack.c.l.b16 %v1067
        %v1091 = vunpack.c.l.b16 %v1068
        %v1092 = vpack.c.b16 %v1090, %v1089
        %v1093 = vpack.c.b16 %v1091, %v1091
        %v1095 = vshrl.u32 %v1092, 16
        %v1097 = vshll.u32 %v1092, 16
        %v1099 = vrot.slane %v1097, 1
        %v1100 = vor.u32 %v1095, %v1099
        %v1102 = vshll.u32 %v1093, 16
        %v1104 = vrot.slane %v1102, 1
        %v1105 = vsel %vm530, %v1100, %v1104
        %v1123 = vunpack.c.l.b16 %v1070
        %v1124 = vunpack.c.l.b16 %v1071
        %v1125 = vunpack.c.l.b16 %v1072
        %v1126 = vunpack.c.l.b16 %v1073
        %v1127 = vunpack.c.l.b16 %v1074
        %v1128 = vunpack.c.l.b16 %v1075
        %v1129 = vunpack.c.l.b16 %v1076
        %v1130 = vunpack.c.l.b16 %v1077
        %v1131 = vunpack.c.l.b16 %v1078
        %v1132 = vunpack.c.l.b16 %v1079
        %v1133 = vunpack.c.l.b16 %v1080
        %v1134 = vunpack.c.l.b16 %v1081
        %v1135 = vunpack.c.l.b16 %v1082
        %v1136 = vunpack.c.l.b16 %v1083
        %v1137 = vunpack.c.l.b16 %v1084
        %v1138 = vunpack.c.l.b16 %v1085
        %v1139 = vpack.c.b16 %v1124, %v1123
        %v1140 = vpack.c.b16 %v1126, %v1125
        %v1141 = vpack.c.b16 %v1128, %v1127
        %v1142 = vpack.c.b16 %v1130, %v1129
        %v1143 = vpack.c.b16 %v1132, %v1131
        %v1144 = vpack.c.b16 %v1134, %v1133
        %v1145 = vpack.c.b16 %v1136, %v1135
        %v1146 = vpack.c.b16 %v1138, %v1137
        %1155 = vmatpush.bf16.msra.mxu0 %v1146
        %1156 = vmatpush.bf16.msra.mxu0 %v1145
        %1157 = vmatpush.bf16.msra.mxu0 %v1144
        %1158 = vmatpush.bf16.msra.mxu0 %v1143
        %1159 = vmatpush.bf16.msra.mxu0 %v1142
        %1160 = vmatpush.bf16.msra.mxu0 %v1141
        %1161 = vmatpush.bf16.msra.mxu0 %v1140
        %1162 = vmatpush.bf16.msra.mxu0 %v1139
        %1163 = vmatmul.bf16.gmra.mxu0 %v1105
        %v1164 = vpop.f32.mrf.mxu0
        %v1165 = vadd.f32 0.0, %v1164
        %v1166 = vpop.f32.mrf.mxu0
        %v1167 = vadd.f32 0.0, %v1166
        %1168 = vdwg.mxu0
        %v1169 = vadd.f32 %v1064, %v1165
        %v1170 = vadd.f32 %v1065, %v1167
        %v1171 = vld [vmem:[%s5] sm:$0x1]
        %v1173 = vperm.slane %v1171, 0
        %v1175 = vadd.f32 %v1169, %v1173
        %v1176 = vadd.f32 %v1170, %v1173
        %v1177 = vpack.c.bf16 %v1175, %v1175
        %v1178 = vpack.c.bf16 %v1176, %v1176
        %1179 = vst [vmem:[%s328] sm:$0xf] %v1177
        %1180 = vst [vmem:[%s328 + $0x4] sm:$0xf] %v1178
        %p1181 = scmp.lt.s32.totalorder %s18, 1
        %s1182 = scalar_select %p1181, %s18, 1
        %s1183 = smul.addr %s1182, 2
        %s1184 = smul.addr %s1183, 4
        %s1185 = scalar_lea.vmem %s6, %s1184
        // Predicated region
        $region49: #{fpn_forward.13} parent=43 // pred_check
          %p1186 = pneg %p182
        $region50: #{fpn_forward.13} parent=43 // pred_check_branch
          %1188 = sbr.rel (%p1186) target = $region52
        $region51: #{fpn_forward.13} parent=43 // pred_region
          _
        $region52: #{fpn_forward.13} parent=43 // pred_fallthru
          _
      $region44: #{fpn_forward.13} parent=5 // pred_fallthru
        _
      %p1189 = scmp.le.s32.totalorder 2, %s13
      // Predicated region
      $region53: #{fpn_forward.13} parent=5 // pred_check
        %p1190 = pneg %p1189
      $region54: #{fpn_forward.13} parent=5 // pred_check_branch
        %1192 = sbr.rel (%p1190) target = $region56
      $region55: #{fpn_forward.13} parent=5 // pred_region
        %s1193 = ssub.s32 %s13, 2
        // Predicated region
        $region57: #{fpn_forward.13} parent=55 // pred_check
          %p1194 = pneg %p188
        $region58: #{fpn_forward.13} parent=55 // pred_check_branch
          %1196 = sbr.rel (%p1194) target = $region60
        $region59: #{fpn_forward.13} parent=55 // pred_region
          %p1197 = scmp.lt.s32.totalorder %s19, 1
          %s1198 = scalar_select %p1197, %s19, 1
          %s1199 = smul.addr %s1198, 2
          %s1200 = smul.addr %s1199, 4
          %s1201 = scalar_lea.vmem %s6, %s1200
        $region60: #{fpn_forward.13} parent=55 // pred_fallthru
          _
      $region56: #{fpn_forward.13} parent=5 // pred_fallthru
        _
    $region6: #{fpn_forward.13} parent=1 // loop_footer
      %s17 = sadd.s32 1, %s13
    $region7: #{fpn_forward.13} parent=1 // loop_footer_branch
      %12 = sbr.rel target = $region3
    $region8: #{fpn_forward.13} parent=1 // loop_exit
      _
    %1202 = vsyncpa [#allocation3], 1
    %s1203 = scalar_lea.sflag [#allocation3], 1
    %1204 = vsyncpa %s1203, 1

// kernel: fpn_forward.11
$region0: #{fpn_forward.11}
  #allocation0 [shape = 'u32[]', space=smem, size = 0x4, offset = 0x4, fixed_abs, tag = 'smem constant byte address 0x4 - core index']
  #allocation1 [shape = 'u32[72,128]{1,0:T(1,128)}', space=vmem, size = 0x9000, scoped, tag = 'internal scratch']
  %s0 = inlined_call_operand.vmem [shape: bf16[2,256,128], index: 0, kind: input, shape index: {}]
  %s1 = inlined_call_operand.vmem [shape: bf16[2,64,128], index: 1, kind: input, shape index: {}]
  %s2 = inlined_call_operand.vmem [shape: bf16[16,8], index: 2, kind: input, shape index: {}]
  %s3 = inlined_call_operand.vmem [shape: bf16[128,128], index: 3, kind: input, shape index: {}]
  %s4 = inlined_call_operand.vmem [shape: f32[1,128], index: 4, kind: input, shape index: {}]
  %s5 = inlined_call_operand.vmem [shape: bf16[2,256,128], index: 5, kind: output, shape index: {}]
  %s6 = sld [smem:[#allocation0]]
  $region53: #{fpn_forward.11} parent=0
    _
  %s8 = ssub.s32 1, %s6
  %s9 = scalar_select 0, %s8, %s6
  loop: start=0, step=1, limit=4
  $region2: #{fpn_forward.11} parent=0 // loop_pre_header
    _
  $region3: #{fpn_forward.11} parent=0 // loop_header
    %s11 = sphi 0, %s15
    %p12 = scmp.ge.s32.totalorder %s11, 4
    %s18 = sphi 0, %s30
    %s19 = sphi 0, %s26
    %s20 = sphi 0, %s18
    %s21 = sphi 0, %s19
    %s22 = sphi 0, %s20
    %s23 = sphi 0, %s21
    %s35 = sphi 0, %s37
    %s38 = sphi 0, %s35
    %s39 = sphi 0, %s38
    %s55 = sphi 0, %s39
    %s63 = sphi 0, %s65
    %s66 = sphi 0, %s63
    %s67 = sphi 0, %s66
    %s83 = sphi 0, %s67
    %s87 = sphi 0, %s87
    %s89 = sphi 0, %s87
    %s90 = sphi 0, %s89
    %s104 = sphi 0, %s90
    %s108 = sphi 0, %s108
    %s110 = sphi 0, %s108
    %s111 = sphi 0, %s110
    %s125 = sphi 0, %s111
    %s129 = sphi 0, %s129
    %s131 = sphi 0, %s129
    %s132 = sphi 0, %s131
    %s146 = sphi 0, %s132
    %s154 = sphi 0, %s156
    %s157 = sphi 0, %s154
    %s158 = sphi 0, %s157
    %s174 = sphi 0, %s158
  $region4: #{fpn_forward.11} parent=0 // loop_header_branch
    %14 = sbr.rel (%p12) target = $region8
  $region5: #{fpn_forward.11} parent=0 // loop_body
    %s16 = ssub.s32 %s11, 1
    %s17 = ssub.s32 %s11, 2
    %s24 = sadd.s32 1, %s19
    %p25 = scmp.ge.s32.totalorder %s24, 1
    %s26 = scalar_select %p25, 0, %s24
    %s27 = sadd.s32 1, %s18
    %s28 = scalar_select %p25, %s27, %s18
    %p29 = scmp.ge.s32.totalorder %s28, 2
    %s30 = scalar_select %p29, 0, %s28
    %s31 = ssub.s32 %s18, %s30
    %s32 = ssub.s32 %s19, %s26
    %s33 = sor.u32 %s31, %s32
    %p34 = scmp.eq.s32.totalorder %s33, 0
    %s36 = sadd.s32 %s35, 1
    %s37 = scalar_select %p34, %s35, %s36
    %p40 = pneg %p34
    %p41 = scmp.eq.s32.totalorder %s11, 1
    %p42 = por %p40, %p41
    %p43 = scmp.ne.s32.totalorder %s35, %s38
    %p44 = scmp.eq.s32.totalorder %s11, 0
    %p45 = por %p43, %p44
    %p46 = scmp.ne.s32.totalorder %s35, %s38
    %p47 = scmp.eq.s32.totalorder %s16, 1
    %p48 = por %p46, %p47
    %p49 = scmp.ne.s32.totalorder %s38, %s39
    %p50 = scmp.eq.s32.totalorder %s16, 0
    %p51 = por %p49, %p50
    %p52 = scmp.ne.s32.totalorder %s38, %s39
    %p53 = scmp.eq.s32.totalorder %s17, 1
    %p54 = por %p52, %p53
    %p56 = scmp.ne.s32.totalorder %s39, %s55
    %p57 = scmp.eq.s32.totalorder %s17, 0
    %p58 = por %p56, %p57
    %s59 = ssub.s32 %s18, %s30
    %s60 = ssub.s32 %s19, %s26
    %s61 = sor.u32 %s59, %s60
    %p62 = scmp.eq.s32.totalorder %s61, 0
    %s64 = sadd.s32 %s63, 1
    %s65 = scalar_select %p62, %s63, %s64
    %p68 = pneg %p62
    %p69 = scmp.eq.s32.totalorder %s11, 1
    %p70 = por %p68, %p69
    %p71 = scmp.ne.s32.totalorder %s63, %s66
    %p72 = scmp.eq.s32.totalorder %s11, 0
    %p73 = por %p71, %p72
    %p74 = scmp.ne.s32.totalorder %s63, %s66
    %p75 = scmp.eq.s32.totalorder %s16, 1
    %p76 = por %p74, %p75
    %p77 = scmp.ne.s32.totalorder %s66, %s67
    %p78 = scmp.eq.s32.totalorder %s16, 0
    %p79 = por %p77, %p78
    %p80 = scmp.ne.s32.totalorder %s66, %s67
    %p81 = scmp.eq.s32.totalorder %s17, 1
    %p82 = por %p80, %p81
    %p84 = scmp.ne.s32.totalorder %s67, %s83
    %p85 = scmp.eq.s32.totalorder %s17, 0
    %p86 = por %p84, %p85
    %s88 = sadd.s32 %s87, 1
    %p91 = scmp.eq.s32.totalorder %s11, 1
    %p92 = scmp.ne.s32.totalorder %s87, %s89
    %p93 = scmp.eq.s32.totalorder %s11, 0
    %p94 = por %p92, %p93
    %p95 = scmp.ne.s32.totalorder %s87, %s89
    %p96 = scmp.eq.s32.totalorder %s16, 1
    %p97 = por %p95, %p96
    %p98 = scmp.ne.s32.totalorder %s89, %s90
    %p99 = scmp.eq.s32.totalorder %s16, 0
    %p100 = por %p98, %p99
    %p101 = scmp.ne.s32.totalorder %s89, %s90
    %p102 = scmp.eq.s32.totalorder %s17, 1
    %p103 = por %p101, %p102
    %p105 = scmp.ne.s32.totalorder %s90, %s104
    %p106 = scmp.eq.s32.totalorder %s17, 0
    %p107 = por %p105, %p106
    %s109 = sadd.s32 %s108, 1
    %p112 = scmp.eq.s32.totalorder %s11, 1
    %p113 = scmp.ne.s32.totalorder %s108, %s110
    %p114 = scmp.eq.s32.totalorder %s11, 0
    %p115 = por %p113, %p114
    %p116 = scmp.ne.s32.totalorder %s108, %s110
    %p117 = scmp.eq.s32.totalorder %s16, 1
    %p118 = por %p116, %p117
    %p119 = scmp.ne.s32.totalorder %s110, %s111
    %p120 = scmp.eq.s32.totalorder %s16, 0
    %p121 = por %p119, %p120
    %p122 = scmp.ne.s32.totalorder %s110, %s111
    %p123 = scmp.eq.s32.totalorder %s17, 1
    %p124 = por %p122, %p123
    %p126 = scmp.ne.s32.totalorder %s111, %s125
    %p127 = scmp.eq.s32.totalorder %s17, 0
    %p128 = por %p126, %p127
    %s130 = sadd.s32 %s129, 1
    %p133 = scmp.eq.s32.totalorder %s11, 1
    %p134 = scmp.ne.s32.totalorder %s129, %s131
    %p135 = scmp.eq.s32.totalorder %s11, 0
    %p136 = por %p134, %p135
    %p137 = scmp.ne.s32.totalorder %s129, %s131
    %p138 = scmp.eq.s32.totalorder %s16, 1
    %p139 = por %p137, %p138
    %p140 = scmp.ne.s32.totalorder %s131, %s132
    %p141 = scmp.eq.s32.totalorder %s16, 0
    %p142 = por %p140, %p141
    %p143 = scmp.ne.s32.totalorder %s131, %s132
    %p144 = scmp.eq.s32.totalorder %s17, 1
    %p145 = por %p143, %p144
    %p147 = scmp.ne.s32.totalorder %s132, %s146
    %p148 = scmp.eq.s32.totalorder %s17, 0
    %p149 = por %p147, %p148
    %s150 = ssub.s32 %s18, %s30
    %s151 = ssub.s32 %s19, %s26
    %s152 = sor.u32 %s150, %s151
    %p153 = scmp.eq.s32.totalorder %s152, 0
    %s155 = sadd.s32 %s154, 1
    %s156 = scalar_select %p153, %s154, %s155
    %p159 = pneg %p153
    %p160 = scmp.eq.s32.totalorder %s11, 1
    %p161 = por %p159, %p160
    %p162 = scmp.ne.s32.totalorder %s154, %s157
    %p163 = scmp.eq.s32.totalorder %s11, 0
    %p164 = por %p162, %p163
    %p165 = scmp.ne.s32.totalorder %s154, %s157
    %p166 = scmp.eq.s32.totalorder %s16, 1
    %p167 = por %p165, %p166
    %p168 = scmp.ne.s32.totalorder %s157, %s158
    %p169 = scmp.eq.s32.totalorder %s16, 0
    %p170 = por %p168, %p169
    %p171 = scmp.ne.s32.totalorder %s157, %s158
    %p172 = scmp.eq.s32.totalorder %s17, 1
    %p173 = por %p171, %p172
    %p175 = scmp.ne.s32.totalorder %s158, %s174
    %p176 = scmp.eq.s32.totalorder %s17, 0
    %p177 = por %p175, %p176
    %p178 = scmp.le.s32.totalorder 1, %s11
    %p179 = scmp.lt.s32.totalorder %s11, 3
    %p180 = pnand %p178, %p179
    %p181 = pneg %p180
    // Predicated region
    $region9: #{fpn_forward.11} parent=5 // pred_check
      _
    $region10: #{fpn_forward.11} parent=5 // pred_check_branch
      %183 = sbr.rel (%p180) target = $region12
    $region11: #{fpn_forward.11} parent=5 // pred_region
      %s184 = ssub.s32 %s11, 1
      // Predicated region
      $region13: #{fpn_forward.11} parent=11 // pred_check
        %p185 = pneg %p100
      $region14: #{fpn_forward.11} parent=11 // pred_check_branch
        %187 = sbr.rel (%p185) target = $region16
      $region15: #{fpn_forward.11} parent=11 // pred_region
        _
      $region16: #{fpn_forward.11} parent=11 // pred_fallthru
        _
      // Predicated region
      $region17: #{fpn_forward.11} parent=11 // pred_check
        %p188 = pneg %p121
      $region18: #{fpn_forward.11} parent=11 // pred_check_branch
        %190 = sbr.rel (%p188) target = $region20
      $region19: #{fpn_forward.11} parent=11 // pred_region
        _
      $region20: #{fpn_forward.11} parent=11 // pred_fallthru
        _
      // Predicated region
      $region21: #{fpn_forward.11} parent=11 // pred_check
        %p191 = pneg %p142
      $region22: #{fpn_forward.11} parent=11 // pred_check_branch
        %193 = sbr.rel (%p191) target = $region24
      $region23: #{fpn_forward.11} parent=11 // pred_region
        _
      $region24: #{fpn_forward.11} parent=11 // pred_fallthru
        _
    $region12: #{fpn_forward.11} parent=5 // pred_fallthru
      _
    %p194 = scmp.lt.s32.totalorder %s11, 2
    // Predicated region
    $region25: #{fpn_forward.11} parent=5 // pred_check
      %p195 = pneg %p194
    $region26: #{fpn_forward.11} parent=5 // pred_check_branch
      %197 = sbr.rel (%p195) target = $region28
    $region27: #{fpn_forward.11} parent=5 // pred_region
      // Predicated region
      $region29: #{fpn_forward.11} parent=27 // pred_check
        %p198 = pneg %p45
      $region30: #{fpn_forward.11} parent=27 // pred_check_branch
        %200 = sbr.rel (%p198) target = $region32
      $region31: #{fpn_forward.11} parent=27 // pred_region
        %s201 = smul.u32 32, %s19
        %p202 = scmp.lt.s32.totalorder %s18, 1
        %s203 = scalar_select %p202, %s18, 1
        %p204 = scmp.lt.s32.totalorder %s201, 31
        %s205 = scalar_select %p204, %s201, 31
        %s206 = smul.addr %s203, 32
        %s207 = sadd.s32 %s205, %s206
        %s208 = smul.addr %s207, 4
        %s209 = scalar_lea.vmem %s0, %s208
        %s210 = smul.u32 32, %s19
      $region32: #{fpn_forward.11} parent=27 // pred_fallthru
        _
      // Predicated region
      $region33: #{fpn_forward.11} parent=27 // pred_check
        %p211 = pneg %p73
      $region34: #{fpn_forward.11} parent=27 // pred_check_branch
        %213 = sbr.rel (%p211) target = $region36
      $region35: #{fpn_forward.11} parent=27 // pred_region
        %s214 = smul.u32 8, %s19
        %p215 = scmp.lt.s32.totalorder %s18, 1
        %s216 = scalar_select %p215, %s18, 1
        %p217 = scmp.lt.s32.totalorder %s214, 7
        %s218 = scalar_select %p217, %s214, 7
        %s219 = smul.addr %s216, 8
        %s220 = sadd.s32 %s218, %s219
        %s221 = smul.addr %s220, 4
        %s222 = scalar_lea.vmem %s1, %s221
        %s223 = smul.u32 8, %s19
      $region36: #{fpn_forward.11} parent=27 // pred_fallthru
        _
    $region28: #{fpn_forward.11} parent=5 // pred_fallthru
      _
    %p224 = scmp.le.s32.totalorder 1, %s11
    %p225 = scmp.lt.s32.totalorder %s11, 3
    %p226 = pnand %p224, %p225
    %p227 = pneg %p226
    // Predicated region
    $region37: #{fpn_forward.11} parent=5 // pred_check
      _
    $region38: #{fpn_forward.11} parent=5 // pred_check_branch
      %229 = sbr.rel (%p226) target = $region40
    $region39: #{fpn_forward.11} parent=5 // pred_region
      %s230 = ssub.s32 %s11, 1
      %s231 = smul.u32 32, %s21
      %p232 = scmp.lt.s32.totalorder %s20, 1
      %s233 = scalar_select %p232, %s20, 1
      %p234 = scmp.lt.s32.totalorder %s231, 31
      %s235 = scalar_select %p234, %s231, 31
      %s236 = smul.addr %s233, 32
      %s237 = sadd.s32 %s235, %s236
      %s238 = smul.addr %s237, 4
      %s239 = scalar_lea.vmem %s0, %s238
      %p240 = pneg %p51
      %p241 = pneg %p48
      %s242 = smul.u32 8, %s21
      %p243 = scmp.lt.s32.totalorder %s20, 1
      %s244 = scalar_select %p243, %s20, 1
      %p245 = scmp.lt.s32.totalorder %s242, 7
      %s246 = scalar_select %p245, %s242, 7
      %s247 = smul.addr %s244, 8
      %s248 = sadd.s32 %s246, %s247
      %s249 = smul.addr %s248, 4
      %s250 = scalar_lea.vmem %s1, %s249
      %p251 = pneg %p79
      %p252 = pneg %p76
      %p253 = pneg %p100
      %p254 = pneg %p97
      %p255 = pneg %p121
      %p256 = pneg %p118
      %p257 = pneg %p142
      %p258 = pneg %p139
      %p259 = pneg %p170
      %p260 = pneg %p167
      %s261 = smul.u32 32, %s21
      %p262 = scmp.lt.s32.totalorder %s20, 1
      %s263 = scalar_select %p262, %s20, 1
      %p264 = scmp.lt.s32.totalorder %s261, 31
      %s265 = scalar_select %p264, %s261, 31
      %s266 = smul.addr %s263, 32
      %s267 = sadd.s32 %s265, %s266
      %s268 = smul.addr %s267, 4
      %s269 = scalar_lea.vmem %s5, %s268
      %s270 = smul.u32 32, %s21
      %p271 = scmp.lt.s32.totalorder %s20, 1
      %s272 = scalar_select %p271, %s20, 1
      %p273 = scmp.lt.s32.totalorder %s270, 31
      %s274 = scalar_select %p273, %s270, 31
      %s275 = smul.addr %s272, 32
      %s276 = sadd.s32 %s274, %s275
      %s277 = smul.addr %s276, 4
      %s278 = scalar_lea.vmem %s0, %s277
      %s279 = smul.u32 32, %s21
      %s280 = smul.u32 8, %s21
      %p281 = scmp.lt.s32.totalorder %s20, 1
      %s282 = scalar_select %p281, %s20, 1
      %p283 = scmp.lt.s32.totalorder %s280, 7
      %s284 = scalar_select %p283, %s280, 7
      %s285 = smul.addr %s282, 8
      %s286 = sadd.s32 %s284, %s285
      %s287 = smul.addr %s286, 4
      %s288 = scalar_lea.vmem %s1, %s287
      %s289 = smul.u32 8, %s21
      %s290 = smul.u32 32, %s21
      %p291 = scmp.lt.s32.totalorder %s20, 1
      %s292 = scalar_select %p291, %s20, 1
      %p293 = scmp.lt.s32.totalorder %s290, 31
      %s294 = scalar_select %p293, %s290, 31
      %s295 = smul.addr %s292, 32
      %s296 = sadd.s32 %s294, %s295
      %s297 = smul.addr %s296, 4
      %s298 = scalar_lea.vmem %s5, %s297
      %s299 = smul.u32 32, %s21
      %v301 = vld [vmem:[%s278] sm:$0xf]
      %v302 = vld [vmem:[%s278 + $0x4] sm:$0xf]
      %v303 = vld [vmem:[%s278 + $0x8] sm:$0xf]
      %v304 = vld [vmem:[%s278 + $0xc] sm:$0xf]
      %v305 = vld [vmem:[%s278 + $0x10] sm:$0xf]
      %v306 = vld [vmem:[%s278 + $0x14] sm:$0xf]
      %v307 = vld [vmem:[%s278 + $0x18] sm:$0xf]
      %v308 = vld [vmem:[%s278 + $0x1c] sm:$0xf]
      %v309 = vld [vmem:[%s278 + $0x20] sm:$0xf]
      %v310 = vld [vmem:[%s278 + $0x24] sm:$0xf]
      %v311 = vld [vmem:[%s278 + $0x28] sm:$0xf]
      %v312 = vld [vmem:[%s278 + $0x2c] sm:$0xf]
      %v313 = vld [vmem:[%s278 + $0x30] sm:$0xf]
      %v314 = vld [vmem:[%s278 + $0x34] sm:$0xf]
      %v315 = vld [vmem:[%s278 + $0x38] sm:$0xf]
      %v316 = vld [vmem:[%s278 + $0x3c] sm:$0xf]
      %v317 = vld [vmem:[%s278 + $0x40] sm:$0xf]
      %v318 = vld [vmem:[%s278 + $0x44] sm:$0xf]
      %v319 = vld [vmem:[%s278 + $0x48] sm:$0xf]
      %v320 = vld [vmem:[%s278 + $0x4c] sm:$0xf]
      %v321 = vld [vmem:[%s278 + $0x50] sm:$0xf]
      %v322 = vld [vmem:[%s278 + $0x54] sm:$0xf]
      %v323 = vld [vmem:[%s278 + $0x58] sm:$0xf]
      %v324 = vld [vmem:[%s278 + $0x5c] sm:$0xf]
      %v325 = vld [vmem:[%s278 + $0x60] sm:$0xf]
      %v326 = vld [vmem:[%s278 + $0x64] sm:$0xf]
      %v327 = vld [vmem:[%s278 + $0x68] sm:$0xf]
      %v328 = vld [vmem:[%s278 + $0x6c] sm:$0xf]
      %v329 = vld [vmem:[%s278 + $0x70] sm:$0xf]
      %v330 = vld [vmem:[%s278 + $0x74] sm:$0xf]
      %v331 = vld [vmem:[%s278 + $0x78] sm:$0xf]
      %v332 = vld [vmem:[%s278 + $0x7c] sm:$0xf]
      %v333 = vld [vmem:[%s3] sm:$0xf]
      %v334 = vld [vmem:[%s3 + $0x4] sm:$0xf]
      %v335 = vld [vmem:[%s3 + $0x8] sm:$0xf]
      %v336 = vld [vmem:[%s3 + $0xc] sm:$0xf]
      %v337 = vld [vmem:[%s3 + $0x10] sm:$0xf]
      %v338 = vld [vmem:[%s3 + $0x14] sm:$0xf]
      %v339 = vld [vmem:[%s3 + $0x18] sm:$0xf]
      %v340 = vld [vmem:[%s3 + $0x1c] sm:$0xf]
      %v341 = vld [vmem:[%s3 + $0x20] sm:$0xf]
      %v342 = vld [vmem:[%s3 + $0x24] sm:$0xf]
      %v343 = vld [vmem:[%s3 + $0x28] sm:$0xf]
      %v344 = vld [vmem:[%s3 + $0x2c] sm:$0xf]
      %v345 = vld [vmem:[%s3 + $0x30] sm:$0xf]
      %v346 = vld [vmem:[%s3 + $0x34] sm:$0xf]
      %v347 = vld [vmem:[%s3 + $0x38] sm:$0xf]
      %v348 = vld [vmem:[%s3 + $0x3c] sm:$0xf]
      %v349 = vld [vmem:[%s4] sm:$0x1]
      %v351 = vperm.slane %v349, 0
      %v385 = vunpack.c.l.b16 %v301
      %v386 = vunpack.c.l.b16 %v302
      %v387 = vunpack.c.l.b16 %v303
      %v388 = vunpack.c.l.b16 %v304
      %v389 = vunpack.c.l.b16 %v305
      %v390 = vunpack.c.l.b16 %v306
      %v391 = vunpack.c.l.b16 %v307
      %v392 = vunpack.c.l.b16 %v308
      %v393 = vunpack.c.l.b16 %v309
      %v394 = vunpack.c.l.b16 %v310
      %v395 = vunpack.c.l.b16 %v311
      %v396 = vunpack.c.l.b16 %v312
      %v397 = vunpack.c.l.b16 %v313
      %v398 = vunpack.c.l.b16 %v314
      %v399 = vunpack.c.l.b16 %v315
      %v400 = vunpack.c.l.b16 %v316
      %v401 = vunpack.c.l.b16 %v317
      %v402 = vunpack.c.l.b16 %v318
      %v403 = vunpack.c.l.b16 %v319
      %v404 = vunpack.c.l.b16 %v320
      %v405 = vunpack.c.l.b16 %v321
      %v406 = vunpack.c.l.b16 %v322
      %v407 = vunpack.c.l.b16 %v323
      %v408 = vunpack.c.l.b16 %v324
      %v409 = vunpack.c.l.b16 %v325
      %v410 = vunpack.c.l.b16 %v326
      %v411 = vunpack.c.l.b16 %v327
      %v412 = vunpack.c.l.b16 %v328
      %v413 = vunpack.c.l.b16 %v329
      %v414 = vunpack.c.l.b16 %v330
      %v415 = vunpack.c.l.b16 %v331
      %v416 = vunpack.c.l.b16 %v332
      %v417 = vpack.c.b16 %v386, %v385
      %v418 = vpack.c.b16 %v388, %v387
      %v419 = vpack.c.b16 %v390, %v389
      %v420 = vpack.c.b16 %v392, %v391
      %v421 = vpack.c.b16 %v394, %v393
      %v422 = vpack.c.b16 %v396, %v395
      %v423 = vpack.c.b16 %v398, %v397
      %v424 = vpack.c.b16 %v400, %v399
      %v425 = vpack.c.b16 %v402, %v401
      %v426 = vpack.c.b16 %v404, %v403
      %v427 = vpack.c.b16 %v406, %v405
      %v428 = vpack.c.b16 %v408, %v407
      %v429 = vpack.c.b16 %v410, %v409
      %v430 = vpack.c.b16 %v412, %v411
      %v431 = vpack.c.b16 %v414, %v413
      %v432 = vpack.c.b16 %v416, %v415
      %v465 = vunpack.c.l.b16 %v333
      %v466 = vunpack.c.l.b16 %v334
      %v467 = vunpack.c.l.b16 %v335
      %v468 = vunpack.c.l.b16 %v336
      %v469 = vunpack.c.l.b16 %v337
      %v470 = vunpack.c.l.b16 %v338
      %v471 = vunpack.c.l.b16 %v339
      %v472 = vunpack.c.l.b16 %v340
      %v473 = vunpack.c.l.b16 %v341
      %v474 = vunpack.c.l.b16 %v342
      %v475 = vunpack.c.l.b16 %v343
      %v476 = vunpack.c.l.b16 %v344
      %v477 = vunpack.c.l.b16 %v345
      %v478 = vunpack.c.l.b16 %v346
      %v479 = vunpack.c.l.b16 %v347
      %v480 = vunpack.c.l.b16 %v348
      %v481 = vpack.c.b16 %v466, %v465
      %v482 = vpack.c.b16 %v468, %v467
      %v483 = vpack.c.b16 %v470, %v469
      %v484 = vpack.c.b16 %v472, %v471
      %v485 = vpack.c.b16 %v474, %v473
      %v486 = vpack.c.b16 %v476, %v475
      %v487 = vpack.c.b16 %v478, %v477
      %v488 = vpack.c.b16 %v480, %v479
      %497 = vmatpush.bf16.msra.mxu0 %v488
      %498 = vmatpush.bf16.msra.mxu0 %v487
      %499 = vmatpush.bf16.msra.mxu0 %v486
      %500 = vmatpush.bf16.msra.mxu0 %v485
      %501 = vmatpush.bf16.msra.mxu0 %v484
      %502 = vmatpush.bf16.msra.mxu0 %v483
      %503 = vmatpush.bf16.msra.mxu0 %v482
      %504 = vmatpush.bf16.msra.mxu0 %v481
      %505 = vmatmul.bf16.gmra.mxu0 %v417
      %v506 = vpop.f32.mrf.mxu0
      %v507 = vadd.f32 %v351, %v506
      %v508 = vpop.f32.mrf.mxu0
      %v509 = vadd.f32 %v351, %v508
      %510 = vmatmul.bf16.gmra.mxu0 %v418
      %v511 = vpop.f32.mrf.mxu0
      %v512 = vadd.f32 %v351, %v511
      %v513 = vpop.f32.mrf.mxu0
      %v514 = vadd.f32 %v351, %v513
      %515 = vmatmul.bf16.gmra.mxu0 %v419
      %v516 = vpop.f32.mrf.mxu0
      %v517 = vadd.f32 %v351, %v516
      %v518 = vpop.f32.mrf.mxu0
      %v519 = vadd.f32 %v351, %v518
      %520 = vmatmul.bf16.gmra.mxu0 %v420
      %v521 = vpop.f32.mrf.mxu0
      %v522 = vadd.f32 %v351, %v521
      %v523 = vpop.f32.mrf.mxu0
      %v524 = vadd.f32 %v351, %v523
      %525 = vmatmul.bf16.gmra.mxu0 %v421
      %v526 = vpop.f32.mrf.mxu0
      %v527 = vadd.f32 %v351, %v526
      %v528 = vpop.f32.mrf.mxu0
      %v529 = vadd.f32 %v351, %v528
      %530 = vmatmul.bf16.gmra.mxu0 %v422
      %v531 = vpop.f32.mrf.mxu0
      %v532 = vadd.f32 %v351, %v531
      %v533 = vpop.f32.mrf.mxu0
      %v534 = vadd.f32 %v351, %v533
      %535 = vmatmul.bf16.gmra.mxu0 %v423
      %v536 = vpop.f32.mrf.mxu0
      %v537 = vadd.f32 %v351, %v536
      %v538 = vpop.f32.mrf.mxu0
      %v539 = vadd.f32 %v351, %v538
      %540 = vmatmul.bf16.gmra.mxu0 %v424
      %v541 = vpop.f32.mrf.mxu0
      %v542 = vadd.f32 %v351, %v541
      %v543 = vpop.f32.mrf.mxu0
      %v544 = vadd.f32 %v351, %v543
      %545 = vmatmul.bf16.gmra.mxu0 %v425
      %v546 = vpop.f32.mrf.mxu0
      %v547 = vadd.f32 %v351, %v546
      %v548 = vpop.f32.mrf.mxu0
      %v549 = vadd.f32 %v351, %v548
      %550 = vmatmul.bf16.gmra.mxu0 %v426
      %v551 = vpop.f32.mrf.mxu0
      %v552 = vadd.f32 %v351, %v551
      %v553 = vpop.f32.mrf.mxu0
      %v554 = vadd.f32 %v351, %v553
      %555 = vmatmul.bf16.gmra.mxu0 %v427
      %v556 = vpop.f32.mrf.mxu0
      %v557 = vadd.f32 %v351, %v556
      %v558 = vpop.f32.mrf.mxu0
      %v559 = vadd.f32 %v351, %v558
      %560 = vmatmul.bf16.gmra.mxu0 %v428
      %v561 = vpop.f32.mrf.mxu0
      %v562 = vadd.f32 %v351, %v561
      %v563 = vpop.f32.mrf.mxu0
      %v564 = vadd.f32 %v351, %v563
      %565 = vmatmul.bf16.gmra.mxu0 %v429
      %v566 = vpop.f32.mrf.mxu0
      %v567 = vadd.f32 %v351, %v566
      %v568 = vpop.f32.mrf.mxu0
      %v569 = vadd.f32 %v351, %v568
      %570 = vmatmul.bf16.gmra.mxu0 %v430
      %v571 = vpop.f32.mrf.mxu0
      %v572 = vadd.f32 %v351, %v571
      %v573 = vpop.f32.mrf.mxu0
      %v574 = vadd.f32 %v351, %v573
      %575 = vmatmul.bf16.gmra.mxu0 %v431
      %v576 = vpop.f32.mrf.mxu0
      %v577 = vadd.f32 %v351, %v576
      %v578 = vpop.f32.mrf.mxu0
      %v579 = vadd.f32 %v351, %v578
      %580 = vmatmul.bf16.gmra.mxu0 %v432
      %v581 = vpop.f32.mrf.mxu0
      %v582 = vadd.f32 %v351, %v581
      %v583 = vpop.f32.mrf.mxu0
      %v584 = vadd.f32 %v351, %v583
      %585 = vdwg.mxu0
      %v586 = vld [vmem:[%s288] sm:$0xf]
      %v587 = vld [vmem:[%s2] sm:$0xf]
      %v588 = vld [vmem:[%s2 + $0x4] sm:$0xf]
      %v591 = vunpack.c.l.b16 %v587
      %v592 = vunpack.c.l.b16 %v588
      %v593 = vpack.c.b16 %v592, %v591
      %vm594 = vcmask 64512
      %v596 = vsel %vm594, %v593, 0
      %vm598 = vcmask 1043456
      %v600 = vsel %vm598, %v586, 0
      %602 = vmatpush.bf16.msra.mxu0 0
      %603 = vmatpush.bf16.msra.mxu0 0
      %604 = vmatpush.bf16.msra.mxu0 0
      %605 = vmatpush.bf16.msra.mxu0 0
      %606 = vmatpush.bf16.msra.mxu0 0
      %607 = vmatpush.bf16.msra.mxu0 0
      %608 = vmatpush.bf16.msra.mxu0 0
      %609 = vmatpush.bf16.msra.mxu0 %v600
      %610 = vmatmul.bf16.gmra.mxu0 %v596
      %v611 = vpop.f32.mrf.mxu0
      %v612 = vadd.f32 0.0, %v611
      %v613 = vpop.f32.mrf.mxu0
      %v614 = vadd.f32 0.0, %v613
      %615 = vdwg.mxu0
      %v616 = vld [vmem:[%s288 + $0x4] sm:$0xf]
      %v618 = vsel %vm598, %v616, 0
      %620 = vmatpush.bf16.msra.mxu0 0
      %621 = vmatpush.bf16.msra.mxu0 0
      %622 = vmatpush.bf16.msra.mxu0 0
      %623 = vmatpush.bf16.msra.mxu0 0
      %624 = vmatpush.bf16.msra.mxu0 0
      %625 = vmatpush.bf16.msra.mxu0 0
      %626 = vmatpush.bf16.msra.mxu0 0
      %627 = vmatpush.bf16.msra.mxu0 %v618
      %628 = vmatmul.bf16.gmra.mxu0 %v596
      %v629 = vpop.f32.mrf.mxu0
      %v630 = vadd.f32 0.0, %v629
      %v631 = vpop.f32.mrf.mxu0
      %v632 = vadd.f32 0.0, %v631
      %633 = vdwg.mxu0
      %v634 = vld [vmem:[%s288 + $0x8] sm:$0xf]
      %v636 = vsel %vm598, %v634, 0
      %638 = vmatpush.bf16.msra.mxu0 0
      %639 = vmatpush.bf16.msra.mxu0 0
      %640 = vmatpush.bf16.msra.mxu0 0
      %641 = vmatpush.bf16.msra.mxu0 0
      %642 = vmatpush.bf16.msra.mxu0 0
      %643 = vmatpush.bf16.msra.mxu0 0
      %644 = vmatpush.bf16.msra.mxu0 0
      %645 = vmatpush.bf16.msra.mxu0 %v636
      %646 = vmatmul.bf16.gmra.mxu0 %v596
      %v647 = vpop.f32.mrf.mxu0
      %v648 = vadd.f32 0.0, %v647
      %v649 = vpop.f32.mrf.mxu0
      %v650 = vadd.f32 0.0, %v649
      %651 = vdwg.mxu0
      %v652 = vld [vmem:[%s288 + $0xc] sm:$0xf]
      %v654 = vsel %vm598, %v652, 0
      %656 = vmatpush.bf16.msra.mxu0 0
      %657 = vmatpush.bf16.msra.mxu0 0
      %658 = vmatpush.bf16.msra.mxu0 0
      %659 = vmatpush.bf16.msra.mxu0 0
      %660 = vmatpush.bf16.msra.mxu0 0
      %661 = vmatpush.bf16.msra.mxu0 0
      %662 = vmatpush.bf16.msra.mxu0 0
      %663 = vmatpush.bf16.msra.mxu0 %v654
      %664 = vmatmul.bf16.gmra.mxu0 %v596
      %v665 = vpop.f32.mrf.mxu0
      %v666 = vadd.f32 0.0, %v665
      %v667 = vpop.f32.mrf.mxu0
      %v668 = vadd.f32 0.0, %v667
      %669 = vdwg.mxu0
      %v670 = vld [vmem:[%s288 + $0x10] sm:$0xf]
      %v672 = vsel %vm598, %v670, 0
      %674 = vmatpush.bf16.msra.mxu0 0
      %675 = vmatpush.bf16.msra.mxu0 0
      %676 = vmatpush.bf16.msra.mxu0 0
      %677 = vmatpush.bf16.msra.mxu0 0
      %678 = vmatpush.bf16.msra.mxu0 0
      %679 = vmatpush.bf16.msra.mxu0 0
      %680 = vmatpush.bf16.msra.mxu0 0
      %681 = vmatpush.bf16.msra.mxu0 %v672
      %682 = vmatmul.bf16.gmra.mxu0 %v596
      %v683 = vpop.f32.mrf.mxu0
      %v684 = vadd.f32 0.0, %v683
      %v685 = vpop.f32.mrf.mxu0
      %v686 = vadd.f32 0.0, %v685
      %687 = vdwg.mxu0
      %v688 = vld [vmem:[%s288 + $0x14] sm:$0xf]
      %v690 = vsel %vm598, %v688, 0
      %692 = vmatpush.bf16.msra.mxu0 0
      %693 = vmatpush.bf16.msra.mxu0 0
      %694 = vmatpush.bf16.msra.mxu0 0
      %695 = vmatpush.bf16.msra.mxu0 0
      %696 = vmatpush.bf16.msra.mxu0 0
      %697 = vmatpush.bf16.msra.mxu0 0
      %698 = vmatpush.bf16.msra.mxu0 0
      %699 = vmatpush.bf16.msra.mxu0 %v690
      %700 = vmatmul.bf16.gmra.mxu0 %v596
      %v701 = vpop.f32.mrf.mxu0
      %v702 = vadd.f32 0.0, %v701
      %v703 = vpop.f32.mrf.mxu0
      %v704 = vadd.f32 0.0, %v703
      %705 = vdwg.mxu0
      %v706 = vld [vmem:[%s288 + $0x18] sm:$0xf]
      %v708 = vsel %vm598, %v706, 0
      %710 = vmatpush.bf16.msra.mxu0 0
      %711 = vmatpush.bf16.msra.mxu0 0
      %712 = vmatpush.bf16.msra.mxu0 0
      %713 = vmatpush.bf16.msra.mxu0 0
      %714 = vmatpush.bf16.msra.mxu0 0
      %715 = vmatpush.bf16.msra.mxu0 0
      %716 = vmatpush.bf16.msra.mxu0 0
      %717 = vmatpush.bf16.msra.mxu0 %v708
      %718 = vmatmul.bf16.gmra.mxu0 %v596
      %v719 = vpop.f32.mrf.mxu0
      %v720 = vadd.f32 0.0, %v719
      %v721 = vpop.f32.mrf.mxu0
      %v722 = vadd.f32 0.0, %v721
      %723 = vdwg.mxu0
      %v724 = vld [vmem:[%s288 + $0x1c] sm:$0xf]
      %v726 = vsel %vm598, %v724, 0
      %728 = vmatpush.bf16.msra.mxu0 0
      %729 = vmatpush.bf16.msra.mxu0 0
      %730 = vmatpush.bf16.msra.mxu0 0
      %731 = vmatpush.bf16.msra.mxu0 0
      %732 = vmatpush.bf16.msra.mxu0 0
      %733 = vmatpush.bf16.msra.mxu0 0
      %734 = vmatpush.bf16.msra.mxu0 0
      %735 = vmatpush.bf16.msra.mxu0 %v726
      %736 = vmatmul.bf16.gmra.mxu0 %v596
      %v737 = vpop.f32.mrf.mxu0
      %v738 = vadd.f32 0.0, %v737
      %v739 = vpop.f32.mrf.mxu0
      %v740 = vadd.f32 0.0, %v739
      %741 = vdwg.mxu0
      %v742 = vadd.f32 %v507, %v612
      %v743 = vadd.f32 %v509, %v614
      %v744 = vadd.f32 %v512, %v612
      %v745 = vadd.f32 %v514, %v614
      %v746 = vadd.f32 %v517, %v630
      %v747 = vadd.f32 %v519, %v632
      %v748 = vadd.f32 %v522, %v630
      %v749 = vadd.f32 %v524, %v632
      %v750 = vadd.f32 %v527, %v648
      %v751 = vadd.f32 %v529, %v650
      %v752 = vadd.f32 %v532, %v648
      %v753 = vadd.f32 %v534, %v650
      %v754 = vadd.f32 %v537, %v666
      %v755 = vadd.f32 %v539, %v668
      %v756 = vadd.f32 %v542, %v666
      %v757 = vadd.f32 %v544, %v668
      %v758 = vadd.f32 %v547, %v684
      %v759 = vadd.f32 %v549, %v686
      %v760 = vadd.f32 %v552, %v684
      %v761 = vadd.f32 %v554, %v686
      %v762 = vadd.f32 %v557, %v702
      %v763 = vadd.f32 %v559, %v704
      %v764 = vadd.f32 %v562, %v702
      %v765 = vadd.f32 %v564, %v704
      %v766 = vadd.f32 %v567, %v720
      %v767 = vadd.f32 %v569, %v722
      %v768 = vadd.f32 %v572, %v720
      %v769 = vadd.f32 %v574, %v722
      %v770 = vadd.f32 %v577, %v738
      %v771 = vadd.f32 %v579, %v740
      %v772 = vadd.f32 %v582, %v738
      %v773 = vadd.f32 %v584, %v740
      %v774 = vpack.c.bf16 %v742, %v742
      %v775 = vpack.c.bf16 %v743, %v743
      %v776 = vpack.c.bf16 %v744, %v744
      %v777 = vpack.c.bf16 %v745, %v745
      %v778 = vpack.c.bf16 %v746, %v746
      %v779 = vpack.c.bf16 %v747, %v747
      %v780 = vpack.c.bf16 %v748, %v748
      %v781 = vpack.c.bf16 %v749, %v749
      %v782 = vpack.c.bf16 %v750, %v750
      %v783 = vpack.c.bf16 %v751, %v751
      %v784 = vpack.c.bf16 %v752, %v752
      %v785 = vpack.c.bf16 %v753, %v753
      %v786 = vpack.c.bf16 %v754, %v754
      %v787 = vpack.c.bf16 %v755, %v755
      %v788 = vpack.c.bf16 %v756, %v756
      %v789 = vpack.c.bf16 %v757, %v757
      %v790 = vpack.c.bf16 %v758, %v758
      %v791 = vpack.c.bf16 %v759, %v759
      %v792 = vpack.c.bf16 %v760, %v760
      %v793 = vpack.c.bf16 %v761, %v761
      %v794 = vpack.c.bf16 %v762, %v762
      %v795 = vpack.c.bf16 %v763, %v763
      %v796 = vpack.c.bf16 %v764, %v764
      %v797 = vpack.c.bf16 %v765, %v765
      %v798 = vpack.c.bf16 %v766, %v766
      %v799 = vpack.c.bf16 %v767, %v767
      %v800 = vpack.c.bf16 %v768, %v768
      %v801 = vpack.c.bf16 %v769, %v769
      %v802 = vpack.c.bf16 %v770, %v770
      %v803 = vpack.c.bf16 %v771, %v771
      %v804 = vpack.c.bf16 %v772, %v772
      %v805 = vpack.c.bf16 %v773, %v773
      %806 = vst [vmem:[%s298] sm:$0xf] %v774
      %807 = vst [vmem:[%s298 + $0x4] sm:$0xf] %v775
      %808 = vst [vmem:[%s298 + $0x8] sm:$0xf] %v776
      %809 = vst [vmem:[%s298 + $0xc] sm:$0xf] %v777
      %810 = vst [vmem:[%s298 + $0x10] sm:$0xf] %v778
      %811 = vst [vmem:[%s298 + $0x14] sm:$0xf] %v779
      %812 = vst [vmem:[%s298 + $0x18] sm:$0xf] %v780
      %813 = vst [vmem:[%s298 + $0x1c] sm:$0xf] %v781
      %814 = vst [vmem:[%s298 + $0x20] sm:$0xf] %v782
      %815 = vst [vmem:[%s298 + $0x24] sm:$0xf] %v783
      %816 = vst [vmem:[%s298 + $0x28] sm:$0xf] %v784
      %817 = vst [vmem:[%s298 + $0x2c] sm:$0xf] %v785
      %818 = vst [vmem:[%s298 + $0x30] sm:$0xf] %v786
      %819 = vst [vmem:[%s298 + $0x34] sm:$0xf] %v787
      %820 = vst [vmem:[%s298 + $0x38] sm:$0xf] %v788
      %821 = vst [vmem:[%s298 + $0x3c] sm:$0xf] %v789
      %822 = vst [vmem:[%s298 + $0x40] sm:$0xf] %v790
      %823 = vst [vmem:[%s298 + $0x44] sm:$0xf] %v791
      %824 = vst [vmem:[%s298 + $0x48] sm:$0xf] %v792
      %825 = vst [vmem:[%s298 + $0x4c] sm:$0xf] %v793
      %826 = vst [vmem:[%s298 + $0x50] sm:$0xf] %v794
      %827 = vst [vmem:[%s298 + $0x54] sm:$0xf] %v795
      %828 = vst [vmem:[%s298 + $0x58] sm:$0xf] %v796
      %829 = vst [vmem:[%s298 + $0x5c] sm:$0xf] %v797
      %830 = vst [vmem:[%s298 + $0x60] sm:$0xf] %v798
      %831 = vst [vmem:[%s298 + $0x64] sm:$0xf] %v799
      %832 = vst [vmem:[%s298 + $0x68] sm:$0xf] %v800
      %833 = vst [vmem:[%s298 + $0x6c] sm:$0xf] %v801
      %834 = vst [vmem:[%s298 + $0x70] sm:$0xf] %v802
      %835 = vst [vmem:[%s298 + $0x74] sm:$0xf] %v803
      %836 = vst [vmem:[%s298 + $0x78] sm:$0xf] %v804
      %837 = vst [vmem:[%s298 + $0x7c] sm:$0xf] %v805
      %s838 = smul.u32 32, %s21
      %p839 = scmp.lt.s32.totalorder %s20, 1
      %s840 = scalar_select %p839, %s20, 1
      %p841 = scmp.lt.s32.totalorder %s838, 31
      %s842 = scalar_select %p841, %s838, 31
      %s843 = smul.addr %s840, 32
      %s844 = sadd.s32 %s842, %s843
      %s845 = smul.addr %s844, 4
      %s846 = scalar_lea.vmem %s5, %s845
      // Predicated region
      $region41: #{fpn_forward.11} parent=39 // pred_check
        %p847 = pneg %p167
      $region42: #{fpn_forward.11} parent=39 // pred_check_branch
        %849 = sbr.rel (%p847) target = $region44
      $region43: #{fpn_forward.11} parent=39 // pred_region
        %s850 = smul.u32 32, %s21
      $region44: #{fpn_forward.11} parent=39 // pred_fallthru
        _
    $region40: #{fpn_forward.11} parent=5 // pred_fallthru
      _
    %p851 = scmp.le.s32.totalorder 2, %s11
    // Predicated region
    $region45: #{fpn_forward.11} parent=5 // pred_check
      %p852 = pneg %p851
    $region46: #{fpn_forward.11} parent=5 // pred_check_branch
      %854 = sbr.rel (%p852) target = $region48
    $region47: #{fpn_forward.11} parent=5 // pred_region
      %s855 = ssub.s32 %s11, 2
      // Predicated region
      $region49: #{fpn_forward.11} parent=47 // pred_check
        %p856 = pneg %p173
      $region50: #{fpn_forward.11} parent=47 // pred_check_branch
        %858 = sbr.rel (%p856) target = $region52
      $region51: #{fpn_forward.11} parent=47 // pred_region
        %s859 = smul.u32 32, %s23
        %p860 = scmp.lt.s32.totalorder %s22, 1
        %s861 = scalar_select %p860, %s22, 1
        %p862 = scmp.lt.s32.totalorder %s859, 31
        %s863 = scalar_select %p862, %s859, 31
        %s864 = smul.addr %s861, 32
        %s865 = sadd.s32 %s863, %s864
        %s866 = smul.addr %s865, 4
        %s867 = scalar_lea.vmem %s5, %s866
      $region52: #{fpn_forward.11} parent=47 // pred_fallthru
        _
    $region48: #{fpn_forward.11} parent=5 // pred_fallthru
      _
  $region6: #{fpn_forward.11} parent=0 // loop_footer
    %s15 = sadd.s32 1, %s11
  $region7: #{fpn_forward.11} parent=0 // loop_footer_branch
    %10 = sbr.rel target = $region3
  $region8: #{fpn_forward.11} parent=0 // loop_exit
    _

// kernel: fpn_forward.8
$region0: #{fpn_forward.8}
  #allocation0 [shape = 'u32[]', space=smem, size = 0x4, offset = 0x4, fixed_abs, tag = 'smem constant byte address 0x4 - core index']
  #allocation1 [shape = 'u32[72,128]{1,0:T(1,128)}', space=vmem, size = 0x9000, scoped, tag = 'internal scratch']
  %s0 = inlined_call_operand.vmem [shape: bf16[2,56,128], index: 0, kind: input, shape index: {}]
  %s1 = inlined_call_operand.vmem [shape: bf16[9,128,128], index: 1, kind: input, shape index: {}]
  %s2 = inlined_call_operand.vmem [shape: f32[1,128], index: 2, kind: input, shape index: {}]
  %s3 = inlined_call_operand.vmem [shape: bf16[2,32,128], index: 3, kind: output, shape index: {}]
  %s4 = sld [smem:[#allocation0]]
  $region45: #{fpn_forward.8} parent=0
    _
  %s6 = ssub.s32 1, %s4
  %s7 = scalar_select 0, %s6, %s4
  loop: start=0, step=1, limit=4
  $region2: #{fpn_forward.8} parent=0 // loop_pre_header
    _
  $region3: #{fpn_forward.8} parent=0 // loop_header
    %s9 = sphi 0, %s13
    %p10 = scmp.ge.s32.totalorder %s9, 4
    %s19 = sphi 0, %s21
    %s22 = sphi 0, %s19
    %s23 = sphi 0, %s22
    %s39 = sphi 0, %s23
    %s43 = sphi 0, %s43
    %s45 = sphi 0, %s43
    %s46 = sphi 0, %s45
    %s60 = sphi 0, %s46
    %s64 = sphi 0, %s64
    %s66 = sphi 0, %s64
    %s67 = sphi 0, %s66
    %s81 = sphi 0, %s67
    %s87 = sphi 0, %s89
    %s90 = sphi 0, %s87
    %s91 = sphi 0, %s90
    %s107 = sphi 0, %s91
  $region4: #{fpn_forward.8} parent=0 // loop_header_branch
    %12 = sbr.rel (%p10) target = $region8
  $region5: #{fpn_forward.8} parent=0 // loop_body
    %s14 = ssub.s32 %s9, 1
    %s15 = ssub.s32 %s9, 2
    %s16 = sadd.s32 %s9, 1
    %s17 = ssub.s32 %s9, %s16
    %p18 = scmp.eq.s32.totalorder %s17, 0
    %s20 = sadd.s32 %s19, 1
    %s21 = scalar_select %p18, %s19, %s20
    %p24 = pneg %p18
    %p25 = scmp.eq.s32.totalorder %s9, 1
    %p26 = por %p24, %p25
    %p27 = scmp.ne.s32.totalorder %s19, %s22
    %p28 = scmp.eq.s32.totalorder %s9, 0
    %p29 = por %p27, %p28
    %p30 = scmp.ne.s32.totalorder %s19, %s22
    %p31 = scmp.eq.s32.totalorder %s14, 1
    %p32 = por %p30, %p31
    %p33 = scmp.ne.s32.totalorder %s22, %s23
    %p34 = scmp.eq.s32.totalorder %s14, 0
    %p35 = por %p33, %p34
    %p36 = scmp.ne.s32.totalorder %s22, %s23
    %p37 = scmp.eq.s32.totalorder %s15, 1
    %p38 = por %p36, %p37
    %p40 = scmp.ne.s32.totalorder %s23, %s39
    %p41 = scmp.eq.s32.totalorder %s15, 0
    %p42 = por %p40, %p41
    %s44 = sadd.s32 %s43, 1
    %p47 = scmp.eq.s32.totalorder %s9, 1
    %p48 = scmp.ne.s32.totalorder %s43, %s45
    %p49 = scmp.eq.s32.totalorder %s9, 0
    %p50 = por %p48, %p49
    %p51 = scmp.ne.s32.totalorder %s43, %s45
    %p52 = scmp.eq.s32.totalorder %s14, 1
    %p53 = por %p51, %p52
    %p54 = scmp.ne.s32.totalorder %s45, %s46
    %p55 = scmp.eq.s32.totalorder %s14, 0
    %p56 = por %p54, %p55
    %p57 = scmp.ne.s32.totalorder %s45, %s46
    %p58 = scmp.eq.s32.totalorder %s15, 1
    %p59 = por %p57, %p58
    %p61 = scmp.ne.s32.totalorder %s46, %s60
    %p62 = scmp.eq.s32.totalorder %s15, 0
    %p63 = por %p61, %p62
    %s65 = sadd.s32 %s64, 1
    %p68 = scmp.eq.s32.totalorder %s9, 1
    %p69 = scmp.ne.s32.totalorder %s64, %s66
    %p70 = scmp.eq.s32.totalorder %s9, 0
    %p71 = por %p69, %p70
    %p72 = scmp.ne.s32.totalorder %s64, %s66
    %p73 = scmp.eq.s32.totalorder %s14, 1
    %p74 = por %p72, %p73
    %p75 = scmp.ne.s32.totalorder %s66, %s67
    %p76 = scmp.eq.s32.totalorder %s14, 0
    %p77 = por %p75, %p76
    %p78 = scmp.ne.s32.totalorder %s66, %s67
    %p79 = scmp.eq.s32.totalorder %s15, 1
    %p80 = por %p78, %p79
    %p82 = scmp.ne.s32.totalorder %s67, %s81
    %p83 = scmp.eq.s32.totalorder %s15, 0
    %p84 = por %p82, %p83
    %s85 = ssub.s32 %s9, %s16
    %p86 = scmp.eq.s32.totalorder %s85, 0
    %s88 = sadd.s32 %s87, 1
    %s89 = scalar_select %p86, %s87, %s88
    %p92 = pneg %p86
    %p93 = scmp.eq.s32.totalorder %s9, 1
    %p94 = por %p92, %p93
    %p95 = scmp.ne.s32.totalorder %s87, %s90
    %p96 = scmp.eq.s32.totalorder %s9, 0
    %p97 = por %p95, %p96
    %p98 = scmp.ne.s32.totalorder %s87, %s90
    %p99 = scmp.eq.s32.totalorder %s14, 1
    %p100 = por %p98, %p99
    %p101 = scmp.ne.s32.totalorder %s90, %s91
    %p102 = scmp.eq.s32.totalorder %s14, 0
    %p103 = por %p101, %p102
    %p104 = scmp.ne.s32.totalorder %s90, %s91
    %p105 = scmp.eq.s32.totalorder %s15, 1
    %p106 = por %p104, %p105
    %p108 = scmp.ne.s32.totalorder %s91, %s107
    %p109 = scmp.eq.s32.totalorder %s15, 0
    %p110 = por %p108, %p109
    %p111 = scmp.le.s32.totalorder 1, %s9
    %p112 = scmp.lt.s32.totalorder %s9, 3
    %p113 = pnand %p111, %p112
    %p114 = pneg %p113
    // Predicated region
    $region9: #{fpn_forward.8} parent=5 // pred_check
      _
    $region10: #{fpn_forward.8} parent=5 // pred_check_branch
      %116 = sbr.rel (%p113) target = $region12
    $region11: #{fpn_forward.8} parent=5 // pred_region
      %s117 = ssub.s32 %s9, 1
      // Predicated region
      $region13: #{fpn_forward.8} parent=11 // pred_check
        %p118 = pneg %p56
      $region14: #{fpn_forward.8} parent=11 // pred_check_branch
        %120 = sbr.rel (%p118) target = $region16
      $region15: #{fpn_forward.8} parent=11 // pred_region
        _
      $region16: #{fpn_forward.8} parent=11 // pred_fallthru
        _
      // Predicated region
      $region17: #{fpn_forward.8} parent=11 // pred_check
        %p121 = pneg %p77
      $region18: #{fpn_forward.8} parent=11 // pred_check_branch
        %123 = sbr.rel (%p121) target = $region20
      $region19: #{fpn_forward.8} parent=11 // pred_region
        _
      $region20: #{fpn_forward.8} parent=11 // pred_fallthru
        _
    $region12: #{fpn_forward.8} parent=5 // pred_fallthru
      _
    %p124 = scmp.lt.s32.totalorder %s9, 2
    // Predicated region
    $region21: #{fpn_forward.8} parent=5 // pred_check
      %p125 = pneg %p124
    $region22: #{fpn_forward.8} parent=5 // pred_check_branch
      %127 = sbr.rel (%p125) target = $region24
    $region23: #{fpn_forward.8} parent=5 // pred_region
      // Predicated region
      $region25: #{fpn_forward.8} parent=23 // pred_check
        %p128 = pneg %p29
      $region26: #{fpn_forward.8} parent=23 // pred_check_branch
        %130 = sbr.rel (%p128) target = $region28
      $region27: #{fpn_forward.8} parent=23 // pred_region
        %p131 = scmp.lt.s32.totalorder %s9, 1
        %s132 = scalar_select %p131, %s9, 1
        %s133 = smul.addr %s132, 7
        %s134 = smul.addr %s133, 4
        %s135 = scalar_lea.vmem %s0, %s134
      $region28: #{fpn_forward.8} parent=23 // pred_fallthru
        _
    $region24: #{fpn_forward.8} parent=5 // pred_fallthru
      _
    %p136 = scmp.le.s32.totalorder 1, %s9
    %p137 = scmp.lt.s32.totalorder %s9, 3
    %p138 = pnand %p136, %p137
    %p139 = pneg %p138
    // Predicated region
    $region29: #{fpn_forward.8} parent=5 // pred_check
      _
    $region30: #{fpn_forward.8} parent=5 // pred_check_branch
      %141 = sbr.rel (%p138) target = $region32
    $region31: #{fpn_forward.8} parent=5 // pred_region
      %s142 = ssub.s32 %s9, 1
      %p143 = scmp.lt.s32.totalorder %s14, 1
      %s144 = scalar_select %p143, %s14, 1
      %s145 = smul.addr %s144, 7
      %s146 = smul.addr %s145, 4
      %s147 = scalar_lea.vmem %s0, %s146
      %p148 = pneg %p35
      %p149 = pneg %p32
      %p150 = pneg %p56
      %p151 = pneg %p53
      %p152 = pneg %p77
      %p153 = pneg %p74
      %p154 = pneg %p103
      %p155 = pneg %p100
      %p156 = scmp.lt.s32.totalorder %s14, 1
      %s157 = scalar_select %p156, %s14, 1
      %s158 = smul.addr %s157, 4
      %s159 = smul.addr %s158, 4
      %s160 = scalar_lea.vmem %s3, %s159
      %p161 = scmp.lt.s32.totalorder %s14, 1
      %s162 = scalar_select %p161, %s14, 1
      %s163 = smul.addr %s162, 7
      %s164 = smul.addr %s163, 4
      %s165 = scalar_lea.vmem %s0, %s164
      %p166 = scmp.lt.s32.totalorder %s14, 1
      %s167 = scalar_select %p166, %s14, 1
      %s168 = smul.addr %s167, 4
      %s169 = smul.addr %s168, 4
      %s170 = scalar_lea.vmem %s3, %s169
      %v171 = vld [vmem:[%s165] sm:$0xf]
      %v172 = vld [vmem:[%s165 + $0x4] sm:$0xf]
      %v173 = vld [vmem:[%s165 + $0x8] sm:$0xf]
      %v174 = vld [vmem:[%s165 + $0xc] sm:$0xf]
      %v175 = vld [vmem:[%s1] sm:$0xf]
      %v176 = vld [vmem:[%s1 + $0x4] sm:$0xf]
      %v177 = vld [vmem:[%s1 + $0x8] sm:$0xf]
      %v178 = vld [vmem:[%s1 + $0xc] sm:$0xf]
      %v179 = vld [vmem:[%s1 + $0x10] sm:$0xf]
      %v180 = vld [vmem:[%s1 + $0x14] sm:$0xf]
      %v181 = vld [vmem:[%s1 + $0x18] sm:$0xf]
      %v182 = vld [vmem:[%s1 + $0x1c] sm:$0xf]
      %v183 = vld [vmem:[%s1 + $0x20] sm:$0xf]
      %v184 = vld [vmem:[%s1 + $0x24] sm:$0xf]
      %v185 = vld [vmem:[%s1 + $0x28] sm:$0xf]
      %v186 = vld [vmem:[%s1 + $0x2c] sm:$0xf]
      %v187 = vld [vmem:[%s1 + $0x30] sm:$0xf]
      %v188 = vld [vmem:[%s1 + $0x34] sm:$0xf]
      %v189 = vld [vmem:[%s1 + $0x38] sm:$0xf]
      %v190 = vld [vmem:[%s1 + $0x3c] sm:$0xf]
      %v191 = vld [vmem:[%s165 + $0x10] sm:$0x1]
      %s192 = scalar_lea.vmem %s1, 64
      %v193 = vld [vmem:[%s192] sm:$0xf]
      %v194 = vld [vmem:[%s192 + $0x4] sm:$0xf]
      %v195 = vld [vmem:[%s192 + $0x8] sm:$0xf]
      %v196 = vld [vmem:[%s192 + $0xc] sm:$0xf]
      %v197 = vld [vmem:[%s192 + $0x10] sm:$0xf]
      %v198 = vld [vmem:[%s192 + $0x14] sm:$0xf]
      %v199 = vld [vmem:[%s192 + $0x18] sm:$0xf]
      %v200 = vld [vmem:[%s192 + $0x1c] sm:$0xf]
      %v201 = vld [vmem:[%s192 + $0x20] sm:$0xf]
      %v202 = vld [vmem:[%s192 + $0x24] sm:$0xf]
      %v203 = vld [vmem:[%s192 + $0x28] sm:$0xf]
      %v204 = vld [vmem:[%s192 + $0x2c] sm:$0xf]
      %v205 = vld [vmem:[%s192 + $0x30] sm:$0xf]
      %v206 = vld [vmem:[%s192 + $0x34] sm:$0xf]
      %v207 = vld [vmem:[%s192 + $0x38] sm:$0xf]
      %v208 = vld [vmem:[%s192 + $0x3c] sm:$0xf]
      %v214 = vunpack.c.l.b16 %v171
      %v215 = vunpack.c.l.b16 %v172
      %v216 = vunpack.c.l.b16 %v173
      %v217 = vunpack.c.l.b16 %v174
      %v218 = vunpack.c.l.b16 %v191
      %v219 = vpack.c.b16 %v215, %v214
      %v220 = vpack.c.b16 %v217, %v216
      %v221 = vpack.c.b16 %v218, %v218
      %vm222 = vsmask.f32 7424
      %v224 = vshrl.u32 %v219, 16
      %v226 = vshll.u32 %v219, 16
      %v228 = vrot.slane %v226, 1
      %v229 = vor.u32 %v224, %v228
      %v231 = vshll.u32 %v220, 16
      %v233 = vrot.slane %v231, 1
      %v234 = vsel %vm222, %v229, %v233
      %v235 = vshrl.u32 %v220, 16
      %v237 = vor.u32 %v235, %v233
      %v239 = vshll.u32 %v221, 16
      %v241 = vrot.slane %v239, 1
      %v242 = vsel %vm222, %v237, %v241
      %v261 = vunpack.c.l.b16 %v193
      %v262 = vunpack.c.l.b16 %v194
      %v263 = vunpack.c.l.b16 %v195
      %v264 = vunpack.c.l.b16 %v196
      %v265 = vunpack.c.l.b16 %v197
      %v266 = vunpack.c.l.b16 %v198
      %v267 = vunpack.c.l.b16 %v199
      %v268 = vunpack.c.l.b16 %v200
      %v269 = vunpack.c.l.b16 %v201
      %v270 = vunpack.c.l.b16 %v202
      %v271 = vunpack.c.l.b16 %v203
      %v272 = vunpack.c.l.b16 %v204
      %v273 = vunpack.c.l.b16 %v205
      %v274 = vunpack.c.l.b16 %v206
      %v275 = vunpack.c.l.b16 %v207
      %v276 = vunpack.c.l.b16 %v208
      %v277 = vpack.c.b16 %v262, %v261
      %v278 = vpack.c.b16 %v264, %v263
      %v279 = vpack.c.b16 %v266, %v265
      %v280 = vpack.c.b16 %v268, %v267
      %v281 = vpack.c.b16 %v270, %v269
      %v282 = vpack.c.b16 %v272, %v271
      %v283 = vpack.c.b16 %v274, %v273
      %v284 = vpack.c.b16 %v276, %v275
      %293 = vmatpush.bf16.msra.mxu0 %v284
      %294 = vmatpush.bf16.msra.mxu0 %v283
      %295 = vmatpush.bf16.msra.mxu0 %v282
      %296 = vmatpush.bf16.msra.mxu0 %v281
      %297 = vmatpush.bf16.msra.mxu0 %v280
      %298 = vmatpush.bf16.msra.mxu0 %v279
      %299 = vmatpush.bf16.msra.mxu0 %v278
      %300 = vmatpush.bf16.msra.mxu0 %v277
      %301 = vmatmul.bf16.gmra.mxu0 %v234
      %v302 = vpop.f32.mrf.mxu0
      %v303 = vadd.f32 0.0, %v302
      %v304 = vpop.f32.mrf.mxu0
      %v305 = vadd.f32 0.0, %v304
      %306 = vmatmul.bf16.gmra.mxu0 %v242
      %v307 = vpop.f32.mrf.mxu0
      %v308 = vadd.f32 0.0, %v307
      %v309 = vpop.f32.mrf.mxu0
      %v310 = vadd.f32 0.0, %v309
      %311 = vdwg.mxu0
      %v330 = vunpack.c.l.b16 %v175
      %v331 = vunpack.c.l.b16 %v176
      %v332 = vunpack.c.l.b16 %v177
      %v333 = vunpack.c.l.b16 %v178
      %v334 = vunpack.c.l.b16 %v179
      %v335 = vunpack.c.l.b16 %v180
      %v336 = vunpack.c.l.b16 %v181
      %v337 = vunpack.c.l.b16 %v182
      %v338 = vunpack.c.l.b16 %v183
      %v339 = vunpack.c.l.b16 %v184
      %v340 = vunpack.c.l.b16 %v185
      %v341 = vunpack.c.l.b16 %v186
      %v342 = vunpack.c.l.b16 %v187
      %v343 = vunpack.c.l.b16 %v188
      %v344 = vunpack.c.l.b16 %v189
      %v345 = vunpack.c.l.b16 %v190
      %v346 = vpack.c.b16 %v331, %v330
      %v347 = vpack.c.b16 %v333, %v332
      %v348 = vpack.c.b16 %v335, %v334
      %v349 = vpack.c.b16 %v337, %v336
      %v350 = vpack.c.b16 %v339, %v338
      %v351 = vpack.c.b16 %v341, %v340
      %v352 = vpack.c.b16 %v343, %v342
      %v353 = vpack.c.b16 %v345, %v344
      %362 = vmatpush.bf16.msra.mxu0 %v353
      %363 = vmatpush.bf16.msra.mxu0 %v352
      %364 = vmatpush.bf16.msra.mxu0 %v351
      %365 = vmatpush.bf16.msra.mxu0 %v350
      %366 = vmatpush.bf16.msra.mxu0 %v349
      %367 = vmatpush.bf16.msra.mxu0 %v348
      %368 = vmatpush.bf16.msra.mxu0 %v347
      %369 = vmatpush.bf16.msra.mxu0 %v346
      %370 = vmatmul.bf16.gmra.mxu0 %v219
      %v371 = vpop.f32.mrf.mxu0
      %v372 = vadd.f32 %v303, %v371
      %v373 = vpop.f32.mrf.mxu0
      %v374 = vadd.f32 %v305, %v373
      %375 = vmatmul.bf16.gmra.mxu0 %v220
      %v376 = vpop.f32.mrf.mxu0
      %v377 = vadd.f32 %v308, %v376
      %v378 = vpop.f32.mrf.mxu0
      %v379 = vadd.f32 %v310, %v378
      %380 = vdwg.mxu0
      %v381 = vld [vmem:[%s165] sm:$0xe]
      %s382 = scalar_lea.vmem %s1, 128
      %v383 = vld [vmem:[%s382] sm:$0xf]
      %v384 = vld [vmem:[%s382 + $0x4] sm:$0xf]
      %v385 = vld [vmem:[%s382 + $0x8] sm:$0xf]
      %v386 = vld [vmem:[%s382 + $0xc] sm:$0xf]
      %v387 = vld [vmem:[%s382 + $0x10] sm:$0xf]
      %v388 = vld [vmem:[%s382 + $0x14] sm:$0xf]
      %v389 = vld [vmem:[%s382 + $0x18] sm:$0xf]
      %v390 = vld [vmem:[%s382 + $0x1c] sm:$0xf]
      %v391 = vld [vmem:[%s382 + $0x20] sm:$0xf]
      %v392 = vld [vmem:[%s382 + $0x24] sm:$0xf]
      %v393 = vld [vmem:[%s382 + $0x28] sm:$0xf]
      %v394 = vld [vmem:[%s382 + $0x2c] sm:$0xf]
      %v395 = vld [vmem:[%s382 + $0x30] sm:$0xf]
      %v396 = vld [vmem:[%s382 + $0x34] sm:$0xf]
      %v397 = vld [vmem:[%s382 + $0x38] sm:$0xf]
      %v398 = vld [vmem:[%s382 + $0x3c] sm:$0xf]
      %v400 = vunpack.c.l.b16 %v381
      %v401 = vpack.c.b16 %v215, %v400
      %vm402 = vcmask 1046528
      %v403 = vrot.slane %v401, 1
      %v404 = vrot.slane %v220, 1
      %v405 = vsel %vm402, %v403, %v404
      %v406 = vrot.slane %v221, 1
      %v407 = vsel %vm402, %v404, %v406
      %v426 = vunpack.c.l.b16 %v383
      %v427 = vunpack.c.l.b16 %v384
      %v428 = vunpack.c.l.b16 %v385
      %v429 = vunpack.c.l.b16 %v386
      %v430 = vunpack.c.l.b16 %v387
      %v431 = vunpack.c.l.b16 %v388
      %v432 = vunpack.c.l.b16 %v389
      %v433 = vunpack.c.l.b16 %v390
      %v434 = vunpack.c.l.b16 %v391
      %v435 = vunpack.c.l.b16 %v392
      %v436 = vunpack.c.l.b16 %v393
      %v437 = vunpack.c.l.b16 %v394
      %v438 = vunpack.c.l.b16 %v395
      %v439 = vunpack.c.l.b16 %v396
      %v440 = vunpack.c.l.b16 %v397
      %v441 = vunpack.c.l.b16 %v398
      %v442 = vpack.c.b16 %v427, %v426
      %v443 = vpack.c.b16 %v429, %v428
      %v444 = vpack.c.b16 %v431, %v430
      %v445 = vpack.c.b16 %v433, %v432
      %v446 = vpack.c.b16 %v435, %v434
      %v447 = vpack.c.b16 %v437, %v436
      %v448 = vpack.c.b16 %v439, %v438
      %v449 = vpack.c.b16 %v441, %v440
      %458 = vmatpush.bf16.msra.mxu0 %v449
      %459 = vmatpush.bf16.msra.mxu0 %v448
      %460 = vmatpush.bf16.msra.mxu0 %v447
      %461 = vmatpush.bf16.msra.mxu0 %v446
      %462 = vmatpush.bf16.msra.mxu0 %v445
      %463 = vmatpush.bf16.msra.mxu0 %v444
      %464 = vmatpush.bf16.msra.mxu0 %v443
      %465 = vmatpush.bf16.msra.mxu0 %v442
      %466 = vmatmul.bf16.gmra.mxu0 %v405
      %v467 = vpop.f32.mrf.mxu0
      %v468 = vadd.f32 0.0, %v467
      %v469 = vpop.f32.mrf.mxu0
      %v470 = vadd.f32 0.0, %v469
      %471 = vmatmul.bf16.gmra.mxu0 %v407
      %v472 = vpop.f32.mrf.mxu0
      %v473 = vadd.f32 0.0, %v472
      %v474 = vpop.f32.mrf.mxu0
      %v475 = vadd.f32 0.0, %v474
      %476 = vdwg.mxu0
      %v477 = vadd.f32 %v372, %v468
      %v478 = vadd.f32 %v374, %v470
      %v479 = vadd.f32 %v377, %v473
      %v480 = vadd.f32 %v379, %v475
      %v481 = vld [vmem:[%s165 + $0x10] sm:$0xf]
      %s482 = scalar_lea.vmem %s1, 192
      %v483 = vld [vmem:[%s482] sm:$0xf]
      %v484 = vld [vmem:[%s482 + $0x4] sm:$0xf]
      %v485 = vld [vmem:[%s482 + $0x8] sm:$0xf]
      %v486 = vld [vmem:[%s482 + $0xc] sm:$0xf]
      %v487 = vld [vmem:[%s482 + $0x10] sm:$0xf]
      %v488 = vld [vmem:[%s482 + $0x14] sm:$0xf]
      %v489 = vld [vmem:[%s482 + $0x18] sm:$0xf]
      %v490 = vld [vmem:[%s482 + $0x1c] sm:$0xf]
      %v491 = vld [vmem:[%s482 + $0x20] sm:$0xf]
      %v492 = vld [vmem:[%s482 + $0x24] sm:$0xf]
      %v493 = vld [vmem:[%s482 + $0x28] sm:$0xf]
      %v494 = vld [vmem:[%s482 + $0x2c] sm:$0xf]
      %v495 = vld [vmem:[%s482 + $0x30] sm:$0xf]
      %v496 = vld [vmem:[%s482 + $0x34] sm:$0xf]
      %v497 = vld [vmem:[%s482 + $0x38] sm:$0xf]
      %v498 = vld [vmem:[%s482 + $0x3c] sm:$0xf]
      %v500 = vunpack.c.l.b16 %v481
      %v501 = vpack.c.b16 %v216, %v215
      %v502 = vpack.c.b16 %v500, %v217
      %v521 = vunpack.c.l.b16 %v483
      %v522 = vunpack.c.l.b16 %v484
      %v523 = vunpack.c.l.b16 %v485
      %v524 = vunpack.c.l.b16 %v486
      %v525 = vunpack.c.l.b16 %v487
      %v526 = vunpack.c.l.b16 %v488
      %v527 = vunpack.c.l.b16 %v489
      %v528 = vunpack.c.l.b16 %v490
      %v529 = vunpack.c.l.b16 %v491
      %v530 = vunpack.c.l.b16 %v492
      %v531 = vunpack.c.l.b16 %v493
      %v532 = vunpack.c.l.b16 %v494
      %v533 = vunpack.c.l.b16 %v495
      %v534 = vunpack.c.l.b16 %v496
      %v535 = vunpack.c.l.b16 %v497
      %v536 = vunpack.c.l.b16 %v498
      %v537 = vpack.c.b16 %v522, %v521
      %v538 = vpack.c.b16 %v524, %v523
      %v539 = vpack.c.b16 %v526, %v525
      %v540 = vpack.c.b16 %v528, %v527
      %v541 = vpack.c.b16 %v530, %v529
      %v542 = vpack.c.b16 %v532, %v531
      %v543 = vpack.c.b16 %v534, %v533
      %v544 = vpack.c.b16 %v536, %v535
      %553 = vmatpush.bf16.msra.mxu0 %v544
      %554 = vmatpush.bf16.msra.mxu0 %v543
      %555 = vmatpush.bf16.msra.mxu0 %v542
      %556 = vmatpush.bf16.msra.mxu0 %v541
      %557 = vmatpush.bf16.msra.mxu0 %v540
      %558 = vmatpush.bf16.msra.mxu0 %v539
      %559 = vmatpush.bf16.msra.mxu0 %v538
      %560 = vmatpush.bf16.msra.mxu0 %v537
      %561 = vmatmul.bf16.gmra.mxu0 %v501
      %v562 = vpop.f32.mrf.mxu0
      %v563 = vadd.f32 0.0, %v562
      %v564 = vpop.f32.mrf.mxu0
      %v565 = vadd.f32 0.0, %v564
      %566 = vmatmul.bf16.gmra.mxu0 %v502
      %v567 = vpop.f32.mrf.mxu0
      %v568 = vadd.f32 0.0, %v567
      %v569 = vpop.f32.mrf.mxu0
      %v570 = vadd.f32 0.0, %v569
      %571 = vdwg.mxu0
      %v572 = vadd.f32 %v477, %v563
      %v573 = vadd.f32 %v478, %v565
      %v574 = vadd.f32 %v479, %v568
      %v575 = vadd.f32 %v480, %v570
      %v576 = vld [vmem:[%s165 + $0x4] sm:$0xf]
      %v577 = vld [vmem:[%s165 + $0x8] sm:$0xf]
      %v578 = vld [vmem:[%s165 + $0xc] sm:$0xf]
      %v579 = vld [vmem:[%s165 + $0x10] sm:$0xf]
      %v580 = vld [vmem:[%s165 + $0x14] sm:$0x1]
      %s581 = scalar_lea.vmem %s1, 256
      %v582 = vld [vmem:[%s581] sm:$0xf]
      %v583 = vld [vmem:[%s581 + $0x4] sm:$0xf]
      %v584 = vld [vmem:[%s581 + $0x8] sm:$0xf]
      %v585 = vld [vmem:[%s581 + $0xc] sm:$0xf]
      %v586 = vld [vmem:[%s581 + $0x10] sm:$0xf]
      %v587 = vld [vmem:[%s581 + $0x14] sm:$0xf]
      %v588 = vld [vmem:[%s581 + $0x18] sm:$0xf]
      %v589 = vld [vmem:[%s581 + $0x1c] sm:$0xf]
      %v590 = vld [vmem:[%s581 + $0x20] sm:$0xf]
      %v591 = vld [vmem:[%s581 + $0x24] sm:$0xf]
      %v592 = vld [vmem:[%s581 + $0x28] sm:$0xf]
      %v593 = vld [vmem:[%s581 + $0x2c] sm:$0xf]
      %v594 = vld [vmem:[%s581 + $0x30] sm:$0xf]
      %v595 = vld [vmem:[%s581 + $0x34] sm:$0xf]
      %v596 = vld [vmem:[%s581 + $0x38] sm:$0xf]
      %v597 = vld [vmem:[%s581 + $0x3c] sm:$0xf]
      %v603 = vunpack.c.l.b16 %v576
      %v604 = vunpack.c.l.b16 %v577
      %v605 = vunpack.c.l.b16 %v578
      %v606 = vunpack.c.l.b16 %v579
      %v607 = vunpack.c.l.b16 %v580
      %v608 = vpack.c.b16 %v604, %v603
      %v609 = vpack.c.b16 %v606, %v605
      %v610 = vpack.c.b16 %v607, %v607
      %v612 = vshrl.u32 %v608, 16
      %v614 = vshll.u32 %v608, 16
      %v616 = vrot.slane %v614, 1
      %v617 = vor.u32 %v612, %v616
      %v619 = vshll.u32 %v609, 16
      %v621 = vrot.slane %v619, 1
      %v622 = vsel %vm222, %v617, %v621
      %v623 = vshrl.u32 %v609, 16
      %v625 = vor.u32 %v623, %v621
      %v627 = vshll.u32 %v610, 16
      %v629 = vrot.slane %v627, 1
      %v630 = vsel %vm222, %v625, %v629
      %v649 = vunpack.c.l.b16 %v582
      %v650 = vunpack.c.l.b16 %v583
      %v651 = vunpack.c.l.b16 %v584
      %v652 = vunpack.c.l.b16 %v585
      %v653 = vunpack.c.l.b16 %v586
      %v654 = vunpack.c.l.b16 %v587
      %v655 = vunpack.c.l.b16 %v588
      %v656 = vunpack.c.l.b16 %v589
      %v657 = vunpack.c.l.b16 %v590
      %v658 = vunpack.c.l.b16 %v591
      %v659 = vunpack.c.l.b16 %v592
      %v660 = vunpack.c.l.b16 %v593
      %v661 = vunpack.c.l.b16 %v594
      %v662 = vunpack.c.l.b16 %v595
      %v663 = vunpack.c.l.b16 %v596
      %v664 = vunpack.c.l.b16 %v597
      %v665 = vpack.c.b16 %v650, %v649
      %v666 = vpack.c.b16 %v652, %v651
      %v667 = vpack.c.b16 %v654, %v653
      %v668 = vpack.c.b16 %v656, %v655
      %v669 = vpack.c.b16 %v658, %v657
      %v670 = vpack.c.b16 %v660, %v659
      %v671 = vpack.c.b16 %v662, %v661
      %v672 = vpack.c.b16 %v664, %v663
      %681 = vmatpush.bf16.msra.mxu0 %v672
      %682 = vmatpush.bf16.msra.mxu0 %v671
      %683 = vmatpush.bf16.msra.mxu0 %v670
      %684 = vmatpush.bf16.msra.mxu0 %v669
      %685 = vmatpush.bf16.msra.mxu0 %v668
      %686 = vmatpush.bf16.msra.mxu0 %v667
      %687 = vmatpush.bf16.msra.mxu0 %v666
      %688 = vmatpush.bf16.msra.mxu0 %v665
      %689 = vmatmul.bf16.gmra.mxu0 %v622
      %v690 = vpop.f32.mrf.mxu0
      %v691 = vadd.f32 0.0, %v690
      %v692 = vpop.f32.mrf.mxu0
      %v693 = vadd.f32 0.0, %v692
      %694 = vmatmul.bf16.gmra.mxu0 %v630
      %v695 = vpop.f32.mrf.mxu0
      %v696 = vadd.f32 0.0, %v695
      %v697 = vpop.f32.mrf.mxu0
      %v698 = vadd.f32 0.0, %v697
      %699 = vdwg.mxu0
      %v700 = vadd.f32 %v572, %v691
      %v701 = vadd.f32 %v573, %v693
      %v702 = vadd.f32 %v574, %v696
      %v703 = vadd.f32 %v575, %v698
      %v704 = vld [vmem:[%s165 + $0x4] sm:$0xe]
      %s705 = scalar_lea.vmem %s1, 320
      %v706 = vld [vmem:[%s705] sm:$0xf]
      %v707 = vld [vmem:[%s705 + $0x4] sm:$0xf]
      %v708 = vld [vmem:[%s705 + $0x8] sm:$0xf]
      %v709 = vld [vmem:[%s705 + $0xc] sm:$0xf]
      %v710 = vld [vmem:[%s705 + $0x10] sm:$0xf]
      %v711 = vld [vmem:[%s705 + $0x14] sm:$0xf]
      %v712 = vld [vmem:[%s705 + $0x18] sm:$0xf]
      %v713 = vld [vmem:[%s705 + $0x1c] sm:$0xf]
      %v714 = vld [vmem:[%s705 + $0x20] sm:$0xf]
      %v715 = vld [vmem:[%s705 + $0x24] sm:$0xf]
      %v716 = vld [vmem:[%s705 + $0x28] sm:$0xf]
      %v717 = vld [vmem:[%s705 + $0x2c] sm:$0xf]
      %v718 = vld [vmem:[%s705 + $0x30] sm:$0xf]
      %v719 = vld [vmem:[%s705 + $0x34] sm:$0xf]
      %v720 = vld [vmem:[%s705 + $0x38] sm:$0xf]
      %v721 = vld [vmem:[%s705 + $0x3c] sm:$0xf]
      %v723 = vunpack.c.l.b16 %v704
      %v724 = vpack.c.b16 %v604, %v723
      %v725 = vrot.slane %v724, 1
      %v726 = vrot.slane %v609, 1
      %v727 = vsel %vm402, %v725, %v726
      %v728 = vrot.slane %v610, 1
      %v729 = vsel %vm402, %v726, %v728
      %v748 = vunpack.c.l.b16 %v706
      %v749 = vunpack.c.l.b16 %v707
      %v750 = vunpack.c.l.b16 %v708
      %v751 = vunpack.c.l.b16 %v709
      %v752 = vunpack.c.l.b16 %v710
      %v753 = vunpack.c.l.b16 %v711
      %v754 = vunpack.c.l.b16 %v712
      %v755 = vunpack.c.l.b16 %v713
      %v756 = vunpack.c.l.b16 %v714
      %v757 = vunpack.c.l.b16 %v715
      %v758 = vunpack.c.l.b16 %v716
      %v759 = vunpack.c.l.b16 %v717
      %v760 = vunpack.c.l.b16 %v718
      %v761 = vunpack.c.l.b16 %v719
      %v762 = vunpack.c.l.b16 %v720
      %v763 = vunpack.c.l.b16 %v721
      %v764 = vpack.c.b16 %v749, %v748
      %v765 = vpack.c.b16 %v751, %v750
      %v766 = vpack.c.b16 %v753, %v752
      %v767 = vpack.c.b16 %v755, %v754
      %v768 = vpack.c.b16 %v757, %v756
      %v769 = vpack.c.b16 %v759, %v758
      %v770 = vpack.c.b16 %v761, %v760
      %v771 = vpack.c.b16 %v763, %v762
      %780 = vmatpush.bf16.msra.mxu0 %v771
      %781 = vmatpush.bf16.msra.mxu0 %v770
      %782 = vmatpush.bf16.msra.mxu0 %v769
      %783 = vmatpush.bf16.msra.mxu0 %v768
      %784 = vmatpush.bf16.msra.mxu0 %v767
      %785 = vmatpush.bf16.msra.mxu0 %v766
      %786 = vmatpush.bf16.msra.mxu0 %v765
      %787 = vmatpush.bf16.msra.mxu0 %v764
      %788 = vmatmul.bf16.gmra.mxu0 %v727
      %v789 = vpop.f32.mrf.mxu0
      %v790 = vadd.f32 0.0, %v789
      %v791 = vpop.f32.mrf.mxu0
      %v792 = vadd.f32 0.0, %v791
      %793 = vmatmul.bf16.gmra.mxu0 %v729
      %v794 = vpop.f32.mrf.mxu0
      %v795 = vadd.f32 0.0, %v794
      %v796 = vpop.f32.mrf.mxu0
      %v797 = vadd.f32 0.0, %v796
      %798 = vdwg.mxu0
      %v799 = vadd.f32 %v700, %v790
      %v800 = vadd.f32 %v701, %v792
      %v801 = vadd.f32 %v702, %v795
      %v802 = vadd.f32 %v703, %v797
      %v803 = vld [vmem:[%s165 + $0x14] sm:$0xf]
      %s804 = scalar_lea.vmem %s1, 384
      %v805 = vld [vmem:[%s804] sm:$0xf]
      %v806 = vld [vmem:[%s804 + $0x4] sm:$0xf]
      %v807 = vld [vmem:[%s804 + $0x8] sm:$0xf]
      %v808 = vld [vmem:[%s804 + $0xc] sm:$0xf]
      %v809 = vld [vmem:[%s804 + $0x10] sm:$0xf]
      %v810 = vld [vmem:[%s804 + $0x14] sm:$0xf]
      %v811 = vld [vmem:[%s804 + $0x18] sm:$0xf]
      %v812 = vld [vmem:[%s804 + $0x1c] sm:$0xf]
      %v813 = vld [vmem:[%s804 + $0x20] sm:$0xf]
      %v814 = vld [vmem:[%s804 + $0x24] sm:$0xf]
      %v815 = vld [vmem:[%s804 + $0x28] sm:$0xf]
      %v816 = vld [vmem:[%s804 + $0x2c] sm:$0xf]
      %v817 = vld [vmem:[%s804 + $0x30] sm:$0xf]
      %v818 = vld [vmem:[%s804 + $0x34] sm:$0xf]
      %v819 = vld [vmem:[%s804 + $0x38] sm:$0xf]
      %v820 = vld [vmem:[%s804 + $0x3c] sm:$0xf]
      %v822 = vunpack.c.l.b16 %v803
      %v823 = vpack.c.b16 %v605, %v604
      %v824 = vpack.c.b16 %v822, %v606
      %v843 = vunpack.c.l.b16 %v805
      %v844 = vunpack.c.l.b16 %v806
      %v845 = vunpack.c.l.b16 %v807
      %v846 = vunpack.c.l.b16 %v808
      %v847 = vunpack.c.l.b16 %v809
      %v848 = vunpack.c.l.b16 %v810
      %v849 = vunpack.c.l.b16 %v811
      %v850 = vunpack.c.l.b16 %v812
      %v851 = vunpack.c.l.b16 %v813
      %v852 = vunpack.c.l.b16 %v814
      %v853 = vunpack.c.l.b16 %v815
      %v854 = vunpack.c.l.b16 %v816
      %v855 = vunpack.c.l.b16 %v817
      %v856 = vunpack.c.l.b16 %v818
      %v857 = vunpack.c.l.b16 %v819
      %v858 = vunpack.c.l.b16 %v820
      %v859 = vpack.c.b16 %v844, %v843
      %v860 = vpack.c.b16 %v846, %v845
      %v861 = vpack.c.b16 %v848, %v847
      %v862 = vpack.c.b16 %v850, %v849
      %v863 = vpack.c.b16 %v852, %v851
      %v864 = vpack.c.b16 %v854, %v853
      %v865 = vpack.c.b16 %v856, %v855
      %v866 = vpack.c.b16 %v858, %v857
      %875 = vmatpush.bf16.msra.mxu0 %v866
      %876 = vmatpush.bf16.msra.mxu0 %v865
      %877 = vmatpush.bf16.msra.mxu0 %v864
      %878 = vmatpush.bf16.msra.mxu0 %v863
      %879 = vmatpush.bf16.msra.mxu0 %v862
      %880 = vmatpush.bf16.msra.mxu0 %v861
      %881 = vmatpush.bf16.msra.mxu0 %v860
      %882 = vmatpush.bf16.msra.mxu0 %v859
      %883 = vmatmul.bf16.gmra.mxu0 %v823
      %v884 = vpop.f32.mrf.mxu0
      %v885 = vadd.f32 0.0, %v884
      %v886 = vpop.f32.mrf.mxu0
      %v887 = vadd.f32 0.0, %v886
      %888 = vmatmul.bf16.gmra.mxu0 %v824
      %v889 = vpop.f32.mrf.mxu0
      %v890 = vadd.f32 0.0, %v889
      %v891 = vpop.f32.mrf.mxu0
      %v892 = vadd.f32 0.0, %v891
      %893 = vdwg.mxu0
      %v894 = vadd.f32 %v799, %v885
      %v895 = vadd.f32 %v800, %v887
      %v896 = vadd.f32 %v801, %v890
      %v897 = vadd.f32 %v802, %v892
      %v898 = vld [vmem:[%s165 + $0x8] sm:$0xf]
      %v899 = vld [vmem:[%s165 + $0xc] sm:$0xf]
      %v900 = vld [vmem:[%s165 + $0x10] sm:$0xf]
      %v901 = vld [vmem:[%s165 + $0x14] sm:$0xf]
      %v902 = vld [vmem:[%s165 + $0x18] sm:$0x1]
      %s903 = scalar_lea.vmem %s1, 448
      %v904 = vld [vmem:[%s903] sm:$0xf]
      %v905 = vld [vmem:[%s903 + $0x4] sm:$0xf]
      %v906 = vld [vmem:[%s903 + $0x8] sm:$0xf]
      %v907 = vld [vmem:[%s903 + $0xc] sm:$0xf]
      %v908 = vld [vmem:[%s903 + $0x10] sm:$0xf]
      %v909 = vld [vmem:[%s903 + $0x14] sm:$0xf]
      %v910 = vld [vmem:[%s903 + $0x18] sm:$0xf]
      %v911 = vld [vmem:[%s903 + $0x1c] sm:$0xf]
      %v912 = vld [vmem:[%s903 + $0x20] sm:$0xf]
      %v913 = vld [vmem:[%s903 + $0x24] sm:$0xf]
      %v914 = vld [vmem:[%s903 + $0x28] sm:$0xf]
      %v915 = vld [vmem:[%s903 + $0x2c] sm:$0xf]
      %v916 = vld [vmem:[%s903 + $0x30] sm:$0xf]
      %v917 = vld [vmem:[%s903 + $0x34] sm:$0xf]
      %v918 = vld [vmem:[%s903 + $0x38] sm:$0xf]
      %v919 = vld [vmem:[%s903 + $0x3c] sm:$0xf]
      %v925 = vunpack.c.l.b16 %v898
      %v926 = vunpack.c.l.b16 %v899
      %v927 = vunpack.c.l.b16 %v900
      %v928 = vunpack.c.l.b16 %v901
      %v929 = vunpack.c.l.b16 %v902
      %v930 = vpack.c.b16 %v926, %v925
      %v931 = vpack.c.b16 %v928, %v927
      %v932 = vpack.c.b16 %v929, %v929
      %v934 = vshrl.u32 %v930, 16
      %v936 = vshll.u32 %v930, 16
      %v938 = vrot.slane %v936, 1
      %v939 = vor.u32 %v934, %v938
      %v941 = vshll.u32 %v931, 16
      %v943 = vrot.slane %v941, 1
      %v944 = vsel %vm222, %v939, %v943
      %v945 = vshrl.u32 %v931, 16
      %v947 = vor.u32 %v945, %v943
      %v949 = vshll.u32 %v932, 16
      %v951 = vrot.slane %v949, 1
      %v952 = vsel %vm222, %v947, %v951
      %v971 = vunpack.c.l.b16 %v904
      %v972 = vunpack.c.l.b16 %v905
      %v973 = vunpack.c.l.b16 %v906
      %v974 = vunpack.c.l.b16 %v907
      %v975 = vunpack.c.l.b16 %v908
      %v976 = vunpack.c.l.b16 %v909
      %v977 = vunpack.c.l.b16 %v910
      %v978 = vunpack.c.l.b16 %v911
      %v979 = vunpack.c.l.b16 %v912
      %v980 = vunpack.c.l.b16 %v913
      %v981 = vunpack.c.l.b16 %v914
      %v982 = vunpack.c.l.b16 %v915
      %v983 = vunpack.c.l.b16 %v916
      %v984 = vunpack.c.l.b16 %v917
      %v985 = vunpack.c.l.b16 %v918
      %v986 = vunpack.c.l.b16 %v919
      %v987 = vpack.c.b16 %v972, %v971
      %v988 = vpack.c.b16 %v974, %v973
      %v989 = vpack.c.b16 %v976, %v975
      %v990 = vpack.c.b16 %v978, %v977
      %v991 = vpack.c.b16 %v980, %v979
      %v992 = vpack.c.b16 %v982, %v981
      %v993 = vpack.c.b16 %v984, %v983
      %v994 = vpack.c.b16 %v986, %v985
      %1003 = vmatpush.bf16.msra.mxu0 %v994
      %1004 = vmatpush.bf16.msra.mxu0 %v993
      %1005 = vmatpush.bf16.msra.mxu0 %v992
      %1006 = vmatpush.bf16.msra.mxu0 %v991
      %1007 = vmatpush.bf16.msra.mxu0 %v990
      %1008 = vmatpush.bf16.msra.mxu0 %v989
      %1009 = vmatpush.bf16.msra.mxu0 %v988
      %1010 = vmatpush.bf16.msra.mxu0 %v987
      %1011 = vmatmul.bf16.gmra.mxu0 %v944
      %v1012 = vpop.f32.mrf.mxu0
      %v1013 = vadd.f32 0.0, %v1012
      %v1014 = vpop.f32.mrf.mxu0
      %v1015 = vadd.f32 0.0, %v1014
      %1016 = vmatmul.bf16.gmra.mxu0 %v952
      %v1017 = vpop.f32.mrf.mxu0
      %v1018 = vadd.f32 0.0, %v1017
      %v1019 = vpop.f32.mrf.mxu0
      %v1020 = vadd.f32 0.0, %v1019
      %1021 = vdwg.mxu0
      %v1022 = vadd.f32 %v894, %v1013
      %v1023 = vadd.f32 %v895, %v1015
      %v1024 = vadd.f32 %v896, %v1018
      %v1025 = vadd.f32 %v897, %v1020
      %v1026 = vld [vmem:[%s165 + $0x8] sm:$0xe]
      %s1027 = scalar_lea.vmem %s1, 512
      %v1028 = vld [vmem:[%s1027] sm:$0xf]
      %v1029 = vld [vmem:[%s1027 + $0x4] sm:$0xf]
      %v1030 = vld [vmem:[%s1027 + $0x8] sm:$0xf]
      %v1031 = vld [vmem:[%s1027 + $0xc] sm:$0xf]
      %v1032 = vld [vmem:[%s1027 + $0x10] sm:$0xf]
      %v1033 = vld [vmem:[%s1027 + $0x14] sm:$0xf]
      %v1034 = vld [vmem:[%s1027 + $0x18] sm:$0xf]
      %v1035 = vld [vmem:[%s1027 + $0x1c] sm:$0xf]
      %v1036 = vld [vmem:[%s1027 + $0x20] sm:$0xf]
      %v1037 = vld [vmem:[%s1027 + $0x24] sm:$0xf]
      %v1038 = vld [vmem:[%s1027 + $0x28] sm:$0xf]
      %v1039 = vld [vmem:[%s1027 + $0x2c] sm:$0xf]
      %v1040 = vld [vmem:[%s1027 + $0x30] sm:$0xf]
      %v1041 = vld [vmem:[%s1027 + $0x34] sm:$0xf]
      %v1042 = vld [vmem:[%s1027 + $0x38] sm:$0xf]
      %v1043 = vld [vmem:[%s1027 + $0x3c] sm:$0xf]
      %v1045 = vunpack.c.l.b16 %v1026
      %v1046 = vpack.c.b16 %v926, %v1045
      %v1047 = vrot.slane %v1046, 1
      %v1048 = vrot.slane %v931, 1
      %v1049 = vsel %vm402, %v1047, %v1048
      %v1050 = vrot.slane %v932, 1
      %v1051 = vsel %vm402, %v1048, %v1050
      %v1070 = vunpack.c.l.b16 %v1028
      %v1071 = vunpack.c.l.b16 %v1029
      %v1072 = vunpack.c.l.b16 %v1030
      %v1073 = vunpack.c.l.b16 %v1031
      %v1074 = vunpack.c.l.b16 %v1032
      %v1075 = vunpack.c.l.b16 %v1033
      %v1076 = vunpack.c.l.b16 %v1034
      %v1077 = vunpack.c.l.b16 %v1035
      %v1078 = vunpack.c.l.b16 %v1036
      %v1079 = vunpack.c.l.b16 %v1037
      %v1080 = vunpack.c.l.b16 %v1038
      %v1081 = vunpack.c.l.b16 %v1039
      %v1082 = vunpack.c.l.b16 %v1040
      %v1083 = vunpack.c.l.b16 %v1041
      %v1084 = vunpack.c.l.b16 %v1042
      %v1085 = vunpack.c.l.b16 %v1043
      %v1086 = vpack.c.b16 %v1071, %v1070
      %v1087 = vpack.c.b16 %v1073, %v1072
      %v1088 = vpack.c.b16 %v1075, %v1074
      %v1089 = vpack.c.b16 %v1077, %v1076
      %v1090 = vpack.c.b16 %v1079, %v1078
      %v1091 = vpack.c.b16 %v1081, %v1080
      %v1092 = vpack.c.b16 %v1083, %v1082
      %v1093 = vpack.c.b16 %v1085, %v1084
      %1102 = vmatpush.bf16.msra.mxu0 %v1093
      %1103 = vmatpush.bf16.msra.mxu0 %v1092
      %1104 = vmatpush.bf16.msra.mxu0 %v1091
      %1105 = vmatpush.bf16.msra.mxu0 %v1090
      %1106 = vmatpush.bf16.msra.mxu0 %v1089
      %1107 = vmatpush.bf16.msra.mxu0 %v1088
      %1108 = vmatpush.bf16.msra.mxu0 %v1087
      %1109 = vmatpush.bf16.msra.mxu0 %v1086
      %1110 = vmatmul.bf16.gmra.mxu0 %v1049
      %v1111 = vpop.f32.mrf.mxu0
      %v1112 = vadd.f32 0.0, %v1111
      %v1113 = vpop.f32.mrf.mxu0
      %v1114 = vadd.f32 0.0, %v1113
      %1115 = vmatmul.bf16.gmra.mxu0 %v1051
      %v1116 = vpop.f32.mrf.mxu0
      %v1117 = vadd.f32 0.0, %v1116
      %v1118 = vpop.f32.mrf.mxu0
      %v1119 = vadd.f32 0.0, %v1118
      %1120 = vdwg.mxu0
      %v1121 = vadd.f32 %v1022, %v1112
      %v1122 = vadd.f32 %v1023, %v1114
      %v1123 = vadd.f32 %v1024, %v1117
      %v1124 = vadd.f32 %v1025, %v1119
      %v1125 = vld [vmem:[%s2] sm:$0x1]
      %v1127 = vperm.slane %v1125, 0
      %v1129 = vadd.f32 %v1121, %v1127
      %v1130 = vadd.f32 %v1122, %v1127
      %v1131 = vadd.f32 %v1123, %v1127
      %v1132 = vadd.f32 %v1124, %v1127
      %v1133 = vpack.c.bf16 %v1129, %v1129
      %v1134 = vpack.c.bf16 %v1130, %v1130
      %v1135 = vpack.c.bf16 %v1131, %v1131
      %v1136 = vpack.c.bf16 %v1132, %v1132
      %1137 = vst [vmem:[%s170] sm:$0xf] %v1133
      %1138 = vst [vmem:[%s170 + $0x4] sm:$0xf] %v1134
      %1139 = vst [vmem:[%s170 + $0x8] sm:$0xf] %v1135
      %1140 = vst [vmem:[%s170 + $0xc] sm:$0xf] %v1136
      %p1141 = scmp.lt.s32.totalorder %s14, 1
      %s1142 = scalar_select %p1141, %s14, 1
      %s1143 = smul.addr %s1142, 4
      %s1144 = smul.addr %s1143, 4
      %s1145 = scalar_lea.vmem %s3, %s1144
      // Predicated region
      $region33: #{fpn_forward.8} parent=31 // pred_check
        %p1146 = pneg %p100
      $region34: #{fpn_forward.8} parent=31 // pred_check_branch
        %1148 = sbr.rel (%p1146) target = $region36
      $region35: #{fpn_forward.8} parent=31 // pred_region
        _
      $region36: #{fpn_forward.8} parent=31 // pred_fallthru
        _
    $region32: #{fpn_forward.8} parent=5 // pred_fallthru
      _
    %p1149 = scmp.le.s32.totalorder 2, %s9
    // Predicated region
    $region37: #{fpn_forward.8} parent=5 // pred_check
      %p1150 = pneg %p1149
    $region38: #{fpn_forward.8} parent=5 // pred_check_branch
      %1152 = sbr.rel (%p1150) target = $region40
    $region39: #{fpn_forward.8} parent=5 // pred_region
      %s1153 = ssub.s32 %s9, 2
      // Predicated region
      $region41: #{fpn_forward.8} parent=39 // pred_check
        %p1154 = pneg %p106
      $region42: #{fpn_forward.8} parent=39 // pred_check_branch
        %1156 = sbr.rel (%p1154) target = $region44
      $region43: #{fpn_forward.8} parent=39 // pred_region
        %p1157 = scmp.lt.s32.totalorder %s15, 1
        %s1158 = scalar_select %p1157, %s15, 1
        %s1159 = smul.addr %s1158, 4
        %s1160 = smul.addr %s1159, 4
        %s1161 = scalar_lea.vmem %s3, %s1160
      $region44: #{fpn_forward.8} parent=39 // pred_fallthru
        _
    $region40: #{fpn_forward.8} parent=5 // pred_fallthru
      _
  $region6: #{fpn_forward.8} parent=0 // loop_footer
    %s13 = sadd.s32 1, %s9
  $region7: #{fpn_forward.8} parent=0 // loop_footer_branch
    %8 = sbr.rel target = $region3
  $region8: #{fpn_forward.8} parent=0 // loop_exit
    _

// kernel: fpn_forward.10
$region0: #{fpn_forward.10}
  #allocation0 [shape = 'u32[]', space=smem, size = 0x4, offset = 0x4, fixed_abs, tag = 'smem constant byte address 0x4 - core index']
  #allocation1 [shape = 'u32[72,128]{1,0:T(1,128)}', space=vmem, size = 0x9000, scoped, tag = 'internal scratch']
  %s0 = inlined_call_operand.vmem [shape: bf16[2,176,128], index: 0, kind: input, shape index: {}]
  %s1 = inlined_call_operand.vmem [shape: bf16[9,128,128], index: 1, kind: input, shape index: {}]
  %s2 = inlined_call_operand.vmem [shape: f32[1,128], index: 2, kind: input, shape index: {}]
  %s3 = inlined_call_operand.vmem [shape: bf16[2,128,128], index: 3, kind: output, shape index: {}]
  %s4 = sld [smem:[#allocation0]]
  $region45: #{fpn_forward.10} parent=0
    _
  %s6 = ssub.s32 1, %s4
  %s7 = scalar_select 0, %s6, %s4
  loop: start=0, step=1, limit=4
  $region2: #{fpn_forward.10} parent=0 // loop_pre_header
    _
  $region3: #{fpn_forward.10} parent=0 // loop_header
    %s9 = sphi 0, %s13
    %p10 = scmp.ge.s32.totalorder %s9, 4
    %s19 = sphi 0, %s21
    %s22 = sphi 0, %s19
    %s23 = sphi 0, %s22
    %s39 = sphi 0, %s23
    %s43 = sphi 0, %s43
    %s45 = sphi 0, %s43
    %s46 = sphi 0, %s45
    %s60 = sphi 0, %s46
    %s64 = sphi 0, %s64
    %s66 = sphi 0, %s64
    %s67 = sphi 0, %s66
    %s81 = sphi 0, %s67
    %s87 = sphi 0, %s89
    %s90 = sphi 0, %s87
    %s91 = sphi 0, %s90
    %s107 = sphi 0, %s91
  $region4: #{fpn_forward.10} parent=0 // loop_header_branch
    %12 = sbr.rel (%p10) target = $region8
  $region5: #{fpn_forward.10} parent=0 // loop_body
    %s14 = ssub.s32 %s9, 1
    %s15 = ssub.s32 %s9, 2
    %s16 = sadd.s32 %s9, 1
    %s17 = ssub.s32 %s9, %s16
    %p18 = scmp.eq.s32.totalorder %s17, 0
    %s20 = sadd.s32 %s19, 1
    %s21 = scalar_select %p18, %s19, %s20
    %p24 = pneg %p18
    %p25 = scmp.eq.s32.totalorder %s9, 1
    %p26 = por %p24, %p25
    %p27 = scmp.ne.s32.totalorder %s19, %s22
    %p28 = scmp.eq.s32.totalorder %s9, 0
    %p29 = por %p27, %p28
    %p30 = scmp.ne.s32.totalorder %s19, %s22
    %p31 = scmp.eq.s32.totalorder %s14, 1
    %p32 = por %p30, %p31
    %p33 = scmp.ne.s32.totalorder %s22, %s23
    %p34 = scmp.eq.s32.totalorder %s14, 0
    %p35 = por %p33, %p34
    %p36 = scmp.ne.s32.totalorder %s22, %s23
    %p37 = scmp.eq.s32.totalorder %s15, 1
    %p38 = por %p36, %p37
    %p40 = scmp.ne.s32.totalorder %s23, %s39
    %p41 = scmp.eq.s32.totalorder %s15, 0
    %p42 = por %p40, %p41
    %s44 = sadd.s32 %s43, 1
    %p47 = scmp.eq.s32.totalorder %s9, 1
    %p48 = scmp.ne.s32.totalorder %s43, %s45
    %p49 = scmp.eq.s32.totalorder %s9, 0
    %p50 = por %p48, %p49
    %p51 = scmp.ne.s32.totalorder %s43, %s45
    %p52 = scmp.eq.s32.totalorder %s14, 1
    %p53 = por %p51, %p52
    %p54 = scmp.ne.s32.totalorder %s45, %s46
    %p55 = scmp.eq.s32.totalorder %s14, 0
    %p56 = por %p54, %p55
    %p57 = scmp.ne.s32.totalorder %s45, %s46
    %p58 = scmp.eq.s32.totalorder %s15, 1
    %p59 = por %p57, %p58
    %p61 = scmp.ne.s32.totalorder %s46, %s60
    %p62 = scmp.eq.s32.totalorder %s15, 0
    %p63 = por %p61, %p62
    %s65 = sadd.s32 %s64, 1
    %p68 = scmp.eq.s32.totalorder %s9, 1
    %p69 = scmp.ne.s32.totalorder %s64, %s66
    %p70 = scmp.eq.s32.totalorder %s9, 0
    %p71 = por %p69, %p70
    %p72 = scmp.ne.s32.totalorder %s64, %s66
    %p73 = scmp.eq.s32.totalorder %s14, 1
    %p74 = por %p72, %p73
    %p75 = scmp.ne.s32.totalorder %s66, %s67
    %p76 = scmp.eq.s32.totalorder %s14, 0
    %p77 = por %p75, %p76
    %p78 = scmp.ne.s32.totalorder %s66, %s67
    %p79 = scmp.eq.s32.totalorder %s15, 1
    %p80 = por %p78, %p79
    %p82 = scmp.ne.s32.totalorder %s67, %s81
    %p83 = scmp.eq.s32.totalorder %s15, 0
    %p84 = por %p82, %p83
    %s85 = ssub.s32 %s9, %s16
    %p86 = scmp.eq.s32.totalorder %s85, 0
    %s88 = sadd.s32 %s87, 1
    %s89 = scalar_select %p86, %s87, %s88
    %p92 = pneg %p86
    %p93 = scmp.eq.s32.totalorder %s9, 1
    %p94 = por %p92, %p93
    %p95 = scmp.ne.s32.totalorder %s87, %s90
    %p96 = scmp.eq.s32.totalorder %s9, 0
    %p97 = por %p95, %p96
    %p98 = scmp.ne.s32.totalorder %s87, %s90
    %p99 = scmp.eq.s32.totalorder %s14, 1
    %p100 = por %p98, %p99
    %p101 = scmp.ne.s32.totalorder %s90, %s91
    %p102 = scmp.eq.s32.totalorder %s14, 0
    %p103 = por %p101, %p102
    %p104 = scmp.ne.s32.totalorder %s90, %s91
    %p105 = scmp.eq.s32.totalorder %s15, 1
    %p106 = por %p104, %p105
    %p108 = scmp.ne.s32.totalorder %s91, %s107
    %p109 = scmp.eq.s32.totalorder %s15, 0
    %p110 = por %p108, %p109
    %p111 = scmp.le.s32.totalorder 1, %s9
    %p112 = scmp.lt.s32.totalorder %s9, 3
    %p113 = pnand %p111, %p112
    %p114 = pneg %p113
    // Predicated region
    $region9: #{fpn_forward.10} parent=5 // pred_check
      _
    $region10: #{fpn_forward.10} parent=5 // pred_check_branch
      %116 = sbr.rel (%p113) target = $region12
    $region11: #{fpn_forward.10} parent=5 // pred_region
      %s117 = ssub.s32 %s9, 1
      // Predicated region
      $region13: #{fpn_forward.10} parent=11 // pred_check
        %p118 = pneg %p56
      $region14: #{fpn_forward.10} parent=11 // pred_check_branch
        %120 = sbr.rel (%p118) target = $region16
      $region15: #{fpn_forward.10} parent=11 // pred_region
        _
      $region16: #{fpn_forward.10} parent=11 // pred_fallthru
        _
      // Predicated region
      $region17: #{fpn_forward.10} parent=11 // pred_check
        %p121 = pneg %p77
      $region18: #{fpn_forward.10} parent=11 // pred_check_branch
        %123 = sbr.rel (%p121) target = $region20
      $region19: #{fpn_forward.10} parent=11 // pred_region
        _
      $region20: #{fpn_forward.10} parent=11 // pred_fallthru
        _
    $region12: #{fpn_forward.10} parent=5 // pred_fallthru
      _
    %p124 = scmp.lt.s32.totalorder %s9, 2
    // Predicated region
    $region21: #{fpn_forward.10} parent=5 // pred_check
      %p125 = pneg %p124
    $region22: #{fpn_forward.10} parent=5 // pred_check_branch
      %127 = sbr.rel (%p125) target = $region24
    $region23: #{fpn_forward.10} parent=5 // pred_region
      // Predicated region
      $region25: #{fpn_forward.10} parent=23 // pred_check
        %p128 = pneg %p29
      $region26: #{fpn_forward.10} parent=23 // pred_check_branch
        %130 = sbr.rel (%p128) target = $region28
      $region27: #{fpn_forward.10} parent=23 // pred_region
        %p131 = scmp.lt.s32.totalorder %s9, 1
        %s132 = scalar_select %p131, %s9, 1
        %s133 = smul.addr %s132, 22
        %s134 = smul.addr %s133, 4
        %s135 = scalar_lea.vmem %s0, %s134
      $region28: #{fpn_forward.10} parent=23 // pred_fallthru
        _
    $region24: #{fpn_forward.10} parent=5 // pred_fallthru
      _
    %p136 = scmp.le.s32.totalorder 1, %s9
    %p137 = scmp.lt.s32.totalorder %s9, 3
    %p138 = pnand %p136, %p137
    %p139 = pneg %p138
    // Predicated region
    $region29: #{fpn_forward.10} parent=5 // pred_check
      _
    $region30: #{fpn_forward.10} parent=5 // pred_check_branch
      %141 = sbr.rel (%p138) target = $region32
    $region31: #{fpn_forward.10} parent=5 // pred_region
      %s142 = ssub.s32 %s9, 1
      %p143 = scmp.lt.s32.totalorder %s14, 1
      %s144 = scalar_select %p143, %s14, 1
      %s145 = smul.addr %s144, 22
      %s146 = smul.addr %s145, 4
      %s147 = scalar_lea.vmem %s0, %s146
      %p148 = pneg %p35
      %p149 = pneg %p32
      %p150 = pneg %p56
      %p151 = pneg %p53
      %p152 = pneg %p77
      %p153 = pneg %p74
      %p154 = pneg %p103
      %p155 = pneg %p100
      %p156 = scmp.lt.s32.totalorder %s14, 1
      %s157 = scalar_select %p156, %s14, 1
      %s158 = smul.addr %s157, 16
      %s159 = smul.addr %s158, 4
      %s160 = scalar_lea.vmem %s3, %s159
      %p161 = scmp.lt.s32.totalorder %s14, 1
      %s162 = scalar_select %p161, %s14, 1
      %s163 = smul.addr %s162, 22
      %s164 = smul.addr %s163, 4
      %s165 = scalar_lea.vmem %s0, %s164
      %p166 = scmp.lt.s32.totalorder %s14, 1
      %s167 = scalar_select %p166, %s14, 1
      %s168 = smul.addr %s167, 16
      %s169 = smul.addr %s168, 4
      %s170 = scalar_lea.vmem %s3, %s169
      %v171 = vld [vmem:[%s165] sm:$0xf]
      %v172 = vld [vmem:[%s165 + $0x4] sm:$0xf]
      %v173 = vld [vmem:[%s165 + $0x8] sm:$0xf]
      %v174 = vld [vmem:[%s165 + $0xc] sm:$0xf]
      %v175 = vld [vmem:[%s165 + $0x10] sm:$0xf]
      %v176 = vld [vmem:[%s165 + $0x14] sm:$0xf]
      %v177 = vld [vmem:[%s165 + $0x18] sm:$0xf]
      %v178 = vld [vmem:[%s165 + $0x1c] sm:$0xf]
      %v179 = vld [vmem:[%s165 + $0x20] sm:$0xf]
      %v180 = vld [vmem:[%s165 + $0x24] sm:$0xf]
      %v181 = vld [vmem:[%s165 + $0x28] sm:$0xf]
      %v182 = vld [vmem:[%s165 + $0x2c] sm:$0xf]
      %v183 = vld [vmem:[%s165 + $0x30] sm:$0xf]
      %v184 = vld [vmem:[%s165 + $0x34] sm:$0xf]
      %v185 = vld [vmem:[%s165 + $0x38] sm:$0xf]
      %v186 = vld [vmem:[%s165 + $0x3c] sm:$0xf]
      %v187 = vld [vmem:[%s1] sm:$0xf]
      %v188 = vld [vmem:[%s1 + $0x4] sm:$0xf]
      %v189 = vld [vmem:[%s1 + $0x8] sm:$0xf]
      %v190 = vld [vmem:[%s1 + $0xc] sm:$0xf]
      %v191 = vld [vmem:[%s1 + $0x10] sm:$0xf]
      %v192 = vld [vmem:[%s1 + $0x14] sm:$0xf]
      %v193 = vld [vmem:[%s1 + $0x18] sm:$0xf]
      %v194 = vld [vmem:[%s1 + $0x1c] sm:$0xf]
      %v195 = vld [vmem:[%s1 + $0x20] sm:$0xf]
      %v196 = vld [vmem:[%s1 + $0x24] sm:$0xf]
      %v197 = vld [vmem:[%s1 + $0x28] sm:$0xf]
      %v198 = vld [vmem:[%s1 + $0x2c] sm:$0xf]
      %v199 = vld [vmem:[%s1 + $0x30] sm:$0xf]
      %v200 = vld [vmem:[%s1 + $0x34] sm:$0xf]
      %v201 = vld [vmem:[%s1 + $0x38] sm:$0xf]
      %v202 = vld [vmem:[%s1 + $0x3c] sm:$0xf]
      %v203 = vld [vmem:[%s165 + $0x40] sm:$0x1]
      %s204 = scalar_lea.vmem %s1, 64
      %v205 = vld [vmem:[%s204] sm:$0xf]
      %v206 = vld [vmem:[%s204 + $0x4] sm:$0xf]
      %v207 = vld [vmem:[%s204 + $0x8] sm:$0xf]
      %v208 = vld [vmem:[%s204 + $0xc] sm:$0xf]
      %v209 = vld [vmem:[%s204 + $0x10] sm:$0xf]
      %v210 = vld [vmem:[%s204 + $0x14] sm:$0xf]
      %v211 = vld [vmem:[%s204 + $0x18] sm:$0xf]
      %v212 = vld [vmem:[%s204 + $0x1c] sm:$0xf]
      %v213 = vld [vmem:[%s204 + $0x20] sm:$0xf]
      %v214 = vld [vmem:[%s204 + $0x24] sm:$0xf]
      %v215 = vld [vmem:[%s204 + $0x28] sm:$0xf]
      %v216 = vld [vmem:[%s204 + $0x2c] sm:$0xf]
      %v217 = vld [vmem:[%s204 + $0x30] sm:$0xf]
      %v218 = vld [vmem:[%s204 + $0x34] sm:$0xf]
      %v219 = vld [vmem:[%s204 + $0x38] sm:$0xf]
      %v220 = vld [vmem:[%s204 + $0x3c] sm:$0xf]
      %v238 = vunpack.c.l.b16 %v171
      %v239 = vunpack.c.l.b16 %v172
      %v240 = vunpack.c.l.b16 %v173
      %v241 = vunpack.c.l.b16 %v174
      %v242 = vunpack.c.l.b16 %v175
      %v243 = vunpack.c.l.b16 %v176
      %v244 = vunpack.c.l.b16 %v177
      %v245 = vunpack.c.l.b16 %v178
      %v246 = vunpack.c.l.b16 %v179
      %v247 = vunpack.c.l.b16 %v180
      %v248 = vunpack.c.l.b16 %v181
      %v249 = vunpack.c.l.b16 %v182
      %v250 = vunpack.c.l.b16 %v183
      %v251 = vunpack.c.l.b16 %v184
      %v252 = vunpack.c.l.b16 %v185
      %v253 = vunpack.c.l.b16 %v186
      %v254 = vunpack.c.l.b16 %v203
      %v255 = vpack.c.b16 %v239, %v238
      %v256 = vpack.c.b16 %v241, %v240
      %v257 = vpack.c.b16 %v243, %v242
      %v258 = vpack.c.b16 %v245, %v244
      %v259 = vpack.c.b16 %v247, %v246
      %v260 = vpack.c.b16 %v249, %v248
      %v261 = vpack.c.b16 %v251, %v250
      %v262 = vpack.c.b16 %v253, %v252
      %v263 = vpack.c.b16 %v254, %v254
      %vm264 = vsmask.f32 7424
      %v266 = vshrl.u32 %v255, 16
      %v268 = vshll.u32 %v255, 16
      %v270 = vrot.slane %v268, 1
      %v271 = vor.u32 %v266, %v270
      %v273 = vshll.u32 %v256, 16
      %v275 = vrot.slane %v273, 1
      %v276 = vsel %vm264, %v271, %v275
      %v277 = vshrl.u32 %v256, 16
      %v279 = vor.u32 %v277, %v275
      %v281 = vshll.u32 %v257, 16
      %v283 = vrot.slane %v281, 1
      %v284 = vsel %vm264, %v279, %v283
      %v285 = vshrl.u32 %v257, 16
      %v287 = vor.u32 %v285, %v283
      %v289 = vshll.u32 %v258, 16
      %v291 = vrot.slane %v289, 1
      %v292 = vsel %vm264, %v287, %v291
      %v293 = vshrl.u32 %v258, 16
      %v295 = vor.u32 %v293, %v291
      %v297 = vshll.u32 %v259, 16
      %v299 = vrot.slane %v297, 1
      %v300 = vsel %vm264, %v295, %v299
      %v301 = vshrl.u32 %v259, 16
      %v303 = vor.u32 %v301, %v299
      %v305 = vshll.u32 %v260, 16
      %v307 = vrot.slane %v305, 1
      %v308 = vsel %vm264, %v303, %v307
      %v309 = vshrl.u32 %v260, 16
      %v311 = vor.u32 %v309, %v307
      %v313 = vshll.u32 %v261, 16
      %v315 = vrot.slane %v313, 1
      %v316 = vsel %vm264, %v311, %v315
      %v317 = vshrl.u32 %v261, 16
      %v319 = vor.u32 %v317, %v315
      %v321 = vshll.u32 %v262, 16
      %v323 = vrot.slane %v321, 1
      %v324 = vsel %vm264, %v319, %v323
      %v325 = vshrl.u32 %v262, 16
      %v327 = vor.u32 %v325, %v323
      %v329 = vshll.u32 %v263, 16
      %v331 = vrot.slane %v329, 1
      %v332 = vsel %vm264, %v327, %v331
      %v357 = vunpack.c.l.b16 %v205
      %v358 = vunpack.c.l.b16 %v206
      %v359 = vunpack.c.l.b16 %v207
      %v360 = vunpack.c.l.b16 %v208
      %v361 = vunpack.c.l.b16 %v209
      %v362 = vunpack.c.l.b16 %v210
      %v363 = vunpack.c.l.b16 %v211
      %v364 = vunpack.c.l.b16 %v212
      %v365 = vunpack.c.l.b16 %v213
      %v366 = vunpack.c.l.b16 %v214
      %v367 = vunpack.c.l.b16 %v215
      %v368 = vunpack.c.l.b16 %v216
      %v369 = vunpack.c.l.b16 %v217
      %v370 = vunpack.c.l.b16 %v218
      %v371 = vunpack.c.l.b16 %v219
      %v372 = vunpack.c.l.b16 %v220
      %v373 = vpack.c.b16 %v358, %v357
      %v374 = vpack.c.b16 %v360, %v359
      %v375 = vpack.c.b16 %v362, %v361
      %v376 = vpack.c.b16 %v364, %v363
      %v377 = vpack.c.b16 %v366, %v365
      %v378 = vpack.c.b16 %v368, %v367
      %v379 = vpack.c.b16 %v370, %v369
      %v380 = vpack.c.b16 %v372, %v371
      %389 = vmatpush.bf16.msra.mxu0 %v380
      %390 = vmatpush.bf16.msra.mxu0 %v379
      %391 = vmatpush.bf16.msra.mxu0 %v378
      %392 = vmatpush.bf16.msra.mxu0 %v377
      %393 = vmatpush.bf16.msra.mxu0 %v376
      %394 = vmatpush.bf16.msra.mxu0 %v375
      %395 = vmatpush.bf16.msra.mxu0 %v374
      %396 = vmatpush.bf16.msra.mxu0 %v373
      %397 = vmatmul.bf16.gmra.mxu0 %v276
      %v398 = vpop.f32.mrf.mxu0
      %v399 = vadd.f32 0.0, %v398
      %v400 = vpop.f32.mrf.mxu0
      %v401 = vadd.f32 0.0, %v400
      %402 = vmatmul.bf16.gmra.mxu0 %v284
      %v403 = vpop.f32.mrf.mxu0
      %v404 = vadd.f32 0.0, %v403
      %v405 = vpop.f32.mrf.mxu0
      %v406 = vadd.f32 0.0, %v405
      %407 = vmatmul.bf16.gmra.mxu0 %v292
      %v408 = vpop.f32.mrf.mxu0
      %v409 = vadd.f32 0.0, %v408
      %v410 = vpop.f32.mrf.mxu0
      %v411 = vadd.f32 0.0, %v410
      %412 = vmatmul.bf16.gmra.mxu0 %v300
      %v413 = vpop.f32.mrf.mxu0
      %v414 = vadd.f32 0.0, %v413
      %v415 = vpop.f32.mrf.mxu0
      %v416 = vadd.f32 0.0, %v415
      %417 = vmatmul.bf16.gmra.mxu0 %v308
      %v418 = vpop.f32.mrf.mxu0
      %v419 = vadd.f32 0.0, %v418
      %v420 = vpop.f32.mrf.mxu0
      %v421 = vadd.f32 0.0, %v420
      %422 = vmatmul.bf16.gmra.mxu0 %v316
      %v423 = vpop.f32.mrf.mxu0
      %v424 = vadd.f32 0.0, %v423
      %v425 = vpop.f32.mrf.mxu0
      %v426 = vadd.f32 0.0, %v425
      %427 = vmatmul.bf16.gmra.mxu0 %v324
      %v428 = vpop.f32.mrf.mxu0
      %v429 = vadd.f32 0.0, %v428
      %v430 = vpop.f32.mrf.mxu0
      %v431 = vadd.f32 0.0, %v430
      %432 = vmatmul.bf16.gmra.mxu0 %v332
      %v433 = vpop.f32.mrf.mxu0
      %v434 = vadd.f32 0.0, %v433
      %v435 = vpop.f32.mrf.mxu0
      %v436 = vadd.f32 0.0, %v435
      %437 = vdwg.mxu0
      %v462 = vunpack.c.l.b16 %v187
      %v463 = vunpack.c.l.b16 %v188
      %v464 = vunpack.c.l.b16 %v189
      %v465 = vunpack.c.l.b16 %v190
      %v466 = vunpack.c.l.b16 %v191
      %v467 = vunpack.c.l.b16 %v192
      %v468 = vunpack.c.l.b16 %v193
      %v469 = vunpack.c.l.b16 %v194
      %v470 = vunpack.c.l.b16 %v195
      %v471 = vunpack.c.l.b16 %v196
      %v472 = vunpack.c.l.b16 %v197
      %v473 = vunpack.c.l.b16 %v198
      %v474 = vunpack.c.l.b16 %v199
      %v475 = vunpack.c.l.b16 %v200
      %v476 = vunpack.c.l.b16 %v201
      %v477 = vunpack.c.l.b16 %v202
      %v478 = vpack.c.b16 %v463, %v462
      %v479 = vpack.c.b16 %v465, %v464
      %v480 = vpack.c.b16 %v467, %v466
      %v481 = vpack.c.b16 %v469, %v468
      %v482 = vpack.c.b16 %v471, %v470
      %v483 = vpack.c.b16 %v473, %v472
      %v484 = vpack.c.b16 %v475, %v474
      %v485 = vpack.c.b16 %v477, %v476
      %494 = vmatpush.bf16.msra.mxu0 %v485
      %495 = vmatpush.bf16.msra.mxu0 %v484
      %496 = vmatpush.bf16.msra.mxu0 %v483
      %497 = vmatpush.bf16.msra.mxu0 %v482
      %498 = vmatpush.bf16.msra.mxu0 %v481
      %499 = vmatpush.bf16.msra.mxu0 %v480
      %500 = vmatpush.bf16.msra.mxu0 %v479
      %501 = vmatpush.bf16.msra.mxu0 %v478
      %502 = vmatmul.bf16.gmra.mxu0 %v255
      %v503 = vpop.f32.mrf.mxu0
      %v504 = vadd.f32 %v399, %v503
      %v505 = vpop.f32.mrf.mxu0
      %v506 = vadd.f32 %v401, %v505
      %507 = vmatmul.bf16.gmra.mxu0 %v256
      %v508 = vpop.f32.mrf.mxu0
      %v509 = vadd.f32 %v404, %v508
      %v510 = vpop.f32.mrf.mxu0
      %v511 = vadd.f32 %v406, %v510
      %512 = vmatmul.bf16.gmra.mxu0 %v257
      %v513 = vpop.f32.mrf.mxu0
      %v514 = vadd.f32 %v409, %v513
      %v515 = vpop.f32.mrf.mxu0
      %v516 = vadd.f32 %v411, %v515
      %517 = vmatmul.bf16.gmra.mxu0 %v258
      %v518 = vpop.f32.mrf.mxu0
      %v519 = vadd.f32 %v414, %v518
      %v520 = vpop.f32.mrf.mxu0
      %v521 = vadd.f32 %v416, %v520
      %522 = vmatmul.bf16.gmra.mxu0 %v259
      %v523 = vpop.f32.mrf.mxu0
      %v524 = vadd.f32 %v419, %v523
      %v525 = vpop.f32.mrf.mxu0
      %v526 = vadd.f32 %v421, %v525
      %527 = vmatmul.bf16.gmra.mxu0 %v260
      %v528 = vpop.f32.mrf.mxu0
      %v529 = vadd.f32 %v424, %v528
      %v530 = vpop.f32.mrf.mxu0
      %v531 = vadd.f32 %v426, %v530
      %532 = vmatmul.bf16.gmra.mxu0 %v261
      %v533 = vpop.f32.mrf.mxu0
      %v534 = vadd.f32 %v429, %v533
      %v535 = vpop.f32.mrf.mxu0
      %v536 = vadd.f32 %v431, %v535
      %537 = vmatmul.bf16.gmra.mxu0 %v262
      %v538 = vpop.f32.mrf.mxu0
      %v539 = vadd.f32 %v434, %v538
      %v540 = vpop.f32.mrf.mxu0
      %v541 = vadd.f32 %v436, %v540
      %542 = vdwg.mxu0
      %v543 = vld [vmem:[%s165] sm:$0xe]
      %s544 = scalar_lea.vmem %s1, 128
      %v545 = vld [vmem:[%s544] sm:$0xf]
      %v546 = vld [vmem:[%s544 + $0x4] sm:$0xf]
      %v547 = vld [vmem:[%s544 + $0x8] sm:$0xf]
      %v548 = vld [vmem:[%s544 + $0xc] sm:$0xf]
      %v549 = vld [vmem:[%s544 + $0x10] sm:$0xf]
      %v550 = vld [vmem:[%s544 + $0x14] sm:$0xf]
      %v551 = vld [vmem:[%s544 + $0x18] sm:$0xf]
      %v552 = vld [vmem:[%s544 + $0x1c] sm:$0xf]
      %v553 = vld [vmem:[%s544 + $0x20] sm:$0xf]
      %v554 = vld [vmem:[%s544 + $0x24] sm:$0xf]
      %v555 = vld [vmem:[%s544 + $0x28] sm:$0xf]
      %v556 = vld [vmem:[%s544 + $0x2c] sm:$0xf]
      %v557 = vld [vmem:[%s544 + $0x30] sm:$0xf]
      %v558 = vld [vmem:[%s544 + $0x34] sm:$0xf]
      %v559 = vld [vmem:[%s544 + $0x38] sm:$0xf]
      %v560 = vld [vmem:[%s544 + $0x3c] sm:$0xf]
      %v562 = vunpack.c.l.b16 %v543
      %v563 = vpack.c.b16 %v239, %v562
      %vm564 = vcmask 1046528
      %v565 = vrot.slane %v563, 1
      %v566 = vrot.slane %v256, 1
      %v567 = vsel %vm564, %v565, %v566
      %v568 = vrot.slane %v257, 1
      %v569 = vsel %vm564, %v566, %v568
      %v570 = vrot.slane %v258, 1
      %v571 = vsel %vm564, %v568, %v570
      %v572 = vrot.slane %v259, 1
      %v573 = vsel %vm564, %v570, %v572
      %v574 = vrot.slane %v260, 1
      %v575 = vsel %vm564, %v572, %v574
      %v576 = vrot.slane %v261, 1
      %v577 = vsel %vm564, %v574, %v576
      %v578 = vrot.slane %v262, 1
      %v579 = vsel %vm564, %v576, %v578
      %v580 = vrot.slane %v263, 1
      %v581 = vsel %vm564, %v578, %v580
      %v606 = vunpack.c.l.b16 %v545
      %v607 = vunpack.c.l.b16 %v546
      %v608 = vunpack.c.l.b16 %v547
      %v609 = vunpack.c.l.b16 %v548
      %v610 = vunpack.c.l.b16 %v549
      %v611 = vunpack.c.l.b16 %v550
      %v612 = vunpack.c.l.b16 %v551
      %v613 = vunpack.c.l.b16 %v552
      %v614 = vunpack.c.l.b16 %v553
      %v615 = vunpack.c.l.b16 %v554
      %v616 = vunpack.c.l.b16 %v555
      %v617 = vunpack.c.l.b16 %v556
      %v618 = vunpack.c.l.b16 %v557
      %v619 = vunpack.c.l.b16 %v558
      %v620 = vunpack.c.l.b16 %v559
      %v621 = vunpack.c.l.b16 %v560
      %v622 = vpack.c.b16 %v607, %v606
      %v623 = vpack.c.b16 %v609, %v608
      %v624 = vpack.c.b16 %v611, %v610
      %v625 = vpack.c.b16 %v613, %v612
      %v626 = vpack.c.b16 %v615, %v614
      %v627 = vpack.c.b16 %v617, %v616
      %v628 = vpack.c.b16 %v619, %v618
      %v629 = vpack.c.b16 %v621, %v620
      %638 = vmatpush.bf16.msra.mxu0 %v629
      %639 = vmatpush.bf16.msra.mxu0 %v628
      %640 = vmatpush.bf16.msra.mxu0 %v627
      %641 = vmatpush.bf16.msra.mxu0 %v626
      %642 = vmatpush.bf16.msra.mxu0 %v625
      %643 = vmatpush.bf16.msra.mxu0 %v624
      %644 = vmatpush.bf16.msra.mxu0 %v623
      %645 = vmatpush.bf16.msra.mxu0 %v622
      %646 = vmatmul.bf16.gmra.mxu0 %v567
      %v647 = vpop.f32.mrf.mxu0
      %v648 = vadd.f32 0.0, %v647
      %v649 = vpop.f32.mrf.mxu0
      %v650 = vadd.f32 0.0, %v649
      %651 = vmatmul.bf16.gmra.mxu0 %v569
      %v652 = vpop.f32.mrf.mxu0
      %v653 = vadd.f32 0.0, %v652
      %v654 = vpop.f32.mrf.mxu0
      %v655 = vadd.f32 0.0, %v654
      %656 = vmatmul.bf16.gmra.mxu0 %v571
      %v657 = vpop.f32.mrf.mxu0
      %v658 = vadd.f32 0.0, %v657
      %v659 = vpop.f32.mrf.mxu0
      %v660 = vadd.f32 0.0, %v659
      %661 = vmatmul.bf16.gmra.mxu0 %v573
      %v662 = vpop.f32.mrf.mxu0
      %v663 = vadd.f32 0.0, %v662
      %v664 = vpop.f32.mrf.mxu0
      %v665 = vadd.f32 0.0, %v664
      %666 = vmatmul.bf16.gmra.mxu0 %v575
      %v667 = vpop.f32.mrf.mxu0
      %v668 = vadd.f32 0.0, %v667
      %v669 = vpop.f32.mrf.mxu0
      %v670 = vadd.f32 0.0, %v669
      %671 = vmatmul.bf16.gmra.mxu0 %v577
      %v672 = vpop.f32.mrf.mxu0
      %v673 = vadd.f32 0.0, %v672
      %v674 = vpop.f32.mrf.mxu0
      %v675 = vadd.f32 0.0, %v674
      %676 = vmatmul.bf16.gmra.mxu0 %v579
      %v677 = vpop.f32.mrf.mxu0
      %v678 = vadd.f32 0.0, %v677
      %v679 = vpop.f32.mrf.mxu0
      %v680 = vadd.f32 0.0, %v679
      %681 = vmatmul.bf16.gmra.mxu0 %v581
      %v682 = vpop.f32.mrf.mxu0
      %v683 = vadd.f32 0.0, %v682
      %v684 = vpop.f32.mrf.mxu0
      %v685 = vadd.f32 0.0, %v684
      %686 = vdwg.mxu0
      %v687 = vadd.f32 %v504, %v648
      %v688 = vadd.f32 %v506, %v650
      %v689 = vadd.f32 %v509, %v653
      %v690 = vadd.f32 %v511, %v655
      %v691 = vadd.f32 %v514, %v658
      %v692 = vadd.f32 %v516, %v660
      %v693 = vadd.f32 %v519, %v663
      %v694 = vadd.f32 %v521, %v665
      %v695 = vadd.f32 %v524, %v668
      %v696 = vadd.f32 %v526, %v670
      %v697 = vadd.f32 %v529, %v673
      %v698 = vadd.f32 %v531, %v675
      %v699 = vadd.f32 %v534, %v678
      %v700 = vadd.f32 %v536, %v680
      %v701 = vadd.f32 %v539, %v683
      %v702 = vadd.f32 %v541, %v685
      %v703 = vld [vmem:[%s165 + $0x8] sm:$0xf]
      %v704 = vld [vmem:[%s165 + $0xc] sm:$0xf]
      %v705 = vld [vmem:[%s165 + $0x10] sm:$0xf]
      %v706 = vld [vmem:[%s165 + $0x14] sm:$0xf]
      %v707 = vld [vmem:[%s165 + $0x18] sm:$0xf]
      %v708 = vld [vmem:[%s165 + $0x1c] sm:$0xf]
      %v709 = vld [vmem:[%s165 + $0x20] sm:$0xf]
      %v710 = vld [vmem:[%s165 + $0x24] sm:$0xf]
      %v711 = vld [vmem:[%s165 + $0x28] sm:$0xf]
      %v712 = vld [vmem:[%s165 + $0x2c] sm:$0xf]
      %v713 = vld [vmem:[%s165 + $0x30] sm:$0xf]
      %v714 = vld [vmem:[%s165 + $0x34] sm:$0xf]
      %v715 = vld [vmem:[%s165 + $0x38] sm:$0xf]
      %v716 = vld [vmem:[%s165 + $0x3c] sm:$0xf]
      %v717 = vld [vmem:[%s165 + $0x40] sm:$0xf]
      %v718 = vld [vmem:[%s165 + $0x44] sm:$0xf]
      %s719 = scalar_lea.vmem %s1, 192
      %v720 = vld [vmem:[%s719] sm:$0xf]
      %v721 = vld [vmem:[%s719 + $0x4] sm:$0xf]
      %v722 = vld [vmem:[%s719 + $0x8] sm:$0xf]
      %v723 = vld [vmem:[%s719 + $0xc] sm:$0xf]
      %v724 = vld [vmem:[%s719 + $0x10] sm:$0xf]
      %v725 = vld [vmem:[%s719 + $0x14] sm:$0xf]
      %v726 = vld [vmem:[%s719 + $0x18] sm:$0xf]
      %v727 = vld [vmem:[%s719 + $0x1c] sm:$0xf]
      %v728 = vld [vmem:[%s719 + $0x20] sm:$0xf]
      %v729 = vld [vmem:[%s719 + $0x24] sm:$0xf]
      %v730 = vld [vmem:[%s719 + $0x28] sm:$0xf]
      %v731 = vld [vmem:[%s719 + $0x2c] sm:$0xf]
      %v732 = vld [vmem:[%s719 + $0x30] sm:$0xf]
      %v733 = vld [vmem:[%s719 + $0x34] sm:$0xf]
      %v734 = vld [vmem:[%s719 + $0x38] sm:$0xf]
      %v735 = vld [vmem:[%s719 + $0x3c] sm:$0xf]
      %v752 = vunpack.c.l.b16 %v703
      %v753 = vunpack.c.l.b16 %v704
      %v754 = vunpack.c.l.b16 %v705
      %v755 = vunpack.c.l.b16 %v706
      %v756 = vunpack.c.l.b16 %v707
      %v757 = vunpack.c.l.b16 %v708
      %v758 = vunpack.c.l.b16 %v709
      %v759 = vunpack.c.l.b16 %v710
      %v760 = vunpack.c.l.b16 %v711
      %v761 = vunpack.c.l.b16 %v712
      %v762 = vunpack.c.l.b16 %v713
      %v763 = vunpack.c.l.b16 %v714
      %v764 = vunpack.c.l.b16 %v715
      %v765 = vunpack.c.l.b16 %v716
      %v766 = vunpack.c.l.b16 %v717
      %v767 = vunpack.c.l.b16 %v718
      %v768 = vpack.c.b16 %v753, %v752
      %v769 = vpack.c.b16 %v755, %v754
      %v770 = vpack.c.b16 %v757, %v756
      %v771 = vpack.c.b16 %v759, %v758
      %v772 = vpack.c.b16 %v761, %v760
      %v773 = vpack.c.b16 %v763, %v762
      %v774 = vpack.c.b16 %v765, %v764
      %v775 = vpack.c.b16 %v767, %v766
      %v800 = vunpack.c.l.b16 %v720
      %v801 = vunpack.c.l.b16 %v721
      %v802 = vunpack.c.l.b16 %v722
      %v803 = vunpack.c.l.b16 %v723
      %v804 = vunpack.c.l.b16 %v724
      %v805 = vunpack.c.l.b16 %v725
      %v806 = vunpack.c.l.b16 %v726
      %v807 = vunpack.c.l.b16 %v727
      %v808 = vunpack.c.l.b16 %v728
      %v809 = vunpack.c.l.b16 %v729
      %v810 = vunpack.c.l.b16 %v730
      %v811 = vunpack.c.l.b16 %v731
      %v812 = vunpack.c.l.b16 %v732
      %v813 = vunpack.c.l.b16 %v733
      %v814 = vunpack.c.l.b16 %v734
      %v815 = vunpack.c.l.b16 %v735
      %v816 = vpack.c.b16 %v801, %v800
      %v817 = vpack.c.b16 %v803, %v802
      %v818 = vpack.c.b16 %v805, %v804
      %v819 = vpack.c.b16 %v807, %v806
      %v820 = vpack.c.b16 %v809, %v808
      %v821 = vpack.c.b16 %v811, %v810
      %v822 = vpack.c.b16 %v813, %v812
      %v823 = vpack.c.b16 %v815, %v814
      %832 = vmatpush.bf16.msra.mxu0 %v823
      %833 = vmatpush.bf16.msra.mxu0 %v822
      %834 = vmatpush.bf16.msra.mxu0 %v821
      %835 = vmatpush.bf16.msra.mxu0 %v820
      %836 = vmatpush.bf16.msra.mxu0 %v819
      %837 = vmatpush.bf16.msra.mxu0 %v818
      %838 = vmatpush.bf16.msra.mxu0 %v817
      %839 = vmatpush.bf16.msra.mxu0 %v816
      %840 = vmatmul.bf16.gmra.mxu0 %v768
      %v841 = vpop.f32.mrf.mxu0
      %v842 = vadd.f32 0.0, %v841
      %v843 = vpop.f32.mrf.mxu0
      %v844 = vadd.f32 0.0, %v843
      %845 = vmatmul.bf16.gmra.mxu0 %v769
      %v846 = vpop.f32.mrf.mxu0
      %v847 = vadd.f32 0.0, %v846
      %v848 = vpop.f32.mrf.mxu0
      %v849 = vadd.f32 0.0, %v848
      %850 = vmatmul.bf16.gmra.mxu0 %v770
      %v851 = vpop.f32.mrf.mxu0
      %v852 = vadd.f32 0.0, %v851
      %v853 = vpop.f32.mrf.mxu0
      %v854 = vadd.f32 0.0, %v853
      %855 = vmatmul.bf16.gmra.mxu0 %v771
      %v856 = vpop.f32.mrf.mxu0
      %v857 = vadd.f32 0.0, %v856
      %v858 = vpop.f32.mrf.mxu0
      %v859 = vadd.f32 0.0, %v858
      %860 = vmatmul.bf16.gmra.mxu0 %v772
      %v861 = vpop.f32.mrf.mxu0
      %v862 = vadd.f32 0.0, %v861
      %v863 = vpop.f32.mrf.mxu0
      %v864 = vadd.f32 0.0, %v863
      %865 = vmatmul.bf16.gmra.mxu0 %v773
      %v866 = vpop.f32.mrf.mxu0
      %v867 = vadd.f32 0.0, %v866
      %v868 = vpop.f32.mrf.mxu0
      %v869 = vadd.f32 0.0, %v868
      %870 = vmatmul.bf16.gmra.mxu0 %v774
      %v871 = vpop.f32.mrf.mxu0
      %v872 = vadd.f32 0.0, %v871
      %v873 = vpop.f32.mrf.mxu0
      %v874 = vadd.f32 0.0, %v873
      %875 = vmatmul.bf16.gmra.mxu0 %v775
      %v876 = vpop.f32.mrf.mxu0
      %v877 = vadd.f32 0.0, %v876
      %v878 = vpop.f32.mrf.mxu0
      %v879 = vadd.f32 0.0, %v878
      %880 = vdwg.mxu0
      %v881 = vadd.f32 %v687, %v842
      %v882 = vadd.f32 %v688, %v844
      %v883 = vadd.f32 %v689, %v847
      %v884 = vadd.f32 %v690, %v849
      %v885 = vadd.f32 %v691, %v852
      %v886 = vadd.f32 %v692, %v854
      %v887 = vadd.f32 %v693, %v857
      %v888 = vadd.f32 %v694, %v859
      %v889 = vadd.f32 %v695, %v862
      %v890 = vadd.f32 %v696, %v864
      %v891 = vadd.f32 %v697, %v867
      %v892 = vadd.f32 %v698, %v869
      %v893 = vadd.f32 %v699, %v872
      %v894 = vadd.f32 %v700, %v874
      %v895 = vadd.f32 %v701, %v877
      %v896 = vadd.f32 %v702, %v879
      %v897 = vld [vmem:[%s165 + $0x8] sm:$0xf]
      %v898 = vld [vmem:[%s165 + $0xc] sm:$0xf]
      %v899 = vld [vmem:[%s165 + $0x10] sm:$0xf]
      %v900 = vld [vmem:[%s165 + $0x14] sm:$0xf]
      %v901 = vld [vmem:[%s165 + $0x18] sm:$0xf]
      %v902 = vld [vmem:[%s165 + $0x1c] sm:$0xf]
      %v903 = vld [vmem:[%s165 + $0x20] sm:$0xf]
      %v904 = vld [vmem:[%s165 + $0x24] sm:$0xf]
      %v905 = vld [vmem:[%s165 + $0x28] sm:$0xf]
      %v906 = vld [vmem:[%s165 + $0x2c] sm:$0xf]
      %v907 = vld [vmem:[%s165 + $0x30] sm:$0xf]
      %v908 = vld [vmem:[%s165 + $0x34] sm:$0xf]
      %v909 = vld [vmem:[%s165 + $0x38] sm:$0xf]
      %v910 = vld [vmem:[%s165 + $0x3c] sm:$0xf]
      %v911 = vld [vmem:[%s165 + $0x40] sm:$0xf]
      %v912 = vld [vmem:[%s165 + $0x44] sm:$0xf]
      %v913 = vld [vmem:[%s165 + $0x48] sm:$0x1]
      %s914 = scalar_lea.vmem %s1, 256
      %v915 = vld [vmem:[%s914] sm:$0xf]
      %v916 = vld [vmem:[%s914 + $0x4] sm:$0xf]
      %v917 = vld [vmem:[%s914 + $0x8] sm:$0xf]
      %v918 = vld [vmem:[%s914 + $0xc] sm:$0xf]
      %v919 = vld [vmem:[%s914 + $0x10] sm:$0xf]
      %v920 = vld [vmem:[%s914 + $0x14] sm:$0xf]
      %v921 = vld [vmem:[%s914 + $0x18] sm:$0xf]
      %v922 = vld [vmem:[%s914 + $0x1c] sm:$0xf]
      %v923 = vld [vmem:[%s914 + $0x20] sm:$0xf]
      %v924 = vld [vmem:[%s914 + $0x24] sm:$0xf]
      %v925 = vld [vmem:[%s914 + $0x28] sm:$0xf]
      %v926 = vld [vmem:[%s914 + $0x2c] sm:$0xf]
      %v927 = vld [vmem:[%s914 + $0x30] sm:$0xf]
      %v928 = vld [vmem:[%s914 + $0x34] sm:$0xf]
      %v929 = vld [vmem:[%s914 + $0x38] sm:$0xf]
      %v930 = vld [vmem:[%s914 + $0x3c] sm:$0xf]
      %v948 = vunpack.c.l.b16 %v897
      %v949 = vunpack.c.l.b16 %v898
      %v950 = vunpack.c.l.b16 %v899
      %v951 = vunpack.c.l.b16 %v900
      %v952 = vunpack.c.l.b16 %v901
      %v953 = vunpack.c.l.b16 %v902
      %v954 = vunpack.c.l.b16 %v903
      %v955 = vunpack.c.l.b16 %v904
      %v956 = vunpack.c.l.b16 %v905
      %v957 = vunpack.c.l.b16 %v906
      %v958 = vunpack.c.l.b16 %v907
      %v959 = vunpack.c.l.b16 %v908
      %v960 = vunpack.c.l.b16 %v909
      %v961 = vunpack.c.l.b16 %v910
      %v962 = vunpack.c.l.b16 %v911
      %v963 = vunpack.c.l.b16 %v912
      %v964 = vunpack.c.l.b16 %v913
      %v965 = vpack.c.b16 %v949, %v948
      %v966 = vpack.c.b16 %v951, %v950
      %v967 = vpack.c.b16 %v953, %v952
      %v968 = vpack.c.b16 %v955, %v954
      %v969 = vpack.c.b16 %v957, %v956
      %v970 = vpack.c.b16 %v959, %v958
      %v971 = vpack.c.b16 %v961, %v960
      %v972 = vpack.c.b16 %v963, %v962
      %v973 = vpack.c.b16 %v964, %v964
      %v975 = vshrl.u32 %v965, 16
      %v977 = vshll.u32 %v965, 16
      %v979 = vrot.slane %v977, 1
      %v980 = vor.u32 %v975, %v979
      %v982 = vshll.u32 %v966, 16
      %v984 = vrot.slane %v982, 1
      %v985 = vsel %vm264, %v980, %v984
      %v986 = vshrl.u32 %v966, 16
      %v988 = vor.u32 %v986, %v984
      %v990 = vshll.u32 %v967, 16
      %v992 = vrot.slane %v990, 1
      %v993 = vsel %vm264, %v988, %v992
      %v994 = vshrl.u32 %v967, 16
      %v996 = vor.u32 %v994, %v992
      %v998 = vshll.u32 %v968, 16
      %v1000 = vrot.slane %v998, 1
      %v1001 = vsel %vm264, %v996, %v1000
      %v1002 = vshrl.u32 %v968, 16
      %v1004 = vor.u32 %v1002, %v1000
      %v1006 = vshll.u32 %v969, 16
      %v1008 = vrot.slane %v1006, 1
      %v1009 = vsel %vm264, %v1004, %v1008
      %v1010 = vshrl.u32 %v969, 16
      %v1012 = vor.u32 %v1010, %v1008
      %v1014 = vshll.u32 %v970, 16
      %v1016 = vrot.slane %v1014, 1
      %v1017 = vsel %vm264, %v1012, %v1016
      %v1018 = vshrl.u32 %v970, 16
      %v1020 = vor.u32 %v1018, %v1016
      %v1022 = vshll.u32 %v971, 16
      %v1024 = vrot.slane %v1022, 1
      %v1025 = vsel %vm264, %v1020, %v1024
      %v1026 = vshrl.u32 %v971, 16
      %v1028 = vor.u32 %v1026, %v1024
      %v1030 = vshll.u32 %v972, 16
      %v1032 = vrot.slane %v1030, 1
      %v1033 = vsel %vm264, %v1028, %v1032
      %v1034 = vshrl.u32 %v972, 16
      %v1036 = vor.u32 %v1034, %v1032
      %v1038 = vshll.u32 %v973, 16
      %v1040 = vrot.slane %v1038, 1
      %v1041 = vsel %vm264, %v1036, %v1040
      %v1066 = vunpack.c.l.b16 %v915
      %v1067 = vunpack.c.l.b16 %v916
      %v1068 = vunpack.c.l.b16 %v917
      %v1069 = vunpack.c.l.b16 %v918
      %v1070 = vunpack.c.l.b16 %v919
      %v1071 = vunpack.c.l.b16 %v920
      %v1072 = vunpack.c.l.b16 %v921
      %v1073 = vunpack.c.l.b16 %v922
      %v1074 = vunpack.c.l.b16 %v923
      %v1075 = vunpack.c.l.b16 %v924
      %v1076 = vunpack.c.l.b16 %v925
      %v1077 = vunpack.c.l.b16 %v926
      %v1078 = vunpack.c.l.b16 %v927
      %v1079 = vunpack.c.l.b16 %v928
      %v1080 = vunpack.c.l.b16 %v929
      %v1081 = vunpack.c.l.b16 %v930
      %v1082 = vpack.c.b16 %v1067, %v1066
      %v1083 = vpack.c.b16 %v1069, %v1068
      %v1084 = vpack.c.b16 %v1071, %v1070
      %v1085 = vpack.c.b16 %v1073, %v1072
      %v1086 = vpack.c.b16 %v1075, %v1074
      %v1087 = vpack.c.b16 %v1077, %v1076
      %v1088 = vpack.c.b16 %v1079, %v1078
      %v1089 = vpack.c.b16 %v1081, %v1080
      %1098 = vmatpush.bf16.msra.mxu0 %v1089
      %1099 = vmatpush.bf16.msra.mxu0 %v1088
      %1100 = vmatpush.bf16.msra.mxu0 %v1087
      %1101 = vmatpush.bf16.msra.mxu0 %v1086
      %1102 = vmatpush.bf16.msra.mxu0 %v1085
      %1103 = vmatpush.bf16.msra.mxu0 %v1084
      %1104 = vmatpush.bf16.msra.mxu0 %v1083
      %1105 = vmatpush.bf16.msra.mxu0 %v1082
      %1106 = vmatmul.bf16.gmra.mxu0 %v985
      %v1107 = vpop.f32.mrf.mxu0
      %v1108 = vadd.f32 0.0, %v1107
      %v1109 = vpop.f32.mrf.mxu0
      %v1110 = vadd.f32 0.0, %v1109
      %1111 = vmatmul.bf16.gmra.mxu0 %v993
      %v1112 = vpop.f32.mrf.mxu0
      %v1113 = vadd.f32 0.0, %v1112
      %v1114 = vpop.f32.mrf.mxu0
      %v1115 = vadd.f32 0.0, %v1114
      %1116 = vmatmul.bf16.gmra.mxu0 %v1001
      %v1117 = vpop.f32.mrf.mxu0
      %v1118 = vadd.f32 0.0, %v1117
      %v1119 = vpop.f32.mrf.mxu0
      %v1120 = vadd.f32 0.0, %v1119
      %1121 = vmatmul.bf16.gmra.mxu0 %v1009
      %v1122 = vpop.f32.mrf.mxu0
      %v1123 = vadd.f32 0.0, %v1122
      %v1124 = vpop.f32.mrf.mxu0
      %v1125 = vadd.f32 0.0, %v1124
      %1126 = vmatmul.bf16.gmra.mxu0 %v1017
      %v1127 = vpop.f32.mrf.mxu0
      %v1128 = vadd.f32 0.0, %v1127
      %v1129 = vpop.f32.mrf.mxu0
      %v1130 = vadd.f32 0.0, %v1129
      %1131 = vmatmul.bf16.gmra.mxu0 %v1025
      %v1132 = vpop.f32.mrf.mxu0
      %v1133 = vadd.f32 0.0, %v1132
      %v1134 = vpop.f32.mrf.mxu0
      %v1135 = vadd.f32 0.0, %v1134
      %1136 = vmatmul.bf16.gmra.mxu0 %v1033
      %v1137 = vpop.f32.mrf.mxu0
      %v1138 = vadd.f32 0.0, %v1137
      %v1139 = vpop.f32.mrf.mxu0
      %v1140 = vadd.f32 0.0, %v1139
      %1141 = vmatmul.bf16.gmra.mxu0 %v1041
      %v1142 = vpop.f32.mrf.mxu0
      %v1143 = vadd.f32 0.0, %v1142
      %v1144 = vpop.f32.mrf.mxu0
      %v1145 = vadd.f32 0.0, %v1144
      %1146 = vdwg.mxu0
      %v1147 = vadd.f32 %v881, %v1108
      %v1148 = vadd.f32 %v882, %v1110
      %v1149 = vadd.f32 %v883, %v1113
      %v1150 = vadd.f32 %v884, %v1115
      %v1151 = vadd.f32 %v885, %v1118
      %v1152 = vadd.f32 %v886, %v1120
      %v1153 = vadd.f32 %v887, %v1123
      %v1154 = vadd.f32 %v888, %v1125
      %v1155 = vadd.f32 %v889, %v1128
      %v1156 = vadd.f32 %v890, %v1130
      %v1157 = vadd.f32 %v891, %v1133
      %v1158 = vadd.f32 %v892, %v1135
      %v1159 = vadd.f32 %v893, %v1138
      %v1160 = vadd.f32 %v894, %v1140
      %v1161 = vadd.f32 %v895, %v1143
      %v1162 = vadd.f32 %v896, %v1145
      %v1163 = vld [vmem:[%s165 + $0x8] sm:$0xe]
      %s1164 = scalar_lea.vmem %s1, 320
      %v1165 = vld [vmem:[%s1164] sm:$0xf]
      %v1166 = vld [vmem:[%s1164 + $0x4] sm:$0xf]
      %v1167 = vld [vmem:[%s1164 + $0x8] sm:$0xf]
      %v1168 = vld [vmem:[%s1164 + $0xc] sm:$0xf]
      %v1169 = vld [vmem:[%s1164 + $0x10] sm:$0xf]
      %v1170 = vld [vmem:[%s1164 + $0x14] sm:$0xf]
      %v1171 = vld [vmem:[%s1164 + $0x18] sm:$0xf]
      %v1172 = vld [vmem:[%s1164 + $0x1c] sm:$0xf]
      %v1173 = vld [vmem:[%s1164 + $0x20] sm:$0xf]
      %v1174 = vld [vmem:[%s1164 + $0x24] sm:$0xf]
      %v1175 = vld [vmem:[%s1164 + $0x28] sm:$0xf]
      %v1176 = vld [vmem:[%s1164 + $0x2c] sm:$0xf]
      %v1177 = vld [vmem:[%s1164 + $0x30] sm:$0xf]
      %v1178 = vld [vmem:[%s1164 + $0x34] sm:$0xf]
      %v1179 = vld [vmem:[%s1164 + $0x38] sm:$0xf]
      %v1180 = vld [vmem:[%s1164 + $0x3c] sm:$0xf]
      %v1182 = vunpack.c.l.b16 %v1163
      %v1183 = vpack.c.b16 %v949, %v1182
      %v1184 = vrot.slane %v1183, 1
      %v1185 = vrot.slane %v966, 1
      %v1186 = vsel %vm564, %v1184, %v1185
      %v1187 = vrot.slane %v967, 1
      %v1188 = vsel %vm564, %v1185, %v1187
      %v1189 = vrot.slane %v968, 1
      %v1190 = vsel %vm564, %v1187, %v1189
      %v1191 = vrot.slane %v969, 1
      %v1192 = vsel %vm564, %v1189, %v1191
      %v1193 = vrot.slane %v970, 1
      %v1194 = vsel %vm564, %v1191, %v1193
      %v1195 = vrot.slane %v971, 1
      %v1196 = vsel %vm564, %v1193, %v1195
      %v1197 = vrot.slane %v972, 1
      %v1198 = vsel %vm564, %v1195, %v1197
      %v1199 = vrot.slane %v973, 1
      %v1200 = vsel %vm564, %v1197, %v1199
      %v1225 = vunpack.c.l.b16 %v1165
      %v1226 = vunpack.c.l.b16 %v1166
      %v1227 = vunpack.c.l.b16 %v1167
      %v1228 = vunpack.c.l.b16 %v1168
      %v1229 = vunpack.c.l.b16 %v1169
      %v1230 = vunpack.c.l.b16 %v1170
      %v1231 = vunpack.c.l.b16 %v1171
      %v1232 = vunpack.c.l.b16 %v1172
      %v1233 = vunpack.c.l.b16 %v1173
      %v1234 = vunpack.c.l.b16 %v1174
      %v1235 = vunpack.c.l.b16 %v1175
      %v1236 = vunpack.c.l.b16 %v1176
      %v1237 = vunpack.c.l.b16 %v1177
      %v1238 = vunpack.c.l.b16 %v1178
      %v1239 = vunpack.c.l.b16 %v1179
      %v1240 = vunpack.c.l.b16 %v1180
      %v1241 = vpack.c.b16 %v1226, %v1225
      %v1242 = vpack.c.b16 %v1228, %v1227
      %v1243 = vpack.c.b16 %v1230, %v1229
      %v1244 = vpack.c.b16 %v1232, %v1231
      %v1245 = vpack.c.b16 %v1234, %v1233
      %v1246 = vpack.c.b16 %v1236, %v1235
      %v1247 = vpack.c.b16 %v1238, %v1237
      %v1248 = vpack.c.b16 %v1240, %v1239
      %1257 = vmatpush.bf16.msra.mxu0 %v1248
      %1258 = vmatpush.bf16.msra.mxu0 %v1247
      %1259 = vmatpush.bf16.msra.mxu0 %v1246
      %1260 = vmatpush.bf16.msra.mxu0 %v1245
      %1261 = vmatpush.bf16.msra.mxu0 %v1244
      %1262 = vmatpush.bf16.msra.mxu0 %v1243
      %1263 = vmatpush.bf16.msra.mxu0 %v1242
      %1264 = vmatpush.bf16.msra.mxu0 %v1241
      %1265 = vmatmul.bf16.gmra.mxu0 %v1186
      %v1266 = vpop.f32.mrf.mxu0
      %v1267 = vadd.f32 0.0, %v1266
      %v1268 = vpop.f32.mrf.mxu0
      %v1269 = vadd.f32 0.0, %v1268
      %1270 = vmatmul.bf16.gmra.mxu0 %v1188
      %v1271 = vpop.f32.mrf.mxu0
      %v1272 = vadd.f32 0.0, %v1271
      %v1273 = vpop.f32.mrf.mxu0
      %v1274 = vadd.f32 0.0, %v1273
      %1275 = vmatmul.bf16.gmra.mxu0 %v1190
      %v1276 = vpop.f32.mrf.mxu0
      %v1277 = vadd.f32 0.0, %v1276
      %v1278 = vpop.f32.mrf.mxu0
      %v1279 = vadd.f32 0.0, %v1278
      %1280 = vmatmul.bf16.gmra.mxu0 %v1192
      %v1281 = vpop.f32.mrf.mxu0
      %v1282 = vadd.f32 0.0, %v1281
      %v1283 = vpop.f32.mrf.mxu0
      %v1284 = vadd.f32 0.0, %v1283
      %1285 = vmatmul.bf16.gmra.mxu0 %v1194
      %v1286 = vpop.f32.mrf.mxu0
      %v1287 = vadd.f32 0.0, %v1286
      %v1288 = vpop.f32.mrf.mxu0
      %v1289 = vadd.f32 0.0, %v1288
      %1290 = vmatmul.bf16.gmra.mxu0 %v1196
      %v1291 = vpop.f32.mrf.mxu0
      %v1292 = vadd.f32 0.0, %v1291
      %v1293 = vpop.f32.mrf.mxu0
      %v1294 = vadd.f32 0.0, %v1293
      %1295 = vmatmul.bf16.gmra.mxu0 %v1198
      %v1296 = vpop.f32.mrf.mxu0
      %v1297 = vadd.f32 0.0, %v1296
      %v1298 = vpop.f32.mrf.mxu0
      %v1299 = vadd.f32 0.0, %v1298
      %1300 = vmatmul.bf16.gmra.mxu0 %v1200
      %v1301 = vpop.f32.mrf.mxu0
      %v1302 = vadd.f32 0.0, %v1301
      %v1303 = vpop.f32.mrf.mxu0
      %v1304 = vadd.f32 0.0, %v1303
      %1305 = vdwg.mxu0
      %v1306 = vadd.f32 %v1147, %v1267
      %v1307 = vadd.f32 %v1148, %v1269
      %v1308 = vadd.f32 %v1149, %v1272
      %v1309 = vadd.f32 %v1150, %v1274
      %v1310 = vadd.f32 %v1151, %v1277
      %v1311 = vadd.f32 %v1152, %v1279
      %v1312 = vadd.f32 %v1153, %v1282
      %v1313 = vadd.f32 %v1154, %v1284
      %v1314 = vadd.f32 %v1155, %v1287
      %v1315 = vadd.f32 %v1156, %v1289
      %v1316 = vadd.f32 %v1157, %v1292
      %v1317 = vadd.f32 %v1158, %v1294
      %v1318 = vadd.f32 %v1159, %v1297
      %v1319 = vadd.f32 %v1160, %v1299
      %v1320 = vadd.f32 %v1161, %v1302
      %v1321 = vadd.f32 %v1162, %v1304
      %v1322 = vld [vmem:[%s165 + $0x10] sm:$0xf]
      %v1323 = vld [vmem:[%s165 + $0x14] sm:$0xf]
      %v1324 = vld [vmem:[%s165 + $0x18] sm:$0xf]
      %v1325 = vld [vmem:[%s165 + $0x1c] sm:$0xf]
      %v1326 = vld [vmem:[%s165 + $0x20] sm:$0xf]
      %v1327 = vld [vmem:[%s165 + $0x24] sm:$0xf]
      %v1328 = vld [vmem:[%s165 + $0x28] sm:$0xf]
      %v1329 = vld [vmem:[%s165 + $0x2c] sm:$0xf]
      %v1330 = vld [vmem:[%s165 + $0x30] sm:$0xf]
      %v1331 = vld [vmem:[%s165 + $0x34] sm:$0xf]
      %v1332 = vld [vmem:[%s165 + $0x38] sm:$0xf]
      %v1333 = vld [vmem:[%s165 + $0x3c] sm:$0xf]
      %v1334 = vld [vmem:[%s165 + $0x40] sm:$0xf]
      %v1335 = vld [vmem:[%s165 + $0x44] sm:$0xf]
      %v1336 = vld [vmem:[%s165 + $0x48] sm:$0xf]
      %v1337 = vld [vmem:[%s165 + $0x4c] sm:$0xf]
      %s1338 = scalar_lea.vmem %s1, 384
      %v1339 = vld [vmem:[%s1338] sm:$0xf]
      %v1340 = vld [vmem:[%s1338 + $0x4] sm:$0xf]
      %v1341 = vld [vmem:[%s1338 + $0x8] sm:$0xf]
      %v1342 = vld [vmem:[%s1338 + $0xc] sm:$0xf]
      %v1343 = vld [vmem:[%s1338 + $0x10] sm:$0xf]
      %v1344 = vld [vmem:[%s1338 + $0x14] sm:$0xf]
      %v1345 = vld [vmem:[%s1338 + $0x18] sm:$0xf]
      %v1346 = vld [vmem:[%s1338 + $0x1c] sm:$0xf]
      %v1347 = vld [vmem:[%s1338 + $0x20] sm:$0xf]
      %v1348 = vld [vmem:[%s1338 + $0x24] sm:$0xf]
      %v1349 = vld [vmem:[%s1338 + $0x28] sm:$0xf]
      %v1350 = vld [vmem:[%s1338 + $0x2c] sm:$0xf]
      %v1351 = vld [vmem:[%s1338 + $0x30] sm:$0xf]
      %v1352 = vld [vmem:[%s1338 + $0x34] sm:$0xf]
      %v1353 = vld [vmem:[%s1338 + $0x38] sm:$0xf]
      %v1354 = vld [vmem:[%s1338 + $0x3c] sm:$0xf]
      %v1371 = vunpack.c.l.b16 %v1322
      %v1372 = vunpack.c.l.b16 %v1323
      %v1373 = vunpack.c.l.b16 %v1324
      %v1374 = vunpack.c.l.b16 %v1325
      %v1375 = vunpack.c.l.b16 %v1326
      %v1376 = vunpack.c.l.b16 %v1327
      %v1377 = vunpack.c.l.b16 %v1328
      %v1378 = vunpack.c.l.b16 %v1329
      %v1379 = vunpack.c.l.b16 %v1330
      %v1380 = vunpack.c.l.b16 %v1331
      %v1381 = vunpack.c.l.b16 %v1332
      %v1382 = vunpack.c.l.b16 %v1333
      %v1383 = vunpack.c.l.b16 %v1334
      %v1384 = vunpack.c.l.b16 %v1335
      %v1385 = vunpack.c.l.b16 %v1336
      %v1386 = vunpack.c.l.b16 %v1337
      %v1387 = vpack.c.b16 %v1372, %v1371
      %v1388 = vpack.c.b16 %v1374, %v1373
      %v1389 = vpack.c.b16 %v1376, %v1375
      %v1390 = vpack.c.b16 %v1378, %v1377
      %v1391 = vpack.c.b16 %v1380, %v1379
      %v1392 = vpack.c.b16 %v1382, %v1381
      %v1393 = vpack.c.b16 %v1384, %v1383
      %v1394 = vpack.c.b16 %v1386, %v1385
      %v1419 = vunpack.c.l.b16 %v1339
      %v1420 = vunpack.c.l.b16 %v1340
      %v1421 = vunpack.c.l.b16 %v1341
      %v1422 = vunpack.c.l.b16 %v1342
      %v1423 = vunpack.c.l.b16 %v1343
      %v1424 = vunpack.c.l.b16 %v1344
      %v1425 = vunpack.c.l.b16 %v1345
      %v1426 = vunpack.c.l.b16 %v1346
      %v1427 = vunpack.c.l.b16 %v1347
      %v1428 = vunpack.c.l.b16 %v1348
      %v1429 = vunpack.c.l.b16 %v1349
      %v1430 = vunpack.c.l.b16 %v1350
      %v1431 = vunpack.c.l.b16 %v1351
      %v1432 = vunpack.c.l.b16 %v1352
      %v1433 = vunpack.c.l.b16 %v1353
      %v1434 = vunpack.c.l.b16 %v1354
      %v1435 = vpack.c.b16 %v1420, %v1419
      %v1436 = vpack.c.b16 %v1422, %v1421
      %v1437 = vpack.c.b16 %v1424, %v1423
      %v1438 = vpack.c.b16 %v1426, %v1425
      %v1439 = vpack.c.b16 %v1428, %v1427
      %v1440 = vpack.c.b16 %v1430, %v1429
      %v1441 = vpack.c.b16 %v1432, %v1431
      %v1442 = vpack.c.b16 %v1434, %v1433
      %1451 = vmatpush.bf16.msra.mxu0 %v1442
      %1452 = vmatpush.bf16.msra.mxu0 %v1441
      %1453 = vmatpush.bf16.msra.mxu0 %v1440
      %1454 = vmatpush.bf16.msra.mxu0 %v1439
      %1455 = vmatpush.bf16.msra.mxu0 %v1438
      %1456 = vmatpush.bf16.msra.mxu0 %v1437
      %1457 = vmatpush.bf16.msra.mxu0 %v1436
      %1458 = vmatpush.bf16.msra.mxu0 %v1435
      %1459 = vmatmul.bf16.gmra.mxu0 %v1387
      %v1460 = vpop.f32.mrf.mxu0
      %v1461 = vadd.f32 0.0, %v1460
      %v1462 = vpop.f32.mrf.mxu0
      %v1463 = vadd.f32 0.0, %v1462
      %1464 = vmatmul.bf16.gmra.mxu0 %v1388
      %v1465 = vpop.f32.mrf.mxu0
      %v1466 = vadd.f32 0.0, %v1465
      %v1467 = vpop.f32.mrf.mxu0
      %v1468 = vadd.f32 0.0, %v1467
      %1469 = vmatmul.bf16.gmra.mxu0 %v1389
      %v1470 = vpop.f32.mrf.mxu0
      %v1471 = vadd.f32 0.0, %v1470
      %v1472 = vpop.f32.mrf.mxu0
      %v1473 = vadd.f32 0.0, %v1472
      %1474 = vmatmul.bf16.gmra.mxu0 %v1390
      %v1475 = vpop.f32.mrf.mxu0
      %v1476 = vadd.f32 0.0, %v1475
      %v1477 = vpop.f32.mrf.mxu0
      %v1478 = vadd.f32 0.0, %v1477
      %1479 = vmatmul.bf16.gmra.mxu0 %v1391
      %v1480 = vpop.f32.mrf.mxu0
      %v1481 = vadd.f32 0.0, %v1480
      %v1482 = vpop.f32.mrf.mxu0
      %v1483 = vadd.f32 0.0, %v1482
      %1484 = vmatmul.bf16.gmra.mxu0 %v1392
      %v1485 = vpop.f32.mrf.mxu0
      %v1486 = vadd.f32 0.0, %v1485
      %v1487 = vpop.f32.mrf.mxu0
      %v1488 = vadd.f32 0.0, %v1487
      %1489 = vmatmul.bf16.gmra.mxu0 %v1393
      %v1490 = vpop.f32.mrf.mxu0
      %v1491 = vadd.f32 0.0, %v1490
      %v1492 = vpop.f32.mrf.mxu0
      %v1493 = vadd.f32 0.0, %v1492
      %1494 = vmatmul.bf16.gmra.mxu0 %v1394
      %v1495 = vpop.f32.mrf.mxu0
      %v1496 = vadd.f32 0.0, %v1495
      %v1497 = vpop.f32.mrf.mxu0
      %v1498 = vadd.f32 0.0, %v1497
      %1499 = vdwg.mxu0
      %v1500 = vadd.f32 %v1306, %v1461
      %v1501 = vadd.f32 %v1307, %v1463
      %v1502 = vadd.f32 %v1308, %v1466
      %v1503 = vadd.f32 %v1309, %v1468
      %v1504 = vadd.f32 %v1310, %v1471
      %v1505 = vadd.f32 %v1311, %v1473
      %v1506 = vadd.f32 %v1312, %v1476
      %v1507 = vadd.f32 %v1313, %v1478
      %v1508 = vadd.f32 %v1314, %v1481
      %v1509 = vadd.f32 %v1315, %v1483
      %v1510 = vadd.f32 %v1316, %v1486
      %v1511 = vadd.f32 %v1317, %v1488
      %v1512 = vadd.f32 %v1318, %v1491
      %v1513 = vadd.f32 %v1319, %v1493
      %v1514 = vadd.f32 %v1320, %v1496
      %v1515 = vadd.f32 %v1321, %v1498
      %v1516 = vld [vmem:[%s165 + $0x10] sm:$0xf]
      %v1517 = vld [vmem:[%s165 + $0x14] sm:$0xf]
      %v1518 = vld [vmem:[%s165 + $0x18] sm:$0xf]
      %v1519 = vld [vmem:[%s165 + $0x1c] sm:$0xf]
      %v1520 = vld [vmem:[%s165 + $0x20] sm:$0xf]
      %v1521 = vld [vmem:[%s165 + $0x24] sm:$0xf]
      %v1522 = vld [vmem:[%s165 + $0x28] sm:$0xf]
      %v1523 = vld [vmem:[%s165 + $0x2c] sm:$0xf]
      %v1524 = vld [vmem:[%s165 + $0x30] sm:$0xf]
      %v1525 = vld [vmem:[%s165 + $0x34] sm:$0xf]
      %v1526 = vld [vmem:[%s165 + $0x38] sm:$0xf]
      %v1527 = vld [vmem:[%s165 + $0x3c] sm:$0xf]
      %v1528 = vld [vmem:[%s165 + $0x40] sm:$0xf]
      %v1529 = vld [vmem:[%s165 + $0x44] sm:$0xf]
      %v1530 = vld [vmem:[%s165 + $0x48] sm:$0xf]
      %v1531 = vld [vmem:[%s165 + $0x4c] sm:$0xf]
      %v1532 = vld [vmem:[%s165 + $0x50] sm:$0x1]
      %s1533 = scalar_lea.vmem %s1, 448
      %v1534 = vld [vmem:[%s1533] sm:$0xf]
      %v1535 = vld [vmem:[%s1533 + $0x4] sm:$0xf]
      %v1536 = vld [vmem:[%s1533 + $0x8] sm:$0xf]
      %v1537 = vld [vmem:[%s1533 + $0xc] sm:$0xf]
      %v1538 = vld [vmem:[%s1533 + $0x10] sm:$0xf]
      %v1539 = vld [vmem:[%s1533 + $0x14] sm:$0xf]
      %v1540 = vld [vmem:[%s1533 + $0x18] sm:$0xf]
      %v1541 = vld [vmem:[%s1533 + $0x1c] sm:$0xf]
      %v1542 = vld [vmem:[%s1533 + $0x20] sm:$0xf]
      %v1543 = vld [vmem:[%s1533 + $0x24] sm:$0xf]
      %v1544 = vld [vmem:[%s1533 + $0x28] sm:$0xf]
      %v1545 = vld [vmem:[%s1533 + $0x2c] sm:$0xf]
      %v1546 = vld [vmem:[%s1533 + $0x30] sm:$0xf]
      %v1547 = vld [vmem:[%s1533 + $0x34] sm:$0xf]
      %v1548 = vld [vmem:[%s1533 + $0x38] sm:$0xf]
      %v1549 = vld [vmem:[%s1533 + $0x3c] sm:$0xf]
      %v1567 = vunpack.c.l.b16 %v1516
      %v1568 = vunpack.c.l.b16 %v1517
      %v1569 = vunpack.c.l.b16 %v1518
      %v1570 = vunpack.c.l.b16 %v1519
      %v1571 = vunpack.c.l.b16 %v1520
      %v1572 = vunpack.c.l.b16 %v1521
      %v1573 = vunpack.c.l.b16 %v1522
      %v1574 = vunpack.c.l.b16 %v1523
      %v1575 = vunpack.c.l.b16 %v1524
      %v1576 = vunpack.c.l.b16 %v1525
      %v1577 = vunpack.c.l.b16 %v1526
      %v1578 = vunpack.c.l.b16 %v1527
      %v1579 = vunpack.c.l.b16 %v1528
      %v1580 = vunpack.c.l.b16 %v1529
      %v1581 = vunpack.c.l.b16 %v1530
      %v1582 = vunpack.c.l.b16 %v1531
      %v1583 = vunpack.c.l.b16 %v1532
      %v1584 = vpack.c.b16 %v1568, %v1567
      %v1585 = vpack.c.b16 %v1570, %v1569
      %v1586 = vpack.c.b16 %v1572, %v1571
      %v1587 = vpack.c.b16 %v1574, %v1573
      %v1588 = vpack.c.b16 %v1576, %v1575
      %v1589 = vpack.c.b16 %v1578, %v1577
      %v1590 = vpack.c.b16 %v1580, %v1579
      %v1591 = vpack.c.b16 %v1582, %v1581
      %v1592 = vpack.c.b16 %v1583, %v1583
      %v1594 = vshrl.u32 %v1584, 16
      %v1596 = vshll.u32 %v1584, 16
      %v1598 = vrot.slane %v1596, 1
      %v1599 = vor.u32 %v1594, %v1598
      %v1601 = vshll.u32 %v1585, 16
      %v1603 = vrot.slane %v1601, 1
      %v1604 = vsel %vm264, %v1599, %v1603
      %v1605 = vshrl.u32 %v1585, 16
      %v1607 = vor.u32 %v1605, %v1603
      %v1609 = vshll.u32 %v1586, 16
      %v1611 = vrot.slane %v1609, 1
      %v1612 = vsel %vm264, %v1607, %v1611
      %v1613 = vshrl.u32 %v1586, 16
      %v1615 = vor.u32 %v1613, %v1611
      %v1617 = vshll.u32 %v1587, 16
      %v1619 = vrot.slane %v1617, 1
      %v1620 = vsel %vm264, %v1615, %v1619
      %v1621 = vshrl.u32 %v1587, 16
      %v1623 = vor.u32 %v1621, %v1619
      %v1625 = vshll.u32 %v1588, 16
      %v1627 = vrot.slane %v1625, 1
      %v1628 = vsel %vm264, %v1623, %v1627
      %v1629 = vshrl.u32 %v1588, 16
      %v1631 = vor.u32 %v1629, %v1627
      %v1633 = vshll.u32 %v1589, 16
      %v1635 = vrot.slane %v1633, 1
      %v1636 = vsel %vm264, %v1631, %v1635
      %v1637 = vshrl.u32 %v1589, 16
      %v1639 = vor.u32 %v1637, %v1635
      %v1641 = vshll.u32 %v1590, 16
      %v1643 = vrot.slane %v1641, 1
      %v1644 = vsel %vm264, %v1639, %v1643
      %v1645 = vshrl.u32 %v1590, 16
      %v1647 = vor.u32 %v1645, %v1643
      %v1649 = vshll.u32 %v1591, 16
      %v1651 = vrot.slane %v1649, 1
      %v1652 = vsel %vm264, %v1647, %v1651
      %v1653 = vshrl.u32 %v1591, 16
      %v1655 = vor.u32 %v1653, %v1651
      %v1657 = vshll.u32 %v1592, 16
      %v1659 = vrot.slane %v1657, 1
      %v1660 = vsel %vm264, %v1655, %v1659
      %v1685 = vunpack.c.l.b16 %v1534
      %v1686 = vunpack.c.l.b16 %v1535
      %v1687 = vunpack.c.l.b16 %v1536
      %v1688 = vunpack.c.l.b16 %v1537
      %v1689 = vunpack.c.l.b16 %v1538
      %v1690 = vunpack.c.l.b16 %v1539
      %v1691 = vunpack.c.l.b16 %v1540
      %v1692 = vunpack.c.l.b16 %v1541
      %v1693 = vunpack.c.l.b16 %v1542
      %v1694 = vunpack.c.l.b16 %v1543
      %v1695 = vunpack.c.l.b16 %v1544
      %v1696 = vunpack.c.l.b16 %v1545
      %v1697 = vunpack.c.l.b16 %v1546
      %v1698 = vunpack.c.l.b16 %v1547
      %v1699 = vunpack.c.l.b16 %v1548
      %v1700 = vunpack.c.l.b16 %v1549
      %v1701 = vpack.c.b16 %v1686, %v1685
      %v1702 = vpack.c.b16 %v1688, %v1687
      %v1703 = vpack.c.b16 %v1690, %v1689
      %v1704 = vpack.c.b16 %v1692, %v1691
      %v1705 = vpack.c.b16 %v1694, %v1693
      %v1706 = vpack.c.b16 %v1696, %v1695
      %v1707 = vpack.c.b16 %v1698, %v1697
      %v1708 = vpack.c.b16 %v1700, %v1699
      %1717 = vmatpush.bf16.msra.mxu0 %v1708
      %1718 = vmatpush.bf16.msra.mxu0 %v1707
      %1719 = vmatpush.bf16.msra.mxu0 %v1706
      %1720 = vmatpush.bf16.msra.mxu0 %v1705
      %1721 = vmatpush.bf16.msra.mxu0 %v1704
      %1722 = vmatpush.bf16.msra.mxu0 %v1703
      %1723 = vmatpush.bf16.msra.mxu0 %v1702
      %1724 = vmatpush.bf16.msra.mxu0 %v1701
      %1725 = vmatmul.bf16.gmra.mxu0 %v1604
      %v1726 = vpop.f32.mrf.mxu0
      %v1727 = vadd.f32 0.0, %v1726
      %v1728 = vpop.f32.mrf.mxu0
      %v1729 = vadd.f32 0.0, %v1728
      %1730 = vmatmul.bf16.gmra.mxu0 %v1612
      %v1731 = vpop.f32.mrf.mxu0
      %v1732 = vadd.f32 0.0, %v1731
      %v1733 = vpop.f32.mrf.mxu0
      %v1734 = vadd.f32 0.0, %v1733
      %1735 = vmatmul.bf16.gmra.mxu0 %v1620
      %v1736 = vpop.f32.mrf.mxu0
      %v1737 = vadd.f32 0.0, %v1736
      %v1738 = vpop.f32.mrf.mxu0
      %v1739 = vadd.f32 0.0, %v1738
      %1740 = vmatmul.bf16.gmra.mxu0 %v1628
      %v1741 = vpop.f32.mrf.mxu0
      %v1742 = vadd.f32 0.0, %v1741
      %v1743 = vpop.f32.mrf.mxu0
      %v1744 = vadd.f32 0.0, %v1743
      %1745 = vmatmul.bf16.gmra.mxu0 %v1636
      %v1746 = vpop.f32.mrf.mxu0
      %v1747 = vadd.f32 0.0, %v1746
      %v1748 = vpop.f32.mrf.mxu0
      %v1749 = vadd.f32 0.0, %v1748
      %1750 = vmatmul.bf16.gmra.mxu0 %v1644
      %v1751 = vpop.f32.mrf.mxu0
      %v1752 = vadd.f32 0.0, %v1751
      %v1753 = vpop.f32.mrf.mxu0
      %v1754 = vadd.f32 0.0, %v1753
      %1755 = vmatmul.bf16.gmra.mxu0 %v1652
      %v1756 = vpop.f32.mrf.mxu0
      %v1757 = vadd.f32 0.0, %v1756
      %v1758 = vpop.f32.mrf.mxu0
      %v1759 = vadd.f32 0.0, %v1758
      %1760 = vmatmul.bf16.gmra.mxu0 %v1660
      %v1761 = vpop.f32.mrf.mxu0
      %v1762 = vadd.f32 0.0, %v1761
      %v1763 = vpop.f32.mrf.mxu0
      %v1764 = vadd.f32 0.0, %v1763
      %1765 = vdwg.mxu0
      %v1766 = vadd.f32 %v1500, %v1727
      %v1767 = vadd.f32 %v1501, %v1729
      %v1768 = vadd.f32 %v1502, %v1732
      %v1769 = vadd.f32 %v1503, %v1734
      %v1770 = vadd.f32 %v1504, %v1737
      %v1771 = vadd.f32 %v1505, %v1739
      %v1772 = vadd.f32 %v1506, %v1742
      %v1773 = vadd.f32 %v1507, %v1744
      %v1774 = vadd.f32 %v1508, %v1747
      %v1775 = vadd.f32 %v1509, %v1749
      %v1776 = vadd.f32 %v1510, %v1752
      %v1777 = vadd.f32 %v1511, %v1754
      %v1778 = vadd.f32 %v1512, %v1757
      %v1779 = vadd.f32 %v1513, %v1759
      %v1780 = vadd.f32 %v1514, %v1762
      %v1781 = vadd.f32 %v1515, %v1764
      %v1782 = vld [vmem:[%s165 + $0x10] sm:$0xe]
      %s1783 = scalar_lea.vmem %s1, 512
      %v1784 = vld [vmem:[%s1783] sm:$0xf]
      %v1785 = vld [vmem:[%s1783 + $0x4] sm:$0xf]
      %v1786 = vld [vmem:[%s1783 + $0x8] sm:$0xf]
      %v1787 = vld [vmem:[%s1783 + $0xc] sm:$0xf]
      %v1788 = vld [vmem:[%s1783 + $0x10] sm:$0xf]
      %v1789 = vld [vmem:[%s1783 + $0x14] sm:$0xf]
      %v1790 = vld [vmem:[%s1783 + $0x18] sm:$0xf]
      %v1791 = vld [vmem:[%s1783 + $0x1c] sm:$0xf]
      %v1792 = vld [vmem:[%s1783 + $0x20] sm:$0xf]
      %v1793 = vld [vmem:[%s1783 + $0x24] sm:$0xf]
      %v1794 = vld [vmem:[%s1783 + $0x28] sm:$0xf]
      %v1795 = vld [vmem:[%s1783 + $0x2c] sm:$0xf]
      %v1796 = vld [vmem:[%s1783 + $0x30] sm:$0xf]
      %v1797 = vld [vmem:[%s1783 + $0x34] sm:$0xf]
      %v1798 = vld [vmem:[%s1783 + $0x38] sm:$0xf]
      %v1799 = vld [vmem:[%s1783 + $0x3c] sm:$0xf]
      %v1801 = vunpack.c.l.b16 %v1782
      %v1802 = vpack.c.b16 %v1568, %v1801
      %v1803 = vrot.slane %v1802, 1
      %v1804 = vrot.slane %v1585, 1
      %v1805 = vsel %vm564, %v1803, %v1804
      %v1806 = vrot.slane %v1586, 1
      %v1807 = vsel %vm564, %v1804, %v1806
      %v1808 = vrot.slane %v1587, 1
      %v1809 = vsel %vm564, %v1806, %v1808
      %v1810 = vrot.slane %v1588, 1
      %v1811 = vsel %vm564, %v1808, %v1810
      %v1812 = vrot.slane %v1589, 1
      %v1813 = vsel %vm564, %v1810, %v1812
      %v1814 = vrot.slane %v1590, 1
      %v1815 = vsel %vm564, %v1812, %v1814
      %v1816 = vrot.slane %v1591, 1
      %v1817 = vsel %vm564, %v1814, %v1816
      %v1818 = vrot.slane %v1592, 1
      %v1819 = vsel %vm564, %v1816, %v1818
      %v1844 = vunpack.c.l.b16 %v1784
      %v1845 = vunpack.c.l.b16 %v1785
      %v1846 = vunpack.c.l.b16 %v1786
      %v1847 = vunpack.c.l.b16 %v1787
      %v1848 = vunpack.c.l.b16 %v1788
      %v1849 = vunpack.c.l.b16 %v1789
      %v1850 = vunpack.c.l.b16 %v1790
      %v1851 = vunpack.c.l.b16 %v1791
      %v1852 = vunpack.c.l.b16 %v1792
      %v1853 = vunpack.c.l.b16 %v1793
      %v1854 = vunpack.c.l.b16 %v1794
      %v1855 = vunpack.c.l.b16 %v1795
      %v1856 = vunpack.c.l.b16 %v1796
      %v1857 = vunpack.c.l.b16 %v1797
      %v1858 = vunpack.c.l.b16 %v1798
      %v1859 = vunpack.c.l.b16 %v1799
      %v1860 = vpack.c.b16 %v1845, %v1844
      %v1861 = vpack.c.b16 %v1847, %v1846
      %v1862 = vpack.c.b16 %v1849, %v1848
      %v1863 = vpack.c.b16 %v1851, %v1850
      %v1864 = vpack.c.b16 %v1853, %v1852
      %v1865 = vpack.c.b16 %v1855, %v1854
      %v1866 = vpack.c.b16 %v1857, %v1856
      %v1867 = vpack.c.b16 %v1859, %v1858
      %1876 = vmatpush.bf16.msra.mxu0 %v1867
      %1877 = vmatpush.bf16.msra.mxu0 %v1866
      %1878 = vmatpush.bf16.msra.mxu0 %v1865
      %1879 = vmatpush.bf16.msra.mxu0 %v1864
      %1880 = vmatpush.bf16.msra.mxu0 %v1863
      %1881 = vmatpush.bf16.msra.mxu0 %v1862
      %1882 = vmatpush.bf16.msra.mxu0 %v1861
      %1883 = vmatpush.bf16.msra.mxu0 %v1860
      %1884 = vmatmul.bf16.gmra.mxu0 %v1805
      %v1885 = vpop.f32.mrf.mxu0
      %v1886 = vadd.f32 0.0, %v1885
      %v1887 = vpop.f32.mrf.mxu0
      %v1888 = vadd.f32 0.0, %v1887
      %1889 = vmatmul.bf16.gmra.mxu0 %v1807
      %v1890 = vpop.f32.mrf.mxu0
      %v1891 = vadd.f32 0.0, %v1890
      %v1892 = vpop.f32.mrf.mxu0
      %v1893 = vadd.f32 0.0, %v1892
      %1894 = vmatmul.bf16.gmra.mxu0 %v1809
      %v1895 = vpop.f32.mrf.mxu0
      %v1896 = vadd.f32 0.0, %v1895
      %v1897 = vpop.f32.mrf.mxu0
      %v1898 = vadd.f32 0.0, %v1897
      %1899 = vmatmul.bf16.gmra.mxu0 %v1811
      %v1900 = vpop.f32.mrf.mxu0
      %v1901 = vadd.f32 0.0, %v1900
      %v1902 = vpop.f32.mrf.mxu0
      %v1903 = vadd.f32 0.0, %v1902
      %1904 = vmatmul.bf16.gmra.mxu0 %v1813
      %v1905 = vpop.f32.mrf.mxu0
      %v1906 = vadd.f32 0.0, %v1905
      %v1907 = vpop.f32.mrf.mxu0
      %v1908 = vadd.f32 0.0, %v1907
      %1909 = vmatmul.bf16.gmra.mxu0 %v1815
      %v1910 = vpop.f32.mrf.mxu0
      %v1911 = vadd.f32 0.0, %v1910
      %v1912 = vpop.f32.mrf.mxu0
      %v1913 = vadd.f32 0.0, %v1912
      %1914 = vmatmul.bf16.gmra.mxu0 %v1817
      %v1915 = vpop.f32.mrf.mxu0
      %v1916 = vadd.f32 0.0, %v1915
      %v1917 = vpop.f32.mrf.mxu0
      %v1918 = vadd.f32 0.0, %v1917
      %1919 = vmatmul.bf16.gmra.mxu0 %v1819
      %v1920 = vpop.f32.mrf.mxu0
      %v1921 = vadd.f32 0.0, %v1920
      %v1922 = vpop.f32.mrf.mxu0
      %v1923 = vadd.f32 0.0, %v1922
      %1924 = vdwg.mxu0
      %v1925 = vadd.f32 %v1766, %v1886
      %v1926 = vadd.f32 %v1767, %v1888
      %v1927 = vadd.f32 %v1768, %v1891
      %v1928 = vadd.f32 %v1769, %v1893
      %v1929 = vadd.f32 %v1770, %v1896
      %v1930 = vadd.f32 %v1771, %v1898
      %v1931 = vadd.f32 %v1772, %v1901
      %v1932 = vadd.f32 %v1773, %v1903
      %v1933 = vadd.f32 %v1774, %v1906
      %v1934 = vadd.f32 %v1775, %v1908
      %v1935 = vadd.f32 %v1776, %v1911
      %v1936 = vadd.f32 %v1777, %v1913
      %v1937 = vadd.f32 %v1778, %v1916
      %v1938 = vadd.f32 %v1779, %v1918
      %v1939 = vadd.f32 %v1780, %v1921
      %v1940 = vadd.f32 %v1781, %v1923
      %v1941 = vld [vmem:[%s2] sm:$0x1]
      %v1943 = vperm.slane %v1941, 0
      %v1945 = vadd.f32 %v1925, %v1943
      %v1946 = vadd.f32 %v1926, %v1943
      %v1947 = vadd.f32 %v1927, %v1943
      %v1948 = vadd.f32 %v1928, %v1943
      %v1949 = vadd.f32 %v1929, %v1943
      %v1950 = vadd.f32 %v1930, %v1943
      %v1951 = vadd.f32 %v1931, %v1943
      %v1952 = vadd.f32 %v1932, %v1943
      %v1953 = vadd.f32 %v1933, %v1943
      %v1954 = vadd.f32 %v1934, %v1943
      %v1955 = vadd.f32 %v1935, %v1943
      %v1956 = vadd.f32 %v1936, %v1943
      %v1957 = vadd.f32 %v1937, %v1943
      %v1958 = vadd.f32 %v1938, %v1943
      %v1959 = vadd.f32 %v1939, %v1943
      %v1960 = vadd.f32 %v1940, %v1943
      %v1961 = vpack.c.bf16 %v1945, %v1945
      %v1962 = vpack.c.bf16 %v1946, %v1946
      %v1963 = vpack.c.bf16 %v1947, %v1947
      %v1964 = vpack.c.bf16 %v1948, %v1948
      %v1965 = vpack.c.bf16 %v1949, %v1949
      %v1966 = vpack.c.bf16 %v1950, %v1950
      %v1967 = vpack.c.bf16 %v1951, %v1951
      %v1968 = vpack.c.bf16 %v1952, %v1952
      %v1969 = vpack.c.bf16 %v1953, %v1953
      %v1970 = vpack.c.bf16 %v1954, %v1954
      %v1971 = vpack.c.bf16 %v1955, %v1955
      %v1972 = vpack.c.bf16 %v1956, %v1956
      %v1973 = vpack.c.bf16 %v1957, %v1957
      %v1974 = vpack.c.bf16 %v1958, %v1958
      %v1975 = vpack.c.bf16 %v1959, %v1959
      %v1976 = vpack.c.bf16 %v1960, %v1960
      %1977 = vst [vmem:[%s170] sm:$0xf] %v1961
      %1978 = vst [vmem:[%s170 + $0x4] sm:$0xf] %v1962
      %1979 = vst [vmem:[%s170 + $0x8] sm:$0xf] %v1963
      %1980 = vst [vmem:[%s170 + $0xc] sm:$0xf] %v1964
      %1981 = vst [vmem:[%s170 + $0x10] sm:$0xf] %v1965
      %1982 = vst [vmem:[%s170 + $0x14] sm:$0xf] %v1966
      %1983 = vst [vmem:[%s170 + $0x18] sm:$0xf] %v1967
      %1984 = vst [vmem:[%s170 + $0x1c] sm:$0xf] %v1968
      %1985 = vst [vmem:[%s170 + $0x20] sm:$0xf] %v1969
      %1986 = vst [vmem:[%s170 + $0x24] sm:$0xf] %v1970
      %1987 = vst [vmem:[%s170 + $0x28] sm:$0xf] %v1971
      %1988 = vst [vmem:[%s170 + $0x2c] sm:$0xf] %v1972
      %1989 = vst [vmem:[%s170 + $0x30] sm:$0xf] %v1973
      %1990 = vst [vmem:[%s170 + $0x34] sm:$0xf] %v1974
      %1991 = vst [vmem:[%s170 + $0x38] sm:$0xf] %v1975
      %1992 = vst [vmem:[%s170 + $0x3c] sm:$0xf] %v1976
      %p1993 = scmp.lt.s32.totalorder %s14, 1
      %s1994 = scalar_select %p1993, %s14, 1
      %s1995 = smul.addr %s1994, 16
      %s1996 = smul.addr %s1995, 4
      %s1997 = scalar_lea.vmem %s3, %s1996
      // Predicated region
      $region33: #{fpn_forward.10} parent=31 // pred_check
        %p1998 = pneg %p100
      $region34: #{fpn_forward.10} parent=31 // pred_check_branch
        %2000 = sbr.rel (%p1998) target = $region36
      $region35: #{fpn_forward.10} parent=31 // pred_region
        _
      $region36: #{fpn_forward.10} parent=31 // pred_fallthru
        _
    $region32: #{fpn_forward.10} parent=5 // pred_fallthru
      _
    %p2001 = scmp.le.s32.totalorder 2, %s9
    // Predicated region
    $region37: #{fpn_forward.10} parent=5 // pred_check
      %p2002 = pneg %p2001
    $region38: #{fpn_forward.10} parent=5 // pred_check_branch
      %2004 = sbr.rel (%p2002) target = $region40
    $region39: #{fpn_forward.10} parent=5 // pred_region
      %s2005 = ssub.s32 %s9, 2
      // Predicated region
      $region41: #{fpn_forward.10} parent=39 // pred_check
        %p2006 = pneg %p106
      $region42: #{fpn_forward.10} parent=39 // pred_check_branch
        %2008 = sbr.rel (%p2006) target = $region44
      $region43: #{fpn_forward.10} parent=39 // pred_region
        %p2009 = scmp.lt.s32.totalorder %s15, 1
        %s2010 = scalar_select %p2009, %s15, 1
        %s2011 = smul.addr %s2010, 16
        %s2012 = smul.addr %s2011, 4
        %s2013 = scalar_lea.vmem %s3, %s2012
      $region44: #{fpn_forward.10} parent=39 // pred_fallthru
        _
    $region40: #{fpn_forward.10} parent=5 // pred_fallthru
      _
  $region6: #{fpn_forward.10} parent=0 // loop_footer
    %s13 = sadd.s32 1, %s9
  $region7: #{fpn_forward.10} parent=0 // loop_footer_branch
    %8 = sbr.rel target = $region3
  $region8: #{fpn_forward.10} parent=0 // loop_exit
    _

// kernel: fpn_forward.12
$region0: #{fpn_forward.12}
  #allocation0 [shape = 'u32[]', space=smem, size = 0x4, offset = 0x4, fixed_abs, tag = 'smem constant byte address 0x4 - core index']
  #allocation1 [shape = 'u32[72,128]{1,0:T(1,128)}', space=vmem, size = 0x9000, scoped, tag = 'internal scratch']
  %s0 = inlined_call_operand.vmem [shape: bf16[2,456,128], index: 0, kind: input, shape index: {}]
  %s1 = inlined_call_operand.vmem [shape: bf16[9,128,128], index: 1, kind: input, shape index: {}]
  %s2 = inlined_call_operand.vmem [shape: f32[1,128], index: 2, kind: input, shape index: {}]
  %s3 = inlined_call_operand.vmem [shape: bf16[2,384,128], index: 3, kind: output, shape index: {}]
  %s4 = sld [smem:[#allocation0]]
  $region45: #{fpn_forward.12} parent=0
    _
  %s6 = ssub.s32 1, %s4
  %s7 = scalar_select 0, %s6, %s4
  loop: start=0, step=1, limit=4
  $region2: #{fpn_forward.12} parent=0 // loop_pre_header
    _
  $region3: #{fpn_forward.12} parent=0 // loop_header
    %s9 = sphi 0, %s13
    %p10 = scmp.ge.s32.totalorder %s9, 4
    %s19 = sphi 0, %s21
    %s22 = sphi 0, %s19
    %s23 = sphi 0, %s22
    %s39 = sphi 0, %s23
    %s43 = sphi 0, %s43
    %s45 = sphi 0, %s43
    %s46 = sphi 0, %s45
    %s60 = sphi 0, %s46
    %s64 = sphi 0, %s64
    %s66 = sphi 0, %s64
    %s67 = sphi 0, %s66
    %s81 = sphi 0, %s67
    %s87 = sphi 0, %s89
    %s90 = sphi 0, %s87
    %s91 = sphi 0, %s90
    %s107 = sphi 0, %s91
  $region4: #{fpn_forward.12} parent=0 // loop_header_branch
    %12 = sbr.rel (%p10) target = $region8
  $region5: #{fpn_forward.12} parent=0 // loop_body
    %s14 = ssub.s32 %s9, 1
    %s15 = ssub.s32 %s9, 2
    %s16 = sadd.s32 %s9, 1
    %s17 = ssub.s32 %s9, %s16
    %p18 = scmp.eq.s32.totalorder %s17, 0
    %s20 = sadd.s32 %s19, 1
    %s21 = scalar_select %p18, %s19, %s20
    %p24 = pneg %p18
    %p25 = scmp.eq.s32.totalorder %s9, 1
    %p26 = por %p24, %p25
    %p27 = scmp.ne.s32.totalorder %s19, %s22
    %p28 = scmp.eq.s32.totalorder %s9, 0
    %p29 = por %p27, %p28
    %p30 = scmp.ne.s32.totalorder %s19, %s22
    %p31 = scmp.eq.s32.totalorder %s14, 1
    %p32 = por %p30, %p31
    %p33 = scmp.ne.s32.totalorder %s22, %s23
    %p34 = scmp.eq.s32.totalorder %s14, 0
    %p35 = por %p33, %p34
    %p36 = scmp.ne.s32.totalorder %s22, %s23
    %p37 = scmp.eq.s32.totalorder %s15, 1
    %p38 = por %p36, %p37
    %p40 = scmp.ne.s32.totalorder %s23, %s39
    %p41 = scmp.eq.s32.totalorder %s15, 0
    %p42 = por %p40, %p41
    %s44 = sadd.s32 %s43, 1
    %p47 = scmp.eq.s32.totalorder %s9, 1
    %p48 = scmp.ne.s32.totalorder %s43, %s45
    %p49 = scmp.eq.s32.totalorder %s9, 0
    %p50 = por %p48, %p49
    %p51 = scmp.ne.s32.totalorder %s43, %s45
    %p52 = scmp.eq.s32.totalorder %s14, 1
    %p53 = por %p51, %p52
    %p54 = scmp.ne.s32.totalorder %s45, %s46
    %p55 = scmp.eq.s32.totalorder %s14, 0
    %p56 = por %p54, %p55
    %p57 = scmp.ne.s32.totalorder %s45, %s46
    %p58 = scmp.eq.s32.totalorder %s15, 1
    %p59 = por %p57, %p58
    %p61 = scmp.ne.s32.totalorder %s46, %s60
    %p62 = scmp.eq.s32.totalorder %s15, 0
    %p63 = por %p61, %p62
    %s65 = sadd.s32 %s64, 1
    %p68 = scmp.eq.s32.totalorder %s9, 1
    %p69 = scmp.ne.s32.totalorder %s64, %s66
    %p70 = scmp.eq.s32.totalorder %s9, 0
    %p71 = por %p69, %p70
    %p72 = scmp.ne.s32.totalorder %s64, %s66
    %p73 = scmp.eq.s32.totalorder %s14, 1
    %p74 = por %p72, %p73
    %p75 = scmp.ne.s32.totalorder %s66, %s67
    %p76 = scmp.eq.s32.totalorder %s14, 0
    %p77 = por %p75, %p76
    %p78 = scmp.ne.s32.totalorder %s66, %s67
    %p79 = scmp.eq.s32.totalorder %s15, 1
    %p80 = por %p78, %p79
    %p82 = scmp.ne.s32.totalorder %s67, %s81
    %p83 = scmp.eq.s32.totalorder %s15, 0
    %p84 = por %p82, %p83
    %s85 = ssub.s32 %s9, %s16
    %p86 = scmp.eq.s32.totalorder %s85, 0
    %s88 = sadd.s32 %s87, 1
    %s89 = scalar_select %p86, %s87, %s88
    %p92 = pneg %p86
    %p93 = scmp.eq.s32.totalorder %s9, 1
    %p94 = por %p92, %p93
    %p95 = scmp.ne.s32.totalorder %s87, %s90
    %p96 = scmp.eq.s32.totalorder %s9, 0
    %p97 = por %p95, %p96
    %p98 = scmp.ne.s32.totalorder %s87, %s90
    %p99 = scmp.eq.s32.totalorder %s14, 1
    %p100 = por %p98, %p99
    %p101 = scmp.ne.s32.totalorder %s90, %s91
    %p102 = scmp.eq.s32.totalorder %s14, 0
    %p103 = por %p101, %p102
    %p104 = scmp.ne.s32.totalorder %s90, %s91
    %p105 = scmp.eq.s32.totalorder %s15, 1
    %p106 = por %p104, %p105
    %p108 = scmp.ne.s32.totalorder %s91, %s107
    %p109 = scmp.eq.s32.totalorder %s15, 0
    %p110 = por %p108, %p109
    %p111 = scmp.le.s32.totalorder 1, %s9
    %p112 = scmp.lt.s32.totalorder %s9, 3
    %p113 = pnand %p111, %p112
    %p114 = pneg %p113
    // Predicated region
    $region9: #{fpn_forward.12} parent=5 // pred_check
      _
    $region10: #{fpn_forward.12} parent=5 // pred_check_branch
      %116 = sbr.rel (%p113) target = $region12
    $region11: #{fpn_forward.12} parent=5 // pred_region
      %s117 = ssub.s32 %s9, 1
      // Predicated region
      $region13: #{fpn_forward.12} parent=11 // pred_check
        %p118 = pneg %p56
      $region14: #{fpn_forward.12} parent=11 // pred_check_branch
        %120 = sbr.rel (%p118) target = $region16
      $region15: #{fpn_forward.12} parent=11 // pred_region
        _
      $region16: #{fpn_forward.12} parent=11 // pred_fallthru
        _
      // Predicated region
      $region17: #{fpn_forward.12} parent=11 // pred_check
        %p121 = pneg %p77
      $region18: #{fpn_forward.12} parent=11 // pred_check_branch
        %123 = sbr.rel (%p121) target = $region20
      $region19: #{fpn_forward.12} parent=11 // pred_region
        _
      $region20: #{fpn_forward.12} parent=11 // pred_fallthru
        _
    $region12: #{fpn_forward.12} parent=5 // pred_fallthru
      _
    %p124 = scmp.lt.s32.totalorder %s9, 2
    // Predicated region
    $region21: #{fpn_forward.12} parent=5 // pred_check
      %p125 = pneg %p124
    $region22: #{fpn_forward.12} parent=5 // pred_check_branch
      %127 = sbr.rel (%p125) target = $region24
    $region23: #{fpn_forward.12} parent=5 // pred_region
      // Predicated region
      $region25: #{fpn_forward.12} parent=23 // pred_check
        %p128 = pneg %p29
      $region26: #{fpn_forward.12} parent=23 // pred_check_branch
        %130 = sbr.rel (%p128) target = $region28
      $region27: #{fpn_forward.12} parent=23 // pred_region
        %p131 = scmp.lt.s32.totalorder %s9, 1
        %s132 = scalar_select %p131, %s9, 1
        %s133 = smul.addr %s132, 57
        %s134 = smul.addr %s133, 4
        %s135 = scalar_lea.vmem %s0, %s134
      $region28: #{fpn_forward.12} parent=23 // pred_fallthru
        _
    $region24: #{fpn_forward.12} parent=5 // pred_fallthru
      _
    %p136 = scmp.le.s32.totalorder 1, %s9
    %p137 = scmp.lt.s32.totalorder %s9, 3
    %p138 = pnand %p136, %p137
    %p139 = pneg %p138
    // Predicated region
    $region29: #{fpn_forward.12} parent=5 // pred_check
      _
    $region30: #{fpn_forward.12} parent=5 // pred_check_branch
      %141 = sbr.rel (%p138) target = $region32
    $region31: #{fpn_forward.12} parent=5 // pred_region
      %s142 = ssub.s32 %s9, 1
      %p143 = scmp.lt.s32.totalorder %s14, 1
      %s144 = scalar_select %p143, %s14, 1
      %s145 = smul.addr %s144, 57
      %s146 = smul.addr %s145, 4
      %s147 = scalar_lea.vmem %s0, %s146
      %p148 = pneg %p35
      %p149 = pneg %p32
      %p150 = pneg %p56
      %p151 = pneg %p53
      %p152 = pneg %p77
      %p153 = pneg %p74
      %p154 = pneg %p103
      %p155 = pneg %p100
      %p156 = scmp.lt.s32.totalorder %s14, 1
      %s157 = scalar_select %p156, %s14, 1
      %s158 = smul.addr %s157, 48
      %s159 = smul.addr %s158, 4
      %s160 = scalar_lea.vmem %s3, %s159
      %p161 = scmp.lt.s32.totalorder %s14, 1
      %s162 = scalar_select %p161, %s14, 1
      %s163 = smul.addr %s162, 57
      %s164 = smul.addr %s163, 4
      %s165 = scalar_lea.vmem %s0, %s164
      %p166 = scmp.lt.s32.totalorder %s14, 1
      %s167 = scalar_select %p166, %s14, 1
      %s168 = smul.addr %s167, 48
      %s169 = smul.addr %s168, 4
      %s170 = scalar_lea.vmem %s3, %s169
      %v171 = vld [vmem:[%s165] sm:$0xf]
      %v172 = vld [vmem:[%s165 + $0x4] sm:$0xf]
      %v173 = vld [vmem:[%s165 + $0x8] sm:$0xf]
      %v174 = vld [vmem:[%s165 + $0xc] sm:$0xf]
      %v175 = vld [vmem:[%s165 + $0x10] sm:$0xf]
      %v176 = vld [vmem:[%s165 + $0x14] sm:$0xf]
      %v177 = vld [vmem:[%s165 + $0x18] sm:$0xf]
      %v178 = vld [vmem:[%s165 + $0x1c] sm:$0xf]
      %v179 = vld [vmem:[%s165 + $0x20] sm:$0xf]
      %v180 = vld [vmem:[%s165 + $0x24] sm:$0xf]
      %v181 = vld [vmem:[%s165 + $0x28] sm:$0xf]
      %v182 = vld [vmem:[%s165 + $0x2c] sm:$0xf]
      %v183 = vld [vmem:[%s165 + $0x30] sm:$0xf]
      %v184 = vld [vmem:[%s165 + $0x34] sm:$0xf]
      %v185 = vld [vmem:[%s165 + $0x38] sm:$0xf]
      %v186 = vld [vmem:[%s165 + $0x3c] sm:$0xf]
      %v187 = vld [vmem:[%s165 + $0x40] sm:$0xf]
      %v188 = vld [vmem:[%s165 + $0x44] sm:$0xf]
      %v189 = vld [vmem:[%s165 + $0x48] sm:$0xf]
      %v190 = vld [vmem:[%s165 + $0x4c] sm:$0xf]
      %v191 = vld [vmem:[%s165 + $0x50] sm:$0xf]
      %v192 = vld [vmem:[%s165 + $0x54] sm:$0xf]
      %v193 = vld [vmem:[%s165 + $0x58] sm:$0xf]
      %v194 = vld [vmem:[%s165 + $0x5c] sm:$0xf]
      %v195 = vld [vmem:[%s165 + $0x60] sm:$0xf]
      %v196 = vld [vmem:[%s165 + $0x64] sm:$0xf]
      %v197 = vld [vmem:[%s165 + $0x68] sm:$0xf]
      %v198 = vld [vmem:[%s165 + $0x6c] sm:$0xf]
      %v199 = vld [vmem:[%s165 + $0x70] sm:$0xf]
      %v200 = vld [vmem:[%s165 + $0x74] sm:$0xf]
      %v201 = vld [vmem:[%s165 + $0x78] sm:$0xf]
      %v202 = vld [vmem:[%s165 + $0x7c] sm:$0xf]
      %v203 = vld [vmem:[%s165 + $0x80] sm:$0xf]
      %v204 = vld [vmem:[%s165 + $0x84] sm:$0xf]
      %v205 = vld [vmem:[%s165 + $0x88] sm:$0xf]
      %v206 = vld [vmem:[%s165 + $0x8c] sm:$0xf]
      %v207 = vld [vmem:[%s165 + $0x90] sm:$0xf]
      %v208 = vld [vmem:[%s165 + $0x94] sm:$0xf]
      %v209 = vld [vmem:[%s165 + $0x98] sm:$0xf]
      %v210 = vld [vmem:[%s165 + $0x9c] sm:$0xf]
      %v211 = vld [vmem:[%s165 + $0xa0] sm:$0xf]
      %v212 = vld [vmem:[%s165 + $0xa4] sm:$0xf]
      %v213 = vld [vmem:[%s165 + $0xa8] sm:$0xf]
      %v214 = vld [vmem:[%s165 + $0xac] sm:$0xf]
      %v215 = vld [vmem:[%s165 + $0xb0] sm:$0xf]
      %v216 = vld [vmem:[%s165 + $0xb4] sm:$0xf]
      %v217 = vld [vmem:[%s165 + $0xb8] sm:$0xf]
      %v218 = vld [vmem:[%s165 + $0xbc] sm:$0xf]
      %v219 = vld [vmem:[%s1] sm:$0xf]
      %v220 = vld [vmem:[%s1 + $0x4] sm:$0xf]
      %v221 = vld [vmem:[%s1 + $0x8] sm:$0xf]
      %v222 = vld [vmem:[%s1 + $0xc] sm:$0xf]
      %v223 = vld [vmem:[%s1 + $0x10] sm:$0xf]
      %v224 = vld [vmem:[%s1 + $0x14] sm:$0xf]
      %v225 = vld [vmem:[%s1 + $0x18] sm:$0xf]
      %v226 = vld [vmem:[%s1 + $0x1c] sm:$0xf]
      %v227 = vld [vmem:[%s1 + $0x20] sm:$0xf]
      %v228 = vld [vmem:[%s1 + $0x24] sm:$0xf]
      %v229 = vld [vmem:[%s1 + $0x28] sm:$0xf]
      %v230 = vld [vmem:[%s1 + $0x2c] sm:$0xf]
      %v231 = vld [vmem:[%s1 + $0x30] sm:$0xf]
      %v232 = vld [vmem:[%s1 + $0x34] sm:$0xf]
      %v233 = vld [vmem:[%s1 + $0x38] sm:$0xf]
      %v234 = vld [vmem:[%s1 + $0x3c] sm:$0xf]
      %v235 = vld [vmem:[%s165 + $0xc0] sm:$0x1]
      %s236 = scalar_lea.vmem %s1, 64
      %v237 = vld [vmem:[%s236] sm:$0xf]
      %v238 = vld [vmem:[%s236 + $0x4] sm:$0xf]
      %v239 = vld [vmem:[%s236 + $0x8] sm:$0xf]
      %v240 = vld [vmem:[%s236 + $0xc] sm:$0xf]
      %v241 = vld [vmem:[%s236 + $0x10] sm:$0xf]
      %v242 = vld [vmem:[%s236 + $0x14] sm:$0xf]
      %v243 = vld [vmem:[%s236 + $0x18] sm:$0xf]
      %v244 = vld [vmem:[%s236 + $0x1c] sm:$0xf]
      %v245 = vld [vmem:[%s236 + $0x20] sm:$0xf]
      %v246 = vld [vmem:[%s236 + $0x24] sm:$0xf]
      %v247 = vld [vmem:[%s236 + $0x28] sm:$0xf]
      %v248 = vld [vmem:[%s236 + $0x2c] sm:$0xf]
      %v249 = vld [vmem:[%s236 + $0x30] sm:$0xf]
      %v250 = vld [vmem:[%s236 + $0x34] sm:$0xf]
      %v251 = vld [vmem:[%s236 + $0x38] sm:$0xf]
      %v252 = vld [vmem:[%s236 + $0x3c] sm:$0xf]
      %v302 = vunpack.c.l.b16 %v171
      %v303 = vunpack.c.l.b16 %v172
      %v304 = vunpack.c.l.b16 %v173
      %v305 = vunpack.c.l.b16 %v174
      %v306 = vunpack.c.l.b16 %v175
      %v307 = vunpack.c.l.b16 %v176
      %v308 = vunpack.c.l.b16 %v177
      %v309 = vunpack.c.l.b16 %v178
      %v310 = vunpack.c.l.b16 %v179
      %v311 = vunpack.c.l.b16 %v180
      %v312 = vunpack.c.l.b16 %v181
      %v313 = vunpack.c.l.b16 %v182
      %v314 = vunpack.c.l.b16 %v183
      %v315 = vunpack.c.l.b16 %v184
      %v316 = vunpack.c.l.b16 %v185
      %v317 = vunpack.c.l.b16 %v186
      %v318 = vunpack.c.l.b16 %v187
      %v319 = vunpack.c.l.b16 %v188
      %v320 = vunpack.c.l.b16 %v189
      %v321 = vunpack.c.l.b16 %v190
      %v322 = vunpack.c.l.b16 %v191
      %v323 = vunpack.c.l.b16 %v192
      %v324 = vunpack.c.l.b16 %v193
      %v325 = vunpack.c.l.b16 %v194
      %v326 = vunpack.c.l.b16 %v195
      %v327 = vunpack.c.l.b16 %v196
      %v328 = vunpack.c.l.b16 %v197
      %v329 = vunpack.c.l.b16 %v198
      %v330 = vunpack.c.l.b16 %v199
      %v331 = vunpack.c.l.b16 %v200
      %v332 = vunpack.c.l.b16 %v201
      %v333 = vunpack.c.l.b16 %v202
      %v334 = vunpack.c.l.b16 %v203
      %v335 = vunpack.c.l.b16 %v204
      %v336 = vunpack.c.l.b16 %v205
      %v337 = vunpack.c.l.b16 %v206
      %v338 = vunpack.c.l.b16 %v207
      %v339 = vunpack.c.l.b16 %v208
      %v340 = vunpack.c.l.b16 %v209
      %v341 = vunpack.c.l.b16 %v210
      %v342 = vunpack.c.l.b16 %v211
      %v343 = vunpack.c.l.b16 %v212
      %v344 = vunpack.c.l.b16 %v213
      %v345 = vunpack.c.l.b16 %v214
      %v346 = vunpack.c.l.b16 %v215
      %v347 = vunpack.c.l.b16 %v216
      %v348 = vunpack.c.l.b16 %v217
      %v349 = vunpack.c.l.b16 %v218
      %v350 = vunpack.c.l.b16 %v235
      %v351 = vpack.c.b16 %v303, %v302
      %v352 = vpack.c.b16 %v305, %v304
      %v353 = vpack.c.b16 %v307, %v306
      %v354 = vpack.c.b16 %v309, %v308
      %v355 = vpack.c.b16 %v311, %v310
      %v356 = vpack.c.b16 %v313, %v312
      %v357 = vpack.c.b16 %v315, %v314
      %v358 = vpack.c.b16 %v317, %v316
      %v359 = vpack.c.b16 %v319, %v318
      %v360 = vpack.c.b16 %v321, %v320
      %v361 = vpack.c.b16 %v323, %v322
      %v362 = vpack.c.b16 %v325, %v324
      %v363 = vpack.c.b16 %v327, %v326
      %v364 = vpack.c.b16 %v329, %v328
      %v365 = vpack.c.b16 %v331, %v330
      %v366 = vpack.c.b16 %v333, %v332
      %v367 = vpack.c.b16 %v335, %v334
      %v368 = vpack.c.b16 %v337, %v336
      %v369 = vpack.c.b16 %v339, %v338
      %v370 = vpack.c.b16 %v341, %v340
      %v371 = vpack.c.b16 %v343, %v342
      %v372 = vpack.c.b16 %v345, %v344
      %v373 = vpack.c.b16 %v347, %v346
      %v374 = vpack.c.b16 %v349, %v348
      %v375 = vpack.c.b16 %v350, %v350
      %vm376 = vsmask.f32 7424
      %v378 = vshrl.u32 %v351, 16
      %v380 = vshll.u32 %v351, 16
      %v382 = vrot.slane %v380, 1
      %v383 = vor.u32 %v378, %v382
      %v385 = vshll.u32 %v352, 16
      %v387 = vrot.slane %v385, 1
      %v388 = vsel %vm376, %v383, %v387
      %v389 = vshrl.u32 %v352, 16
      %v391 = vor.u32 %v389, %v387
      %v393 = vshll.u32 %v353, 16
      %v395 = vrot.slane %v393, 1
      %v396 = vsel %vm376, %v391, %v395
      %v397 = vshrl.u32 %v353, 16
      %v399 = vor.u32 %v397, %v395
      %v401 = vshll.u32 %v354, 16
      %v403 = vrot.slane %v401, 1
      %v404 = vsel %vm376, %v399, %v403
      %v405 = vshrl.u32 %v354, 16
      %v407 = vor.u32 %v405, %v403
      %v409 = vshll.u32 %v355, 16
      %v411 = vrot.slane %v409, 1
      %v412 = vsel %vm376, %v407, %v411
      %v413 = vshrl.u32 %v355, 16
      %v415 = vor.u32 %v413, %v411
      %v417 = vshll.u32 %v356, 16
      %v419 = vrot.slane %v417, 1
      %v420 = vsel %vm376, %v415, %v419
      %v421 = vshrl.u32 %v356, 16
      %v423 = vor.u32 %v421, %v419
      %v425 = vshll.u32 %v357, 16
      %v427 = vrot.slane %v425, 1
      %v428 = vsel %vm376, %v423, %v427
      %v429 = vshrl.u32 %v357, 16
      %v431 = vor.u32 %v429, %v427
      %v433 = vshll.u32 %v358, 16
      %v435 = vrot.slane %v433, 1
      %v436 = vsel %vm376, %v431, %v435
      %v437 = vshrl.u32 %v358, 16
      %v439 = vor.u32 %v437, %v435
      %v441 = vshll.u32 %v359, 16
      %v443 = vrot.slane %v441, 1
      %v444 = vsel %vm376, %v439, %v443
      %v445 = vshrl.u32 %v359, 16
      %v447 = vor.u32 %v445, %v443
      %v449 = vshll.u32 %v360, 16
      %v451 = vrot.slane %v449, 1
      %v452 = vsel %vm376, %v447, %v451
      %v453 = vshrl.u32 %v360, 16
      %v455 = vor.u32 %v453, %v451
      %v457 = vshll.u32 %v361, 16
      %v459 = vrot.slane %v457, 1
      %v460 = vsel %vm376, %v455, %v459
      %v461 = vshrl.u32 %v361, 16
      %v463 = vor.u32 %v461, %v459
      %v465 = vshll.u32 %v362, 16
      %v467 = vrot.slane %v465, 1
      %v468 = vsel %vm376, %v463, %v467
      %v469 = vshrl.u32 %v362, 16
      %v471 = vor.u32 %v469, %v467
      %v473 = vshll.u32 %v363, 16
      %v475 = vrot.slane %v473, 1
      %v476 = vsel %vm376, %v471, %v475
      %v477 = vshrl.u32 %v363, 16
      %v479 = vor.u32 %v477, %v475
      %v481 = vshll.u32 %v364, 16
      %v483 = vrot.slane %v481, 1
      %v484 = vsel %vm376, %v479, %v483
      %v485 = vshrl.u32 %v364, 16
      %v487 = vor.u32 %v485, %v483
      %v489 = vshll.u32 %v365, 16
      %v491 = vrot.slane %v489, 1
      %v492 = vsel %vm376, %v487, %v491
      %v493 = vshrl.u32 %v365, 16
      %v495 = vor.u32 %v493, %v491
      %v497 = vshll.u32 %v366, 16
      %v499 = vrot.slane %v497, 1
      %v500 = vsel %vm376, %v495, %v499
      %v501 = vshrl.u32 %v366, 16
      %v503 = vor.u32 %v501, %v499
      %v505 = vshll.u32 %v367, 16
      %v507 = vrot.slane %v505, 1
      %v508 = vsel %vm376, %v503, %v507
      %v509 = vshrl.u32 %v367, 16
      %v511 = vor.u32 %v509, %v507
      %v513 = vshll.u32 %v368, 16
      %v515 = vrot.slane %v513, 1
      %v516 = vsel %vm376, %v511, %v515
      %v517 = vshrl.u32 %v368, 16
      %v519 = vor.u32 %v517, %v515
      %v521 = vshll.u32 %v369, 16
      %v523 = vrot.slane %v521, 1
      %v524 = vsel %vm376, %v519, %v523
      %v525 = vshrl.u32 %v369, 16
      %v527 = vor.u32 %v525, %v523
      %v529 = vshll.u32 %v370, 16
      %v531 = vrot.slane %v529, 1
      %v532 = vsel %vm376, %v527, %v531
      %v533 = vshrl.u32 %v370, 16
      %v535 = vor.u32 %v533, %v531
      %v537 = vshll.u32 %v371, 16
      %v539 = vrot.slane %v537, 1
      %v540 = vsel %vm376, %v535, %v539
      %v541 = vshrl.u32 %v371, 16
      %v543 = vor.u32 %v541, %v539
      %v545 = vshll.u32 %v372, 16
      %v547 = vrot.slane %v545, 1
      %v548 = vsel %vm376, %v543, %v547
      %v549 = vshrl.u32 %v372, 16
      %v551 = vor.u32 %v549, %v547
      %v553 = vshll.u32 %v373, 16
      %v555 = vrot.slane %v553, 1
      %v556 = vsel %vm376, %v551, %v555
      %v557 = vshrl.u32 %v373, 16
      %v559 = vor.u32 %v557, %v555
      %v561 = vshll.u32 %v374, 16
      %v563 = vrot.slane %v561, 1
      %v564 = vsel %vm376, %v559, %v563
      %v565 = vshrl.u32 %v374, 16
      %v567 = vor.u32 %v565, %v563
      %v569 = vshll.u32 %v375, 16
      %v571 = vrot.slane %v569, 1
      %v572 = vsel %vm376, %v567, %v571
      %v613 = vunpack.c.l.b16 %v237
      %v614 = vunpack.c.l.b16 %v238
      %v615 = vunpack.c.l.b16 %v239
      %v616 = vunpack.c.l.b16 %v240
      %v617 = vunpack.c.l.b16 %v241
      %v618 = vunpack.c.l.b16 %v242
      %v619 = vunpack.c.l.b16 %v243
      %v620 = vunpack.c.l.b16 %v244
      %v621 = vunpack.c.l.b16 %v245
      %v622 = vunpack.c.l.b16 %v246
      %v623 = vunpack.c.l.b16 %v247
      %v624 = vunpack.c.l.b16 %v248
      %v625 = vunpack.c.l.b16 %v249
      %v626 = vunpack.c.l.b16 %v250
      %v627 = vunpack.c.l.b16 %v251
      %v628 = vunpack.c.l.b16 %v252
      %v629 = vpack.c.b16 %v614, %v613
      %v630 = vpack.c.b16 %v616, %v615
      %v631 = vpack.c.b16 %v618, %v617
      %v632 = vpack.c.b16 %v620, %v619
      %v633 = vpack.c.b16 %v622, %v621
      %v634 = vpack.c.b16 %v624, %v623
      %v635 = vpack.c.b16 %v626, %v625
      %v636 = vpack.c.b16 %v628, %v627
      %645 = vmatpush.bf16.msra.mxu0 %v636
      %646 = vmatpush.bf16.msra.mxu0 %v635
      %647 = vmatpush.bf16.msra.mxu0 %v634
      %648 = vmatpush.bf16.msra.mxu0 %v633
      %649 = vmatpush.bf16.msra.mxu0 %v632
      %650 = vmatpush.bf16.msra.mxu0 %v631
      %651 = vmatpush.bf16.msra.mxu0 %v630
      %652 = vmatpush.bf16.msra.mxu0 %v629
      %653 = vmatmul.bf16.gmra.mxu0 %v388
      %v654 = vpop.f32.mrf.mxu0
      %v655 = vadd.f32 0.0, %v654
      %v656 = vpop.f32.mrf.mxu0
      %v657 = vadd.f32 0.0, %v656
      %658 = vmatmul.bf16.gmra.mxu0 %v396
      %v659 = vpop.f32.mrf.mxu0
      %v660 = vadd.f32 0.0, %v659
      %v661 = vpop.f32.mrf.mxu0
      %v662 = vadd.f32 0.0, %v661
      %663 = vmatmul.bf16.gmra.mxu0 %v404
      %v664 = vpop.f32.mrf.mxu0
      %v665 = vadd.f32 0.0, %v664
      %v666 = vpop.f32.mrf.mxu0
      %v667 = vadd.f32 0.0, %v666
      %668 = vmatmul.bf16.gmra.mxu0 %v412
      %v669 = vpop.f32.mrf.mxu0
      %v670 = vadd.f32 0.0, %v669
      %v671 = vpop.f32.mrf.mxu0
      %v672 = vadd.f32 0.0, %v671
      %673 = vmatmul.bf16.gmra.mxu0 %v420
      %v674 = vpop.f32.mrf.mxu0
      %v675 = vadd.f32 0.0, %v674
      %v676 = vpop.f32.mrf.mxu0
      %v677 = vadd.f32 0.0, %v676
      %678 = vmatmul.bf16.gmra.mxu0 %v428
      %v679 = vpop.f32.mrf.mxu0
      %v680 = vadd.f32 0.0, %v679
      %v681 = vpop.f32.mrf.mxu0
      %v682 = vadd.f32 0.0, %v681
      %683 = vmatmul.bf16.gmra.mxu0 %v436
      %v684 = vpop.f32.mrf.mxu0
      %v685 = vadd.f32 0.0, %v684
      %v686 = vpop.f32.mrf.mxu0
      %v687 = vadd.f32 0.0, %v686
      %688 = vmatmul.bf16.gmra.mxu0 %v444
      %v689 = vpop.f32.mrf.mxu0
      %v690 = vadd.f32 0.0, %v689
      %v691 = vpop.f32.mrf.mxu0
      %v692 = vadd.f32 0.0, %v691
      %693 = vmatmul.bf16.gmra.mxu0 %v452
      %v694 = vpop.f32.mrf.mxu0
      %v695 = vadd.f32 0.0, %v694
      %v696 = vpop.f32.mrf.mxu0
      %v697 = vadd.f32 0.0, %v696
      %698 = vmatmul.bf16.gmra.mxu0 %v460
      %v699 = vpop.f32.mrf.mxu0
      %v700 = vadd.f32 0.0, %v699
      %v701 = vpop.f32.mrf.mxu0
      %v702 = vadd.f32 0.0, %v701
      %703 = vmatmul.bf16.gmra.mxu0 %v468
      %v704 = vpop.f32.mrf.mxu0
      %v705 = vadd.f32 0.0, %v704
      %v706 = vpop.f32.mrf.mxu0
      %v707 = vadd.f32 0.0, %v706
      %708 = vmatmul.bf16.gmra.mxu0 %v476
      %v709 = vpop.f32.mrf.mxu0
      %v710 = vadd.f32 0.0, %v709
      %v711 = vpop.f32.mrf.mxu0
      %v712 = vadd.f32 0.0, %v711
      %713 = vmatmul.bf16.gmra.mxu0 %v484
      %v714 = vpop.f32.mrf.mxu0
      %v715 = vadd.f32 0.0, %v714
      %v716 = vpop.f32.mrf.mxu0
      %v717 = vadd.f32 0.0, %v716
      %718 = vmatmul.bf16.gmra.mxu0 %v492
      %v719 = vpop.f32.mrf.mxu0
      %v720 = vadd.f32 0.0, %v719
      %v721 = vpop.f32.mrf.mxu0
      %v722 = vadd.f32 0.0, %v721
      %723 = vmatmul.bf16.gmra.mxu0 %v500
      %v724 = vpop.f32.mrf.mxu0
      %v725 = vadd.f32 0.0, %v724
      %v726 = vpop.f32.mrf.mxu0
      %v727 = vadd.f32 0.0, %v726
      %728 = vmatmul.bf16.gmra.mxu0 %v508
      %v729 = vpop.f32.mrf.mxu0
      %v730 = vadd.f32 0.0, %v729
      %v731 = vpop.f32.mrf.mxu0
      %v732 = vadd.f32 0.0, %v731
      %733 = vmatmul.bf16.gmra.mxu0 %v516
      %v734 = vpop.f32.mrf.mxu0
      %v735 = vadd.f32 0.0, %v734
      %v736 = vpop.f32.mrf.mxu0
      %v737 = vadd.f32 0.0, %v736
      %738 = vmatmul.bf16.gmra.mxu0 %v524
      %v739 = vpop.f32.mrf.mxu0
      %v740 = vadd.f32 0.0, %v739
      %v741 = vpop.f32.mrf.mxu0
      %v742 = vadd.f32 0.0, %v741
      %743 = vmatmul.bf16.gmra.mxu0 %v532
      %v744 = vpop.f32.mrf.mxu0
      %v745 = vadd.f32 0.0, %v744
      %v746 = vpop.f32.mrf.mxu0
      %v747 = vadd.f32 0.0, %v746
      %748 = vmatmul.bf16.gmra.mxu0 %v540
      %v749 = vpop.f32.mrf.mxu0
      %v750 = vadd.f32 0.0, %v749
      %v751 = vpop.f32.mrf.mxu0
      %v752 = vadd.f32 0.0, %v751
      %753 = vmatmul.bf16.gmra.mxu0 %v548
      %v754 = vpop.f32.mrf.mxu0
      %v755 = vadd.f32 0.0, %v754
      %v756 = vpop.f32.mrf.mxu0
      %v757 = vadd.f32 0.0, %v756
      %758 = vmatmul.bf16.gmra.mxu0 %v556
      %v759 = vpop.f32.mrf.mxu0
      %v760 = vadd.f32 0.0, %v759
      %v761 = vpop.f32.mrf.mxu0
      %v762 = vadd.f32 0.0, %v761
      %763 = vmatmul.bf16.gmra.mxu0 %v564
      %v764 = vpop.f32.mrf.mxu0
      %v765 = vadd.f32 0.0, %v764
      %v766 = vpop.f32.mrf.mxu0
      %v767 = vadd.f32 0.0, %v766
      %768 = vmatmul.bf16.gmra.mxu0 %v572
      %v769 = vpop.f32.mrf.mxu0
      %v770 = vadd.f32 0.0, %v769
      %v771 = vpop.f32.mrf.mxu0
      %v772 = vadd.f32 0.0, %v771
      %773 = vdwg.mxu0
      %v814 = vunpack.c.l.b16 %v219
      %v815 = vunpack.c.l.b16 %v220
      %v816 = vunpack.c.l.b16 %v221
      %v817 = vunpack.c.l.b16 %v222
      %v818 = vunpack.c.l.b16 %v223
      %v819 = vunpack.c.l.b16 %v224
      %v820 = vunpack.c.l.b16 %v225
      %v821 = vunpack.c.l.b16 %v226
      %v822 = vunpack.c.l.b16 %v227
      %v823 = vunpack.c.l.b16 %v228
      %v824 = vunpack.c.l.b16 %v229
      %v825 = vunpack.c.l.b16 %v230
      %v826 = vunpack.c.l.b16 %v231
      %v827 = vunpack.c.l.b16 %v232
      %v828 = vunpack.c.l.b16 %v233
      %v829 = vunpack.c.l.b16 %v234
      %v830 = vpack.c.b16 %v815, %v814
      %v831 = vpack.c.b16 %v817, %v816
      %v832 = vpack.c.b16 %v819, %v818
      %v833 = vpack.c.b16 %v821, %v820
      %v834 = vpack.c.b16 %v823, %v822
      %v835 = vpack.c.b16 %v825, %v824
      %v836 = vpack.c.b16 %v827, %v826
      %v837 = vpack.c.b16 %v829, %v828
      %846 = vmatpush.bf16.msra.mxu0 %v837
      %847 = vmatpush.bf16.msra.mxu0 %v836
      %848 = vmatpush.bf16.msra.mxu0 %v835
      %849 = vmatpush.bf16.msra.mxu0 %v834
      %850 = vmatpush.bf16.msra.mxu0 %v833
      %851 = vmatpush.bf16.msra.mxu0 %v832
      %852 = vmatpush.bf16.msra.mxu0 %v831
      %853 = vmatpush.bf16.msra.mxu0 %v830
      %854 = vmatmul.bf16.gmra.mxu0 %v351
      %v855 = vpop.f32.mrf.mxu0
      %v856 = vadd.f32 %v655, %v855
      %v857 = vpop.f32.mrf.mxu0
      %v858 = vadd.f32 %v657, %v857
      %859 = vmatmul.bf16.gmra.mxu0 %v352
      %v860 = vpop.f32.mrf.mxu0
      %v861 = vadd.f32 %v660, %v860
      %v862 = vpop.f32.mrf.mxu0
      %v863 = vadd.f32 %v662, %v862
      %864 = vmatmul.bf16.gmra.mxu0 %v353
      %v865 = vpop.f32.mrf.mxu0
      %v866 = vadd.f32 %v665, %v865
      %v867 = vpop.f32.mrf.mxu0
      %v868 = vadd.f32 %v667, %v867
      %869 = vmatmul.bf16.gmra.mxu0 %v354
      %v870 = vpop.f32.mrf.mxu0
      %v871 = vadd.f32 %v670, %v870
      %v872 = vpop.f32.mrf.mxu0
      %v873 = vadd.f32 %v672, %v872
      %874 = vmatmul.bf16.gmra.mxu0 %v355
      %v875 = vpop.f32.mrf.mxu0
      %v876 = vadd.f32 %v675, %v875
      %v877 = vpop.f32.mrf.mxu0
      %v878 = vadd.f32 %v677, %v877
      %879 = vmatmul.bf16.gmra.mxu0 %v356
      %v880 = vpop.f32.mrf.mxu0
      %v881 = vadd.f32 %v680, %v880
      %v882 = vpop.f32.mrf.mxu0
      %v883 = vadd.f32 %v682, %v882
      %884 = vmatmul.bf16.gmra.mxu0 %v357
      %v885 = vpop.f32.mrf.mxu0
      %v886 = vadd.f32 %v685, %v885
      %v887 = vpop.f32.mrf.mxu0
      %v888 = vadd.f32 %v687, %v887
      %889 = vmatmul.bf16.gmra.mxu0 %v358
      %v890 = vpop.f32.mrf.mxu0
      %v891 = vadd.f32 %v690, %v890
      %v892 = vpop.f32.mrf.mxu0
      %v893 = vadd.f32 %v692, %v892
      %894 = vmatmul.bf16.gmra.mxu0 %v359
      %v895 = vpop.f32.mrf.mxu0
      %v896 = vadd.f32 %v695, %v895
      %v897 = vpop.f32.mrf.mxu0
      %v898 = vadd.f32 %v697, %v897
      %899 = vmatmul.bf16.gmra.mxu0 %v360
      %v900 = vpop.f32.mrf.mxu0
      %v901 = vadd.f32 %v700, %v900
      %v902 = vpop.f32.mrf.mxu0
      %v903 = vadd.f32 %v702, %v902
      %904 = vmatmul.bf16.gmra.mxu0 %v361
      %v905 = vpop.f32.mrf.mxu0
      %v906 = vadd.f32 %v705, %v905
      %v907 = vpop.f32.mrf.mxu0
      %v908 = vadd.f32 %v707, %v907
      %909 = vmatmul.bf16.gmra.mxu0 %v362
      %v910 = vpop.f32.mrf.mxu0
      %v911 = vadd.f32 %v710, %v910
      %v912 = vpop.f32.mrf.mxu0
      %v913 = vadd.f32 %v712, %v912
      %914 = vmatmul.bf16.gmra.mxu0 %v363
      %v915 = vpop.f32.mrf.mxu0
      %v916 = vadd.f32 %v715, %v915
      %v917 = vpop.f32.mrf.mxu0
      %v918 = vadd.f32 %v717, %v917
      %919 = vmatmul.bf16.gmra.mxu0 %v364
      %v920 = vpop.f32.mrf.mxu0
      %v921 = vadd.f32 %v720, %v920
      %v922 = vpop.f32.mrf.mxu0
      %v923 = vadd.f32 %v722, %v922
      %924 = vmatmul.bf16.gmra.mxu0 %v365
      %v925 = vpop.f32.mrf.mxu0
      %v926 = vadd.f32 %v725, %v925
      %v927 = vpop.f32.mrf.mxu0
      %v928 = vadd.f32 %v727, %v927
      %929 = vmatmul.bf16.gmra.mxu0 %v366
      %v930 = vpop.f32.mrf.mxu0
      %v931 = vadd.f32 %v730, %v930
      %v932 = vpop.f32.mrf.mxu0
      %v933 = vadd.f32 %v732, %v932
      %934 = vmatmul.bf16.gmra.mxu0 %v367
      %v935 = vpop.f32.mrf.mxu0
      %v936 = vadd.f32 %v735, %v935
      %v937 = vpop.f32.mrf.mxu0
      %v938 = vadd.f32 %v737, %v937
      %939 = vmatmul.bf16.gmra.mxu0 %v368
      %v940 = vpop.f32.mrf.mxu0
      %v941 = vadd.f32 %v740, %v940
      %v942 = vpop.f32.mrf.mxu0
      %v943 = vadd.f32 %v742, %v942
      %944 = vmatmul.bf16.gmra.mxu0 %v369
      %v945 = vpop.f32.mrf.mxu0
      %v946 = vadd.f32 %v745, %v945
      %v947 = vpop.f32.mrf.mxu0
      %v948 = vadd.f32 %v747, %v947
      %949 = vmatmul.bf16.gmra.mxu0 %v370
      %v950 = vpop.f32.mrf.mxu0
      %v951 = vadd.f32 %v750, %v950
      %v952 = vpop.f32.mrf.mxu0
      %v953 = vadd.f32 %v752, %v952
      %954 = vmatmul.bf16.gmra.mxu0 %v371
      %v955 = vpop.f32.mrf.mxu0
      %v956 = vadd.f32 %v755, %v955
      %v957 = vpop.f32.mrf.mxu0
      %v958 = vadd.f32 %v757, %v957
      %959 = vmatmul.bf16.gmra.mxu0 %v372
      %v960 = vpop.f32.mrf.mxu0
      %v961 = vadd.f32 %v760, %v960
      %v962 = vpop.f32.mrf.mxu0
      %v963 = vadd.f32 %v762, %v962
      %964 = vmatmul.bf16.gmra.mxu0 %v373
      %v965 = vpop.f32.mrf.mxu0
      %v966 = vadd.f32 %v765, %v965
      %v967 = vpop.f32.mrf.mxu0
      %v968 = vadd.f32 %v767, %v967
      %969 = vmatmul.bf16.gmra.mxu0 %v374
      %v970 = vpop.f32.mrf.mxu0
      %v971 = vadd.f32 %v770, %v970
      %v972 = vpop.f32.mrf.mxu0
      %v973 = vadd.f32 %v772, %v972
      %974 = vdwg.mxu0
      %v975 = vld [vmem:[%s165] sm:$0xe]
      %s976 = scalar_lea.vmem %s1, 128
      %v977 = vld [vmem:[%s976] sm:$0xf]
      %v978 = vld [vmem:[%s976 + $0x4] sm:$0xf]
      %v979 = vld [vmem:[%s976 + $0x8] sm:$0xf]
      %v980 = vld [vmem:[%s976 + $0xc] sm:$0xf]
      %v981 = vld [vmem:[%s976 + $0x10] sm:$0xf]
      %v982 = vld [vmem:[%s976 + $0x14] sm:$0xf]
      %v983 = vld [vmem:[%s976 + $0x18] sm:$0xf]
      %v984 = vld [vmem:[%s976 + $0x1c] sm:$0xf]
      %v985 = vld [vmem:[%s976 + $0x20] sm:$0xf]
      %v986 = vld [vmem:[%s976 + $0x24] sm:$0xf]
      %v987 = vld [vmem:[%s976 + $0x28] sm:$0xf]
      %v988 = vld [vmem:[%s976 + $0x2c] sm:$0xf]
      %v989 = vld [vmem:[%s976 + $0x30] sm:$0xf]
      %v990 = vld [vmem:[%s976 + $0x34] sm:$0xf]
      %v991 = vld [vmem:[%s976 + $0x38] sm:$0xf]
      %v992 = vld [vmem:[%s976 + $0x3c] sm:$0xf]
      %v994 = vunpack.c.l.b16 %v975
      %v995 = vpack.c.b16 %v303, %v994
      %vm996 = vcmask 1046528
      %v997 = vrot.slane %v995, 1
      %v998 = vrot.slane %v352, 1
      %v999 = vsel %vm996, %v997, %v998
      %v1000 = vrot.slane %v353, 1
      %v1001 = vsel %vm996, %v998, %v1000
      %v1002 = vrot.slane %v354, 1
      %v1003 = vsel %vm996, %v1000, %v1002
      %v1004 = vrot.slane %v355, 1
      %v1005 = vsel %vm996, %v1002, %v1004
      %v1006 = vrot.slane %v356, 1
      %v1007 = vsel %vm996, %v1004, %v1006
      %v1008 = vrot.slane %v357, 1
      %v1009 = vsel %vm996, %v1006, %v1008
      %v1010 = vrot.slane %v358, 1
      %v1011 = vsel %vm996, %v1008, %v1010
      %v1012 = vrot.slane %v359, 1
      %v1013 = vsel %vm996, %v1010, %v1012
      %v1014 = vrot.slane %v360, 1
      %v1015 = vsel %vm996, %v1012, %v1014
      %v1016 = vrot.slane %v361, 1
      %v1017 = vsel %vm996, %v1014, %v1016
      %v1018 = vrot.slane %v362, 1
      %v1019 = vsel %vm996, %v1016, %v1018
      %v1020 = vrot.slane %v363, 1
      %v1021 = vsel %vm996, %v1018, %v1020
      %v1022 = vrot.slane %v364, 1
      %v1023 = vsel %vm996, %v1020, %v1022
      %v1024 = vrot.slane %v365, 1
      %v1025 = vsel %vm996, %v1022, %v1024
      %v1026 = vrot.slane %v366, 1
      %v1027 = vsel %vm996, %v1024, %v1026
      %v1028 = vrot.slane %v367, 1
      %v1029 = vsel %vm996, %v1026, %v1028
      %v1030 = vrot.slane %v368, 1
      %v1031 = vsel %vm996, %v1028, %v1030
      %v1032 = vrot.slane %v369, 1
      %v1033 = vsel %vm996, %v1030, %v1032
      %v1034 = vrot.slane %v370, 1
      %v1035 = vsel %vm996, %v1032, %v1034
      %v1036 = vrot.slane %v371, 1
      %v1037 = vsel %vm996, %v1034, %v1036
      %v1038 = vrot.slane %v372, 1
      %v1039 = vsel %vm996, %v1036, %v1038
      %v1040 = vrot.slane %v373, 1
      %v1041 = vsel %vm996, %v1038, %v1040
      %v1042 = vrot.slane %v374, 1
      %v1043 = vsel %vm996, %v1040, %v1042
      %v1044 = vrot.slane %v375, 1
      %v1045 = vsel %vm996, %v1042, %v1044
      %v1086 = vunpack.c.l.b16 %v977
      %v1087 = vunpack.c.l.b16 %v978
      %v1088 = vunpack.c.l.b16 %v979
      %v1089 = vunpack.c.l.b16 %v980
      %v1090 = vunpack.c.l.b16 %v981
      %v1091 = vunpack.c.l.b16 %v982
      %v1092 = vunpack.c.l.b16 %v983
      %v1093 = vunpack.c.l.b16 %v984
      %v1094 = vunpack.c.l.b16 %v985
      %v1095 = vunpack.c.l.b16 %v986
      %v1096 = vunpack.c.l.b16 %v987
      %v1097 = vunpack.c.l.b16 %v988
      %v1098 = vunpack.c.l.b16 %v989
      %v1099 = vunpack.c.l.b16 %v990
      %v1100 = vunpack.c.l.b16 %v991
      %v1101 = vunpack.c.l.b16 %v992
      %v1102 = vpack.c.b16 %v1087, %v1086
      %v1103 = vpack.c.b16 %v1089, %v1088
      %v1104 = vpack.c.b16 %v1091, %v1090
      %v1105 = vpack.c.b16 %v1093, %v1092
      %v1106 = vpack.c.b16 %v1095, %v1094
      %v1107 = vpack.c.b16 %v1097, %v1096
      %v1108 = vpack.c.b16 %v1099, %v1098
      %v1109 = vpack.c.b16 %v1101, %v1100
      %1118 = vmatpush.bf16.msra.mxu0 %v1109
      %1119 = vmatpush.bf16.msra.mxu0 %v1108
      %1120 = vmatpush.bf16.msra.mxu0 %v1107
      %1121 = vmatpush.bf16.msra.mxu0 %v1106
      %1122 = vmatpush.bf16.msra.mxu0 %v1105
      %1123 = vmatpush.bf16.msra.mxu0 %v1104
      %1124 = vmatpush.bf16.msra.mxu0 %v1103
      %1125 = vmatpush.bf16.msra.mxu0 %v1102
      %1126 = vmatmul.bf16.gmra.mxu0 %v999
      %v1127 = vpop.f32.mrf.mxu0
      %v1128 = vadd.f32 0.0, %v1127
      %v1129 = vpop.f32.mrf.mxu0
      %v1130 = vadd.f32 0.0, %v1129
      %1131 = vmatmul.bf16.gmra.mxu0 %v1001
      %v1132 = vpop.f32.mrf.mxu0
      %v1133 = vadd.f32 0.0, %v1132
      %v1134 = vpop.f32.mrf.mxu0
      %v1135 = vadd.f32 0.0, %v1134
      %1136 = vmatmul.bf16.gmra.mxu0 %v1003
      %v1137 = vpop.f32.mrf.mxu0
      %v1138 = vadd.f32 0.0, %v1137
      %v1139 = vpop.f32.mrf.mxu0
      %v1140 = vadd.f32 0.0, %v1139
      %1141 = vmatmul.bf16.gmra.mxu0 %v1005
      %v1142 = vpop.f32.mrf.mxu0
      %v1143 = vadd.f32 0.0, %v1142
      %v1144 = vpop.f32.mrf.mxu0
      %v1145 = vadd.f32 0.0, %v1144
      %1146 = vmatmul.bf16.gmra.mxu0 %v1007
      %v1147 = vpop.f32.mrf.mxu0
      %v1148 = vadd.f32 0.0, %v1147
      %v1149 = vpop.f32.mrf.mxu0
      %v1150 = vadd.f32 0.0, %v1149
      %1151 = vmatmul.bf16.gmra.mxu0 %v1009
      %v1152 = vpop.f32.mrf.mxu0
      %v1153 = vadd.f32 0.0, %v1152
      %v1154 = vpop.f32.mrf.mxu0
      %v1155 = vadd.f32 0.0, %v1154
      %1156 = vmatmul.bf16.gmra.mxu0 %v1011
      %v1157 = vpop.f32.mrf.mxu0
      %v1158 = vadd.f32 0.0, %v1157
      %v1159 = vpop.f32.mrf.mxu0
      %v1160 = vadd.f32 0.0, %v1159
      %1161 = vmatmul.bf16.gmra.mxu0 %v1013
      %v1162 = vpop.f32.mrf.mxu0
      %v1163 = vadd.f32 0.0, %v1162
      %v1164 = vpop.f32.mrf.mxu0
      %v1165 = vadd.f32 0.0, %v1164
      %1166 = vmatmul.bf16.gmra.mxu0 %v1015
      %v1167 = vpop.f32.mrf.mxu0
      %v1168 = vadd.f32 0.0, %v1167
      %v1169 = vpop.f32.mrf.mxu0
      %v1170 = vadd.f32 0.0, %v1169
      %1171 = vmatmul.bf16.gmra.mxu0 %v1017
      %v1172 = vpop.f32.mrf.mxu0
      %v1173 = vadd.f32 0.0, %v1172
      %v1174 = vpop.f32.mrf.mxu0
      %v1175 = vadd.f32 0.0, %v1174
      %1176 = vmatmul.bf16.gmra.mxu0 %v1019
      %v1177 = vpop.f32.mrf.mxu0
      %v1178 = vadd.f32 0.0, %v1177
      %v1179 = vpop.f32.mrf.mxu0
      %v1180 = vadd.f32 0.0, %v1179
      %1181 = vmatmul.bf16.gmra.mxu0 %v1021
      %v1182 = vpop.f32.mrf.mxu0
      %v1183 = vadd.f32 0.0, %v1182
      %v1184 = vpop.f32.mrf.mxu0
      %v1185 = vadd.f32 0.0, %v1184
      %1186 = vmatmul.bf16.gmra.mxu0 %v1023
      %v1187 = vpop.f32.mrf.mxu0
      %v1188 = vadd.f32 0.0, %v1187
      %v1189 = vpop.f32.mrf.mxu0
      %v1190 = vadd.f32 0.0, %v1189
      %1191 = vmatmul.bf16.gmra.mxu0 %v1025
      %v1192 = vpop.f32.mrf.mxu0
      %v1193 = vadd.f32 0.0, %v1192
      %v1194 = vpop.f32.mrf.mxu0
      %v1195 = vadd.f32 0.0, %v1194
      %1196 = vmatmul.bf16.gmra.mxu0 %v1027
      %v1197 = vpop.f32.mrf.mxu0
      %v1198 = vadd.f32 0.0, %v1197
      %v1199 = vpop.f32.mrf.mxu0
      %v1200 = vadd.f32 0.0, %v1199
      %1201 = vmatmul.bf16.gmra.mxu0 %v1029
      %v1202 = vpop.f32.mrf.mxu0
      %v1203 = vadd.f32 0.0, %v1202
      %v1204 = vpop.f32.mrf.mxu0
      %v1205 = vadd.f32 0.0, %v1204
      %1206 = vmatmul.bf16.gmra.mxu0 %v1031
      %v1207 = vpop.f32.mrf.mxu0
      %v1208 = vadd.f32 0.0, %v1207
      %v1209 = vpop.f32.mrf.mxu0
      %v1210 = vadd.f32 0.0, %v1209
      %1211 = vmatmul.bf16.gmra.mxu0 %v1033
      %v1212 = vpop.f32.mrf.mxu0
      %v1213 = vadd.f32 0.0, %v1212
      %v1214 = vpop.f32.mrf.mxu0
      %v1215 = vadd.f32 0.0, %v1214
      %1216 = vmatmul.bf16.gmra.mxu0 %v1035
      %v1217 = vpop.f32.mrf.mxu0
      %v1218 = vadd.f32 0.0, %v1217
      %v1219 = vpop.f32.mrf.mxu0
      %v1220 = vadd.f32 0.0, %v1219
      %1221 = vmatmul.bf16.gmra.mxu0 %v1037
      %v1222 = vpop.f32.mrf.mxu0
      %v1223 = vadd.f32 0.0, %v1222
      %v1224 = vpop.f32.mrf.mxu0
      %v1225 = vadd.f32 0.0, %v1224
      %1226 = vmatmul.bf16.gmra.mxu0 %v1039
      %v1227 = vpop.f32.mrf.mxu0
      %v1228 = vadd.f32 0.0, %v1227
      %v1229 = vpop.f32.mrf.mxu0
      %v1230 = vadd.f32 0.0, %v1229
      %1231 = vmatmul.bf16.gmra.mxu0 %v1041
      %v1232 = vpop.f32.mrf.mxu0
      %v1233 = vadd.f32 0.0, %v1232
      %v1234 = vpop.f32.mrf.mxu0
      %v1235 = vadd.f32 0.0, %v1234
      %1236 = vmatmul.bf16.gmra.mxu0 %v1043
      %v1237 = vpop.f32.mrf.mxu0
      %v1238 = vadd.f32 0.0, %v1237
      %v1239 = vpop.f32.mrf.mxu0
      %v1240 = vadd.f32 0.0, %v1239
      %1241 = vmatmul.bf16.gmra.mxu0 %v1045
      %v1242 = vpop.f32.mrf.mxu0
      %v1243 = vadd.f32 0.0, %v1242
      %v1244 = vpop.f32.mrf.mxu0
      %v1245 = vadd.f32 0.0, %v1244
      %1246 = vdwg.mxu0
      %v1247 = vadd.f32 %v856, %v1128
      %v1248 = vadd.f32 %v858, %v1130
      %v1249 = vadd.f32 %v861, %v1133
      %v1250 = vadd.f32 %v863, %v1135
      %v1251 = vadd.f32 %v866, %v1138
      %v1252 = vadd.f32 %v868, %v1140
      %v1253 = vadd.f32 %v871, %v1143
      %v1254 = vadd.f32 %v873, %v1145
      %v1255 = vadd.f32 %v876, %v1148
      %v1256 = vadd.f32 %v878, %v1150
      %v1257 = vadd.f32 %v881, %v1153
      %v1258 = vadd.f32 %v883, %v1155
      %v1259 = vadd.f32 %v886, %v1158
      %v1260 = vadd.f32 %v888, %v1160
      %v1261 = vadd.f32 %v891, %v1163
      %v1262 = vadd.f32 %v893, %v1165
      %v1263 = vadd.f32 %v896, %v1168
      %v1264 = vadd.f32 %v898, %v1170
      %v1265 = vadd.f32 %v901, %v1173
      %v1266 = vadd.f32 %v903, %v1175
      %v1267 = vadd.f32 %v906, %v1178
      %v1268 = vadd.f32 %v908, %v1180
      %v1269 = vadd.f32 %v911, %v1183
      %v1270 = vadd.f32 %v913, %v1185
      %v1271 = vadd.f32 %v916, %v1188
      %v1272 = vadd.f32 %v918, %v1190
      %v1273 = vadd.f32 %v921, %v1193
      %v1274 = vadd.f32 %v923, %v1195
      %v1275 = vadd.f32 %v926, %v1198
      %v1276 = vadd.f32 %v928, %v1200
      %v1277 = vadd.f32 %v931, %v1203
      %v1278 = vadd.f32 %v933, %v1205
      %v1279 = vadd.f32 %v936, %v1208
      %v1280 = vadd.f32 %v938, %v1210
      %v1281 = vadd.f32 %v941, %v1213
      %v1282 = vadd.f32 %v943, %v1215
      %v1283 = vadd.f32 %v946, %v1218
      %v1284 = vadd.f32 %v948, %v1220
      %v1285 = vadd.f32 %v951, %v1223
      %v1286 = vadd.f32 %v953, %v1225
      %v1287 = vadd.f32 %v956, %v1228
      %v1288 = vadd.f32 %v958, %v1230
      %v1289 = vadd.f32 %v961, %v1233
      %v1290 = vadd.f32 %v963, %v1235
      %v1291 = vadd.f32 %v966, %v1238
      %v1292 = vadd.f32 %v968, %v1240
      %v1293 = vadd.f32 %v971, %v1243
      %v1294 = vadd.f32 %v973, %v1245
      %v1295 = vld [vmem:[%s165 + $0xc] sm:$0xf]
      %v1296 = vld [vmem:[%s165 + $0x10] sm:$0xf]
      %v1297 = vld [vmem:[%s165 + $0x14] sm:$0xf]
      %v1298 = vld [vmem:[%s165 + $0x18] sm:$0xf]
      %v1299 = vld [vmem:[%s165 + $0x1c] sm:$0xf]
      %v1300 = vld [vmem:[%s165 + $0x20] sm:$0xf]
      %v1301 = vld [vmem:[%s165 + $0x24] sm:$0xf]
      %v1302 = vld [vmem:[%s165 + $0x28] sm:$0xf]
      %v1303 = vld [vmem:[%s165 + $0x2c] sm:$0xf]
      %v1304 = vld [vmem:[%s165 + $0x30] sm:$0xf]
      %v1305 = vld [vmem:[%s165 + $0x34] sm:$0xf]
      %v1306 = vld [vmem:[%s165 + $0x38] sm:$0xf]
      %v1307 = vld [vmem:[%s165 + $0x3c] sm:$0xf]
      %v1308 = vld [vmem:[%s165 + $0x40] sm:$0xf]
      %v1309 = vld [vmem:[%s165 + $0x44] sm:$0xf]
      %v1310 = vld [vmem:[%s165 + $0x48] sm:$0xf]
      %v1311 = vld [vmem:[%s165 + $0x4c] sm:$0xf]
      %v1312 = vld [vmem:[%s165 + $0x50] sm:$0xf]
      %v1313 = vld [vmem:[%s165 + $0x54] sm:$0xf]
      %v1314 = vld [vmem:[%s165 + $0x58] sm:$0xf]
      %v1315 = vld [vmem:[%s165 + $0x5c] sm:$0xf]
      %v1316 = vld [vmem:[%s165 + $0x60] sm:$0xf]
      %v1317 = vld [vmem:[%s165 + $0x64] sm:$0xf]
      %v1318 = vld [vmem:[%s165 + $0x68] sm:$0xf]
      %v1319 = vld [vmem:[%s165 + $0x6c] sm:$0xf]
      %v1320 = vld [vmem:[%s165 + $0x70] sm:$0xf]
      %v1321 = vld [vmem:[%s165 + $0x74] sm:$0xf]
      %v1322 = vld [vmem:[%s165 + $0x78] sm:$0xf]
      %v1323 = vld [vmem:[%s165 + $0x7c] sm:$0xf]
      %v1324 = vld [vmem:[%s165 + $0x80] sm:$0xf]
      %v1325 = vld [vmem:[%s165 + $0x84] sm:$0xf]
      %v1326 = vld [vmem:[%s165 + $0x88] sm:$0xf]
      %v1327 = vld [vmem:[%s165 + $0x8c] sm:$0xf]
      %v1328 = vld [vmem:[%s165 + $0x90] sm:$0xf]
      %v1329 = vld [vmem:[%s165 + $0x94] sm:$0xf]
      %v1330 = vld [vmem:[%s165 + $0x98] sm:$0xf]
      %v1331 = vld [vmem:[%s165 + $0x9c] sm:$0xf]
      %v1332 = vld [vmem:[%s165 + $0xa0] sm:$0xf]
      %v1333 = vld [vmem:[%s165 + $0xa4] sm:$0xf]
      %v1334 = vld [vmem:[%s165 + $0xa8] sm:$0xf]
      %v1335 = vld [vmem:[%s165 + $0xac] sm:$0xf]
      %v1336 = vld [vmem:[%s165 + $0xb0] sm:$0xf]
      %v1337 = vld [vmem:[%s165 + $0xb4] sm:$0xf]
      %v1338 = vld [vmem:[%s165 + $0xb8] sm:$0xf]
      %v1339 = vld [vmem:[%s165 + $0xbc] sm:$0xf]
      %v1340 = vld [vmem:[%s165 + $0xc0] sm:$0xf]
      %v1341 = vld [vmem:[%s165 + $0xc4] sm:$0xf]
      %v1342 = vld [vmem:[%s165 + $0xc8] sm:$0xf]
      %s1343 = scalar_lea.vmem %s1, 192
      %v1344 = vld [vmem:[%s1343] sm:$0xf]
      %v1345 = vld [vmem:[%s1343 + $0x4] sm:$0xf]
      %v1346 = vld [vmem:[%s1343 + $0x8] sm:$0xf]
      %v1347 = vld [vmem:[%s1343 + $0xc] sm:$0xf]
      %v1348 = vld [vmem:[%s1343 + $0x10] sm:$0xf]
      %v1349 = vld [vmem:[%s1343 + $0x14] sm:$0xf]
      %v1350 = vld [vmem:[%s1343 + $0x18] sm:$0xf]
      %v1351 = vld [vmem:[%s1343 + $0x1c] sm:$0xf]
      %v1352 = vld [vmem:[%s1343 + $0x20] sm:$0xf]
      %v1353 = vld [vmem:[%s1343 + $0x24] sm:$0xf]
      %v1354 = vld [vmem:[%s1343 + $0x28] sm:$0xf]
      %v1355 = vld [vmem:[%s1343 + $0x2c] sm:$0xf]
      %v1356 = vld [vmem:[%s1343 + $0x30] sm:$0xf]
      %v1357 = vld [vmem:[%s1343 + $0x34] sm:$0xf]
      %v1358 = vld [vmem:[%s1343 + $0x38] sm:$0xf]
      %v1359 = vld [vmem:[%s1343 + $0x3c] sm:$0xf]
      %v1408 = vunpack.c.l.b16 %v1295
      %v1409 = vunpack.c.l.b16 %v1296
      %v1410 = vunpack.c.l.b16 %v1297
      %v1411 = vunpack.c.l.b16 %v1298
      %v1412 = vunpack.c.l.b16 %v1299
      %v1413 = vunpack.c.l.b16 %v1300
      %v1414 = vunpack.c.l.b16 %v1301
      %v1415 = vunpack.c.l.b16 %v1302
      %v1416 = vunpack.c.l.b16 %v1303
      %v1417 = vunpack.c.l.b16 %v1304
      %v1418 = vunpack.c.l.b16 %v1305
      %v1419 = vunpack.c.l.b16 %v1306
      %v1420 = vunpack.c.l.b16 %v1307
      %v1421 = vunpack.c.l.b16 %v1308
      %v1422 = vunpack.c.l.b16 %v1309
      %v1423 = vunpack.c.l.b16 %v1310
      %v1424 = vunpack.c.l.b16 %v1311
      %v1425 = vunpack.c.l.b16 %v1312
      %v1426 = vunpack.c.l.b16 %v1313
      %v1427 = vunpack.c.l.b16 %v1314
      %v1428 = vunpack.c.l.b16 %v1315
      %v1429 = vunpack.c.l.b16 %v1316
      %v1430 = vunpack.c.l.b16 %v1317
      %v1431 = vunpack.c.l.b16 %v1318
      %v1432 = vunpack.c.l.b16 %v1319
      %v1433 = vunpack.c.l.b16 %v1320
      %v1434 = vunpack.c.l.b16 %v1321
      %v1435 = vunpack.c.l.b16 %v1322
      %v1436 = vunpack.c.l.b16 %v1323
      %v1437 = vunpack.c.l.b16 %v1324
      %v1438 = vunpack.c.l.b16 %v1325
      %v1439 = vunpack.c.l.b16 %v1326
      %v1440 = vunpack.c.l.b16 %v1327
      %v1441 = vunpack.c.l.b16 %v1328
      %v1442 = vunpack.c.l.b16 %v1329
      %v1443 = vunpack.c.l.b16 %v1330
      %v1444 = vunpack.c.l.b16 %v1331
      %v1445 = vunpack.c.l.b16 %v1332
      %v1446 = vunpack.c.l.b16 %v1333
      %v1447 = vunpack.c.l.b16 %v1334
      %v1448 = vunpack.c.l.b16 %v1335
      %v1449 = vunpack.c.l.b16 %v1336
      %v1450 = vunpack.c.l.b16 %v1337
      %v1451 = vunpack.c.l.b16 %v1338
      %v1452 = vunpack.c.l.b16 %v1339
      %v1453 = vunpack.c.l.b16 %v1340
      %v1454 = vunpack.c.l.b16 %v1341
      %v1455 = vunpack.c.l.b16 %v1342
      %v1456 = vpack.c.b16 %v1409, %v1408
      %v1457 = vpack.c.b16 %v1411, %v1410
      %v1458 = vpack.c.b16 %v1413, %v1412
      %v1459 = vpack.c.b16 %v1415, %v1414
      %v1460 = vpack.c.b16 %v1417, %v1416
      %v1461 = vpack.c.b16 %v1419, %v1418
      %v1462 = vpack.c.b16 %v1421, %v1420
      %v1463 = vpack.c.b16 %v1423, %v1422
      %v1464 = vpack.c.b16 %v1425, %v1424
      %v1465 = vpack.c.b16 %v1427, %v1426
      %v1466 = vpack.c.b16 %v1429, %v1428
      %v1467 = vpack.c.b16 %v1431, %v1430
      %v1468 = vpack.c.b16 %v1433, %v1432
      %v1469 = vpack.c.b16 %v1435, %v1434
      %v1470 = vpack.c.b16 %v1437, %v1436
      %v1471 = vpack.c.b16 %v1439, %v1438
      %v1472 = vpack.c.b16 %v1441, %v1440
      %v1473 = vpack.c.b16 %v1443, %v1442
      %v1474 = vpack.c.b16 %v1445, %v1444
      %v1475 = vpack.c.b16 %v1447, %v1446
      %v1476 = vpack.c.b16 %v1449, %v1448
      %v1477 = vpack.c.b16 %v1451, %v1450
      %v1478 = vpack.c.b16 %v1453, %v1452
      %v1479 = vpack.c.b16 %v1455, %v1454
      %v1520 = vunpack.c.l.b16 %v1344
      %v1521 = vunpack.c.l.b16 %v1345
      %v1522 = vunpack.c.l.b16 %v1346
      %v1523 = vunpack.c.l.b16 %v1347
      %v1524 = vunpack.c.l.b16 %v1348
      %v1525 = vunpack.c.l.b16 %v1349
      %v1526 = vunpack.c.l.b16 %v1350
      %v1527 = vunpack.c.l.b16 %v1351
      %v1528 = vunpack.c.l.b16 %v1352
      %v1529 = vunpack.c.l.b16 %v1353
      %v1530 = vunpack.c.l.b16 %v1354
      %v1531 = vunpack.c.l.b16 %v1355
      %v1532 = vunpack.c.l.b16 %v1356
      %v1533 = vunpack.c.l.b16 %v1357
      %v1534 = vunpack.c.l.b16 %v1358
      %v1535 = vunpack.c.l.b16 %v1359
      %v1536 = vpack.c.b16 %v1521, %v1520
      %v1537 = vpack.c.b16 %v1523, %v1522
      %v1538 = vpack.c.b16 %v1525, %v1524
      %v1539 = vpack.c.b16 %v1527, %v1526
      %v1540 = vpack.c.b16 %v1529, %v1528
      %v1541 = vpack.c.b16 %v1531, %v1530
      %v1542 = vpack.c.b16 %v1533, %v1532
      %v1543 = vpack.c.b16 %v1535, %v1534
      %1552 = vmatpush.bf16.msra.mxu0 %v1543
      %1553 = vmatpush.bf16.msra.mxu0 %v1542
      %1554 = vmatpush.bf16.msra.mxu0 %v1541
      %1555 = vmatpush.bf16.msra.mxu0 %v1540
      %1556 = vmatpush.bf16.msra.mxu0 %v1539
      %1557 = vmatpush.bf16.msra.mxu0 %v1538
      %1558 = vmatpush.bf16.msra.mxu0 %v1537
      %1559 = vmatpush.bf16.msra.mxu0 %v1536
      %1560 = vmatmul.bf16.gmra.mxu0 %v1456
      %v1561 = vpop.f32.mrf.mxu0
      %v1562 = vadd.f32 0.0, %v1561
      %v1563 = vpop.f32.mrf.mxu0
      %v1564 = vadd.f32 0.0, %v1563
      %1565 = vmatmul.bf16.gmra.mxu0 %v1457
      %v1566 = vpop.f32.mrf.mxu0
      %v1567 = vadd.f32 0.0, %v1566
      %v1568 = vpop.f32.mrf.mxu0
      %v1569 = vadd.f32 0.0, %v1568
      %1570 = vmatmul.bf16.gmra.mxu0 %v1458
      %v1571 = vpop.f32.mrf.mxu0
      %v1572 = vadd.f32 0.0, %v1571
      %v1573 = vpop.f32.mrf.mxu0
      %v1574 = vadd.f32 0.0, %v1573
      %1575 = vmatmul.bf16.gmra.mxu0 %v1459
      %v1576 = vpop.f32.mrf.mxu0
      %v1577 = vadd.f32 0.0, %v1576
      %v1578 = vpop.f32.mrf.mxu0
      %v1579 = vadd.f32 0.0, %v1578
      %1580 = vmatmul.bf16.gmra.mxu0 %v1460
      %v1581 = vpop.f32.mrf.mxu0
      %v1582 = vadd.f32 0.0, %v1581
      %v1583 = vpop.f32.mrf.mxu0
      %v1584 = vadd.f32 0.0, %v1583
      %1585 = vmatmul.bf16.gmra.mxu0 %v1461
      %v1586 = vpop.f32.mrf.mxu0
      %v1587 = vadd.f32 0.0, %v1586
      %v1588 = vpop.f32.mrf.mxu0
      %v1589 = vadd.f32 0.0, %v1588
      %1590 = vmatmul.bf16.gmra.mxu0 %v1462
      %v1591 = vpop.f32.mrf.mxu0
      %v1592 = vadd.f32 0.0, %v1591
      %v1593 = vpop.f32.mrf.mxu0
      %v1594 = vadd.f32 0.0, %v1593
      %1595 = vmatmul.bf16.gmra.mxu0 %v1463
      %v1596 = vpop.f32.mrf.mxu0
      %v1597 = vadd.f32 0.0, %v1596
      %v1598 = vpop.f32.mrf.mxu0
      %v1599 = vadd.f32 0.0, %v1598
      %1600 = vmatmul.bf16.gmra.mxu0 %v1464
      %v1601 = vpop.f32.mrf.mxu0
      %v1602 = vadd.f32 0.0, %v1601
      %v1603 = vpop.f32.mrf.mxu0
      %v1604 = vadd.f32 0.0, %v1603
      %1605 = vmatmul.bf16.gmra.mxu0 %v1465
      %v1606 = vpop.f32.mrf.mxu0
      %v1607 = vadd.f32 0.0, %v1606
      %v1608 = vpop.f32.mrf.mxu0
      %v1609 = vadd.f32 0.0, %v1608
      %1610 = vmatmul.bf16.gmra.mxu0 %v1466
      %v1611 = vpop.f32.mrf.mxu0
      %v1612 = vadd.f32 0.0, %v1611
      %v1613 = vpop.f32.mrf.mxu0
      %v1614 = vadd.f32 0.0, %v1613
      %1615 = vmatmul.bf16.gmra.mxu0 %v1467
      %v1616 = vpop.f32.mrf.mxu0
      %v1617 = vadd.f32 0.0, %v1616
      %v1618 = vpop.f32.mrf.mxu0
      %v1619 = vadd.f32 0.0, %v1618
      %1620 = vmatmul.bf16.gmra.mxu0 %v1468
      %v1621 = vpop.f32.mrf.mxu0
      %v1622 = vadd.f32 0.0, %v1621
      %v1623 = vpop.f32.mrf.mxu0
      %v1624 = vadd.f32 0.0, %v1623
      %1625 = vmatmul.bf16.gmra.mxu0 %v1469
      %v1626 = vpop.f32.mrf.mxu0
      %v1627 = vadd.f32 0.0, %v1626
      %v1628 = vpop.f32.mrf.mxu0
      %v1629 = vadd.f32 0.0, %v1628
      %1630 = vmatmul.bf16.gmra.mxu0 %v1470
      %v1631 = vpop.f32.mrf.mxu0
      %v1632 = vadd.f32 0.0, %v1631
      %v1633 = vpop.f32.mrf.mxu0
      %v1634 = vadd.f32 0.0, %v1633
      %1635 = vmatmul.bf16.gmra.mxu0 %v1471
      %v1636 = vpop.f32.mrf.mxu0
      %v1637 = vadd.f32 0.0, %v1636
      %v1638 = vpop.f32.mrf.mxu0
      %v1639 = vadd.f32 0.0, %v1638
      %1640 = vmatmul.bf16.gmra.mxu0 %v1472
      %v1641 = vpop.f32.mrf.mxu0
      %v1642 = vadd.f32 0.0, %v1641
      %v1643 = vpop.f32.mrf.mxu0
      %v1644 = vadd.f32 0.0, %v1643
      %1645 = vmatmul.bf16.gmra.mxu0 %v1473
      %v1646 = vpop.f32.mrf.mxu0
      %v1647 = vadd.f32 0.0, %v1646
      %v1648 = vpop.f32.mrf.mxu0
      %v1649 = vadd.f32 0.0, %v1648
      %1650 = vmatmul.bf16.gmra.mxu0 %v1474
      %v1651 = vpop.f32.mrf.mxu0
      %v1652 = vadd.f32 0.0, %v1651
      %v1653 = vpop.f32.mrf.mxu0
      %v1654 = vadd.f32 0.0, %v1653
      %1655 = vmatmul.bf16.gmra.mxu0 %v1475
      %v1656 = vpop.f32.mrf.mxu0
      %v1657 = vadd.f32 0.0, %v1656
      %v1658 = vpop.f32.mrf.mxu0
      %v1659 = vadd.f32 0.0, %v1658
      %1660 = vmatmul.bf16.gmra.mxu0 %v1476
      %v1661 = vpop.f32.mrf.mxu0
      %v1662 = vadd.f32 0.0, %v1661
      %v1663 = vpop.f32.mrf.mxu0
      %v1664 = vadd.f32 0.0, %v1663
      %1665 = vmatmul.bf16.gmra.mxu0 %v1477
      %v1666 = vpop.f32.mrf.mxu0
      %v1667 = vadd.f32 0.0, %v1666
      %v1668 = vpop.f32.mrf.mxu0
      %v1669 = vadd.f32 0.0, %v1668
      %1670 = vmatmul.bf16.gmra.mxu0 %v1478
      %v1671 = vpop.f32.mrf.mxu0
      %v1672 = vadd.f32 0.0, %v1671
      %v1673 = vpop.f32.mrf.mxu0
      %v1674 = vadd.f32 0.0, %v1673
      %1675 = vmatmul.bf16.gmra.mxu0 %v1479
      %v1676 = vpop.f32.mrf.mxu0
      %v1677 = vadd.f32 0.0, %v1676
      %v1678 = vpop.f32.mrf.mxu0
      %v1679 = vadd.f32 0.0, %v1678
      %1680 = vdwg.mxu0
      %v1681 = vadd.f32 %v1247, %v1562
      %v1682 = vadd.f32 %v1248, %v1564
      %v1683 = vadd.f32 %v1249, %v1567
      %v1684 = vadd.f32 %v1250, %v1569
      %v1685 = vadd.f32 %v1251, %v1572
      %v1686 = vadd.f32 %v1252, %v1574
      %v1687 = vadd.f32 %v1253, %v1577
      %v1688 = vadd.f32 %v1254, %v1579
      %v1689 = vadd.f32 %v1255, %v1582
      %v1690 = vadd.f32 %v1256, %v1584
      %v1691 = vadd.f32 %v1257, %v1587
      %v1692 = vadd.f32 %v1258, %v1589
      %v1693 = vadd.f32 %v1259, %v1592
      %v1694 = vadd.f32 %v1260, %v1594
      %v1695 = vadd.f32 %v1261, %v1597
      %v1696 = vadd.f32 %v1262, %v1599
      %v1697 = vadd.f32 %v1263, %v1602
      %v1698 = vadd.f32 %v1264, %v1604
      %v1699 = vadd.f32 %v1265, %v1607
      %v1700 = vadd.f32 %v1266, %v1609
      %v1701 = vadd.f32 %v1267, %v1612
      %v1702 = vadd.f32 %v1268, %v1614
      %v1703 = vadd.f32 %v1269, %v1617
      %v1704 = vadd.f32 %v1270, %v1619
      %v1705 = vadd.f32 %v1271, %v1622
      %v1706 = vadd.f32 %v1272, %v1624
      %v1707 = vadd.f32 %v1273, %v1627
      %v1708 = vadd.f32 %v1274, %v1629
      %v1709 = vadd.f32 %v1275, %v1632
      %v1710 = vadd.f32 %v1276, %v1634
      %v1711 = vadd.f32 %v1277, %v1637
      %v1712 = vadd.f32 %v1278, %v1639
      %v1713 = vadd.f32 %v1279, %v1642
      %v1714 = vadd.f32 %v1280, %v1644
      %v1715 = vadd.f32 %v1281, %v1647
      %v1716 = vadd.f32 %v1282, %v1649
      %v1717 = vadd.f32 %v1283, %v1652
      %v1718 = vadd.f32 %v1284, %v1654
      %v1719 = vadd.f32 %v1285, %v1657
      %v1720 = vadd.f32 %v1286, %v1659
      %v1721 = vadd.f32 %v1287, %v1662
      %v1722 = vadd.f32 %v1288, %v1664
      %v1723 = vadd.f32 %v1289, %v1667
      %v1724 = vadd.f32 %v1290, %v1669
      %v1725 = vadd.f32 %v1291, %v1672
      %v1726 = vadd.f32 %v1292, %v1674
      %v1727 = vadd.f32 %v1293, %v1677
      %v1728 = vadd.f32 %v1294, %v1679
      %v1729 = vld [vmem:[%s165 + $0xc] sm:$0xf]
      %v1730 = vld [vmem:[%s165 + $0x10] sm:$0xf]
      %v1731 = vld [vmem:[%s165 + $0x14] sm:$0xf]
      %v1732 = vld [vmem:[%s165 + $0x18] sm:$0xf]
      %v1733 = vld [vmem:[%s165 + $0x1c] sm:$0xf]
      %v1734 = vld [vmem:[%s165 + $0x20] sm:$0xf]
      %v1735 = vld [vmem:[%s165 + $0x24] sm:$0xf]
      %v1736 = vld [vmem:[%s165 + $0x28] sm:$0xf]
      %v1737 = vld [vmem:[%s165 + $0x2c] sm:$0xf]
      %v1738 = vld [vmem:[%s165 + $0x30] sm:$0xf]
      %v1739 = vld [vmem:[%s165 + $0x34] sm:$0xf]
      %v1740 = vld [vmem:[%s165 + $0x38] sm:$0xf]
      %v1741 = vld [vmem:[%s165 + $0x3c] sm:$0xf]
      %v1742 = vld [vmem:[%s165 + $0x40] sm:$0xf]
      %v1743 = vld [vmem:[%s165 + $0x44] sm:$0xf]
      %v1744 = vld [vmem:[%s165 + $0x48] sm:$0xf]
      %v1745 = vld [vmem:[%s165 + $0x4c] sm:$0xf]
      %v1746 = vld [vmem:[%s165 + $0x50] sm:$0xf]
      %v1747 = vld [vmem:[%s165 + $0x54] sm:$0xf]
      %v1748 = vld [vmem:[%s165 + $0x58] sm:$0xf]
      %v1749 = vld [vmem:[%s165 + $0x5c] sm:$0xf]
      %v1750 = vld [vmem:[%s165 + $0x60] sm:$0xf]
      %v1751 = vld [vmem:[%s165 + $0x64] sm:$0xf]
      %v1752 = vld [vmem:[%s165 + $0x68] sm:$0xf]
      %v1753 = vld [vmem:[%s165 + $0x6c] sm:$0xf]
      %v1754 = vld [vmem:[%s165 + $0x70] sm:$0xf]
      %v1755 = vld [vmem:[%s165 + $0x74] sm:$0xf]
      %v1756 = vld [vmem:[%s165 + $0x78] sm:$0xf]
      %v1757 = vld [vmem:[%s165 + $0x7c] sm:$0xf]
      %v1758 = vld [vmem:[%s165 + $0x80] sm:$0xf]
      %v1759 = vld [vmem:[%s165 + $0x84] sm:$0xf]
      %v1760 = vld [vmem:[%s165 + $0x88] sm:$0xf]
      %v1761 = vld [vmem:[%s165 + $0x8c] sm:$0xf]
      %v1762 = vld [vmem:[%s165 + $0x90] sm:$0xf]
      %v1763 = vld [vmem:[%s165 + $0x94] sm:$0xf]
      %v1764 = vld [vmem:[%s165 + $0x98] sm:$0xf]
      %v1765 = vld [vmem:[%s165 + $0x9c] sm:$0xf]
      %v1766 = vld [vmem:[%s165 + $0xa0] sm:$0xf]
      %v1767 = vld [vmem:[%s165 + $0xa4] sm:$0xf]
      %v1768 = vld [vmem:[%s165 + $0xa8] sm:$0xf]
      %v1769 = vld [vmem:[%s165 + $0xac] sm:$0xf]
      %v1770 = vld [vmem:[%s165 + $0xb0] sm:$0xf]
      %v1771 = vld [vmem:[%s165 + $0xb4] sm:$0xf]
      %v1772 = vld [vmem:[%s165 + $0xb8] sm:$0xf]
      %v1773 = vld [vmem:[%s165 + $0xbc] sm:$0xf]
      %v1774 = vld [vmem:[%s165 + $0xc0] sm:$0xf]
      %v1775 = vld [vmem:[%s165 + $0xc4] sm:$0xf]
      %v1776 = vld [vmem:[%s165 + $0xc8] sm:$0xf]
      %v1777 = vld [vmem:[%s165 + $0xcc] sm:$0x1]
      %s1778 = scalar_lea.vmem %s1, 256
      %v1779 = vld [vmem:[%s1778] sm:$0xf]
      %v1780 = vld [vmem:[%s1778 + $0x4] sm:$0xf]
      %v1781 = vld [vmem:[%s1778 + $0x8] sm:$0xf]
      %v1782 = vld [vmem:[%s1778 + $0xc] sm:$0xf]
      %v1783 = vld [vmem:[%s1778 + $0x10] sm:$0xf]
      %v1784 = vld [vmem:[%s1778 + $0x14] sm:$0xf]
      %v1785 = vld [vmem:[%s1778 + $0x18] sm:$0xf]
      %v1786 = vld [vmem:[%s1778 + $0x1c] sm:$0xf]
      %v1787 = vld [vmem:[%s1778 + $0x20] sm:$0xf]
      %v1788 = vld [vmem:[%s1778 + $0x24] sm:$0xf]
      %v1789 = vld [vmem:[%s1778 + $0x28] sm:$0xf]
      %v1790 = vld [vmem:[%s1778 + $0x2c] sm:$0xf]
      %v1791 = vld [vmem:[%s1778 + $0x30] sm:$0xf]
      %v1792 = vld [vmem:[%s1778 + $0x34] sm:$0xf]
      %v1793 = vld [vmem:[%s1778 + $0x38] sm:$0xf]
      %v1794 = vld [vmem:[%s1778 + $0x3c] sm:$0xf]
      %v1844 = vunpack.c.l.b16 %v1729
      %v1845 = vunpack.c.l.b16 %v1730
      %v1846 = vunpack.c.l.b16 %v1731
      %v1847 = vunpack.c.l.b16 %v1732
      %v1848 = vunpack.c.l.b16 %v1733
      %v1849 = vunpack.c.l.b16 %v1734
      %v1850 = vunpack.c.l.b16 %v1735
      %v1851 = vunpack.c.l.b16 %v1736
      %v1852 = vunpack.c.l.b16 %v1737
      %v1853 = vunpack.c.l.b16 %v1738
      %v1854 = vunpack.c.l.b16 %v1739
      %v1855 = vunpack.c.l.b16 %v1740
      %v1856 = vunpack.c.l.b16 %v1741
      %v1857 = vunpack.c.l.b16 %v1742
      %v1858 = vunpack.c.l.b16 %v1743
      %v1859 = vunpack.c.l.b16 %v1744
      %v1860 = vunpack.c.l.b16 %v1745
      %v1861 = vunpack.c.l.b16 %v1746
      %v1862 = vunpack.c.l.b16 %v1747
      %v1863 = vunpack.c.l.b16 %v1748
      %v1864 = vunpack.c.l.b16 %v1749
      %v1865 = vunpack.c.l.b16 %v1750
      %v1866 = vunpack.c.l.b16 %v1751
      %v1867 = vunpack.c.l.b16 %v1752
      %v1868 = vunpack.c.l.b16 %v1753
      %v1869 = vunpack.c.l.b16 %v1754
      %v1870 = vunpack.c.l.b16 %v1755
      %v1871 = vunpack.c.l.b16 %v1756
      %v1872 = vunpack.c.l.b16 %v1757
      %v1873 = vunpack.c.l.b16 %v1758
      %v1874 = vunpack.c.l.b16 %v1759
      %v1875 = vunpack.c.l.b16 %v1760
      %v1876 = vunpack.c.l.b16 %v1761
      %v1877 = vunpack.c.l.b16 %v1762
      %v1878 = vunpack.c.l.b16 %v1763
      %v1879 = vunpack.c.l.b16 %v1764
      %v1880 = vunpack.c.l.b16 %v1765
      %v1881 = vunpack.c.l.b16 %v1766
      %v1882 = vunpack.c.l.b16 %v1767
      %v1883 = vunpack.c.l.b16 %v1768
      %v1884 = vunpack.c.l.b16 %v1769
      %v1885 = vunpack.c.l.b16 %v1770
      %v1886 = vunpack.c.l.b16 %v1771
      %v1887 = vunpack.c.l.b16 %v1772
      %v1888 = vunpack.c.l.b16 %v1773
      %v1889 = vunpack.c.l.b16 %v1774
      %v1890 = vunpack.c.l.b16 %v1775
      %v1891 = vunpack.c.l.b16 %v1776
      %v1892 = vunpack.c.l.b16 %v1777
      %v1893 = vpack.c.b16 %v1845, %v1844
      %v1894 = vpack.c.b16 %v1847, %v1846
      %v1895 = vpack.c.b16 %v1849, %v1848
      %v1896 = vpack.c.b16 %v1851, %v1850
      %v1897 = vpack.c.b16 %v1853, %v1852
      %v1898 = vpack.c.b16 %v1855, %v1854
      %v1899 = vpack.c.b16 %v1857, %v1856
      %v1900 = vpack.c.b16 %v1859, %v1858
      %v1901 = vpack.c.b16 %v1861, %v1860
      %v1902 = vpack.c.b16 %v1863, %v1862
      %v1903 = vpack.c.b16 %v1865, %v1864
      %v1904 = vpack.c.b16 %v1867, %v1866
      %v1905 = vpack.c.b16 %v1869, %v1868
      %v1906 = vpack.c.b16 %v1871, %v1870
      %v1907 = vpack.c.b16 %v1873, %v1872
      %v1908 = vpack.c.b16 %v1875, %v1874
      %v1909 = vpack.c.b16 %v1877, %v1876
      %v1910 = vpack.c.b16 %v1879, %v1878
      %v1911 = vpack.c.b16 %v1881, %v1880
      %v1912 = vpack.c.b16 %v1883, %v1882
      %v1913 = vpack.c.b16 %v1885, %v1884
      %v1914 = vpack.c.b16 %v1887, %v1886
      %v1915 = vpack.c.b16 %v1889, %v1888
      %v1916 = vpack.c.b16 %v1891, %v1890
      %v1917 = vpack.c.b16 %v1892, %v1892
      %v1919 = vshrl.u32 %v1893, 16
      %v1921 = vshll.u32 %v1893, 16
      %v1923 = vrot.slane %v1921, 1
      %v1924 = vor.u32 %v1919, %v1923
      %v1926 = vshll.u32 %v1894, 16
      %v1928 = vrot.slane %v1926, 1
      %v1929 = vsel %vm376, %v1924, %v1928
      %v1930 = vshrl.u32 %v1894, 16
      %v1932 = vor.u32 %v1930, %v1928
      %v1934 = vshll.u32 %v1895, 16
      %v1936 = vrot.slane %v1934, 1
      %v1937 = vsel %vm376, %v1932, %v1936
      %v1938 = vshrl.u32 %v1895, 16
      %v1940 = vor.u32 %v1938, %v1936
      %v1942 = vshll.u32 %v1896, 16
      %v1944 = vrot.slane %v1942, 1
      %v1945 = vsel %vm376, %v1940, %v1944
      %v1946 = vshrl.u32 %v1896, 16
      %v1948 = vor.u32 %v1946, %v1944
      %v1950 = vshll.u32 %v1897, 16
      %v1952 = vrot.slane %v1950, 1
      %v1953 = vsel %vm376, %v1948, %v1952
      %v1954 = vshrl.u32 %v1897, 16
      %v1956 = vor.u32 %v1954, %v1952
      %v1958 = vshll.u32 %v1898, 16
      %v1960 = vrot.slane %v1958, 1
      %v1961 = vsel %vm376, %v1956, %v1960
      %v1962 = vshrl.u32 %v1898, 16
      %v1964 = vor.u32 %v1962, %v1960
      %v1966 = vshll.u32 %v1899, 16
      %v1968 = vrot.slane %v1966, 1
      %v1969 = vsel %vm376, %v1964, %v1968
      %v1970 = vshrl.u32 %v1899, 16
      %v1972 = vor.u32 %v1970, %v1968
      %v1974 = vshll.u32 %v1900, 16
      %v1976 = vrot.slane %v1974, 1
      %v1977 = vsel %vm376, %v1972, %v1976
      %v1978 = vshrl.u32 %v1900, 16
      %v1980 = vor.u32 %v1978, %v1976
      %v1982 = vshll.u32 %v1901, 16
      %v1984 = vrot.slane %v1982, 1
      %v1985 = vsel %vm376, %v1980, %v1984
      %v1986 = vshrl.u32 %v1901, 16
      %v1988 = vor.u32 %v1986, %v1984
      %v1990 = vshll.u32 %v1902, 16
      %v1992 = vrot.slane %v1990, 1
      %v1993 = vsel %vm376, %v1988, %v1992
      %v1994 = vshrl.u32 %v1902, 16
      %v1996 = vor.u32 %v1994, %v1992
      %v1998 = vshll.u32 %v1903, 16
      %v2000 = vrot.slane %v1998, 1
      %v2001 = vsel %vm376, %v1996, %v2000
      %v2002 = vshrl.u32 %v1903, 16
      %v2004 = vor.u32 %v2002, %v2000
      %v2006 = vshll.u32 %v1904, 16
      %v2008 = vrot.slane %v2006, 1
      %v2009 = vsel %vm376, %v2004, %v2008
      %v2010 = vshrl.u32 %v1904, 16
      %v2012 = vor.u32 %v2010, %v2008
      %v2014 = vshll.u32 %v1905, 16
      %v2016 = vrot.slane %v2014, 1
      %v2017 = vsel %vm376, %v2012, %v2016
      %v2018 = vshrl.u32 %v1905, 16
      %v2020 = vor.u32 %v2018, %v2016
      %v2022 = vshll.u32 %v1906, 16
      %v2024 = vrot.slane %v2022, 1
      %v2025 = vsel %vm376, %v2020, %v2024
      %v2026 = vshrl.u32 %v1906, 16
      %v2028 = vor.u32 %v2026, %v2024
      %v2030 = vshll.u32 %v1907, 16
      %v2032 = vrot.slane %v2030, 1
      %v2033 = vsel %vm376, %v2028, %v2032
      %v2034 = vshrl.u32 %v1907, 16
      %v2036 = vor.u32 %v2034, %v2032
      %v2038 = vshll.u32 %v1908, 16
      %v2040 = vrot.slane %v2038, 1
      %v2041 = vsel %vm376, %v2036, %v2040
      %v2042 = vshrl.u32 %v1908, 16
      %v2044 = vor.u32 %v2042, %v2040
      %v2046 = vshll.u32 %v1909, 16
      %v2048 = vrot.slane %v2046, 1
      %v2049 = vsel %vm376, %v2044, %v2048
      %v2050 = vshrl.u32 %v1909, 16
      %v2052 = vor.u32 %v2050, %v2048
      %v2054 = vshll.u32 %v1910, 16
      %v2056 = vrot.slane %v2054, 1
      %v2057 = vsel %vm376, %v2052, %v2056
      %v2058 = vshrl.u32 %v1910, 16
      %v2060 = vor.u32 %v2058, %v2056
      %v2062 = vshll.u32 %v1911, 16
      %v2064 = vrot.slane %v2062, 1
      %v2065 = vsel %vm376, %v2060, %v2064
      %v2066 = vshrl.u32 %v1911, 16
      %v2068 = vor.u32 %v2066, %v2064
      %v2070 = vshll.u32 %v1912, 16
      %v2072 = vrot.slane %v2070, 1
      %v2073 = vsel %vm376, %v2068, %v2072
      %v2074 = vshrl.u32 %v1912, 16
      %v2076 = vor.u32 %v2074, %v2072
      %v2078 = vshll.u32 %v1913, 16
      %v2080 = vrot.slane %v2078, 1
      %v2081 = vsel %vm376, %v2076, %v2080
      %v2082 = vshrl.u32 %v1913, 16
      %v2084 = vor.u32 %v2082, %v2080
      %v2086 = vshll.u32 %v1914, 16
      %v2088 = vrot.slane %v2086, 1
      %v2089 = vsel %vm376, %v2084, %v2088
      %v2090 = vshrl.u32 %v1914, 16
      %v2092 = vor.u32 %v2090, %v2088
      %v2094 = vshll.u32 %v1915, 16
      %v2096 = vrot.slane %v2094, 1
      %v2097 = vsel %vm376, %v2092, %v2096
      %v2098 = vshrl.u32 %v1915, 16
      %v2100 = vor.u32 %v2098, %v2096
      %v2102 = vshll.u32 %v1916, 16
      %v2104 = vrot.slane %v2102, 1
      %v2105 = vsel %vm376, %v2100, %v2104
      %v2106 = vshrl.u32 %v1916, 16
      %v2108 = vor.u32 %v2106, %v2104
      %v2110 = vshll.u32 %v1917, 16
      %v2112 = vrot.slane %v2110, 1
      %v2113 = vsel %vm376, %v2108, %v2112
      %v2154 = vunpack.c.l.b16 %v1779
      %v2155 = vunpack.c.l.b16 %v1780
      %v2156 = vunpack.c.l.b16 %v1781
      %v2157 = vunpack.c.l.b16 %v1782
      %v2158 = vunpack.c.l.b16 %v1783
      %v2159 = vunpack.c.l.b16 %v1784
      %v2160 = vunpack.c.l.b16 %v1785
      %v2161 = vunpack.c.l.b16 %v1786
      %v2162 = vunpack.c.l.b16 %v1787
      %v2163 = vunpack.c.l.b16 %v1788
      %v2164 = vunpack.c.l.b16 %v1789
      %v2165 = vunpack.c.l.b16 %v1790
      %v2166 = vunpack.c.l.b16 %v1791
      %v2167 = vunpack.c.l.b16 %v1792
      %v2168 = vunpack.c.l.b16 %v1793
      %v2169 = vunpack.c.l.b16 %v1794
      %v2170 = vpack.c.b16 %v2155, %v2154
      %v2171 = vpack.c.b16 %v2157, %v2156
      %v2172 = vpack.c.b16 %v2159, %v2158
      %v2173 = vpack.c.b16 %v2161, %v2160
      %v2174 = vpack.c.b16 %v2163, %v2162
      %v2175 = vpack.c.b16 %v2165, %v2164
      %v2176 = vpack.c.b16 %v2167, %v2166
      %v2177 = vpack.c.b16 %v2169, %v2168
      %2186 = vmatpush.bf16.msra.mxu0 %v2177
      %2187 = vmatpush.bf16.msra.mxu0 %v2176
      %2188 = vmatpush.bf16.msra.mxu0 %v2175
      %2189 = vmatpush.bf16.msra.mxu0 %v2174
      %2190 = vmatpush.bf16.msra.mxu0 %v2173
      %2191 = vmatpush.bf16.msra.mxu0 %v2172
      %2192 = vmatpush.bf16.msra.mxu0 %v2171
      %2193 = vmatpush.bf16.msra.mxu0 %v2170
      %2194 = vmatmul.bf16.gmra.mxu0 %v1929
      %v2195 = vpop.f32.mrf.mxu0
      %v2196 = vadd.f32 0.0, %v2195
      %v2197 = vpop.f32.mrf.mxu0
      %v2198 = vadd.f32 0.0, %v2197
      %2199 = vmatmul.bf16.gmra.mxu0 %v1937
      %v2200 = vpop.f32.mrf.mxu0
      %v2201 = vadd.f32 0.0, %v2200
      %v2202 = vpop.f32.mrf.mxu0
      %v2203 = vadd.f32 0.0, %v2202
      %2204 = vmatmul.bf16.gmra.mxu0 %v1945
      %v2205 = vpop.f32.mrf.mxu0
      %v2206 = vadd.f32 0.0, %v2205
      %v2207 = vpop.f32.mrf.mxu0
      %v2208 = vadd.f32 0.0, %v2207
      %2209 = vmatmul.bf16.gmra.mxu0 %v1953
      %v2210 = vpop.f32.mrf.mxu0
      %v2211 = vadd.f32 0.0, %v2210
      %v2212 = vpop.f32.mrf.mxu0
      %v2213 = vadd.f32 0.0, %v2212
      %2214 = vmatmul.bf16.gmra.mxu0 %v1961
      %v2215 = vpop.f32.mrf.mxu0
      %v2216 = vadd.f32 0.0, %v2215
      %v2217 = vpop.f32.mrf.mxu0
      %v2218 = vadd.f32 0.0, %v2217
      %2219 = vmatmul.bf16.gmra.mxu0 %v1969
      %v2220 = vpop.f32.mrf.mxu0
      %v2221 = vadd.f32 0.0, %v2220
      %v2222 = vpop.f32.mrf.mxu0
      %v2223 = vadd.f32 0.0, %v2222
      %2224 = vmatmul.bf16.gmra.mxu0 %v1977
      %v2225 = vpop.f32.mrf.mxu0
      %v2226 = vadd.f32 0.0, %v2225
      %v2227 = vpop.f32.mrf.mxu0
      %v2228 = vadd.f32 0.0, %v2227
      %2229 = vmatmul.bf16.gmra.mxu0 %v1985
      %v2230 = vpop.f32.mrf.mxu0
      %v2231 = vadd.f32 0.0, %v2230
      %v2232 = vpop.f32.mrf.mxu0
      %v2233 = vadd.f32 0.0, %v2232
      %2234 = vmatmul.bf16.gmra.mxu0 %v1993
      %v2235 = vpop.f32.mrf.mxu0
      %v2236 = vadd.f32 0.0, %v2235
      %v2237 = vpop.f32.mrf.mxu0
      %v2238 = vadd.f32 0.0, %v2237
      %2239 = vmatmul.bf16.gmra.mxu0 %v2001
      %v2240 = vpop.f32.mrf.mxu0
      %v2241 = vadd.f32 0.0, %v2240
      %v2242 = vpop.f32.mrf.mxu0
      %v2243 = vadd.f32 0.0, %v2242
      %2244 = vmatmul.bf16.gmra.mxu0 %v2009
      %v2245 = vpop.f32.mrf.mxu0
      %v2246 = vadd.f32 0.0, %v2245
      %v2247 = vpop.f32.mrf.mxu0
      %v2248 = vadd.f32 0.0, %v2247
      %2249 = vmatmul.bf16.gmra.mxu0 %v2017
      %v2250 = vpop.f32.mrf.mxu0
      %v2251 = vadd.f32 0.0, %v2250
      %v2252 = vpop.f32.mrf.mxu0
      %v2253 = vadd.f32 0.0, %v2252
      %2254 = vmatmul.bf16.gmra.mxu0 %v2025
      %v2255 = vpop.f32.mrf.mxu0
      %v2256 = vadd.f32 0.0, %v2255
      %v2257 = vpop.f32.mrf.mxu0
      %v2258 = vadd.f32 0.0, %v2257
      %2259 = vmatmul.bf16.gmra.mxu0 %v2033
      %v2260 = vpop.f32.mrf.mxu0
      %v2261 = vadd.f32 0.0, %v2260
      %v2262 = vpop.f32.mrf.mxu0
      %v2263 = vadd.f32 0.0, %v2262
      %2264 = vmatmul.bf16.gmra.mxu0 %v2041
      %v2265 = vpop.f32.mrf.mxu0
      %v2266 = vadd.f32 0.0, %v2265
      %v2267 = vpop.f32.mrf.mxu0
      %v2268 = vadd.f32 0.0, %v2267
      %2269 = vmatmul.bf16.gmra.mxu0 %v2049
      %v2270 = vpop.f32.mrf.mxu0
      %v2271 = vadd.f32 0.0, %v2270
      %v2272 = vpop.f32.mrf.mxu0
      %v2273 = vadd.f32 0.0, %v2272
      %2274 = vmatmul.bf16.gmra.mxu0 %v2057
      %v2275 = vpop.f32.mrf.mxu0
      %v2276 = vadd.f32 0.0, %v2275
      %v2277 = vpop.f32.mrf.mxu0
      %v2278 = vadd.f32 0.0, %v2277
      %2279 = vmatmul.bf16.gmra.mxu0 %v2065
      %v2280 = vpop.f32.mrf.mxu0
      %v2281 = vadd.f32 0.0, %v2280
      %v2282 = vpop.f32.mrf.mxu0
      %v2283 = vadd.f32 0.0, %v2282
      %2284 = vmatmul.bf16.gmra.mxu0 %v2073
      %v2285 = vpop.f32.mrf.mxu0
      %v2286 = vadd.f32 0.0, %v2285
      %v2287 = vpop.f32.mrf.mxu0
      %v2288 = vadd.f32 0.0, %v2287
      %2289 = vmatmul.bf16.gmra.mxu0 %v2081
      %v2290 = vpop.f32.mrf.mxu0
      %v2291 = vadd.f32 0.0, %v2290
      %v2292 = vpop.f32.mrf.mxu0
      %v2293 = vadd.f32 0.0, %v2292
      %2294 = vmatmul.bf16.gmra.mxu0 %v2089
      %v2295 = vpop.f32.mrf.mxu0
      %v2296 = vadd.f32 0.0, %v2295
      %v2297 = vpop.f32.mrf.mxu0
      %v2298 = vadd.f32 0.0, %v2297
      %2299 = vmatmul.bf16.gmra.mxu0 %v2097
      %v2300 = vpop.f32.mrf.mxu0
      %v2301 = vadd.f32 0.0, %v2300
      %v2302 = vpop.f32.mrf.mxu0
      %v2303 = vadd.f32 0.0, %v2302
      %2304 = vmatmul.bf16.gmra.mxu0 %v2105
      %v2305 = vpop.f32.mrf.mxu0
      %v2306 = vadd.f32 0.0, %v2305
      %v2307 = vpop.f32.mrf.mxu0
      %v2308 = vadd.f32 0.0, %v2307
      %2309 = vmatmul.bf16.gmra.mxu0 %v2113
      %v2310 = vpop.f32.mrf.mxu0
      %v2311 = vadd.f32 0.0, %v2310
      %v2312 = vpop.f32.mrf.mxu0
      %v2313 = vadd.f32 0.0, %v2312
      %2314 = vdwg.mxu0
      %v2315 = vadd.f32 %v1681, %v2196
      %v2316 = vadd.f32 %v1682, %v2198
      %v2317 = vadd.f32 %v1683, %v2201
      %v2318 = vadd.f32 %v1684, %v2203
      %v2319 = vadd.f32 %v1685, %v2206
      %v2320 = vadd.f32 %v1686, %v2208
      %v2321 = vadd.f32 %v1687, %v2211
      %v2322 = vadd.f32 %v1688, %v2213
      %v2323 = vadd.f32 %v1689, %v2216
      %v2324 = vadd.f32 %v1690, %v2218
      %v2325 = vadd.f32 %v1691, %v2221
      %v2326 = vadd.f32 %v1692, %v2223
      %v2327 = vadd.f32 %v1693, %v2226
      %v2328 = vadd.f32 %v1694, %v2228
      %v2329 = vadd.f32 %v1695, %v2231
      %v2330 = vadd.f32 %v1696, %v2233
      %v2331 = vadd.f32 %v1697, %v2236
      %v2332 = vadd.f32 %v1698, %v2238
      %v2333 = vadd.f32 %v1699, %v2241
      %v2334 = vadd.f32 %v1700, %v2243
      %v2335 = vadd.f32 %v1701, %v2246
      %v2336 = vadd.f32 %v1702, %v2248
      %v2337 = vadd.f32 %v1703, %v2251
      %v2338 = vadd.f32 %v1704, %v2253
      %v2339 = vadd.f32 %v1705, %v2256
      %v2340 = vadd.f32 %v1706, %v2258
      %v2341 = vadd.f32 %v1707, %v2261
      %v2342 = vadd.f32 %v1708, %v2263
      %v2343 = vadd.f32 %v1709, %v2266
      %v2344 = vadd.f32 %v1710, %v2268
      %v2345 = vadd.f32 %v1711, %v2271
      %v2346 = vadd.f32 %v1712, %v2273
      %v2347 = vadd.f32 %v1713, %v2276
      %v2348 = vadd.f32 %v1714, %v2278
      %v2349 = vadd.f32 %v1715, %v2281
      %v2350 = vadd.f32 %v1716, %v2283
      %v2351 = vadd.f32 %v1717, %v2286
      %v2352 = vadd.f32 %v1718, %v2288
      %v2353 = vadd.f32 %v1719, %v2291
      %v2354 = vadd.f32 %v1720, %v2293
      %v2355 = vadd.f32 %v1721, %v2296
      %v2356 = vadd.f32 %v1722, %v2298
      %v2357 = vadd.f32 %v1723, %v2301
      %v2358 = vadd.f32 %v1724, %v2303
      %v2359 = vadd.f32 %v1725, %v2306
      %v2360 = vadd.f32 %v1726, %v2308
      %v2361 = vadd.f32 %v1727, %v2311
      %v2362 = vadd.f32 %v1728, %v2313
      %v2363 = vld [vmem:[%s165 + $0xc] sm:$0xe]
      %s2364 = scalar_lea.vmem %s1, 320
      %v2365 = vld [vmem:[%s2364] sm:$0xf]
      %v2366 = vld [vmem:[%s2364 + $0x4] sm:$0xf]
      %v2367 = vld [vmem:[%s2364 + $0x8] sm:$0xf]
      %v2368 = vld [vmem:[%s2364 + $0xc] sm:$0xf]
      %v2369 = vld [vmem:[%s2364 + $0x10] sm:$0xf]
      %v2370 = vld [vmem:[%s2364 + $0x14] sm:$0xf]
      %v2371 = vld [vmem:[%s2364 + $0x18] sm:$0xf]
      %v2372 = vld [vmem:[%s2364 + $0x1c] sm:$0xf]
      %v2373 = vld [vmem:[%s2364 + $0x20] sm:$0xf]
      %v2374 = vld [vmem:[%s2364 + $0x24] sm:$0xf]
      %v2375 = vld [vmem:[%s2364 + $0x28] sm:$0xf]
      %v2376 = vld [vmem:[%s2364 + $0x2c] sm:$0xf]
      %v2377 = vld [vmem:[%s2364 + $0x30] sm:$0xf]
      %v2378 = vld [vmem:[%s2364 + $0x34] sm:$0xf]
      %v2379 = vld [vmem:[%s2364 + $0x38] sm:$0xf]
      %v2380 = vld [vmem:[%s2364 + $0x3c] sm:$0xf]
      %v2382 = vunpack.c.l.b16 %v2363
      %v2383 = vpack.c.b16 %v1845, %v2382
      %v2384 = vrot.slane %v2383, 1
      %v2385 = vrot.slane %v1894, 1
      %v2386 = vsel %vm996, %v2384, %v2385
      %v2387 = vrot.slane %v1895, 1
      %v2388 = vsel %vm996, %v2385, %v2387
      %v2389 = vrot.slane %v1896, 1
      %v2390 = vsel %vm996, %v2387, %v2389
      %v2391 = vrot.slane %v1897, 1
      %v2392 = vsel %vm996, %v2389, %v2391
      %v2393 = vrot.slane %v1898, 1
      %v2394 = vsel %vm996, %v2391, %v2393
      %v2395 = vrot.slane %v1899, 1
      %v2396 = vsel %vm996, %v2393, %v2395
      %v2397 = vrot.slane %v1900, 1
      %v2398 = vsel %vm996, %v2395, %v2397
      %v2399 = vrot.slane %v1901, 1
      %v2400 = vsel %vm996, %v2397, %v2399
      %v2401 = vrot.slane %v1902, 1
      %v2402 = vsel %vm996, %v2399, %v2401
      %v2403 = vrot.slane %v1903, 1
      %v2404 = vsel %vm996, %v2401, %v2403
      %v2405 = vrot.slane %v1904, 1
      %v2406 = vsel %vm996, %v2403, %v2405
      %v2407 = vrot.slane %v1905, 1
      %v2408 = vsel %vm996, %v2405, %v2407
      %v2409 = vrot.slane %v1906, 1
      %v2410 = vsel %vm996, %v2407, %v2409
      %v2411 = vrot.slane %v1907, 1
      %v2412 = vsel %vm996, %v2409, %v2411
      %v2413 = vrot.slane %v1908, 1
      %v2414 = vsel %vm996, %v2411, %v2413
      %v2415 = vrot.slane %v1909, 1
      %v2416 = vsel %vm996, %v2413, %v2415
      %v2417 = vrot.slane %v1910, 1
      %v2418 = vsel %vm996, %v2415, %v2417
      %v2419 = vrot.slane %v1911, 1
      %v2420 = vsel %vm996, %v2417, %v2419
      %v2421 = vrot.slane %v1912, 1
      %v2422 = vsel %vm996, %v2419, %v2421
      %v2423 = vrot.slane %v1913, 1
      %v2424 = vsel %vm996, %v2421, %v2423
      %v2425 = vrot.slane %v1914, 1
      %v2426 = vsel %vm996, %v2423, %v2425
      %v2427 = vrot.slane %v1915, 1
      %v2428 = vsel %vm996, %v2425, %v2427
      %v2429 = vrot.slane %v1916, 1
      %v2430 = vsel %vm996, %v2427, %v2429
      %v2431 = vrot.slane %v1917, 1
      %v2432 = vsel %vm996, %v2429, %v2431
      %v2473 = vunpack.c.l.b16 %v2365
      %v2474 = vunpack.c.l.b16 %v2366
      %v2475 = vunpack.c.l.b16 %v2367
      %v2476 = vunpack.c.l.b16 %v2368
      %v2477 = vunpack.c.l.b16 %v2369
      %v2478 = vunpack.c.l.b16 %v2370
      %v2479 = vunpack.c.l.b16 %v2371
      %v2480 = vunpack.c.l.b16 %v2372
      %v2481 = vunpack.c.l.b16 %v2373
      %v2482 = vunpack.c.l.b16 %v2374
      %v2483 = vunpack.c.l.b16 %v2375
      %v2484 = vunpack.c.l.b16 %v2376
      %v2485 = vunpack.c.l.b16 %v2377
      %v2486 = vunpack.c.l.b16 %v2378
      %v2487 = vunpack.c.l.b16 %v2379
      %v2488 = vunpack.c.l.b16 %v2380
      %v2489 = vpack.c.b16 %v2474, %v2473
      %v2490 = vpack.c.b16 %v2476, %v2475
      %v2491 = vpack.c.b16 %v2478, %v2477
      %v2492 = vpack.c.b16 %v2480, %v2479
      %v2493 = vpack.c.b16 %v2482, %v2481
      %v2494 = vpack.c.b16 %v2484, %v2483
      %v2495 = vpack.c.b16 %v2486, %v2485
      %v2496 = vpack.c.b16 %v2488, %v2487
      %2505 = vmatpush.bf16.msra.mxu0 %v2496
      %2506 = vmatpush.bf16.msra.mxu0 %v2495
      %2507 = vmatpush.bf16.msra.mxu0 %v2494
      %2508 = vmatpush.bf16.msra.mxu0 %v2493
      %2509 = vmatpush.bf16.msra.mxu0 %v2492
      %2510 = vmatpush.bf16.msra.mxu0 %v2491
      %2511 = vmatpush.bf16.msra.mxu0 %v2490
      %2512 = vmatpush.bf16.msra.mxu0 %v2489
      %2513 = vmatmul.bf16.gmra.mxu0 %v2386
      %v2514 = vpop.f32.mrf.mxu0
      %v2515 = vadd.f32 0.0, %v2514
      %v2516 = vpop.f32.mrf.mxu0
      %v2517 = vadd.f32 0.0, %v2516
      %2518 = vmatmul.bf16.gmra.mxu0 %v2388
      %v2519 = vpop.f32.mrf.mxu0
      %v2520 = vadd.f32 0.0, %v2519
      %v2521 = vpop.f32.mrf.mxu0
      %v2522 = vadd.f32 0.0, %v2521
      %2523 = vmatmul.bf16.gmra.mxu0 %v2390
      %v2524 = vpop.f32.mrf.mxu0
      %v2525 = vadd.f32 0.0, %v2524
      %v2526 = vpop.f32.mrf.mxu0
      %v2527 = vadd.f32 0.0, %v2526
      %2528 = vmatmul.bf16.gmra.mxu0 %v2392
      %v2529 = vpop.f32.mrf.mxu0
      %v2530 = vadd.f32 0.0, %v2529
      %v2531 = vpop.f32.mrf.mxu0
      %v2532 = vadd.f32 0.0, %v2531
      %2533 = vmatmul.bf16.gmra.mxu0 %v2394
      %v2534 = vpop.f32.mrf.mxu0
      %v2535 = vadd.f32 0.0, %v2534
      %v2536 = vpop.f32.mrf.mxu0
      %v2537 = vadd.f32 0.0, %v2536
      %2538 = vmatmul.bf16.gmra.mxu0 %v2396
      %v2539 = vpop.f32.mrf.mxu0
      %v2540 = vadd.f32 0.0, %v2539
      %v2541 = vpop.f32.mrf.mxu0
      %v2542 = vadd.f32 0.0, %v2541
      %2543 = vmatmul.bf16.gmra.mxu0 %v2398
      %v2544 = vpop.f32.mrf.mxu0
      %v2545 = vadd.f32 0.0, %v2544
      %v2546 = vpop.f32.mrf.mxu0
      %v2547 = vadd.f32 0.0, %v2546
      %2548 = vmatmul.bf16.gmra.mxu0 %v2400
      %v2549 = vpop.f32.mrf.mxu0
      %v2550 = vadd.f32 0.0, %v2549
      %v2551 = vpop.f32.mrf.mxu0
      %v2552 = vadd.f32 0.0, %v2551
      %2553 = vmatmul.bf16.gmra.mxu0 %v2402
      %v2554 = vpop.f32.mrf.mxu0
      %v2555 = vadd.f32 0.0, %v2554
      %v2556 = vpop.f32.mrf.mxu0
      %v2557 = vadd.f32 0.0, %v2556
      %2558 = vmatmul.bf16.gmra.mxu0 %v2404
      %v2559 = vpop.f32.mrf.mxu0
      %v2560 = vadd.f32 0.0, %v2559
      %v2561 = vpop.f32.mrf.mxu0
      %v2562 = vadd.f32 0.0, %v2561
      %2563 = vmatmul.bf16.gmra.mxu0 %v2406
      %v2564 = vpop.f32.mrf.mxu0
      %v2565 = vadd.f32 0.0, %v2564
      %v2566 = vpop.f32.mrf.mxu0
      %v2567 = vadd.f32 0.0, %v2566
      %2568 = vmatmul.bf16.gmra.mxu0 %v2408
      %v2569 = vpop.f32.mrf.mxu0
      %v2570 = vadd.f32 0.0, %v2569
      %v2571 = vpop.f32.mrf.mxu0
      %v2572 = vadd.f32 0.0, %v2571
      %2573 = vmatmul.bf16.gmra.mxu0 %v2410
      %v2574 = vpop.f32.mrf.mxu0
      %v2575 = vadd.f32 0.0, %v2574
      %v2576 = vpop.f32.mrf.mxu0
      %v2577 = vadd.f32 0.0, %v2576
      %2578 = vmatmul.bf16.gmra.mxu0 %v2412
      %v2579 = vpop.f32.mrf.mxu0
      %v2580 = vadd.f32 0.0, %v2579
      %v2581 = vpop.f32.mrf.mxu0
      %v2582 = vadd.f32 0.0, %v2581
      %2583 = vmatmul.bf16.gmra.mxu0 %v2414
      %v2584 = vpop.f32.mrf.mxu0
      %v2585 = vadd.f32 0.0, %v2584
      %v2586 = vpop.f32.mrf.mxu0
      %v2587 = vadd.f32 0.0, %v2586
      %2588 = vmatmul.bf16.gmra.mxu0 %v2416
      %v2589 = vpop.f32.mrf.mxu0
      %v2590 = vadd.f32 0.0, %v2589
      %v2591 = vpop.f32.mrf.mxu0
      %v2592 = vadd.f32 0.0, %v2591
      %2593 = vmatmul.bf16.gmra.mxu0 %v2418
      %v2594 = vpop.f32.mrf.mxu0
      %v2595 = vadd.f32 0.0, %v2594
      %v2596 = vpop.f32.mrf.mxu0
      %v2597 = vadd.f32 0.0, %v2596
      %2598 = vmatmul.bf16.gmra.mxu0 %v2420
      %v2599 = vpop.f32.mrf.mxu0
      %v2600 = vadd.f32 0.0, %v2599
      %v2601 = vpop.f32.mrf.mxu0
      %v2602 = vadd.f32 0.0, %v2601
      %2603 = vmatmul.bf16.gmra.mxu0 %v2422
      %v2604 = vpop.f32.mrf.mxu0
      %v2605 = vadd.f32 0.0, %v2604
      %v2606 = vpop.f32.mrf.mxu0
      %v2607 = vadd.f32 0.0, %v2606
      %2608 = vmatmul.bf16.gmra.mxu0 %v2424
      %v2609 = vpop.f32.mrf.mxu0
      %v2610 = vadd.f32 0.0, %v2609
      %v2611 = vpop.f32.mrf.mxu0
      %v2612 = vadd.f32 0.0, %v2611
      %2613 = vmatmul.bf16.gmra.mxu0 %v2426
      %v2614 = vpop.f32.mrf.mxu0
      %v2615 = vadd.f32 0.0, %v2614
      %v2616 = vpop.f32.mrf.mxu0
      %v2617 = vadd.f32 0.0, %v2616
      %2618 = vmatmul.bf16.gmra.mxu0 %v2428
      %v2619 = vpop.f32.mrf.mxu0
      %v2620 = vadd.f32 0.0, %v2619
      %v2621 = vpop.f32.mrf.mxu0
      %v2622 = vadd.f32 0.0, %v2621
      %2623 = vmatmul.bf16.gmra.mxu0 %v2430
      %v2624 = vpop.f32.mrf.mxu0
      %v2625 = vadd.f32 0.0, %v2624
      %v2626 = vpop.f32.mrf.mxu0
      %v2627 = vadd.f32 0.0, %v2626
      %2628 = vmatmul.bf16.gmra.mxu0 %v2432
      %v2629 = vpop.f32.mrf.mxu0
      %v2630 = vadd.f32 0.0, %v2629
      %v2631 = vpop.f32.mrf.mxu0
      %v2632 = vadd.f32 0.0, %v2631
      %2633 = vdwg.mxu0
      %v2634 = vadd.f32 %v2315, %v2515
      %v2635 = vadd.f32 %v2316, %v2517
      %v2636 = vadd.f32 %v2317, %v2520
      %v2637 = vadd.f32 %v2318, %v2522
      %v2638 = vadd.f32 %v2319, %v2525
      %v2639 = vadd.f32 %v2320, %v2527
      %v2640 = vadd.f32 %v2321, %v2530
      %v2641 = vadd.f32 %v2322, %v2532
      %v2642 = vadd.f32 %v2323, %v2535
      %v2643 = vadd.f32 %v2324, %v2537
      %v2644 = vadd.f32 %v2325, %v2540
      %v2645 = vadd.f32 %v2326, %v2542
      %v2646 = vadd.f32 %v2327, %v2545
      %v2647 = vadd.f32 %v2328, %v2547
      %v2648 = vadd.f32 %v2329, %v2550
      %v2649 = vadd.f32 %v2330, %v2552
      %v2650 = vadd.f32 %v2331, %v2555
      %v2651 = vadd.f32 %v2332, %v2557
      %v2652 = vadd.f32 %v2333, %v2560
      %v2653 = vadd.f32 %v2334, %v2562
      %v2654 = vadd.f32 %v2335, %v2565
      %v2655 = vadd.f32 %v2336, %v2567
      %v2656 = vadd.f32 %v2337, %v2570
      %v2657 = vadd.f32 %v2338, %v2572
      %v2658 = vadd.f32 %v2339, %v2575
      %v2659 = vadd.f32 %v2340, %v2577
      %v2660 = vadd.f32 %v2341, %v2580
      %v2661 = vadd.f32 %v2342, %v2582
      %v2662 = vadd.f32 %v2343, %v2585
      %v2663 = vadd.f32 %v2344, %v2587
      %v2664 = vadd.f32 %v2345, %v2590
      %v2665 = vadd.f32 %v2346, %v2592
      %v2666 = vadd.f32 %v2347, %v2595
      %v2667 = vadd.f32 %v2348, %v2597
      %v2668 = vadd.f32 %v2349, %v2600
      %v2669 = vadd.f32 %v2350, %v2602
      %v2670 = vadd.f32 %v2351, %v2605
      %v2671 = vadd.f32 %v2352, %v2607
      %v2672 = vadd.f32 %v2353, %v2610
      %v2673 = vadd.f32 %v2354, %v2612
      %v2674 = vadd.f32 %v2355, %v2615
      %v2675 = vadd.f32 %v2356, %v2617
      %v2676 = vadd.f32 %v2357, %v2620
      %v2677 = vadd.f32 %v2358, %v2622
      %v2678 = vadd.f32 %v2359, %v2625
      %v2679 = vadd.f32 %v2360, %v2627
      %v2680 = vadd.f32 %v2361, %v2630
      %v2681 = vadd.f32 %v2362, %v2632
      %v2682 = vld [vmem:[%s165 + $0x18] sm:$0xf]
      %v2683 = vld [vmem:[%s165 + $0x1c] sm:$0xf]
      %v2684 = vld [vmem:[%s165 + $0x20] sm:$0xf]
      %v2685 = vld [vmem:[%s165 + $0x24] sm:$0xf]
      %v2686 = vld [vmem:[%s165 + $0x28] sm:$0xf]
      %v2687 = vld [vmem:[%s165 + $0x2c] sm:$0xf]
      %v2688 = vld [vmem:[%s165 + $0x30] sm:$0xf]
      %v2689 = vld [vmem:[%s165 + $0x34] sm:$0xf]
      %v2690 = vld [vmem:[%s165 + $0x38] sm:$0xf]
      %v2691 = vld [vmem:[%s165 + $0x3c] sm:$0xf]
      %v2692 = vld [vmem:[%s165 + $0x40] sm:$0xf]
      %v2693 = vld [vmem:[%s165 + $0x44] sm:$0xf]
      %v2694 = vld [vmem:[%s165 + $0x48] sm:$0xf]
      %v2695 = vld [vmem:[%s165 + $0x4c] sm:$0xf]
      %v2696 = vld [vmem:[%s165 + $0x50] sm:$0xf]
      %v2697 = vld [vmem:[%s165 + $0x54] sm:$0xf]
      %v2698 = vld [vmem:[%s165 + $0x58] sm:$0xf]
      %v2699 = vld [vmem:[%s165 + $0x5c] sm:$0xf]
      %v2700 = vld [vmem:[%s165 + $0x60] sm:$0xf]
      %v2701 = vld [vmem:[%s165 + $0x64] sm:$0xf]
      %v2702 = vld [vmem:[%s165 + $0x68] sm:$0xf]
      %v2703 = vld [vmem:[%s165 + $0x6c] sm:$0xf]
      %v2704 = vld [vmem:[%s165 + $0x70] sm:$0xf]
      %v2705 = vld [vmem:[%s165 + $0x74] sm:$0xf]
      %v2706 = vld [vmem:[%s165 + $0x78] sm:$0xf]
      %v2707 = vld [vmem:[%s165 + $0x7c] sm:$0xf]
      %v2708 = vld [vmem:[%s165 + $0x80] sm:$0xf]
      %v2709 = vld [vmem:[%s165 + $0x84] sm:$0xf]
      %v2710 = vld [vmem:[%s165 + $0x88] sm:$0xf]
      %v2711 = vld [vmem:[%s165 + $0x8c] sm:$0xf]
      %v2712 = vld [vmem:[%s165 + $0x90] sm:$0xf]
      %v2713 = vld [vmem:[%s165 + $0x94] sm:$0xf]
      %v2714 = vld [vmem:[%s165 + $0x98] sm:$0xf]
      %v2715 = vld [vmem:[%s165 + $0x9c] sm:$0xf]
      %v2716 = vld [vmem:[%s165 + $0xa0] sm:$0xf]
      %v2717 = vld [vmem:[%s165 + $0xa4] sm:$0xf]
      %v2718 = vld [vmem:[%s165 + $0xa8] sm:$0xf]
      %v2719 = vld [vmem:[%s165 + $0xac] sm:$0xf]
      %v2720 = vld [vmem:[%s165 + $0xb0] sm:$0xf]
      %v2721 = vld [vmem:[%s165 + $0xb4] sm:$0xf]
      %v2722 = vld [vmem:[%s165 + $0xb8] sm:$0xf]
      %v2723 = vld [vmem:[%s165 + $0xbc] sm:$0xf]
      %v2724 = vld [vmem:[%s165 + $0xc0] sm:$0xf]
      %v2725 = vld [vmem:[%s165 + $0xc4] sm:$0xf]
      %v2726 = vld [vmem:[%s165 + $0xc8] sm:$0xf]
      %v2727 = vld [vmem:[%s165 + $0xcc] sm:$0xf]
      %v2728 = vld [vmem:[%s165 + $0xd0] sm:$0xf]
      %v2729 = vld [vmem:[%s165 + $0xd4] sm:$0xf]
      %s2730 = scalar_lea.vmem %s1, 384
      %v2731 = vld [vmem:[%s2730] sm:$0xf]
      %v2732 = vld [vmem:[%s2730 + $0x4] sm:$0xf]
      %v2733 = vld [vmem:[%s2730 + $0x8] sm:$0xf]
      %v2734 = vld [vmem:[%s2730 + $0xc] sm:$0xf]
      %v2735 = vld [vmem:[%s2730 + $0x10] sm:$0xf]
      %v2736 = vld [vmem:[%s2730 + $0x14] sm:$0xf]
      %v2737 = vld [vmem:[%s2730 + $0x18] sm:$0xf]
      %v2738 = vld [vmem:[%s2730 + $0x1c] sm:$0xf]
      %v2739 = vld [vmem:[%s2730 + $0x20] sm:$0xf]
      %v2740 = vld [vmem:[%s2730 + $0x24] sm:$0xf]
      %v2741 = vld [vmem:[%s2730 + $0x28] sm:$0xf]
      %v2742 = vld [vmem:[%s2730 + $0x2c] sm:$0xf]
      %v2743 = vld [vmem:[%s2730 + $0x30] sm:$0xf]
      %v2744 = vld [vmem:[%s2730 + $0x34] sm:$0xf]
      %v2745 = vld [vmem:[%s2730 + $0x38] sm:$0xf]
      %v2746 = vld [vmem:[%s2730 + $0x3c] sm:$0xf]
      %v2795 = vunpack.c.l.b16 %v2682
      %v2796 = vunpack.c.l.b16 %v2683
      %v2797 = vunpack.c.l.b16 %v2684
      %v2798 = vunpack.c.l.b16 %v2685
      %v2799 = vunpack.c.l.b16 %v2686
      %v2800 = vunpack.c.l.b16 %v2687
      %v2801 = vunpack.c.l.b16 %v2688
      %v2802 = vunpack.c.l.b16 %v2689
      %v2803 = vunpack.c.l.b16 %v2690
      %v2804 = vunpack.c.l.b16 %v2691
      %v2805 = vunpack.c.l.b16 %v2692
      %v2806 = vunpack.c.l.b16 %v2693
      %v2807 = vunpack.c.l.b16 %v2694
      %v2808 = vunpack.c.l.b16 %v2695
      %v2809 = vunpack.c.l.b16 %v2696
      %v2810 = vunpack.c.l.b16 %v2697
      %v2811 = vunpack.c.l.b16 %v2698
      %v2812 = vunpack.c.l.b16 %v2699
      %v2813 = vunpack.c.l.b16 %v2700
      %v2814 = vunpack.c.l.b16 %v2701
      %v2815 = vunpack.c.l.b16 %v2702
      %v2816 = vunpack.c.l.b16 %v2703
      %v2817 = vunpack.c.l.b16 %v2704
      %v2818 = vunpack.c.l.b16 %v2705
      %v2819 = vunpack.c.l.b16 %v2706
      %v2820 = vunpack.c.l.b16 %v2707
      %v2821 = vunpack.c.l.b16 %v2708
      %v2822 = vunpack.c.l.b16 %v2709
      %v2823 = vunpack.c.l.b16 %v2710
      %v2824 = vunpack.c.l.b16 %v2711
      %v2825 = vunpack.c.l.b16 %v2712
      %v2826 = vunpack.c.l.b16 %v2713
      %v2827 = vunpack.c.l.b16 %v2714
      %v2828 = vunpack.c.l.b16 %v2715
      %v2829 = vunpack.c.l.b16 %v2716
      %v2830 = vunpack.c.l.b16 %v2717
      %v2831 = vunpack.c.l.b16 %v2718
      %v2832 = vunpack.c.l.b16 %v2719
      %v2833 = vunpack.c.l.b16 %v2720
      %v2834 = vunpack.c.l.b16 %v2721
      %v2835 = vunpack.c.l.b16 %v2722
      %v2836 = vunpack.c.l.b16 %v2723
      %v2837 = vunpack.c.l.b16 %v2724
      %v2838 = vunpack.c.l.b16 %v2725
      %v2839 = vunpack.c.l.b16 %v2726
      %v2840 = vunpack.c.l.b16 %v2727
      %v2841 = vunpack.c.l.b16 %v2728
      %v2842 = vunpack.c.l.b16 %v2729
      %v2843 = vpack.c.b16 %v2796, %v2795
      %v2844 = vpack.c.b16 %v2798, %v2797
      %v2845 = vpack.c.b16 %v2800, %v2799
      %v2846 = vpack.c.b16 %v2802, %v2801
      %v2847 = vpack.c.b16 %v2804, %v2803
      %v2848 = vpack.c.b16 %v2806, %v2805
      %v2849 = vpack.c.b16 %v2808, %v2807
      %v2850 = vpack.c.b16 %v2810, %v2809
      %v2851 = vpack.c.b16 %v2812, %v2811
      %v2852 = vpack.c.b16 %v2814, %v2813
      %v2853 = vpack.c.b16 %v2816, %v2815
      %v2854 = vpack.c.b16 %v2818, %v2817
      %v2855 = vpack.c.b16 %v2820, %v2819
      %v2856 = vpack.c.b16 %v2822, %v2821
      %v2857 = vpack.c.b16 %v2824, %v2823
      %v2858 = vpack.c.b16 %v2826, %v2825
      %v2859 = vpack.c.b16 %v2828, %v2827
      %v2860 = vpack.c.b16 %v2830, %v2829
      %v2861 = vpack.c.b16 %v2832, %v2831
      %v2862 = vpack.c.b16 %v2834, %v2833
      %v2863 = vpack.c.b16 %v2836, %v2835
      %v2864 = vpack.c.b16 %v2838, %v2837
      %v2865 = vpack.c.b16 %v2840, %v2839
      %v2866 = vpack.c.b16 %v2842, %v2841
      %v2907 = vunpack.c.l.b16 %v2731
      %v2908 = vunpack.c.l.b16 %v2732
      %v2909 = vunpack.c.l.b16 %v2733
      %v2910 = vunpack.c.l.b16 %v2734
      %v2911 = vunpack.c.l.b16 %v2735
      %v2912 = vunpack.c.l.b16 %v2736
      %v2913 = vunpack.c.l.b16 %v2737
      %v2914 = vunpack.c.l.b16 %v2738
      %v2915 = vunpack.c.l.b16 %v2739
      %v2916 = vunpack.c.l.b16 %v2740
      %v2917 = vunpack.c.l.b16 %v2741
      %v2918 = vunpack.c.l.b16 %v2742
      %v2919 = vunpack.c.l.b16 %v2743
      %v2920 = vunpack.c.l.b16 %v2744
      %v2921 = vunpack.c.l.b16 %v2745
      %v2922 = vunpack.c.l.b16 %v2746
      %v2923 = vpack.c.b16 %v2908, %v2907
      %v2924 = vpack.c.b16 %v2910, %v2909
      %v2925 = vpack.c.b16 %v2912, %v2911
      %v2926 = vpack.c.b16 %v2914, %v2913
      %v2927 = vpack.c.b16 %v2916, %v2915
      %v2928 = vpack.c.b16 %v2918, %v2917
      %v2929 = vpack.c.b16 %v2920, %v2919
      %v2930 = vpack.c.b16 %v2922, %v2921
      %2939 = vmatpush.bf16.msra.mxu0 %v2930
      %2940 = vmatpush.bf16.msra.mxu0 %v2929
      %2941 = vmatpush.bf16.msra.mxu0 %v2928
      %2942 = vmatpush.bf16.msra.mxu0 %v2927
      %2943 = vmatpush.bf16.msra.mxu0 %v2926
      %2944 = vmatpush.bf16.msra.mxu0 %v2925
      %2945 = vmatpush.bf16.msra.mxu0 %v2924
      %2946 = vmatpush.bf16.msra.mxu0 %v2923
      %2947 = vmatmul.bf16.gmra.mxu0 %v2843
      %v2948 = vpop.f32.mrf.mxu0
      %v2949 = vadd.f32 0.0, %v2948
      %v2950 = vpop.f32.mrf.mxu0
      %v2951 = vadd.f32 0.0, %v2950
      %2952 = vmatmul.bf16.gmra.mxu0 %v2844
      %v2953 = vpop.f32.mrf.mxu0
      %v2954 = vadd.f32 0.0, %v2953
      %v2955 = vpop.f32.mrf.mxu0
      %v2956 = vadd.f32 0.0, %v2955
      %2957 = vmatmul.bf16.gmra.mxu0 %v2845
      %v2958 = vpop.f32.mrf.mxu0
      %v2959 = vadd.f32 0.0, %v2958
      %v2960 = vpop.f32.mrf.mxu0
      %v2961 = vadd.f32 0.0, %v2960
      %2962 = vmatmul.bf16.gmra.mxu0 %v2846
      %v2963 = vpop.f32.mrf.mxu0
      %v2964 = vadd.f32 0.0, %v2963
      %v2965 = vpop.f32.mrf.mxu0
      %v2966 = vadd.f32 0.0, %v2965
      %2967 = vmatmul.bf16.gmra.mxu0 %v2847
      %v2968 = vpop.f32.mrf.mxu0
      %v2969 = vadd.f32 0.0, %v2968
      %v2970 = vpop.f32.mrf.mxu0
      %v2971 = vadd.f32 0.0, %v2970
      %2972 = vmatmul.bf16.gmra.mxu0 %v2848
      %v2973 = vpop.f32.mrf.mxu0
      %v2974 = vadd.f32 0.0, %v2973
      %v2975 = vpop.f32.mrf.mxu0
      %v2976 = vadd.f32 0.0, %v2975
      %2977 = vmatmul.bf16.gmra.mxu0 %v2849
      %v2978 = vpop.f32.mrf.mxu0
      %v2979 = vadd.f32 0.0, %v2978
      %v2980 = vpop.f32.mrf.mxu0
      %v2981 = vadd.f32 0.0, %v2980
      %2982 = vmatmul.bf16.gmra.mxu0 %v2850
      %v2983 = vpop.f32.mrf.mxu0
      %v2984 = vadd.f32 0.0, %v2983
      %v2985 = vpop.f32.mrf.mxu0
      %v2986 = vadd.f32 0.0, %v2985
      %2987 = vmatmul.bf16.gmra.mxu0 %v2851
      %v2988 = vpop.f32.mrf.mxu0
      %v2989 = vadd.f32 0.0, %v2988
      %v2990 = vpop.f32.mrf.mxu0
      %v2991 = vadd.f32 0.0, %v2990
      %2992 = vmatmul.bf16.gmra.mxu0 %v2852
      %v2993 = vpop.f32.mrf.mxu0
      %v2994 = vadd.f32 0.0, %v2993
      %v2995 = vpop.f32.mrf.mxu0
      %v2996 = vadd.f32 0.0, %v2995
      %2997 = vmatmul.bf16.gmra.mxu0 %v2853
      %v2998 = vpop.f32.mrf.mxu0
      %v2999 = vadd.f32 0.0, %v2998
      %v3000 = vpop.f32.mrf.mxu0
      %v3001 = vadd.f32 0.0, %v3000
      %3002 = vmatmul.bf16.gmra.mxu0 %v2854
      %v3003 = vpop.f32.mrf.mxu0
      %v3004 = vadd.f32 0.0, %v3003
      %v3005 = vpop.f32.mrf.mxu0
      %v3006 = vadd.f32 0.0, %v3005
      %3007 = vmatmul.bf16.gmra.mxu0 %v2855
      %v3008 = vpop.f32.mrf.mxu0
      %v3009 = vadd.f32 0.0, %v3008
      %v3010 = vpop.f32.mrf.mxu0
      %v3011 = vadd.f32 0.0, %v3010
      %3012 = vmatmul.bf16.gmra.mxu0 %v2856
      %v3013 = vpop.f32.mrf.mxu0
      %v3014 = vadd.f32 0.0, %v3013
      %v3015 = vpop.f32.mrf.mxu0
      %v3016 = vadd.f32 0.0, %v3015
      %3017 = vmatmul.bf16.gmra.mxu0 %v2857
      %v3018 = vpop.f32.mrf.mxu0
      %v3019 = vadd.f32 0.0, %v3018
      %v3020 = vpop.f32.mrf.mxu0
      %v3021 = vadd.f32 0.0, %v3020
      %3022 = vmatmul.bf16.gmra.mxu0 %v2858
      %v3023 = vpop.f32.mrf.mxu0
      %v3024 = vadd.f32 0.0, %v3023
      %v3025 = vpop.f32.mrf.mxu0
      %v3026 = vadd.f32 0.0, %v3025
      %3027 = vmatmul.bf16.gmra.mxu0 %v2859
      %v3028 = vpop.f32.mrf.mxu0
      %v3029 = vadd.f32 0.0, %v3028
      %v3030 = vpop.f32.mrf.mxu0
      %v3031 = vadd.f32 0.0, %v3030
      %3032 = vmatmul.bf16.gmra.mxu0 %v2860
      %v3033 = vpop.f32.mrf.mxu0
      %v3034 = vadd.f32 0.0, %v3033
      %v3035 = vpop.f32.mrf.mxu0
      %v3036 = vadd.f32 0.0, %v3035
      %3037 = vmatmul.bf16.gmra.mxu0 %v2861
      %v3038 = vpop.f32.mrf.mxu0
      %v3039 = vadd.f32 0.0, %v3038
      %v3040 = vpop.f32.mrf.mxu0
      %v3041 = vadd.f32 0.0, %v3040
      %3042 = vmatmul.bf16.gmra.mxu0 %v2862
      %v3043 = vpop.f32.mrf.mxu0
      %v3044 = vadd.f32 0.0, %v3043
      %v3045 = vpop.f32.mrf.mxu0
      %v3046 = vadd.f32 0.0, %v3045
      %3047 = vmatmul.bf16.gmra.mxu0 %v2863
      %v3048 = vpop.f32.mrf.mxu0
      %v3049 = vadd.f32 0.0, %v3048
      %v3050 = vpop.f32.mrf.mxu0
      %v3051 = vadd.f32 0.0, %v3050
      %3052 = vmatmul.bf16.gmra.mxu0 %v2864
      %v3053 = vpop.f32.mrf.mxu0
      %v3054 = vadd.f32 0.0, %v3053
      %v3055 = vpop.f32.mrf.mxu0
      %v3056 = vadd.f32 0.0, %v3055
      %3057 = vmatmul.bf16.gmra.mxu0 %v2865
      %v3058 = vpop.f32.mrf.mxu0
      %v3059 = vadd.f32 0.0, %v3058
      %v3060 = vpop.f32.mrf.mxu0
      %v3061 = vadd.f32 0.0, %v3060
      %3062 = vmatmul.bf16.gmra.mxu0 %v2866
      %v3063 = vpop.f32.mrf.mxu0
      %v3064 = vadd.f32 0.0, %v3063
      %v3065 = vpop.f32.mrf.mxu0
      %v3066 = vadd.f32 0.0, %v3065
      %3067 = vdwg.mxu0
      %v3068 = vadd.f32 %v2634, %v2949
      %v3069 = vadd.f32 %v2635, %v2951
      %v3070 = vadd.f32 %v2636, %v2954
      %v3071 = vadd.f32 %v2637, %v2956
      %v3072 = vadd.f32 %v2638, %v2959
      %v3073 = vadd.f32 %v2639, %v2961
      %v3074 = vadd.f32 %v2640, %v2964
      %v3075 = vadd.f32 %v2641, %v2966
      %v3076 = vadd.f32 %v2642, %v2969
      %v3077 = vadd.f32 %v2643, %v2971
      %v3078 = vadd.f32 %v2644, %v2974
      %v3079 = vadd.f32 %v2645, %v2976
      %v3080 = vadd.f32 %v2646, %v2979
      %v3081 = vadd.f32 %v2647, %v2981
      %v3082 = vadd.f32 %v2648, %v2984
      %v3083 = vadd.f32 %v2649, %v2986
      %v3084 = vadd.f32 %v2650, %v2989
      %v3085 = vadd.f32 %v2651, %v2991
      %v3086 = vadd.f32 %v2652, %v2994
      %v3087 = vadd.f32 %v2653, %v2996
      %v3088 = vadd.f32 %v2654, %v2999
      %v3089 = vadd.f32 %v2655, %v3001
      %v3090 = vadd.f32 %v2656, %v3004
      %v3091 = vadd.f32 %v2657, %v3006
      %v3092 = vadd.f32 %v2658, %v3009
      %v3093 = vadd.f32 %v2659, %v3011
      %v3094 = vadd.f32 %v2660, %v3014
      %v3095 = vadd.f32 %v2661, %v3016
      %v3096 = vadd.f32 %v2662, %v3019
      %v3097 = vadd.f32 %v2663, %v3021
      %v3098 = vadd.f32 %v2664, %v3024
      %v3099 = vadd.f32 %v2665, %v3026
      %v3100 = vadd.f32 %v2666, %v3029
      %v3101 = vadd.f32 %v2667, %v3031
      %v3102 = vadd.f32 %v2668, %v3034
      %v3103 = vadd.f32 %v2669, %v3036
      %v3104 = vadd.f32 %v2670, %v3039
      %v3105 = vadd.f32 %v2671, %v3041
      %v3106 = vadd.f32 %v2672, %v3044
      %v3107 = vadd.f32 %v2673, %v3046
      %v3108 = vadd.f32 %v2674, %v3049
      %v3109 = vadd.f32 %v2675, %v3051
      %v3110 = vadd.f32 %v2676, %v3054
      %v3111 = vadd.f32 %v2677, %v3056
      %v3112 = vadd.f32 %v2678, %v3059
      %v3113 = vadd.f32 %v2679, %v3061
      %v3114 = vadd.f32 %v2680, %v3064
      %v3115 = vadd.f32 %v2681, %v3066
      %v3116 = vld [vmem:[%s165 + $0x18] sm:$0xf]
      %v3117 = vld [vmem:[%s165 + $0x1c] sm:$0xf]
      %v3118 = vld [vmem:[%s165 + $0x20] sm:$0xf]
      %v3119 = vld [vmem:[%s165 + $0x24] sm:$0xf]
      %v3120 = vld [vmem:[%s165 + $0x28] sm:$0xf]
      %v3121 = vld [vmem:[%s165 + $0x2c] sm:$0xf]
      %v3122 = vld [vmem:[%s165 + $0x30] sm:$0xf]
      %v3123 = vld [vmem:[%s165 + $0x34] sm:$0xf]
      %v3124 = vld [vmem:[%s165 + $0x38] sm:$0xf]
      %v3125 = vld [vmem:[%s165 + $0x3c] sm:$0xf]
      %v3126 = vld [vmem:[%s165 + $0x40] sm:$0xf]
      %v3127 = vld [vmem:[%s165 + $0x44] sm:$0xf]
      %v3128 = vld [vmem:[%s165 + $0x48] sm:$0xf]
      %v3129 = vld [vmem:[%s165 + $0x4c] sm:$0xf]
      %v3130 = vld [vmem:[%s165 + $0x50] sm:$0xf]
      %v3131 = vld [vmem:[%s165 + $0x54] sm:$0xf]
      %v3132 = vld [vmem:[%s165 + $0x58] sm:$0xf]
      %v3133 = vld [vmem:[%s165 + $0x5c] sm:$0xf]
      %v3134 = vld [vmem:[%s165 + $0x60] sm:$0xf]
      %v3135 = vld [vmem:[%s165 + $0x64] sm:$0xf]
      %v3136 = vld [vmem:[%s165 + $0x68] sm:$0xf]
      %v3137 = vld [vmem:[%s165 + $0x6c] sm:$0xf]
      %v3138 = vld [vmem:[%s165 + $0x70] sm:$0xf]
      %v3139 = vld [vmem:[%s165 + $0x74] sm:$0xf]
      %v3140 = vld [vmem:[%s165 + $0x78] sm:$0xf]
      %v3141 = vld [vmem:[%s165 + $0x7c] sm:$0xf]
      %v3142 = vld [vmem:[%s165 + $0x80] sm:$0xf]
      %v3143 = vld [vmem:[%s165 + $0x84] sm:$0xf]
      %v3144 = vld [vmem:[%s165 + $0x88] sm:$0xf]
      %v3145 = vld [vmem:[%s165 + $0x8c] sm:$0xf]
      %v3146 = vld [vmem:[%s165 + $0x90] sm:$0xf]
      %v3147 = vld [vmem:[%s165 + $0x94] sm:$0xf]
      %v3148 = vld [vmem:[%s165 + $0x98] sm:$0xf]
      %v3149 = vld [vmem:[%s165 + $0x9c] sm:$0xf]
      %v3150 = vld [vmem:[%s165 + $0xa0] sm:$0xf]
      %v3151 = vld [vmem:[%s165 + $0xa4] sm:$0xf]
      %v3152 = vld [vmem:[%s165 + $0xa8] sm:$0xf]
      %v3153 = vld [vmem:[%s165 + $0xac] sm:$0xf]
      %v3154 = vld [vmem:[%s165 + $0xb0] sm:$0xf]
      %v3155 = vld [vmem:[%s165 + $0xb4] sm:$0xf]
      %v3156 = vld [vmem:[%s165 + $0xb8] sm:$0xf]
      %v3157 = vld [vmem:[%s165 + $0xbc] sm:$0xf]
      %v3158 = vld [vmem:[%s165 + $0xc0] sm:$0xf]
      %v3159 = vld [vmem:[%s165 + $0xc4] sm:$0xf]
      %v3160 = vld [vmem:[%s165 + $0xc8] sm:$0xf]
      %v3161 = vld [vmem:[%s165 + $0xcc] sm:$0xf]
      %v3162 = vld [vmem:[%s165 + $0xd0] sm:$0xf]
      %v3163 = vld [vmem:[%s165 + $0xd4] sm:$0xf]
      %v3164 = vld [vmem:[%s165 + $0xd8] sm:$0x1]
      %s3165 = scalar_lea.vmem %s1, 448
      %v3166 = vld [vmem:[%s3165] sm:$0xf]
      %v3167 = vld [vmem:[%s3165 + $0x4] sm:$0xf]
      %v3168 = vld [vmem:[%s3165 + $0x8] sm:$0xf]
      %v3169 = vld [vmem:[%s3165 + $0xc] sm:$0xf]
      %v3170 = vld [vmem:[%s3165 + $0x10] sm:$0xf]
      %v3171 = vld [vmem:[%s3165 + $0x14] sm:$0xf]
      %v3172 = vld [vmem:[%s3165 + $0x18] sm:$0xf]
      %v3173 = vld [vmem:[%s3165 + $0x1c] sm:$0xf]
      %v3174 = vld [vmem:[%s3165 + $0x20] sm:$0xf]
      %v3175 = vld [vmem:[%s3165 + $0x24] sm:$0xf]
      %v3176 = vld [vmem:[%s3165 + $0x28] sm:$0xf]
      %v3177 = vld [vmem:[%s3165 + $0x2c] sm:$0xf]
      %v3178 = vld [vmem:[%s3165 + $0x30] sm:$0xf]
      %v3179 = vld [vmem:[%s3165 + $0x34] sm:$0xf]
      %v3180 = vld [vmem:[%s3165 + $0x38] sm:$0xf]
      %v3181 = vld [vmem:[%s3165 + $0x3c] sm:$0xf]
      %v3231 = vunpack.c.l.b16 %v3116
      %v3232 = vunpack.c.l.b16 %v3117
      %v3233 = vunpack.c.l.b16 %v3118
      %v3234 = vunpack.c.l.b16 %v3119
      %v3235 = vunpack.c.l.b16 %v3120
      %v3236 = vunpack.c.l.b16 %v3121
      %v3237 = vunpack.c.l.b16 %v3122
      %v3238 = vunpack.c.l.b16 %v3123
      %v3239 = vunpack.c.l.b16 %v3124
      %v3240 = vunpack.c.l.b16 %v3125
      %v3241 = vunpack.c.l.b16 %v3126
      %v3242 = vunpack.c.l.b16 %v3127
      %v3243 = vunpack.c.l.b16 %v3128
      %v3244 = vunpack.c.l.b16 %v3129
      %v3245 = vunpack.c.l.b16 %v3130
      %v3246 = vunpack.c.l.b16 %v3131
      %v3247 = vunpack.c.l.b16 %v3132
      %v3248 = vunpack.c.l.b16 %v3133
      %v3249 = vunpack.c.l.b16 %v3134
      %v3250 = vunpack.c.l.b16 %v3135
      %v3251 = vunpack.c.l.b16 %v3136
      %v3252 = vunpack.c.l.b16 %v3137
      %v3253 = vunpack.c.l.b16 %v3138
      %v3254 = vunpack.c.l.b16 %v3139
      %v3255 = vunpack.c.l.b16 %v3140
      %v3256 = vunpack.c.l.b16 %v3141
      %v3257 = vunpack.c.l.b16 %v3142
      %v3258 = vunpack.c.l.b16 %v3143
      %v3259 = vunpack.c.l.b16 %v3144
      %v3260 = vunpack.c.l.b16 %v3145
      %v3261 = vunpack.c.l.b16 %v3146
      %v3262 = vunpack.c.l.b16 %v3147
      %v3263 = vunpack.c.l.b16 %v3148
      %v3264 = vunpack.c.l.b16 %v3149
      %v3265 = vunpack.c.l.b16 %v3150
      %v3266 = vunpack.c.l.b16 %v3151
      %v3267 = vunpack.c.l.b16 %v3152
      %v3268 = vunpack.c.l.b16 %v3153
      %v3269 = vunpack.c.l.b16 %v3154
      %v3270 = vunpack.c.l.b16 %v3155
      %v3271 = vunpack.c.l.b16 %v3156
      %v3272 = vunpack.c.l.b16 %v3157
      %v3273 = vunpack.c.l.b16 %v3158
      %v3274 = vunpack.c.l.b16 %v3159
      %v3275 = vunpack.c.l.b16 %v3160
      %v3276 = vunpack.c.l.b16 %v3161
      %v3277 = vunpack.c.l.b16 %v3162
      %v3278 = vunpack.c.l.b16 %v3163
      %v3279 = vunpack.c.l.b16 %v3164
      %v3280 = vpack.c.b16 %v3232, %v3231
      %v3281 = vpack.c.b16 %v3234, %v3233
      %v3282 = vpack.c.b16 %v3236, %v3235
      %v3283 = vpack.c.b16 %v3238, %v3237
      %v3284 = vpack.c.b16 %v3240, %v3239
      %v3285 = vpack.c.b16 %v3242, %v3241
      %v3286 = vpack.c.b16 %v3244, %v3243
      %v3287 = vpack.c.b16 %v3246, %v3245
      %v3288 = vpack.c.b16 %v3248, %v3247
      %v3289 = vpack.c.b16 %v3250, %v3249
      %v3290 = vpack.c.b16 %v3252, %v3251
      %v3291 = vpack.c.b16 %v3254, %v3253
      %v3292 = vpack.c.b16 %v3256, %v3255
      %v3293 = vpack.c.b16 %v3258, %v3257
      %v3294 = vpack.c.b16 %v3260, %v3259
      %v3295 = vpack.c.b16 %v3262, %v3261
      %v3296 = vpack.c.b16 %v3264, %v3263
      %v3297 = vpack.c.b16 %v3266, %v3265
      %v3298 = vpack.c.b16 %v3268, %v3267
      %v3299 = vpack.c.b16 %v3270, %v3269
      %v3300 = vpack.c.b16 %v3272, %v3271
      %v3301 = vpack.c.b16 %v3274, %v3273
      %v3302 = vpack.c.b16 %v3276, %v3275
      %v3303 = vpack.c.b16 %v3278, %v3277
      %v3304 = vpack.c.b16 %v3279, %v3279
      %v3306 = vshrl.u32 %v3280, 16
      %v3308 = vshll.u32 %v3280, 16
      %v3310 = vrot.slane %v3308, 1
      %v3311 = vor.u32 %v3306, %v3310
      %v3313 = vshll.u32 %v3281, 16
      %v3315 = vrot.slane %v3313, 1
      %v3316 = vsel %vm376, %v3311, %v3315
      %v3317 = vshrl.u32 %v3281, 16
      %v3319 = vor.u32 %v3317, %v3315
      %v3321 = vshll.u32 %v3282, 16
      %v3323 = vrot.slane %v3321, 1
      %v3324 = vsel %vm376, %v3319, %v3323
      %v3325 = vshrl.u32 %v3282, 16
      %v3327 = vor.u32 %v3325, %v3323
      %v3329 = vshll.u32 %v3283, 16
      %v3331 = vrot.slane %v3329, 1
      %v3332 = vsel %vm376, %v3327, %v3331
      %v3333 = vshrl.u32 %v3283, 16
      %v3335 = vor.u32 %v3333, %v3331
      %v3337 = vshll.u32 %v3284, 16
      %v3339 = vrot.slane %v3337, 1
      %v3340 = vsel %vm376, %v3335, %v3339
      %v3341 = vshrl.u32 %v3284, 16
      %v3343 = vor.u32 %v3341, %v3339
      %v3345 = vshll.u32 %v3285, 16
      %v3347 = vrot.slane %v3345, 1
      %v3348 = vsel %vm376, %v3343, %v3347
      %v3349 = vshrl.u32 %v3285, 16
      %v3351 = vor.u32 %v3349, %v3347
      %v3353 = vshll.u32 %v3286, 16
      %v3355 = vrot.slane %v3353, 1
      %v3356 = vsel %vm376, %v3351, %v3355
      %v3357 = vshrl.u32 %v3286, 16
      %v3359 = vor.u32 %v3357, %v3355
      %v3361 = vshll.u32 %v3287, 16
      %v3363 = vrot.slane %v3361, 1
      %v3364 = vsel %vm376, %v3359, %v3363
      %v3365 = vshrl.u32 %v3287, 16
      %v3367 = vor.u32 %v3365, %v3363
      %v3369 = vshll.u32 %v3288, 16
      %v3371 = vrot.slane %v3369, 1
      %v3372 = vsel %vm376, %v3367, %v3371
      %v3373 = vshrl.u32 %v3288, 16
      %v3375 = vor.u32 %v3373, %v3371
      %v3377 = vshll.u32 %v3289, 16
      %v3379 = vrot.slane %v3377, 1
      %v3380 = vsel %vm376, %v3375, %v3379
      %v3381 = vshrl.u32 %v3289, 16
      %v3383 = vor.u32 %v3381, %v3379
      %v3385 = vshll.u32 %v3290, 16
      %v3387 = vrot.slane %v3385, 1
      %v3388 = vsel %vm376, %v3383, %v3387
      %v3389 = vshrl.u32 %v3290, 16
      %v3391 = vor.u32 %v3389, %v3387
      %v3393 = vshll.u32 %v3291, 16
      %v3395 = vrot.slane %v3393, 1
      %v3396 = vsel %vm376, %v3391, %v3395
      %v3397 = vshrl.u32 %v3291, 16
      %v3399 = vor.u32 %v3397, %v3395
      %v3401 = vshll.u32 %v3292, 16
      %v3403 = vrot.slane %v3401, 1
      %v3404 = vsel %vm376, %v3399, %v3403
      %v3405 = vshrl.u32 %v3292, 16
      %v3407 = vor.u32 %v3405, %v3403
      %v3409 = vshll.u32 %v3293, 16
      %v3411 = vrot.slane %v3409, 1
      %v3412 = vsel %vm376, %v3407, %v3411
      %v3413 = vshrl.u32 %v3293, 16
      %v3415 = vor.u32 %v3413, %v3411
      %v3417 = vshll.u32 %v3294, 16
      %v3419 = vrot.slane %v3417, 1
      %v3420 = vsel %vm376, %v3415, %v3419
      %v3421 = vshrl.u32 %v3294, 16
      %v3423 = vor.u32 %v3421, %v3419
      %v3425 = vshll.u32 %v3295, 16
      %v3427 = vrot.slane %v3425, 1
      %v3428 = vsel %vm376, %v3423, %v3427
      %v3429 = vshrl.u32 %v3295, 16
      %v3431 = vor.u32 %v3429, %v3427
      %v3433 = vshll.u32 %v3296, 16
      %v3435 = vrot.slane %v3433, 1
      %v3436 = vsel %vm376, %v3431, %v3435
      %v3437 = vshrl.u32 %v3296, 16
      %v3439 = vor.u32 %v3437, %v3435
      %v3441 = vshll.u32 %v3297, 16
      %v3443 = vrot.slane %v3441, 1
      %v3444 = vsel %vm376, %v3439, %v3443
      %v3445 = vshrl.u32 %v3297, 16
      %v3447 = vor.u32 %v3445, %v3443
      %v3449 = vshll.u32 %v3298, 16
      %v3451 = vrot.slane %v3449, 1
      %v3452 = vsel %vm376, %v3447, %v3451
      %v3453 = vshrl.u32 %v3298, 16
      %v3455 = vor.u32 %v3453, %v3451
      %v3457 = vshll.u32 %v3299, 16
      %v3459 = vrot.slane %v3457, 1
      %v3460 = vsel %vm376, %v3455, %v3459
      %v3461 = vshrl.u32 %v3299, 16
      %v3463 = vor.u32 %v3461, %v3459
      %v3465 = vshll.u32 %v3300, 16
      %v3467 = vrot.slane %v3465, 1
      %v3468 = vsel %vm376, %v3463, %v3467
      %v3469 = vshrl.u32 %v3300, 16
      %v3471 = vor.u32 %v3469, %v3467
      %v3473 = vshll.u32 %v3301, 16
      %v3475 = vrot.slane %v3473, 1
      %v3476 = vsel %vm376, %v3471, %v3475
      %v3477 = vshrl.u32 %v3301, 16
      %v3479 = vor.u32 %v3477, %v3475
      %v3481 = vshll.u32 %v3302, 16
      %v3483 = vrot.slane %v3481, 1
      %v3484 = vsel %vm376, %v3479, %v3483
      %v3485 = vshrl.u32 %v3302, 16
      %v3487 = vor.u32 %v3485, %v3483
      %v3489 = vshll.u32 %v3303, 16
      %v3491 = vrot.slane %v3489, 1
      %v3492 = vsel %vm376, %v3487, %v3491
      %v3493 = vshrl.u32 %v3303, 16
      %v3495 = vor.u32 %v3493, %v3491
      %v3497 = vshll.u32 %v3304, 16
      %v3499 = vrot.slane %v3497, 1
      %v3500 = vsel %vm376, %v3495, %v3499
      %v3541 = vunpack.c.l.b16 %v3166
      %v3542 = vunpack.c.l.b16 %v3167
      %v3543 = vunpack.c.l.b16 %v3168
      %v3544 = vunpack.c.l.b16 %v3169
      %v3545 = vunpack.c.l.b16 %v3170
      %v3546 = vunpack.c.l.b16 %v3171
      %v3547 = vunpack.c.l.b16 %v3172
      %v3548 = vunpack.c.l.b16 %v3173
      %v3549 = vunpack.c.l.b16 %v3174
      %v3550 = vunpack.c.l.b16 %v3175
      %v3551 = vunpack.c.l.b16 %v3176
      %v3552 = vunpack.c.l.b16 %v3177
      %v3553 = vunpack.c.l.b16 %v3178
      %v3554 = vunpack.c.l.b16 %v3179
      %v3555 = vunpack.c.l.b16 %v3180
      %v3556 = vunpack.c.l.b16 %v3181
      %v3557 = vpack.c.b16 %v3542, %v3541
      %v3558 = vpack.c.b16 %v3544, %v3543
      %v3559 = vpack.c.b16 %v3546, %v3545
      %v3560 = vpack.c.b16 %v3548, %v3547
      %v3561 = vpack.c.b16 %v3550, %v3549
      %v3562 = vpack.c.b16 %v3552, %v3551
      %v3563 = vpack.c.b16 %v3554, %v3553
      %v3564 = vpack.c.b16 %v3556, %v3555
      %3573 = vmatpush.bf16.msra.mxu0 %v3564
      %3574 = vmatpush.bf16.msra.mxu0 %v3563
      %3575 = vmatpush.bf16.msra.mxu0 %v3562
      %3576 = vmatpush.bf16.msra.mxu0 %v3561
      %3577 = vmatpush.bf16.msra.mxu0 %v3560
      %3578 = vmatpush.bf16.msra.mxu0 %v3559
      %3579 = vmatpush.bf16.msra.mxu0 %v3558
      %3580 = vmatpush.bf16.msra.mxu0 %v3557
      %3581 = vmatmul.bf16.gmra.mxu0 %v3316
      %v3582 = vpop.f32.mrf.mxu0
      %v3583 = vadd.f32 0.0, %v3582
      %v3584 = vpop.f32.mrf.mxu0
      %v3585 = vadd.f32 0.0, %v3584
      %3586 = vmatmul.bf16.gmra.mxu0 %v3324
      %v3587 = vpop.f32.mrf.mxu0
      %v3588 = vadd.f32 0.0, %v3587
      %v3589 = vpop.f32.mrf.mxu0
      %v3590 = vadd.f32 0.0, %v3589
      %3591 = vmatmul.bf16.gmra.mxu0 %v3332
      %v3592 = vpop.f32.mrf.mxu0
      %v3593 = vadd.f32 0.0, %v3592
      %v3594 = vpop.f32.mrf.mxu0
      %v3595 = vadd.f32 0.0, %v3594
      %3596 = vmatmul.bf16.gmra.mxu0 %v3340
      %v3597 = vpop.f32.mrf.mxu0
      %v3598 = vadd.f32 0.0, %v3597
      %v3599 = vpop.f32.mrf.mxu0
      %v3600 = vadd.f32 0.0, %v3599
      %3601 = vmatmul.bf16.gmra.mxu0 %v3348
      %v3602 = vpop.f32.mrf.mxu0
      %v3603 = vadd.f32 0.0, %v3602
      %v3604 = vpop.f32.mrf.mxu0
      %v3605 = vadd.f32 0.0, %v3604
      %3606 = vmatmul.bf16.gmra.mxu0 %v3356
      %v3607 = vpop.f32.mrf.mxu0
      %v3608 = vadd.f32 0.0, %v3607
      %v3609 = vpop.f32.mrf.mxu0
      %v3610 = vadd.f32 0.0, %v3609
      %3611 = vmatmul.bf16.gmra.mxu0 %v3364
      %v3612 = vpop.f32.mrf.mxu0
      %v3613 = vadd.f32 0.0, %v3612
      %v3614 = vpop.f32.mrf.mxu0
      %v3615 = vadd.f32 0.0, %v3614
      %3616 = vmatmul.bf16.gmra.mxu0 %v3372
      %v3617 = vpop.f32.mrf.mxu0
      %v3618 = vadd.f32 0.0, %v3617
      %v3619 = vpop.f32.mrf.mxu0
      %v3620 = vadd.f32 0.0, %v3619
      %3621 = vmatmul.bf16.gmra.mxu0 %v3380
      %v3622 = vpop.f32.mrf.mxu0
      %v3623 = vadd.f32 0.0, %v3622
      %v3624 = vpop.f32.mrf.mxu0
      %v3625 = vadd.f32 0.0, %v3624
      %3626 = vmatmul.bf16.gmra.mxu0 %v3388
      %v3627 = vpop.f32.mrf.mxu0
      %v3628 = vadd.f32 0.0, %v3627
      %v3629 = vpop.f32.mrf.mxu0
      %v3630 = vadd.f32 0.0, %v3629
      %3631 = vmatmul.bf16.gmra.mxu0 %v3396
      %v3632 = vpop.f32.mrf.mxu0
      %v3633 = vadd.f32 0.0, %v3632
      %v3634 = vpop.f32.mrf.mxu0
      %v3635 = vadd.f32 0.0, %v3634
      %3636 = vmatmul.bf16.gmra.mxu0 %v3404
      %v3637 = vpop.f32.mrf.mxu0
      %v3638 = vadd.f32 0.0, %v3637
      %v3639 = vpop.f32.mrf.mxu0
      %v3640 = vadd.f32 0.0, %v3639
      %3641 = vmatmul.bf16.gmra.mxu0 %v3412
      %v3642 = vpop.f32.mrf.mxu0
      %v3643 = vadd.f32 0.0, %v3642
      %v3644 = vpop.f32.mrf.mxu0
      %v3645 = vadd.f32 0.0, %v3644
      %3646 = vmatmul.bf16.gmra.mxu0 %v3420
      %v3647 = vpop.f32.mrf.mxu0
      %v3648 = vadd.f32 0.0, %v3647
      %v3649 = vpop.f32.mrf.mxu0
      %v3650 = vadd.f32 0.0, %v3649
      %3651 = vmatmul.bf16.gmra.mxu0 %v3428
      %v3652 = vpop.f32.mrf.mxu0
      %v3653 = vadd.f32 0.0, %v3652
      %v3654 = vpop.f32.mrf.mxu0
      %v3655 = vadd.f32 0.0, %v3654
      %3656 = vmatmul.bf16.gmra.mxu0 %v3436
      %v3657 = vpop.f32.mrf.mxu0
      %v3658 = vadd.f32 0.0, %v3657
      %v3659 = vpop.f32.mrf.mxu0
      %v3660 = vadd.f32 0.0, %v3659
      %3661 = vmatmul.bf16.gmra.mxu0 %v3444
      %v3662 = vpop.f32.mrf.mxu0
      %v3663 = vadd.f32 0.0, %v3662
      %v3664 = vpop.f32.mrf.mxu0
      %v3665 = vadd.f32 0.0, %v3664
      %3666 = vmatmul.bf16.gmra.mxu0 %v3452
      %v3667 = vpop.f32.mrf.mxu0
      %v3668 = vadd.f32 0.0, %v3667
      %v3669 = vpop.f32.mrf.mxu0
      %v3670 = vadd.f32 0.0, %v3669
      %3671 = vmatmul.bf16.gmra.mxu0 %v3460
      %v3672 = vpop.f32.mrf.mxu0
      %v3673 = vadd.f32 0.0, %v3672
      %v3674 = vpop.f32.mrf.mxu0
      %v3675 = vadd.f32 0.0, %v3674
      %3676 = vmatmul.bf16.gmra.mxu0 %v3468
      %v3677 = vpop.f32.mrf.mxu0
      %v3678 = vadd.f32 0.0, %v3677
      %v3679 = vpop.f32.mrf.mxu0
      %v3680 = vadd.f32 0.0, %v3679
      %3681 = vmatmul.bf16.gmra.mxu0 %v3476
      %v3682 = vpop.f32.mrf.mxu0
      %v3683 = vadd.f32 0.0, %v3682
      %v3684 = vpop.f32.mrf.mxu0
      %v3685 = vadd.f32 0.0, %v3684
      %3686 = vmatmul.bf16.gmra.mxu0 %v3484
      %v3687 = vpop.f32.mrf.mxu0
      %v3688 = vadd.f32 0.0, %v3687
      %v3689 = vpop.f32.mrf.mxu0
      %v3690 = vadd.f32 0.0, %v3689
      %3691 = vmatmul.bf16.gmra.mxu0 %v3492
      %v3692 = vpop.f32.mrf.mxu0
      %v3693 = vadd.f32 0.0, %v3692
      %v3694 = vpop.f32.mrf.mxu0
      %v3695 = vadd.f32 0.0, %v3694
      %3696 = vmatmul.bf16.gmra.mxu0 %v3500
      %v3697 = vpop.f32.mrf.mxu0
      %v3698 = vadd.f32 0.0, %v3697
      %v3699 = vpop.f32.mrf.mxu0
      %v3700 = vadd.f32 0.0, %v3699
      %3701 = vdwg.mxu0
      %v3702 = vadd.f32 %v3068, %v3583
      %v3703 = vadd.f32 %v3069, %v3585
      %v3704 = vadd.f32 %v3070, %v3588
      %v3705 = vadd.f32 %v3071, %v3590
      %v3706 = vadd.f32 %v3072, %v3593
      %v3707 = vadd.f32 %v3073, %v3595
      %v3708 = vadd.f32 %v3074, %v3598
      %v3709 = vadd.f32 %v3075, %v3600
      %v3710 = vadd.f32 %v3076, %v3603
      %v3711 = vadd.f32 %v3077, %v3605
      %v3712 = vadd.f32 %v3078, %v3608
      %v3713 = vadd.f32 %v3079, %v3610
      %v3714 = vadd.f32 %v3080, %v3613
      %v3715 = vadd.f32 %v3081, %v3615
      %v3716 = vadd.f32 %v3082, %v3618
      %v3717 = vadd.f32 %v3083, %v3620
      %v3718 = vadd.f32 %v3084, %v3623
      %v3719 = vadd.f32 %v3085, %v3625
      %v3720 = vadd.f32 %v3086, %v3628
      %v3721 = vadd.f32 %v3087, %v3630
      %v3722 = vadd.f32 %v3088, %v3633
      %v3723 = vadd.f32 %v3089, %v3635
      %v3724 = vadd.f32 %v3090, %v3638
      %v3725 = vadd.f32 %v3091, %v3640
      %v3726 = vadd.f32 %v3092, %v3643
      %v3727 = vadd.f32 %v3093, %v3645
      %v3728 = vadd.f32 %v3094, %v3648
      %v3729 = vadd.f32 %v3095, %v3650
      %v3730 = vadd.f32 %v3096, %v3653
      %v3731 = vadd.f32 %v3097, %v3655
      %v3732 = vadd.f32 %v3098, %v3658
      %v3733 = vadd.f32 %v3099, %v3660
      %v3734 = vadd.f32 %v3100, %v3663
      %v3735 = vadd.f32 %v3101, %v3665
      %v3736 = vadd.f32 %v3102, %v3668
      %v3737 = vadd.f32 %v3103, %v3670
      %v3738 = vadd.f32 %v3104, %v3673
      %v3739 = vadd.f32 %v3105, %v3675
      %v3740 = vadd.f32 %v3106, %v3678
      %v3741 = vadd.f32 %v3107, %v3680
      %v3742 = vadd.f32 %v3108, %v3683
      %v3743 = vadd.f32 %v3109, %v3685
      %v3744 = vadd.f32 %v3110, %v3688
      %v3745 = vadd.f32 %v3111, %v3690
      %v3746 = vadd.f32 %v3112, %v3693
      %v3747 = vadd.f32 %v3113, %v3695
      %v3748 = vadd.f32 %v3114, %v3698
      %v3749 = vadd.f32 %v3115, %v3700
      %v3750 = vld [vmem:[%s165 + $0x18] sm:$0xe]
      %s3751 = scalar_lea.vmem %s1, 512
      %v3752 = vld [vmem:[%s3751] sm:$0xf]
      %v3753 = vld [vmem:[%s3751 + $0x4] sm:$0xf]
      %v3754 = vld [vmem:[%s3751 + $0x8] sm:$0xf]
      %v3755 = vld [vmem:[%s3751 + $0xc] sm:$0xf]
      %v3756 = vld [vmem:[%s3751 + $0x10] sm:$0xf]
      %v3757 = vld [vmem:[%s3751 + $0x14] sm:$0xf]
      %v3758 = vld [vmem:[%s3751 + $0x18] sm:$0xf]
      %v3759 = vld [vmem:[%s3751 + $0x1c] sm:$0xf]
      %v3760 = vld [vmem:[%s3751 + $0x20] sm:$0xf]
      %v3761 = vld [vmem:[%s3751 + $0x24] sm:$0xf]
      %v3762 = vld [vmem:[%s3751 + $0x28] sm:$0xf]
      %v3763 = vld [vmem:[%s3751 + $0x2c] sm:$0xf]
      %v3764 = vld [vmem:[%s3751 + $0x30] sm:$0xf]
      %v3765 = vld [vmem:[%s3751 + $0x34] sm:$0xf]
      %v3766 = vld [vmem:[%s3751 + $0x38] sm:$0xf]
      %v3767 = vld [vmem:[%s3751 + $0x3c] sm:$0xf]
      %v3769 = vunpack.c.l.b16 %v3750
      %v3770 = vpack.c.b16 %v3232, %v3769
      %v3771 = vrot.slane %v3770, 1
      %v3772 = vrot.slane %v3281, 1
      %v3773 = vsel %vm996, %v3771, %v3772
      %v3774 = vrot.slane %v3282, 1
      %v3775 = vsel %vm996, %v3772, %v3774
      %v3776 = vrot.slane %v3283, 1
      %v3777 = vsel %vm996, %v3774, %v3776
      %v3778 = vrot.slane %v3284, 1
      %v3779 = vsel %vm996, %v3776, %v3778
      %v3780 = vrot.slane %v3285, 1
      %v3781 = vsel %vm996, %v3778, %v3780
      %v3782 = vrot.slane %v3286, 1
      %v3783 = vsel %vm996, %v3780, %v3782
      %v3784 = vrot.slane %v3287, 1
      %v3785 = vsel %vm996, %v3782, %v3784
      %v3786 = vrot.slane %v3288, 1
      %v3787 = vsel %vm996, %v3784, %v3786
      %v3788 = vrot.slane %v3289, 1
      %v3789 = vsel %vm996, %v3786, %v3788
      %v3790 = vrot.slane %v3290, 1
      %v3791 = vsel %vm996, %v3788, %v3790
      %v3792 = vrot.slane %v3291, 1
      %v3793 = vsel %vm996, %v3790, %v3792
      %v3794 = vrot.slane %v3292, 1
      %v3795 = vsel %vm996, %v3792, %v3794
      %v3796 = vrot.slane %v3293, 1
      %v3797 = vsel %vm996, %v3794, %v3796
      %v3798 = vrot.slane %v3294, 1
      %v3799 = vsel %vm996, %v3796, %v3798
      %v3800 = vrot.slane %v3295, 1
      %v3801 = vsel %vm996, %v3798, %v3800
      %v3802 = vrot.slane %v3296, 1
      %v3803 = vsel %vm996, %v3800, %v3802
      %v3804 = vrot.slane %v3297, 1
      %v3805 = vsel %vm996, %v3802, %v3804
      %v3806 = vrot.slane %v3298, 1
      %v3807 = vsel %vm996, %v3804, %v3806
      %v3808 = vrot.slane %v3299, 1
      %v3809 = vsel %vm996, %v3806, %v3808
      %v3810 = vrot.slane %v3300, 1
      %v3811 = vsel %vm996, %v3808, %v3810
      %v3812 = vrot.slane %v3301, 1
      %v3813 = vsel %vm996, %v3810, %v3812
      %v3814 = vrot.slane %v3302, 1
      %v3815 = vsel %vm996, %v3812, %v3814
      %v3816 = vrot.slane %v3303, 1
      %v3817 = vsel %vm996, %v3814, %v3816
      %v3818 = vrot.slane %v3304, 1
      %v3819 = vsel %vm996, %v3816, %v3818
      %v3860 = vunpack.c.l.b16 %v3752
      %v3861 = vunpack.c.l.b16 %v3753
      %v3862 = vunpack.c.l.b16 %v3754
      %v3863 = vunpack.c.l.b16 %v3755
      %v3864 = vunpack.c.l.b16 %v3756
      %v3865 = vunpack.c.l.b16 %v3757
      %v3866 = vunpack.c.l.b16 %v3758
      %v3867 = vunpack.c.l.b16 %v3759
      %v3868 = vunpack.c.l.b16 %v3760
      %v3869 = vunpack.c.l.b16 %v3761
      %v3870 = vunpack.c.l.b16 %v3762
      %v3871 = vunpack.c.l.b16 %v3763
      %v3872 = vunpack.c.l.b16 %v3764
      %v3873 = vunpack.c.l.b16 %v3765
      %v3874 = vunpack.c.l.b16 %v3766
      %v3875 = vunpack.c.l.b16 %v3767
      %v3876 = vpack.c.b16 %v3861, %v3860
      %v3877 = vpack.c.b16 %v3863, %v3862
      %v3878 = vpack.c.b16 %v3865, %v3864
      %v3879 = vpack.c.b16 %v3867, %v3866
      %v3880 = vpack.c.b16 %v3869, %v3868
      %v3881 = vpack.c.b16 %v3871, %v3870
      %v3882 = vpack.c.b16 %v3873, %v3872
      %v3883 = vpack.c.b16 %v3875, %v3874
      %3892 = vmatpush.bf16.msra.mxu0 %v3883
      %3893 = vmatpush.bf16.msra.mxu0 %v3882
      %3894 = vmatpush.bf16.msra.mxu0 %v3881
      %3895 = vmatpush.bf16.msra.mxu0 %v3880
      %3896 = vmatpush.bf16.msra.mxu0 %v3879
      %3897 = vmatpush.bf16.msra.mxu0 %v3878
      %3898 = vmatpush.bf16.msra.mxu0 %v3877
      %3899 = vmatpush.bf16.msra.mxu0 %v3876
      %3900 = vmatmul.bf16.gmra.mxu0 %v3773
      %v3901 = vpop.f32.mrf.mxu0
      %v3902 = vadd.f32 0.0, %v3901
      %v3903 = vpop.f32.mrf.mxu0
      %v3904 = vadd.f32 0.0, %v3903
      %3905 = vmatmul.bf16.gmra.mxu0 %v3775
      %v3906 = vpop.f32.mrf.mxu0
      %v3907 = vadd.f32 0.0, %v3906
      %v3908 = vpop.f32.mrf.mxu0
      %v3909 = vadd.f32 0.0, %v3908
      %3910 = vmatmul.bf16.gmra.mxu0 %v3777
      %v3911 = vpop.f32.mrf.mxu0
      %v3912 = vadd.f32 0.0, %v3911
      %v3913 = vpop.f32.mrf.mxu0
      %v3914 = vadd.f32 0.0, %v3913
      %3915 = vmatmul.bf16.gmra.mxu0 %v3779
      %v3916 = vpop.f32.mrf.mxu0
      %v3917 = vadd.f32 0.0, %v3916
      %v3918 = vpop.f32.mrf.mxu0
      %v3919 = vadd.f32 0.0, %v3918
      %3920 = vmatmul.bf16.gmra.mxu0 %v3781
      %v3921 = vpop.f32.mrf.mxu0
      %v3922 = vadd.f32 0.0, %v3921
      %v3923 = vpop.f32.mrf.mxu0
      %v3924 = vadd.f32 0.0, %v3923
      %3925 = vmatmul.bf16.gmra.mxu0 %v3783
      %v3926 = vpop.f32.mrf.mxu0
      %v3927 = vadd.f32 0.0, %v3926
      %v3928 = vpop.f32.mrf.mxu0
      %v3929 = vadd.f32 0.0, %v3928
      %3930 = vmatmul.bf16.gmra.mxu0 %v3785
      %v3931 = vpop.f32.mrf.mxu0
      %v3932 = vadd.f32 0.0, %v3931
      %v3933 = vpop.f32.mrf.mxu0
      %v3934 = vadd.f32 0.0, %v3933
      %3935 = vmatmul.bf16.gmra.mxu0 %v3787
      %v3936 = vpop.f32.mrf.mxu0
      %v3937 = vadd.f32 0.0, %v3936
      %v3938 = vpop.f32.mrf.mxu0
      %v3939 = vadd.f32 0.0, %v3938
      %3940 = vmatmul.bf16.gmra.mxu0 %v3789
      %v3941 = vpop.f32.mrf.mxu0
      %v3942 = vadd.f32 0.0, %v3941
      %v3943 = vpop.f32.mrf.mxu0
      %v3944 = vadd.f32 0.0, %v3943
      %3945 = vmatmul.bf16.gmra.mxu0 %v3791
      %v3946 = vpop.f32.mrf.mxu0
      %v3947 = vadd.f32 0.0, %v3946
      %v3948 = vpop.f32.mrf.mxu0
      %v3949 = vadd.f32 0.0, %v3948
      %3950 = vmatmul.bf16.gmra.mxu0 %v3793
      %v3951 = vpop.f32.mrf.mxu0
      %v3952 = vadd.f32 0.0, %v3951
      %v3953 = vpop.f32.mrf.mxu0
      %v3954 = vadd.f32 0.0, %v3953
      %3955 = vmatmul.bf16.gmra.mxu0 %v3795
      %v3956 = vpop.f32.mrf.mxu0
      %v3957 = vadd.f32 0.0, %v3956
      %v3958 = vpop.f32.mrf.mxu0
      %v3959 = vadd.f32 0.0, %v3958
      %3960 = vmatmul.bf16.gmra.mxu0 %v3797
      %v3961 = vpop.f32.mrf.mxu0
      %v3962 = vadd.f32 0.0, %v3961
      %v3963 = vpop.f32.mrf.mxu0
      %v3964 = vadd.f32 0.0, %v3963
      %3965 = vmatmul.bf16.gmra.mxu0 %v3799
      %v3966 = vpop.f32.mrf.mxu0
      %v3967 = vadd.f32 0.0, %v3966
      %v3968 = vpop.f32.mrf.mxu0
      %v3969 = vadd.f32 0.0, %v3968
      %3970 = vmatmul.bf16.gmra.mxu0 %v3801
      %v3971 = vpop.f32.mrf.mxu0
      %v3972 = vadd.f32 0.0, %v3971
      %v3973 = vpop.f32.mrf.mxu0
      %v3974 = vadd.f32 0.0, %v3973
      %3975 = vmatmul.bf16.gmra.mxu0 %v3803
      %v3976 = vpop.f32.mrf.mxu0
      %v3977 = vadd.f32 0.0, %v3976
      %v3978 = vpop.f32.mrf.mxu0
      %v3979 = vadd.f32 0.0, %v3978
      %3980 = vmatmul.bf16.gmra.mxu0 %v3805
      %v3981 = vpop.f32.mrf.mxu0
      %v3982 = vadd.f32 0.0, %v3981
      %v3983 = vpop.f32.mrf.mxu0
      %v3984 = vadd.f32 0.0, %v3983
      %3985 = vmatmul.bf16.gmra.mxu0 %v3807
      %v3986 = vpop.f32.mrf.mxu0
      %v3987 = vadd.f32 0.0, %v3986
      %v3988 = vpop.f32.mrf.mxu0
      %v3989 = vadd.f32 0.0, %v3988
      %3990 = vmatmul.bf16.gmra.mxu0 %v3809
      %v3991 = vpop.f32.mrf.mxu0
      %v3992 = vadd.f32 0.0, %v3991
      %v3993 = vpop.f32.mrf.mxu0
      %v3994 = vadd.f32 0.0, %v3993
      %3995 = vmatmul.bf16.gmra.mxu0 %v3811
      %v3996 = vpop.f32.mrf.mxu0
      %v3997 = vadd.f32 0.0, %v3996
      %v3998 = vpop.f32.mrf.mxu0
      %v3999 = vadd.f32 0.0, %v3998
      %4000 = vmatmul.bf16.gmra.mxu0 %v3813
      %v4001 = vpop.f32.mrf.mxu0
      %v4002 = vadd.f32 0.0, %v4001
      %v4003 = vpop.f32.mrf.mxu0
      %v4004 = vadd.f32 0.0, %v4003
      %4005 = vmatmul.bf16.gmra.mxu0 %v3815
      %v4006 = vpop.f32.mrf.mxu0
      %v4007 = vadd.f32 0.0, %v4006
      %v4008 = vpop.f32.mrf.mxu0
      %v4009 = vadd.f32 0.0, %v4008
      %4010 = vmatmul.bf16.gmra.mxu0 %v3817
      %v4011 = vpop.f32.mrf.mxu0
      %v4012 = vadd.f32 0.0, %v4011
      %v4013 = vpop.f32.mrf.mxu0
      %v4014 = vadd.f32 0.0, %v4013
      %4015 = vmatmul.bf16.gmra.mxu0 %v3819
      %v4016 = vpop.f32.mrf.mxu0
      %v4017 = vadd.f32 0.0, %v4016
      %v4018 = vpop.f32.mrf.mxu0
      %v4019 = vadd.f32 0.0, %v4018
      %4020 = vdwg.mxu0
      %v4021 = vadd.f32 %v3702, %v3902
      %v4022 = vadd.f32 %v3703, %v3904
      %v4023 = vadd.f32 %v3704, %v3907
      %v4024 = vadd.f32 %v3705, %v3909
      %v4025 = vadd.f32 %v3706, %v3912
      %v4026 = vadd.f32 %v3707, %v3914
      %v4027 = vadd.f32 %v3708, %v3917
      %v4028 = vadd.f32 %v3709, %v3919
      %v4029 = vadd.f32 %v3710, %v3922
      %v4030 = vadd.f32 %v3711, %v3924
      %v4031 = vadd.f32 %v3712, %v3927
      %v4032 = vadd.f32 %v3713, %v3929
      %v4033 = vadd.f32 %v3714, %v3932
      %v4034 = vadd.f32 %v3715, %v3934
      %v4035 = vadd.f32 %v3716, %v3937
      %v4036 = vadd.f32 %v3717, %v3939
      %v4037 = vadd.f32 %v3718, %v3942
      %v4038 = vadd.f32 %v3719, %v3944
      %v4039 = vadd.f32 %v3720, %v3947
      %v4040 = vadd.f32 %v3721, %v3949
      %v4041 = vadd.f32 %v3722, %v3952
      %v4042 = vadd.f32 %v3723, %v3954
      %v4043 = vadd.f32 %v3724, %v3957
      %v4044 = vadd.f32 %v3725, %v3959
      %v4045 = vadd.f32 %v3726, %v3962
      %v4046 = vadd.f32 %v3727, %v3964
      %v4047 = vadd.f32 %v3728, %v3967
      %v4048 = vadd.f32 %v3729, %v3969
      %v4049 = vadd.f32 %v3730, %v3972
      %v4050 = vadd.f32 %v3731, %v3974
      %v4051 = vadd.f32 %v3732, %v3977
      %v4052 = vadd.f32 %v3733, %v3979
      %v4053 = vadd.f32 %v3734, %v3982
      %v4054 = vadd.f32 %v3735, %v3984
      %v4055 = vadd.f32 %v3736, %v3987
      %v4056 = vadd.f32 %v3737, %v3989
      %v4057 = vadd.f32 %v3738, %v3992
      %v4058 = vadd.f32 %v3739, %v3994
      %v4059 = vadd.f32 %v3740, %v3997
      %v4060 = vadd.f32 %v3741, %v3999
      %v4061 = vadd.f32 %v3742, %v4002
      %v4062 = vadd.f32 %v3743, %v4004
      %v4063 = vadd.f32 %v3744, %v4007
      %v4064 = vadd.f32 %v3745, %v4009
      %v4065 = vadd.f32 %v3746, %v4012
      %v4066 = vadd.f32 %v3747, %v4014
      %v4067 = vadd.f32 %v3748, %v4017
      %v4068 = vadd.f32 %v3749, %v4019
      %v4069 = vld [vmem:[%s2] sm:$0x1]
      %v4071 = vperm.slane %v4069, 0
      %v4073 = vadd.f32 %v4021, %v4071
      %v4074 = vadd.f32 %v4022, %v4071
      %v4075 = vadd.f32 %v4023, %v4071
      %v4076 = vadd.f32 %v4024, %v4071
      %v4077 = vadd.f32 %v4025, %v4071
      %v4078 = vadd.f32 %v4026, %v4071
      %v4079 = vadd.f32 %v4027, %v4071
      %v4080 = vadd.f32 %v4028, %v4071
      %v4081 = vadd.f32 %v4029, %v4071
      %v4082 = vadd.f32 %v4030, %v4071
      %v4083 = vadd.f32 %v4031, %v4071
      %v4084 = vadd.f32 %v4032, %v4071
      %v4085 = vadd.f32 %v4033, %v4071
      %v4086 = vadd.f32 %v4034, %v4071
      %v4087 = vadd.f32 %v4035, %v4071
      %v4088 = vadd.f32 %v4036, %v4071
      %v4089 = vadd.f32 %v4037, %v4071
      %v4090 = vadd.f32 %v4038, %v4071
      %v4091 = vadd.f32 %v4039, %v4071
      %v4092 = vadd.f32 %v4040, %v4071
      %v4093 = vadd.f32 %v4041, %v4071
      %v4094 = vadd.f32 %v4042, %v4071
      %v4095 = vadd.f32 %v4043, %v4071
      %v4096 = vadd.f32 %v4044, %v4071
      %v4097 = vadd.f32 %v4045, %v4071
      %v4098 = vadd.f32 %v4046, %v4071
      %v4099 = vadd.f32 %v4047, %v4071
      %v4100 = vadd.f32 %v4048, %v4071
      %v4101 = vadd.f32 %v4049, %v4071
      %v4102 = vadd.f32 %v4050, %v4071
      %v4103 = vadd.f32 %v4051, %v4071
      %v4104 = vadd.f32 %v4052, %v4071
      %v4105 = vadd.f32 %v4053, %v4071
      %v4106 = vadd.f32 %v4054, %v4071
      %v4107 = vadd.f32 %v4055, %v4071
      %v4108 = vadd.f32 %v4056, %v4071
      %v4109 = vadd.f32 %v4057, %v4071
      %v4110 = vadd.f32 %v4058, %v4071
      %v4111 = vadd.f32 %v4059, %v4071
      %v4112 = vadd.f32 %v4060, %v4071
      %v4113 = vadd.f32 %v4061, %v4071
      %v4114 = vadd.f32 %v4062, %v4071
      %v4115 = vadd.f32 %v4063, %v4071
      %v4116 = vadd.f32 %v4064, %v4071
      %v4117 = vadd.f32 %v4065, %v4071
      %v4118 = vadd.f32 %v4066, %v4071
      %v4119 = vadd.f32 %v4067, %v4071
      %v4120 = vadd.f32 %v4068, %v4071
      %v4121 = vpack.c.bf16 %v4073, %v4073
      %v4122 = vpack.c.bf16 %v4074, %v4074
      %v4123 = vpack.c.bf16 %v4075, %v4075
      %v4124 = vpack.c.bf16 %v4076, %v4076
      %v4125 = vpack.c.bf16 %v4077, %v4077
      %v4126 = vpack.c.bf16 %v4078, %v4078
      %v4127 = vpack.c.bf16 %v4079, %v4079
      %v4128 = vpack.c.bf16 %v4080, %v4080
      %v4129 = vpack.c.bf16 %v4081, %v4081
      %v4130 = vpack.c.bf16 %v4082, %v4082
      %v4131 = vpack.c.bf16 %v4083, %v4083
      %v4132 = vpack.c.bf16 %v4084, %v4084
      %v4133 = vpack.c.bf16 %v4085, %v4085
      %v4134 = vpack.c.bf16 %v4086, %v4086
      %v4135 = vpack.c.bf16 %v4087, %v4087
      %v4136 = vpack.c.bf16 %v4088, %v4088
      %v4137 = vpack.c.bf16 %v4089, %v4089
      %v4138 = vpack.c.bf16 %v4090, %v4090
      %v4139 = vpack.c.bf16 %v4091, %v4091
      %v4140 = vpack.c.bf16 %v4092, %v4092
      %v4141 = vpack.c.bf16 %v4093, %v4093
      %v4142 = vpack.c.bf16 %v4094, %v4094
      %v4143 = vpack.c.bf16 %v4095, %v4095
      %v4144 = vpack.c.bf16 %v4096, %v4096
      %v4145 = vpack.c.bf16 %v4097, %v4097
      %v4146 = vpack.c.bf16 %v4098, %v4098
      %v4147 = vpack.c.bf16 %v4099, %v4099
      %v4148 = vpack.c.bf16 %v4100, %v4100
      %v4149 = vpack.c.bf16 %v4101, %v4101
      %v4150 = vpack.c.bf16 %v4102, %v4102
      %v4151 = vpack.c.bf16 %v4103, %v4103
      %v4152 = vpack.c.bf16 %v4104, %v4104
      %v4153 = vpack.c.bf16 %v4105, %v4105
      %v4154 = vpack.c.bf16 %v4106, %v4106
      %v4155 = vpack.c.bf16 %v4107, %v4107
      %v4156 = vpack.c.bf16 %v4108, %v4108
      %v4157 = vpack.c.bf16 %v4109, %v4109
      %v4158 = vpack.c.bf16 %v4110, %v4110
      %v4159 = vpack.c.bf16 %v4111, %v4111
      %v4160 = vpack.c.bf16 %v4112, %v4112
      %v4161 = vpack.c.bf16 %v4113, %v4113
      %v4162 = vpack.c.bf16 %v4114, %v4114
      %v4163 = vpack.c.bf16 %v4115, %v4115
      %v4164 = vpack.c.bf16 %v4116, %v4116
      %v4165 = vpack.c.bf16 %v4117, %v4117
      %v4166 = vpack.c.bf16 %v4118, %v4118
      %v4167 = vpack.c.bf16 %v4119, %v4119
      %v4168 = vpack.c.bf16 %v4120, %v4120
      %4169 = vst [vmem:[%s170] sm:$0xf] %v4121
      %4170 = vst [vmem:[%s170 + $0x4] sm:$0xf] %v4122
      %4171 = vst [vmem:[%s170 + $0x8] sm:$0xf] %v4123
      %4172 = vst [vmem:[%s170 + $0xc] sm:$0xf] %v4124
      %4173 = vst [vmem:[%s170 + $0x10] sm:$0xf] %v4125
      %4174 = vst [vmem:[%s170 + $0x14] sm:$0xf] %v4126
      %4175 = vst [vmem:[%s170 + $0x18] sm:$0xf] %v4127
      %4176 = vst [vmem:[%s170 + $0x1c] sm:$0xf] %v4128
      %4177 = vst [vmem:[%s170 + $0x20] sm:$0xf] %v4129
      %4178 = vst [vmem:[%s170 + $0x24] sm:$0xf] %v4130
      %4179 = vst [vmem:[%s170 + $0x28] sm:$0xf] %v4131
      %4180 = vst [vmem:[%s170 + $0x2c] sm:$0xf] %v4132
      %4181 = vst [vmem:[%s170 + $0x30] sm:$0xf] %v4133
      %4182 = vst [vmem:[%s170 + $0x34] sm:$0xf] %v4134
      %4183 = vst [vmem:[%s170 + $0x38] sm:$0xf] %v4135
      %4184 = vst [vmem:[%s170 + $0x3c] sm:$0xf] %v4136
      %4185 = vst [vmem:[%s170 + $0x40] sm:$0xf] %v4137
      %4186 = vst [vmem:[%s170 + $0x44] sm:$0xf] %v4138
      %4187 = vst [vmem:[%s170 + $0x48] sm:$0xf] %v4139
      %4188 = vst [vmem:[%s170 + $0x4c] sm:$0xf] %v4140
      %4189 = vst [vmem:[%s170 + $0x50] sm:$0xf] %v4141
      %4190 = vst [vmem:[%s170 + $0x54] sm:$0xf] %v4142
      %4191 = vst [vmem:[%s170 + $0x58] sm:$0xf] %v4143
      %4192 = vst [vmem:[%s170 + $0x5c] sm:$0xf] %v4144
      %4193 = vst [vmem:[%s170 + $0x60] sm:$0xf] %v4145
      %4194 = vst [vmem:[%s170 + $0x64] sm:$0xf] %v4146
      %4195 = vst [vmem:[%s170 + $0x68] sm:$0xf] %v4147
      %4196 = vst [vmem:[%s170 + $0x6c] sm:$0xf] %v4148
      %4197 = vst [vmem:[%s170 + $0x70] sm:$0xf] %v4149
      %4198 = vst [vmem:[%s170 + $0x74] sm:$0xf] %v4150
      %4199 = vst [vmem:[%s170 + $0x78] sm:$0xf] %v4151
      %4200 = vst [vmem:[%s170 + $0x7c] sm:$0xf] %v4152
      %4201 = vst [vmem:[%s170 + $0x80] sm:$0xf] %v4153
      %4202 = vst [vmem:[%s170 + $0x84] sm:$0xf] %v4154
      %4203 = vst [vmem:[%s170 + $0x88] sm:$0xf] %v4155
      %4204 = vst [vmem:[%s170 + $0x8c] sm:$0xf] %v4156
      %4205 = vst [vmem:[%s170 + $0x90] sm:$0xf] %v4157
      %4206 = vst [vmem:[%s170 + $0x94] sm:$0xf] %v4158
      %4207 = vst [vmem:[%s170 + $0x98] sm:$0xf] %v4159
      %4208 = vst [vmem:[%s170 + $0x9c] sm:$0xf] %v4160
      %4209 = vst [vmem:[%s170 + $0xa0] sm:$0xf] %v4161
      %4210 = vst [vmem:[%s170 + $0xa4] sm:$0xf] %v4162
      %4211 = vst [vmem:[%s170 + $0xa8] sm:$0xf] %v4163
      %4212 = vst [vmem:[%s170 + $0xac] sm:$0xf] %v4164
      %4213 = vst [vmem:[%s170 + $0xb0] sm:$0xf] %v4165
      %4214 = vst [vmem:[%s170 + $0xb4] sm:$0xf] %v4166
      %4215 = vst [vmem:[%s170 + $0xb8] sm:$0xf] %v4167
      %4216 = vst [vmem:[%s170 + $0xbc] sm:$0xf] %v4168
      %p4217 = scmp.lt.s32.totalorder %s14, 1
      %s4218 = scalar_select %p4217, %s14, 1
      %s4219 = smul.addr %s4218, 48
      %s4220 = smul.addr %s4219, 4
      %s4221 = scalar_lea.vmem %s3, %s4220
      // Predicated region
      $region33: #{fpn_forward.12} parent=31 // pred_check
        %p4222 = pneg %p100
      $region34: #{fpn_forward.12} parent=31 // pred_check_branch
        %4224 = sbr.rel (%p4222) target = $region36
      $region35: #{fpn_forward.12} parent=31 // pred_region
        _
      $region36: #{fpn_forward.12} parent=31 // pred_fallthru
        _
    $region32: #{fpn_forward.12} parent=5 // pred_fallthru
      _
    %p4225 = scmp.le.s32.totalorder 2, %s9
    // Predicated region
    $region37: #{fpn_forward.12} parent=5 // pred_check
      %p4226 = pneg %p4225
    $region38: #{fpn_forward.12} parent=5 // pred_check_branch
      %4228 = sbr.rel (%p4226) target = $region40
    $region39: #{fpn_forward.12} parent=5 // pred_region
      %s4229 = ssub.s32 %s9, 2
      // Predicated region
      $region41: #{fpn_forward.12} parent=39 // pred_check
        %p4230 = pneg %p106
      $region42: #{fpn_forward.12} parent=39 // pred_check_branch
        %4232 = sbr.rel (%p4230) target = $region44
      $region43: #{fpn_forward.12} parent=39 // pred_region
        %p4233 = scmp.lt.s32.totalorder %s15, 1
        %s4234 = scalar_select %p4233, %s15, 1
        %s4235 = smul.addr %s4234, 48
        %s4236 = smul.addr %s4235, 4
        %s4237 = scalar_lea.vmem %s3, %s4236
      $region44: #{fpn_forward.12} parent=39 // pred_fallthru
        _
    $region40: #{fpn_forward.12} parent=5 // pred_fallthru
      _
  $region6: #{fpn_forward.12} parent=0 // loop_footer
    %s13 = sadd.s32 1, %s9
  $region7: #{fpn_forward.12} parent=0 // loop_footer_branch
    %8 = sbr.rel target = $region3
  $region8: #{fpn_forward.12} parent=0 // loop_exit
    _

</llo_original>
